<compile_context>
chip_gen: v5e
topology: v5e:2x2
jax: 0.10.0
libtpu: 0.0.40
codegen_flags: <defaults>
</compile_context>

<pallas_src>
from functools import partial

import jax
import jax.numpy as jnp
from jax.experimental import pallas as pl
from jax.experimental.pallas import tpu as pltpu


# ----------------------------------------------------------------------------
# Synthetic scaled-down EfficientNet-style backbone config
# ----------------------------------------------------------------------------
# (cin, cout, stride) for the 7 block groups (stand-in for B5's 7 stages)
BLOCK_CFG = [(8, 8, 1), (8, 16, 2), (16, 16, 1), (16, 24, 1),
             (24, 24, 1), (24, 32, 2), (32, 32, 1)]
STEM_OUT = 8
HEAD_OUT = 64
BN_EPS = 1e-3
TM_HEAD = 1024                      # head GEMM row tile (v5e feedback; v7x-safe)
VMEM_LIMIT = 32 * 1024 * 1024       # explicit scoped-VMEM limit (<= v7x physical)


def _chain_groups(cfg):
    """Group blocks into fusable chains: a chain starts at every stride-2
    block; all following stride-1 blocks are chained in the same kernel."""
    groups = []
    for i, (_, _, s) in enumerate(cfg):
        if i == 0 or s == 2:
            groups.append([i])
        else:
            groups[-1].append(i)
    return groups


CHAINS = _chain_groups(BLOCK_CFG)   # [[0], [1, 2, 3, 4], [5, 6]]


def _round_up(x, m):
    return (x + m - 1) // m * m


def _silu(v):
    # sigmoid = exp (EUP) + approximate reciprocal (EUP); no vector divide.
    return v * pl.reciprocal(1.0 + jnp.exp(-v), approx=True)


# ----------------------------------------------------------------------------
# In-kernel 3x3 tap construction (halo handled in VMEM, never in HBM)
# ----------------------------------------------------------------------------
def _taps_stride1(x3d, pbuf, ho, wo, c):
    """9 taps of a stride-1 3x3 conv (pad=1): stage the activation inside the
    zero-bordered VMEM scratch, then each tap is a unit-stride static slice."""
    pbuf[1:ho + 1, 1:wo + 1, 0:c] = x3d
    return [pbuf[ki:ki + ho, kj:kj + wo, 0:c]
            for ki in range(3) for kj in range(3)]


def _taps_from_phases(phases, pbuf, ho, wo, c):
    """9 taps of a stride-2 3x3 conv (pad=1) from the four even/odd row/col
    phase views of the *unpadded* input.  Each phase is staged once through
    the zero-bordered scratch so the +/-1 halo shifts are plain slices."""
    need = {}
    for ki in range(3):
        for kj in range(3):
            rp = 0 if ki == 1 else 1          # even rows only for ki == 1
            cp = 0 if kj == 1 else 1
            need.setdefault((rp, cp), []).append((ki, kj))
    taps = [None] * 9
    for (rp, cp), kks in need.items():
        pbuf[1:ho + 1, 1:wo + 1, 0:c] = phases[2 * rp + cp]
        for ki, kj in kks:
            r0 = 0 if ki == 0 else 1          # ki == 0 reads into the zero halo
            c0 = 0 if kj == 0 else 1
            taps[3 * ki + kj] = pbuf[r0:r0 + ho, c0:c0 + wo, 0:c]
    return taps


# ----------------------------------------------------------------------------
# Kernels
# ----------------------------------------------------------------------------
def _stem_kernel(pEE, pEO, pOE, pOO, w_ref, s_ref, b_ref,
                 conv_ref, bn_ref, act_ref, pbuf, patch, *, Ho, Wo, cin):
    # Fused conv_stem(3x3, s2) + bn1 + act1; one K = 9*cin MXU dot.
    pbuf[...] = jnp.zeros(pbuf.shape, pbuf.dtype)
    phases = [pEE[0], pEO[0], pOE[0], pOO[0]]
    taps = _taps_from_phases(phases, pbuf, Ho, Wo, cin)
    # in-VMEM im2col: a single (Ho*Wo, 9*cin) patch instead of nine tiny dots
    for k in range(9):
        patch[:, k * cin:(k + 1) * cin] = taps[k].reshape(Ho * Wo, cin)
    conv = jnp.dot(patch[...], w_ref[...], preferred_element_type=jnp.float32)
    conv_ref[0] = conv
    bn = conv * s_ref[...] + b_ref[...]
    bn_ref[0] = bn
    act_ref[0] = _silu(bn)


def _mbconv_chain_kernel(*refs, first_stride, Ho, Wo, nb):
    # Chain of nb MBConv-style blocks (dw3x3+BN+SiLU + 1x1+BN+SiLU); the
    # first block may be stride 2 (phase inputs), the rest are stride 1 and
    # consume the previous block's output directly from registers/VMEM.
    nin = 4 if first_stride == 2 else 1
    ins = refs[:nin]
    wrefs = refs[nin:nin + 4 * nb]
    outs = refs[nin + 4 * nb:nin + 5 * nb]
    pbuf = refs[nin + 5 * nb]

    pbuf[...] = jnp.zeros(pbuf.shape, pbuf.dtype)   # zero halo border once

    h3 = None
    for b in range(nb):
        dw_w = wrefs[4 * b][...]        # (9, C)     dw-BN scale pre-folded
        b1 = wrefs[4 * b + 1][...]      # (1, C)
        pw_w = wrefs[4 * b + 2][...]    # (C, Cout)  pw-BN scale pre-folded
        b2 = wrefs[4 * b + 3][...]      # (1, Cout)
        c = dw_w.shape[1]

        if b == 0 and first_stride == 2:
            taps = _taps_from_phases([r[0] for r in ins], pbuf, Ho, Wo, c)
        elif b == 0:
            taps = _taps_stride1(ins[0][0], pbuf, Ho, Wo, c)
        else:
            taps = _taps_stride1(h3, pbuf, Ho, Wo, c)

        # depthwise 3x3 (BN scale folded into the weights)
        acc = taps[0] * dw_w[0:1].reshape(1, 1, c)
        for k in range(1, 9):
            acc = acc + taps[k] * dw_w[k:k + 1].reshape(1, 1, c)
        h2 = _silu(acc.reshape(Ho * Wo, c) + b1)
        # pointwise 1x1 on the MXU + fused BN shift + SiLU
        y = _silu(jnp.dot(h2, pw_w, preferred_element_type=jnp.float32) + b2)
        outs[b][0] = y                               # feature writeback (only HBM touch)
        h3 = y.reshape(Ho, Wo, y.shape[-1])          # stays in VMEM for next block


def _head_kernel(a_ref, w_ref, s_ref, b_ref, conv_ref, bn_ref, act_ref):
    # Fused conv_head(1x1) + bn2 + act2 as a row-tiled GEMM epilogue.
    conv = jnp.dot(a_ref[...], w_ref[...], preferred_element_type=jnp.float32)
    conv_ref[...] = conv
    bn = conv * s_ref[...] + b_ref[...]
    bn_ref[...] = bn
    act_ref[...] = _silu(bn)


# ----------------------------------------------------------------------------
# Wrappers (grid / BlockSpec plumbing)
# ----------------------------------------------------------------------------
def _mosaic_params():
    return pltpu.CompilerParams(dimension_semantics=("parallel",),
                                vmem_limit_bytes=VMEM_LIMIT)


def stem_forward(x_nhwc, pp):
    n, h, w, cin = x_nhwc.shape
    assert h % 2 == 0 and w % 2 == 0
    ho, wo = h // 2, w // 2
    # TODO(synk): these stride-2 phase views are still built by XLA; fold them
    # into the kernel with strided pl.ds reads to drop the last extra copy.
    phases = [x_nhwc[:, p::2, q::2, :] for p in range(2) for q in range(2)]
    phase_spec = pl.BlockSpec((1, ho, wo, cin), lambda i: (i, 0, 0, 0))
    out_sds = jax.ShapeDtypeStruct((n, ho * wo, STEM_OUT), jnp.float32)
    return pl.pallas_call(
        partial(_stem_kernel, Ho=ho, Wo=wo, cin=cin),
        out_shape=(out_sds,) * 3,
        grid=(n,),
        in_specs=[phase_spec] * 4 + [
            pl.BlockSpec((9 * cin, STEM_OUT), lambda i: (0, 0)),
            pl.BlockSpec((1, STEM_OUT), lambda i: (0, 0)),
            pl.BlockSpec((1, STEM_OUT), lambda i: (0, 0))],
        out_specs=tuple(
            pl.BlockSpec((1, ho * wo, STEM_OUT), lambda i: (i, 0, 0))
            for _ in range(3)),
        scratch_shapes=[pltpu.VMEM((ho + 2, wo + 2, cin), jnp.float32),
                        pltpu.VMEM((ho * wo, 9 * cin), jnp.float32)],
        compiler_params=_mosaic_params(),
    )(*phases, pp["stem_w"], pp["stem_s"], pp["stem_b"])


def mbconv_chain_forward(x_nhwc, block_params, first_stride):
    """One fused pallas_call for a chain of MBConv blocks; returns one
    (N, Ho*Wo, Cout) feature per block plus the new spatial size."""
    n, h, w, cin = x_nhwc.shape
    nb = len(block_params)
    if first_stride == 2:
        assert h % 2 == 0 and w % 2 == 0
        ho, wo = h // 2, w // 2
        # TODO(synk): move this phase split in-kernel (strided pl.ds reads).
        inputs = [x_nhwc[:, p::2, q::2, :] for p in range(2) for q in range(2)]
        in_specs = [pl.BlockSpec((1, ho, wo, cin), lambda i: (i, 0, 0, 0))] * 4
    else:
        ho, wo = h, w
        inputs = [x_nhwc]
        in_specs = [pl.BlockSpec((1, h, w, cin), lambda i: (i, 0, 0, 0))]

    cmax = max(bp["pw_w"].shape[0] for bp in block_params)
    out_shapes, out_specs = [], []
    for bp in block_params:
        cout = bp["pw_w"].shape[1]
        out_shapes.append(jax.ShapeDtypeStruct((n, ho * wo, cout), jnp.float32))
        out_specs.append(pl.BlockSpec((1, ho * wo, cout), lambda i: (i, 0, 0)))
        for name in ("dw_w", "b1", "pw_w", "b2"):
            inputs.append(bp[name])
            in_specs.append(pl.BlockSpec(bp[name].shape, lambda i: (0, 0)))

    outs = pl.pallas_call(
        partial(_mbconv_chain_kernel, first_stride=first_stride,
                Ho=ho, Wo=wo, nb=nb),
        out_shape=tuple(out_shapes),
        grid=(n,),
        in_specs=in_specs,
        out_specs=tuple(out_specs),
        scratch_shapes=[pltpu.VMEM((ho + 2, wo + 2, cmax), jnp.float32)],
        compiler_params=_mosaic_params(),
    )(*inputs)
    if not isinstance(outs, (list, tuple)):
        outs = (outs,)
    return list(outs), ho, wo


def head_forward(a, pp):
    m, c = a.shape
    tm = min(TM_HEAD, _round_up(m, 8))
    mp = _round_up(m, tm)
    if mp != m:
        a = jnp.pad(a, ((0, mp - m), (0, 0)))
    out_sds = jax.ShapeDtypeStruct((mp, HEAD_OUT), jnp.float32)
    conv, bn, act = pl.pallas_call(
        _head_kernel,
        out_shape=(out_sds,) * 3,
        grid=(mp // tm,),
        in_specs=[pl.BlockSpec((tm, c), lambda i: (i, 0)),
                  pl.BlockSpec((c, HEAD_OUT), lambda i: (0, 0)),
                  pl.BlockSpec((1, HEAD_OUT), lambda i: (0, 0)),
                  pl.BlockSpec((1, HEAD_OUT), lambda i: (0, 0))],
        out_specs=tuple(pl.BlockSpec((tm, HEAD_OUT), lambda i: (i, 0))
                        for _ in range(3)),
        compiler_params=_mosaic_params(),
    )(a, pp["head_w"], pp["head_s"], pp["head_b"])
    return conv[:m], bn[:m], act[:m]


# ----------------------------------------------------------------------------
# Parameters (original shapes) and their BN-folded kernel layout
# ----------------------------------------------------------------------------
def make_params(key):
    keys = iter(jax.random.split(key, 128))

    def w_init(shape, fan_in):
        return jax.random.normal(next(keys), shape, jnp.float32) / jnp.sqrt(
            jnp.float32(fan_in))

    def bn_init(c):
        g = 1.0 + 0.1 * jax.random.normal(next(keys), (c,), jnp.float32)
        b = 0.1 * jax.random.normal(next(keys), (c,), jnp.float32)
        m = 0.05 * jax.random.normal(next(keys), (c,), jnp.float32)
        v = 1.0 + 0.1 * jax.random.uniform(next(keys), (c,), jnp.float32)
        return (g, b, m, v)

    params = {
        "conv_stem": w_init((3, 3, 3, STEM_OUT), 27),
        "bn1": bn_init(STEM_OUT),
        "blocks": [],
        "conv_head": w_init((BLOCK_CFG[-1][1], HEAD_OUT), BLOCK_CFG[-1][1]),
        "bn2": bn_init(HEAD_OUT),
    }
    for cin, cout, _ in BLOCK_CFG:
        params["blocks"].append({
            "dw_w": w_init((3, 3, cin), 9),
            "bn_dw": bn_init(cin),
            "pw_w": w_init((cin, cout), cin),
            "bn_pw": bn_init(cout),
        })
    return params


def _fold_bn(bn):
    g, b, m, v = bn
    scale = g * jax.lax.rsqrt(v + BN_EPS)
    shift = b - m * scale
    return scale, shift


def prep_params(params):
    stem_s, stem_b = _fold_bn(params["bn1"])
    head_s, head_b = _fold_bn(params["bn2"])
    pp = {
        "stem_w": params["conv_stem"].reshape(27, STEM_OUT),
        "stem_s": stem_s.reshape(1, -1), "stem_b": stem_b.reshape(1, -1),
        "head_w": params["conv_head"],
        "head_s": head_s.reshape(1, -1), "head_b": head_b.reshape(1, -1),
        "blocks": [],
    }
    for bp in params["blocks"]:
        s1, b1 = _fold_bn(bp["bn_dw"])
        s2, b2 = _fold_bn(bp["bn_pw"])
        pp["blocks"].append({
            "dw_w": bp["dw_w"].reshape(9, -1) * s1[None, :],   # dw-BN scale folded
            "b1": b1.reshape(1, -1),
            "pw_w": bp["pw_w"] * s2[None, :],                  # pw-BN scale folded
            "b2": b2.reshape(1, -1),
        })
    return pp


# ----------------------------------------------------------------------------
# Forward pass (mirrors Encoder.forward feature collection)
# ----------------------------------------------------------------------------
def _to_nchw(t_flat, h, w):
    n, _, c = t_flat.shape
    return jnp.transpose(t_flat.reshape(n, h, w, c), (0, 3, 1, 2))


def encoder_forward(pp, x_nchw):
    n = x_nchw.shape[0]
    features = [x_nchw]                                  # features = [x]
    x = jnp.transpose(x_nchw, (0, 2, 3, 1))              # NCHW -> NHWC

    conv, bn, act = stem_forward(x, pp)                  # conv_stem, bn1, act1
    h, w = x.shape[1] // 2, x.shape[2] // 2
    features += [_to_nchw(conv, h, w), _to_nchw(bn, h, w), _to_nchw(act, h, w)]

    cur = act                                            # (n, h*w, c)
    ccur = STEM_OUT
    for chain in CHAINS:                                 # blocks[0..6]
        stride = BLOCK_CFG[chain[0]][2]
        block_params = [pp["blocks"][b] for b in chain]
        cur4 = cur.reshape(n, h, w, ccur)
        outs, h, w = mbconv_chain_forward(cur4, block_params, stride)
        for o in outs:
            features.append(_to_nchw(o, h, w))
        cur = outs[-1]
        ccur = BLOCK_CFG[chain[-1]][1]

    a = cur.reshape(n * h * w, ccur)
    conv, bn, act = head_forward(a, pp)                  # conv_head, bn2, act2
    features += [_to_nchw(conv.reshape(n, h * w, HEAD_OUT), h, w),
                 _to_nchw(bn.reshape(n, h * w, HEAD_OUT), h, w),
                 _to_nchw(act.reshape(n, h * w, HEAD_OUT), h, w)]

    features.append(features[-1])                        # global_pool = Identity
    features.append(features[-1])                        # classifier  = Identity
    return features


# ----------------------------------------------------------------------------
# Pure-XLA reference (no Pallas), used only for the in-script self-check
# ----------------------------------------------------------------------------
def reference_forward(params, x_nchw):
    hi = jax.lax.Precision.HIGHEST
    nchw = lambda t: jnp.transpose(t, (0, 3, 1, 2))
    silu = lambda t: t * jax.nn.sigmoid(t)

    def bnorm(t, bn):
        g, b, m, v = bn
        return (t - m) * (g * jax.lax.rsqrt(v + BN_EPS)) + b

    def conv3(t, w, stride, groups=1):
        return jax.lax.conv_general_dilated(
            t, w, (stride, stride), ((1, 1), (1, 1)),
            dimension_numbers=("NHWC", "HWIO", "NHWC"),
            feature_group_count=groups, precision=hi)

    feats = [x_nchw]
    h = jnp.transpose(x_nchw, (0, 2, 3, 1))
    h = conv3(h, params["conv_stem"], 2); feats.append(nchw(h))
    h = bnorm(h, params["bn1"]); feats.append(nchw(h))
    h = silu(h); feats.append(nchw(h))
    for bp, (cin, cout, stride) in zip(params["blocks"], BLOCK_CFG):
        h = conv3(h, bp["dw_w"].reshape(3, 3, 1, cin), stride, groups=cin)
        h = silu(bnorm(h, bp["bn_dw"]))
        h = jnp.tensordot(h, bp["pw_w"], axes=[[3], [0]], precision=hi)
        h = silu(bnorm(h, bp["bn_pw"]))
        feats.append(nchw(h))
    h = jnp.tensordot(h, params["conv_head"], axes=[[3], [0]], precision=hi)
    feats.append(nchw(h))
    h = bnorm(h, params["bn2"]); feats.append(nchw(h))
    h = silu(h); feats.append(nchw(h))
    feats.append(feats[-1]); feats.append(feats[-1])
    return feats


# ----------------------------------------------------------------------------
if __name__ == "__main__":
    key = jax.random.PRNGKey(0)
    pkey, xkey = jax.random.split(key)
    params = make_params(pkey)
    pp = prep_params(params)

    # small deterministic NCHW input (batch=2, rgb, 16x16)
    x = jax.random.normal(xkey, (2, 3, 16, 16), jnp.float32)

    feats = jax.jit(encoder_forward)(pp, x)
    feats = [jax.block_until_ready(f) for f in feats]

    # same topology as the reference forward (16 features) and the fused
    # Pallas path matches the pure-XLA formulation.
    assert len(feats) == 1 + 3 + len(BLOCK_CFG) + 3 + 2
    ref = reference_forward(params, x)
    for i, (a, b) in enumerate(zip(feats, ref)):
        assert a.shape == b.shape, (i, a.shape, b.shape)
        assert jnp.allclose(a, b, atol=2e-2, rtol=2e-2), (
            i, float(jnp.max(jnp.abs(a - b))))
    print("KERNEL_OK")
</pallas_src>

<mosaic_0001>
module attributes {stable_mosaic.version = 11 : i64} {
  func.func @_stem_kernel(%arg0: i32, %arg1: memref<1x8x8x3xf32, #tpu.memory_space<vmem>>, %arg2: memref<1x8x8x3xf32, #tpu.memory_space<vmem>>, %arg3: memref<1x8x8x3xf32, #tpu.memory_space<vmem>>, %arg4: memref<1x8x8x3xf32, #tpu.memory_space<vmem>>, %arg5: memref<27x8xf32, #tpu.memory_space<vmem>>, %arg6: memref<1x8xf32, #tpu.memory_space<vmem>>, %arg7: memref<1x8xf32, #tpu.memory_space<vmem>>, %arg8: memref<1x64x8xf32, #tpu.memory_space<vmem>>, %arg9: memref<1x64x8xf32, #tpu.memory_space<vmem>>, %arg10: memref<1x64x8xf32, #tpu.memory_space<vmem>>, %arg11: memref<10x10x3xf32, #tpu.memory_space<vmem>>, %arg12: memref<64x27xf32, #tpu.memory_space<vmem>>) attributes {dimension_semantics = [#tpu.dimension_semantics<parallel>], iteration_bounds = array<i64: 2>, scalar_prefetch = 0 : i64, scratch_operands = 2 : i64, tpu.core_type = #tpu.core_type<tc>, window_params = [{transform_indices = @transform_0, window_bounds = array<i64: 1, 8, 8, 3>}, {transform_indices = @transform_1, window_bounds = array<i64: 1, 8, 8, 3>}, {transform_indices = @transform_2, window_bounds = array<i64: 1, 8, 8, 3>}, {transform_indices = @transform_3, window_bounds = array<i64: 1, 8, 8, 3>}, {pipeline_mode = #tpu.pipeline_mode<synchronous>, transform_indices = @transform_4, window_bounds = array<i64: 27, 8>}, {pipeline_mode = #tpu.pipeline_mode<synchronous>, transform_indices = @transform_5, window_bounds = array<i64: 1, 8>}, {pipeline_mode = #tpu.pipeline_mode<synchronous>, transform_indices = @transform_6, window_bounds = array<i64: 1, 8>}, {transform_indices = @transform_7, window_bounds = array<i64: 1, 64, 8>}, {transform_indices = @transform_8, window_bounds = array<i64: 1, 64, 8>}, {transform_indices = @transform_9, window_bounds = array<i64: 1, 64, 8>}]} {
    %cst = arith.constant 0.000000e+00 : f32
    %0 = vector.broadcast %cst : f32 to vector<10x10x3xf32>
    %c0 = arith.constant 0 : index
    %c0_0 = arith.constant 0 : index
    %c0_1 = arith.constant 0 : index
    %1 = vector.load %arg11[%c0, %c0_0, %c0_1] : memref<10x10x3xf32, #tpu.memory_space<vmem>>, vector<10x10x3xf32>
    tpu.vector_store %arg11[%c0, %c0_0, %c0_1], %0 {strides = array<i32>} : memref<10x10x3xf32, #tpu.memory_space<vmem>>, vector<10x10x3xf32>,
    %c0_2 = arith.constant 0 : index
    %c0_3 = arith.constant 0 : index
    %c0_4 = arith.constant 0 : index
    %c0_5 = arith.constant 0 : index
    %2 = vector.load %arg1[%c0_2, %c0_3, %c0_4, %c0_5] : memref<1x8x8x3xf32, #tpu.memory_space<vmem>>, vector<1x8x8x3xf32>
    %3 = vector.shape_cast %2 : vector<1x8x8x3xf32> to vector<8x8x3xf32>
    %c0_6 = arith.constant 0 : index
    %c0_7 = arith.constant 0 : index
    %c0_8 = arith.constant 0 : index
    %c0_9 = arith.constant 0 : index
    %4 = vector.load %arg2[%c0_6, %c0_7, %c0_8, %c0_9] : memref<1x8x8x3xf32, #tpu.memory_space<vmem>>, vector<1x8x8x3xf32>
    %5 = vector.shape_cast %4 : vector<1x8x8x3xf32> to vector<8x8x3xf32>
    %c0_10 = arith.constant 0 : index
    %c0_11 = arith.constant 0 : index
    %c0_12 = arith.constant 0 : index
    %c0_13 = arith.constant 0 : index
    %6 = vector.load %arg3[%c0_10, %c0_11, %c0_12, %c0_13] : memref<1x8x8x3xf32, #tpu.memory_space<vmem>>, vector<1x8x8x3xf32>
    %7 = vector.shape_cast %6 : vector<1x8x8x3xf32> to vector<8x8x3xf32>
    %c0_14 = arith.constant 0 : index
    %c0_15 = arith.constant 0 : index
    %c0_16 = arith.constant 0 : index
    %c0_17 = arith.constant 0 : index
    %8 = vector.load %arg4[%c0_14, %c0_15, %c0_16, %c0_17] : memref<1x8x8x3xf32, #tpu.memory_space<vmem>>, vector<1x8x8x3xf32>
    %9 = vector.shape_cast %8 : vector<1x8x8x3xf32> to vector<8x8x3xf32>
    %c1 = arith.constant 1 : index
    %c1_18 = arith.constant 1 : index
    %c0_19 = arith.constant 0 : index
    %10 = vector.load %arg11[%c1, %c1_18, %c0_19] : memref<10x10x3xf32, #tpu.memory_space<vmem>>, vector<8x8x3xf32>
    tpu.vector_store %arg11[%c1, %c1_18, %c0_19], %9 {strides = array<i32>} : memref<10x10x3xf32, #tpu.memory_space<vmem>>, vector<8x8x3xf32>,
    %c0_20 = arith.constant 0 : index
    %c0_21 = arith.constant 0 : index
    %c0_22 = arith.constant 0 : index
    %11 = vector.load %arg11[%c0_20, %c0_21, %c0_22] : memref<10x10x3xf32, #tpu.memory_space<vmem>>, vector<8x8x3xf32>
    %c0_23 = arith.constant 0 : index
    %c1_24 = arith.constant 1 : index
    %c0_25 = arith.constant 0 : index
    %12 = vector.load %arg11[%c0_23, %c1_24, %c0_25] : memref<10x10x3xf32, #tpu.memory_space<vmem>>, vector<8x8x3xf32>
    %c1_26 = arith.constant 1 : index
    %c0_27 = arith.constant 0 : index
    %c0_28 = arith.constant 0 : index
    %13 = vector.load %arg11[%c1_26, %c0_27, %c0_28] : memref<10x10x3xf32, #tpu.memory_space<vmem>>, vector<8x8x3xf32>
    %c1_29 = arith.constant 1 : index
    %c1_30 = arith.constant 1 : index
    %c0_31 = arith.constant 0 : index
    %14 = vector.load %arg11[%c1_29, %c1_30, %c0_31] : memref<10x10x3xf32, #tpu.memory_space<vmem>>, vector<8x8x3xf32>
    %c1_32 = arith.constant 1 : index
    %c1_33 = arith.constant 1 : index
    %c0_34 = arith.constant 0 : index
    %15 = vector.load %arg11[%c1_32, %c1_33, %c0_34] : memref<10x10x3xf32, #tpu.memory_space<vmem>>, vector<8x8x3xf32>
    tpu.vector_store %arg11[%c1_32, %c1_33, %c0_34], %7 {strides = array<i32>} : memref<10x10x3xf32, #tpu.memory_space<vmem>>, vector<8x8x3xf32>,
    %c0_35 = arith.constant 0 : index
    %c1_36 = arith.constant 1 : index
    %c0_37 = arith.constant 0 : index
    %16 = vector.load %arg11[%c0_35, %c1_36, %c0_37] : memref<10x10x3xf32, #tpu.memory_space<vmem>>, vector<8x8x3xf32>
    %c1_38 = arith.constant 1 : index
    %c1_39 = arith.constant 1 : index
    %c0_40 = arith.constant 0 : index
    %17 = vector.load %arg11[%c1_38, %c1_39, %c0_40] : memref<10x10x3xf32, #tpu.memory_space<vmem>>, vector<8x8x3xf32>
    %c1_41 = arith.constant 1 : index
    %c1_42 = arith.constant 1 : index
    %c0_43 = arith.constant 0 : index
    %18 = vector.load %arg11[%c1_41, %c1_42, %c0_43] : memref<10x10x3xf32, #tpu.memory_space<vmem>>, vector<8x8x3xf32>
    tpu.vector_store %arg11[%c1_41, %c1_42, %c0_43], %5 {strides = array<i32>} : memref<10x10x3xf32, #tpu.memory_space<vmem>>, vector<8x8x3xf32>,
    %c1_44 = arith.constant 1 : index
    %c0_45 = arith.constant 0 : index
    %c0_46 = arith.constant 0 : index
    %19 = vector.load %arg11[%c1_44, %c0_45, %c0_46] : memref<10x10x3xf32, #tpu.memory_space<vmem>>, vector<8x8x3xf32>
    %c1_47 = arith.constant 1 : index
    %c1_48 = arith.constant 1 : index
    %c0_49 = arith.constant 0 : index
    %20 = vector.load %arg11[%c1_47, %c1_48, %c0_49] : memref<10x10x3xf32, #tpu.memory_space<vmem>>, vector<8x8x3xf32>
    %c1_50 = arith.constant 1 : index
    %c1_51 = arith.constant 1 : index
    %c0_52 = arith.constant 0 : index
    %21 = vector.load %arg11[%c1_50, %c1_51, %c0_52] : memref<10x10x3xf32, #tpu.memory_space<vmem>>, vector<8x8x3xf32>
    tpu.vector_store %arg11[%c1_50, %c1_51, %c0_52], %3 {strides = array<i32>} : memref<10x10x3xf32, #tpu.memory_space<vmem>>, vector<8x8x3xf32>,
    %c1_53 = arith.constant 1 : index
    %c1_54 = arith.constant 1 : index
    %c0_55 = arith.constant 0 : index
    %22 = vector.load %arg11[%c1_53, %c1_54, %c0_55] : memref<10x10x3xf32, #tpu.memory_space<vmem>>, vector<8x8x3xf32>
    %23 = vector.shape_cast %11 : vector<8x8x3xf32> to vector<64x3xf32>
    %c0_56 = arith.constant 0 : index
    %c0_57 = arith.constant 0 : index
    %24 = vector.load %arg12[%c0_56, %c0_57] : memref<64x27xf32, #tpu.memory_space<vmem>>, vector<64x3xf32>
    tpu.vector_store %arg12[%c0_56, %c0_57], %23 {strides = array<i32>} : memref<64x27xf32, #tpu.memory_space<vmem>>, vector<64x3xf32>,
    %25 = vector.shape_cast %16 : vector<8x8x3xf32> to vector<64x3xf32>
    %c0_58 = arith.constant 0 : index
    %c3 = arith.constant 3 : index
    %26 = vector.load %arg12[%c0_58, %c3] : memref<64x27xf32, #tpu.memory_space<vmem>>, vector<64x3xf32>
    tpu.vector_store %arg12[%c0_58, %c3], %25 {strides = array<i32>} : memref<64x27xf32, #tpu.memory_space<vmem>>, vector<64x3xf32>,
    %27 = vector.shape_cast %12 : vector<8x8x3xf32> to vector<64x3xf32>
    %c0_59 = arith.constant 0 : index
    %c6 = arith.constant 6 : index
    %28 = vector.load %arg12[%c0_59, %c6] : memref<64x27xf32, #tpu.memory_space<vmem>>, vector<64x3xf32>
    tpu.vector_store %arg12[%c0_59, %c6], %27 {strides = array<i32>} : memref<64x27xf32, #tpu.memory_space<vmem>>, vector<64x3xf32>,
    %29 = vector.shape_cast %19 : vector<8x8x3xf32> to vector<64x3xf32>
    %c0_60 = arith.constant 0 : index
    %c9 = arith.constant 9 : index
    %30 = vector.load %arg12[%c0_60, %c9] : memref<64x27xf32, #tpu.memory_space<vmem>>, vector<64x3xf32>
    tpu.vector_store %arg12[%c0_60, %c9], %29 {strides = array<i32>} : memref<64x27xf32, #tpu.memory_space<vmem>>, vector<64x3xf32>,
    %31 = vector.shape_cast %22 : vector<8x8x3xf32> to vector<64x3xf32>
    %c0_61 = arith.constant 0 : index
    %c12 = arith.constant 12 : index
    %32 = vector.load %arg12[%c0_61, %c12] : memref<64x27xf32, #tpu.memory_space<vmem>>, vector<64x3xf32>
    tpu.vector_store %arg12[%c0_61, %c12], %31 {strides = array<i32>} : memref<64x27xf32, #tpu.memory_space<vmem>>, vector<64x3xf32>,
    %33 = vector.shape_cast %20 : vector<8x8x3xf32> to vector<64x3xf32>
    %c0_62 = arith.constant 0 : index
    %c15 = arith.constant 15 : index
    %34 = vector.load %arg12[%c0_62, %c15] : memref<64x27xf32, #tpu.memory_space<vmem>>, vector<64x3xf32>
    tpu.vector_store %arg12[%c0_62, %c15], %33 {strides = array<i32>} : memref<64x27xf32, #tpu.memory_space<vmem>>, vector<64x3xf32>,
    %35 = vector.shape_cast %13 : vector<8x8x3xf32> to vector<64x3xf32>
    %c0_63 = arith.constant 0 : index
    %c18 = arith.constant 18 : index
    %36 = vector.load %arg12[%c0_63, %c18] : memref<64x27xf32, #tpu.memory_space<vmem>>, vector<64x3xf32>
    tpu.vector_store %arg12[%c0_63, %c18], %35 {strides = array<i32>} : memref<64x27xf32, #tpu.memory_space<vmem>>, vector<64x3xf32>,
    %37 = vector.shape_cast %17 : vector<8x8x3xf32> to vector<64x3xf32>
    %c0_64 = arith.constant 0 : index
    %c21 = arith.constant 21 : index
    %38 = vector.load %arg12[%c0_64, %c21] : memref<64x27xf32, #tpu.memory_space<vmem>>, vector<64x3xf32>
    tpu.vector_store %arg12[%c0_64, %c21], %37 {strides = array<i32>} : memref<64x27xf32, #tpu.memory_space<vmem>>, vector<64x3xf32>,
    %39 = vector.shape_cast %14 : vector<8x8x3xf32> to vector<64x3xf32>
    %c0_65 = arith.constant 0 : index
    %c24 = arith.constant 24 : index
    %40 = vector.load %arg12[%c0_65, %c24] : memref<64x27xf32, #tpu.memory_space<vmem>>, vector<64x3xf32>
    tpu.vector_store %arg12[%c0_65, %c24], %39 {strides = array<i32>} : memref<64x27xf32, #tpu.memory_space<vmem>>, vector<64x3xf32>,
    %c0_66 = arith.constant 0 : index
    %c0_67 = arith.constant 0 : index
    %41 = vector.load %arg12[%c0_66, %c0_67] : memref<64x27xf32, #tpu.memory_space<vmem>>, vector<64x27xf32>
    %c0_68 = arith.constant 0 : index
    %c0_69 = arith.constant 0 : index
    %42 = vector.load %arg5[%c0_68, %c0_69] : memref<27x8xf32, #tpu.memory_space<vmem>>, vector<27x8xf32>
    %cst_70 = arith.constant dense<0.000000e+00> : vector<64x8xf32>
    %43 = tpu.matmul %41, %42, %cst_70 {dimension_numbers = #tpu.dot_dimension_numbers<[1], [0], [0], [1], [0, 0, 1, 1], [], []>} : vector<64x27xf32>, vector<27x8xf32>, vector<64x8xf32> -> vector<64x8xf32>
    %c0_71 = arith.constant 0 : index
    %c0_72 = arith.constant 0 : index
    %c0_73 = arith.constant 0 : index
    %44 = vector.load %arg8[%c0_71, %c0_72, %c0_73] : memref<1x64x8xf32, #tpu.memory_space<vmem>>, vector<1x64x8xf32>
    %45 = vector.shape_cast %44 : vector<1x64x8xf32> to vector<64x8xf32>
    %46 = vector.shape_cast %43 : vector<64x8xf32> to vector<1x64x8xf32>
    tpu.vector_store %arg8[%c0_71, %c0_72, %c0_73], %46 {strides = array<i32>} : memref<1x64x8xf32, #tpu.memory_space<vmem>>, vector<1x64x8xf32>,
    %c0_74 = arith.constant 0 : index
    %c0_75 = arith.constant 0 : index
    %47 = vector.load %arg6[%c0_74, %c0_75] : memref<1x8xf32, #tpu.memory_space<vmem>>, vector<1x8xf32>
    %48 = vector.broadcast %47 : vector<1x8xf32> to vector<64x8xf32>
    %49 = arith.mulf %43, %48 : vector<64x8xf32>
    %c0_76 = arith.constant 0 : index
    %c0_77 = arith.constant 0 : index
    %50 = vector.load %arg7[%c0_76, %c0_77] : memref<1x8xf32, #tpu.memory_space<vmem>>, vector<1x8xf32>
    %51 = vector.broadcast %50 : vector<1x8xf32> to vector<64x8xf32>
    %52 = arith.addf %49, %51 : vector<64x8xf32>
    %c0_78 = arith.constant 0 : index
    %c0_79 = arith.constant 0 : index
    %c0_80 = arith.constant 0 : index
    %53 = vector.load %arg9[%c0_78, %c0_79, %c0_80] : memref<1x64x8xf32, #tpu.memory_space<vmem>>, vector<1x64x8xf32>
    %54 = vector.shape_cast %53 : vector<1x64x8xf32> to vector<64x8xf32>
    %55 = vector.shape_cast %52 : vector<64x8xf32> to vector<1x64x8xf32>
    tpu.vector_store %arg9[%c0_78, %c0_79, %c0_80], %55 {strides = array<i32>} : memref<1x64x8xf32, #tpu.memory_space<vmem>>, vector<1x64x8xf32>,
    %cst_81 = arith.constant 0.000000e+00 : f32
    %56 = vector.broadcast %cst_81 : f32 to vector<64x8xf32>
    %57 = arith.subf %56, %52 : vector<64x8xf32>
    %58 = math.exp %57 : vector<64x8xf32>
    %cst_82 = arith.constant 1.000000e+00 : f32
    %59 = vector.broadcast %cst_82 : f32 to vector<64x8xf32>
    %60 = arith.addf %59, %58 : vector<64x8xf32>
    %61 = tpu.reciprocal %60 {approx = true} : vector<64x8xf32> -> vector<64x8xf32>
    %62 = arith.mulf %52, %61 : vector<64x8xf32>
    %c0_83 = arith.constant 0 : index
    %c0_84 = arith.constant 0 : index
    %c0_85 = arith.constant 0 : index
    %63 = vector.load %arg10[%c0_83, %c0_84, %c0_85] : memref<1x64x8xf32, #tpu.memory_space<vmem>>, vector<1x64x8xf32>
    %64 = vector.shape_cast %63 : vector<1x64x8xf32> to vector<64x8xf32>
    %65 = vector.shape_cast %62 : vector<64x8xf32> to vector<1x64x8xf32>
    tpu.vector_store %arg10[%c0_83, %c0_84, %c0_85], %65 {strides = array<i32>} : memref<1x64x8xf32, #tpu.memory_space<vmem>>, vector<1x64x8xf32>,
    return
  }
  func.func @transform_0(%arg0: i32) -> (i32, i32, i32, i32) {
    %c0_i32 = arith.constant 0 : i32
    %c0_i32_0 = arith.constant 0 : i32
    %c0_i32_1 = arith.constant 0 : i32
    %c0_i32_2 = arith.constant 0 : i32
    return %arg0, %c0_i32, %c0_i32_0, %c0_i32_1 : i32, i32, i32, i32
  }
  func.func @transform_1(%arg0: i32) -> (i32, i32, i32, i32) {
    %c0_i32 = arith.constant 0 : i32
    %c0_i32_0 = arith.constant 0 : i32
    %c0_i32_1 = arith.constant 0 : i32
    %c0_i32_2 = arith.constant 0 : i32
    return %arg0, %c0_i32, %c0_i32_0, %c0_i32_1 : i32, i32, i32, i32
  }
  func.func @transform_2(%arg0: i32) -> (i32, i32, i32, i32) {
    %c0_i32 = arith.constant 0 : i32
    %c0_i32_0 = arith.constant 0 : i32
    %c0_i32_1 = arith.constant 0 : i32
    %c0_i32_2 = arith.constant 0 : i32
    return %arg0, %c0_i32, %c0_i32_0, %c0_i32_1 : i32, i32, i32, i32
  }
  func.func @transform_3(%arg0: i32) -> (i32, i32, i32, i32) {
    %c0_i32 = arith.constant 0 : i32
    %c0_i32_0 = arith.constant 0 : i32
    %c0_i32_1 = arith.constant 0 : i32
    %c0_i32_2 = arith.constant 0 : i32
    return %arg0, %c0_i32, %c0_i32_0, %c0_i32_1 : i32, i32, i32, i32
  }
  func.func @transform_4(%arg0: i32) -> (i32, i32) {
    %c0_i32 = arith.constant 0 : i32
    %c0_i32_0 = arith.constant 0 : i32
    %c0_i32_1 = arith.constant 0 : i32
    return %c0_i32, %c0_i32_0 : i32, i32
  }
  func.func @transform_5(%arg0: i32) -> (i32, i32) {
    %c0_i32 = arith.constant 0 : i32
    %c0_i32_0 = arith.constant 0 : i32
    %c0_i32_1 = arith.constant 0 : i32
    return %c0_i32, %c0_i32_0 : i32, i32
  }
  func.func @transform_6(%arg0: i32) -> (i32, i32) {
    %c0_i32 = arith.constant 0 : i32
    %c0_i32_0 = arith.constant 0 : i32
    %c0_i32_1 = arith.constant 0 : i32
    return %c0_i32, %c0_i32_0 : i32, i32
  }
  func.func @transform_7(%arg0: i32) -> (i32, i32, i32) {
    %c0_i32 = arith.constant 0 : i32
    %c0_i32_0 = arith.constant 0 : i32
    %c0_i32_1 = arith.constant 0 : i32
    return %arg0, %c0_i32, %c0_i32_0 : i32, i32, i32
  }
  func.func @transform_8(%arg0: i32) -> (i32, i32, i32) {
    %c0_i32 = arith.constant 0 : i32
    %c0_i32_0 = arith.constant 0 : i32
    %c0_i32_1 = arith.constant 0 : i32
    return %arg0, %c0_i32, %c0_i32_0 : i32, i32, i32
  }
  func.func @transform_9(%arg0: i32) -> (i32, i32, i32) {
    %c0_i32 = arith.constant 0 : i32
    %c0_i32_0 = arith.constant 0 : i32
    %c0_i32_1 = arith.constant 0 : i32
    return %arg0, %c0_i32, %c0_i32_0 : i32, i32, i32
  }
}

module attributes {stable_mosaic.version = 11 : i64} {
  func.func @_mbconv_chain_kernel(%arg0: i32, %arg1: memref<1x8x8x8xf32, #tpu.memory_space<vmem>>, %arg2: memref<9x8xf32, #tpu.memory_space<vmem>>, %arg3: memref<1x8xf32, #tpu.memory_space<vmem>>, %arg4: memref<8x8xf32, #tpu.memory_space<vmem>>, %arg5: memref<1x8xf32, #tpu.memory_space<vmem>>, %arg6: memref<1x64x8xf32, #tpu.memory_space<vmem>>, %arg7: memref<10x10x8xf32, #tpu.memory_space<vmem>>) attributes {dimension_semantics = [#tpu.dimension_semantics<parallel>], iteration_bounds = array<i64: 2>, scalar_prefetch = 0 : i64, scratch_operands = 1 : i64, tpu.core_type = #tpu.core_type<tc>, window_params = [{transform_indices = @transform_0, window_bounds = array<i64: 1, 8, 8, 8>}, {pipeline_mode = #tpu.pipeline_mode<synchronous>, transform_indices = @transform_1, window_bounds = array<i64: 9, 8>}, {pipeline_mode = #tpu.pipeline_mode<synchronous>, transform_indices = @transform_2, window_bounds = array<i64: 1, 8>}, {pipeline_mode = #tpu.pipeline_mode<synchronous>, transform_indices = @transform_3, window_bounds = array<i64: 8, 8>}, {pipeline_mode = #tpu.pipeline_mode<synchronous>, transform_indices = @transform_4, window_bounds = array<i64: 1, 8>}, {transform_indices = @transform_5, window_bounds = array<i64: 1, 64, 8>}]} {
    %cst = arith.constant 0.000000e+00 : f32
    %0 = vector.broadcast %cst : f32 to vector<10x10x8xf32>
    %c0 = arith.constant 0 : index
    %c0_0 = arith.constant 0 : index
    %c0_1 = arith.constant 0 : index
    %1 = vector.load %arg7[%c0, %c0_0, %c0_1] : memref<10x10x8xf32, #tpu.memory_space<vmem>>, vector<10x10x8xf32>
    tpu.vector_store %arg7[%c0, %c0_0, %c0_1], %0 {strides = array<i32>} : memref<10x10x8xf32, #tpu.memory_space<vmem>>, vector<10x10x8xf32>,
    %c0_2 = arith.constant 0 : index
    %c0_3 = arith.constant 0 : index
    %2 = vector.load %arg2[%c0_2, %c0_3] : memref<9x8xf32, #tpu.memory_space<vmem>>, vector<9x8xf32>
    %c0_4 = arith.constant 0 : index
    %c0_5 = arith.constant 0 : index
    %3 = vector.load %arg3[%c0_4, %c0_5] : memref<1x8xf32, #tpu.memory_space<vmem>>, vector<1x8xf32>
    %c0_6 = arith.constant 0 : index
    %c0_7 = arith.constant 0 : index
    %4 = vector.load %arg4[%c0_6, %c0_7] : memref<8x8xf32, #tpu.memory_space<vmem>>, vector<8x8xf32>
    %c0_8 = arith.constant 0 : index
    %c0_9 = arith.constant 0 : index
    %5 = vector.load %arg5[%c0_8, %c0_9] : memref<1x8xf32, #tpu.memory_space<vmem>>, vector<1x8xf32>
    %c0_10 = arith.constant 0 : index
    %c0_11 = arith.constant 0 : index
    %c0_12 = arith.constant 0 : index
    %c0_13 = arith.constant 0 : index
    %6 = vector.load %arg1[%c0_10, %c0_11, %c0_12, %c0_13] : memref<1x8x8x8xf32, #tpu.memory_space<vmem>>, vector<1x8x8x8xf32>
    %7 = vector.shape_cast %6 : vector<1x8x8x8xf32> to vector<8x8x8xf32>
    %c1 = arith.constant 1 : index
    %c1_14 = arith.constant 1 : index
    %c0_15 = arith.constant 0 : index
    %8 = vector.load %arg7[%c1, %c1_14, %c0_15] : memref<10x10x8xf32, #tpu.memory_space<vmem>>, vector<8x8x8xf32>
    tpu.vector_store %arg7[%c1, %c1_14, %c0_15], %7 {strides = array<i32>} : memref<10x10x8xf32, #tpu.memory_space<vmem>>, vector<8x8x8xf32>,
    %c0_16 = arith.constant 0 : index
    %c0_17 = arith.constant 0 : index
    %c0_18 = arith.constant 0 : index
    %9 = vector.load %arg7[%c0_16, %c0_17, %c0_18] : memref<10x10x8xf32, #tpu.memory_space<vmem>>, vector<8x8x8xf32>
    %c0_19 = arith.constant 0 : index
    %c1_20 = arith.constant 1 : index
    %c0_21 = arith.constant 0 : index
    %10 = vector.load %arg7[%c0_19, %c1_20, %c0_21] : memref<10x10x8xf32, #tpu.memory_space<vmem>>, vector<8x8x8xf32>
    %c0_22 = arith.constant 0 : index
    %c2 = arith.constant 2 : index
    %c0_23 = arith.constant 0 : index
    %11 = vector.load %arg7[%c0_22, %c2, %c0_23] : memref<10x10x8xf32, #tpu.memory_space<vmem>>, vector<8x8x8xf32>
    %c1_24 = arith.constant 1 : index
    %c0_25 = arith.constant 0 : index
    %c0_26 = arith.constant 0 : index
    %12 = vector.load %arg7[%c1_24, %c0_25, %c0_26] : memref<10x10x8xf32, #tpu.memory_space<vmem>>, vector<8x8x8xf32>
    %c1_27 = arith.constant 1 : index
    %c1_28 = arith.constant 1 : index
    %c0_29 = arith.constant 0 : index
    %13 = vector.load %arg7[%c1_27, %c1_28, %c0_29] : memref<10x10x8xf32, #tpu.memory_space<vmem>>, vector<8x8x8xf32>
    %c1_30 = arith.constant 1 : index
    %c2_31 = arith.constant 2 : index
    %c0_32 = arith.constant 0 : index
    %14 = vector.load %arg7[%c1_30, %c2_31, %c0_32] : memref<10x10x8xf32, #tpu.memory_space<vmem>>, vector<8x8x8xf32>
    %c2_33 = arith.constant 2 : index
    %c0_34 = arith.constant 0 : index
    %c0_35 = arith.constant 0 : index
    %15 = vector.load %arg7[%c2_33, %c0_34, %c0_35] : memref<10x10x8xf32, #tpu.memory_space<vmem>>, vector<8x8x8xf32>
    %c2_36 = arith.constant 2 : index
    %c1_37 = arith.constant 1 : index
    %c0_38 = arith.constant 0 : index
    %16 = vector.load %arg7[%c2_36, %c1_37, %c0_38] : memref<10x10x8xf32, #tpu.memory_space<vmem>>, vector<8x8x8xf32>
    %c2_39 = arith.constant 2 : index
    %c2_40 = arith.constant 2 : index
    %c0_41 = arith.constant 0 : index
    %17 = vector.load %arg7[%c2_39, %c2_40, %c0_41] : memref<10x10x8xf32, #tpu.memory_space<vmem>>, vector<8x8x8xf32>
    %18 = vector.extract_strided_slice %2 {offsets = [0, 0], sizes = [1, 8], strides = [1, 1]} : vector<9x8xf32> to vector<1x8xf32>
    %19 = vector.shape_cast %18 : vector<1x8xf32> to vector<1x1x8xf32>
    %20 = vector.broadcast %19 : vector<1x1x8xf32> to vector<8x8x8xf32>
    %21 = arith.mulf %9, %20 : vector<8x8x8xf32>
    %22 = vector.extract_strided_slice %2 {offsets = [1, 0], sizes = [1, 8], strides = [1, 1]} : vector<9x8xf32> to vector<1x8xf32>
    %23 = vector.shape_cast %22 : vector<1x8xf32> to vector<1x1x8xf32>
    %24 = vector.broadcast %23 : vector<1x1x8xf32> to vector<8x8x8xf32>
    %25 = arith.mulf %10, %24 : vector<8x8x8xf32>
    %26 = arith.addf %21, %25 : vector<8x8x8xf32>
    %27 = vector.extract_strided_slice %2 {offsets = [2, 0], sizes = [1, 8], strides = [1, 1]} : vector<9x8xf32> to vector<1x8xf32>
    %28 = vector.shape_cast %27 : vector<1x8xf32> to vector<1x1x8xf32>
    %29 = vector.broadcast %28 : vector<1x1x8xf32> to vector<8x8x8xf32>
    %30 = arith.mulf %11, %29 : vector<8x8x8xf32>
    %31 = arith.addf %26, %30 : vector<8x8x8xf32>
    %32 = vector.extract_strided_slice %2 {offsets = [3, 0], sizes = [1, 8], strides = [1, 1]} : vector<9x8xf32> to vector<1x8xf32>
    %33 = vector.shape_cast %32 : vector<1x8xf32> to vector<1x1x8xf32>
    %34 = vector.broadcast %33 : vector<1x1x8xf32> to vector<8x8x8xf32>
    %35 = arith.mulf %12, %34 : vector<8x8x8xf32>
    %36 = arith.addf %31, %35 : vector<8x8x8xf32>
    %37 = vector.extract_strided_slice %2 {offsets = [4, 0], sizes = [1, 8], strides = [1, 1]} : vector<9x8xf32> to vector<1x8xf32>
    %38 = vector.shape_cast %37 : vector<1x8xf32> to vector<1x1x8xf32>
    %39 = vector.broadcast %38 : vector<1x1x8xf32> to vector<8x8x8xf32>
    %40 = arith.mulf %13, %39 : vector<8x8x8xf32>
    %41 = arith.addf %36, %40 : vector<8x8x8xf32>
    %42 = vector.extract_strided_slice %2 {offsets = [5, 0], sizes = [1, 8], strides = [1, 1]} : vector<9x8xf32> to vector<1x8xf32>
    %43 = vector.shape_cast %42 : vector<1x8xf32> to vector<1x1x8xf32>
    %44 = vector.broadcast %43 : vector<1x1x8xf32> to vector<8x8x8xf32>
    %45 = arith.mulf %14, %44 : vector<8x8x8xf32>
    %46 = arith.addf %41, %45 : vector<8x8x8xf32>
    %47 = vector.extract_strided_slice %2 {offsets = [6, 0], sizes = [1, 8], strides = [1, 1]} : vector<9x8xf32> to vector<1x8xf32>
    %48 = vector.shape_cast %47 : vector<1x8xf32> to vector<1x1x8xf32>
    %49 = vector.broadcast %48 : vector<1x1x8xf32> to vector<8x8x8xf32>
    %50 = arith.mulf %15, %49 : vector<8x8x8xf32>
    %51 = arith.addf %46, %50 : vector<8x8x8xf32>
    %52 = vector.extract_strided_slice %2 {offsets = [7, 0], sizes = [1, 8], strides = [1, 1]} : vector<9x8xf32> to vector<1x8xf32>
    %53 = vector.shape_cast %52 : vector<1x8xf32> to vector<1x1x8xf32>
    %54 = vector.broadcast %53 : vector<1x1x8xf32> to vector<8x8x8xf32>
    %55 = arith.mulf %16, %54 : vector<8x8x8xf32>
    %56 = arith.addf %51, %55 : vector<8x8x8xf32>
    %57 = vector.extract_strided_slice %2 {offsets = [8, 0], sizes = [1, 8], strides = [1, 1]} : vector<9x8xf32> to vector<1x8xf32>
    %58 = vector.shape_cast %57 : vector<1x8xf32> to vector<1x1x8xf32>
    %59 = vector.broadcast %58 : vector<1x1x8xf32> to vector<8x8x8xf32>
    %60 = arith.mulf %17, %59 : vector<8x8x8xf32>
    %61 = arith.addf %56, %60 : vector<8x8x8xf32>
    %62 = vector.shape_cast %61 : vector<8x8x8xf32> to vector<64x8xf32>
    %63 = vector.broadcast %3 : vector<1x8xf32> to vector<64x8xf32>
    %64 = arith.addf %62, %63 : vector<64x8xf32>
    %cst_42 = arith.constant 0.000000e+00 : f32
    %65 = vector.broadcast %cst_42 : f32 to vector<64x8xf32>
    %66 = arith.subf %65, %64 : vector<64x8xf32>
    %67 = math.exp %66 : vector<64x8xf32>
    %cst_43 = arith.constant 1.000000e+00 : f32
    %68 = vector.broadcast %cst_43 : f32 to vector<64x8xf32>
    %69 = arith.addf %68, %67 : vector<64x8xf32>
    %70 = tpu.reciprocal %69 {approx = true} : vector<64x8xf32> -> vector<64x8xf32>
    %71 = arith.mulf %64, %70 : vector<64x8xf32>
    %cst_44 = arith.constant dense<0.000000e+00> : vector<64x8xf32>
    %72 = tpu.matmul %71, %4, %cst_44 {dimension_numbers = #tpu.dot_dimension_numbers<[1], [0], [0], [1], [0, 0, 1, 1], [], []>} : vector<64x8xf32>, vector<8x8xf32>, vector<64x8xf32> -> vector<64x8xf32>
    %73 = vector.broadcast %5 : vector<1x8xf32> to vector<64x8xf32>
    %74 = arith.addf %72, %73 : vector<64x8xf32>
    %cst_45 = arith.constant 0.000000e+00 : f32
    %75 = vector.broadcast %cst_45 : f32 to vector<64x8xf32>
    %76 = arith.subf %75, %74 : vector<64x8xf32>
    %77 = math.exp %76 : vector<64x8xf32>
    %cst_46 = arith.constant 1.000000e+00 : f32
    %78 = vector.broadcast %cst_46 : f32 to vector<64x8xf32>
    %79 = arith.addf %78, %77 : vector<64x8xf32>
    %80 = tpu.reciprocal %79 {approx = true} : vector<64x8xf32> -> vector<64x8xf32>
    %81 = arith.mulf %74, %80 : vector<64x8xf32>
    %c0_47 = arith.constant 0 : index
    %c0_48 = arith.constant 0 : index
    %c0_49 = arith.constant 0 : index
    %82 = vector.load %arg6[%c0_47, %c0_48, %c0_49] : memref<1x64x8xf32, #tpu.memory_space<vmem>>, vector<1x64x8xf32>
    %83 = vector.shape_cast %82 : vector<1x64x8xf32> to vector<64x8xf32>
    %84 = vector.shape_cast %81 : vector<64x8xf32> to vector<1x64x8xf32>
    tpu.vector_store %arg6[%c0_47, %c0_48, %c0_49], %84 {strides = array<i32>} : memref<1x64x8xf32, #tpu.memory_space<vmem>>, vector<1x64x8xf32>,
    return
  }
  func.func @transform_0(%arg0: i32) -> (i32, i32, i32, i32) {
    %c0_i32 = arith.constant 0 : i32
    %c0_i32_0 = arith.constant 0 : i32
    %c0_i32_1 = arith.constant 0 : i32
    %c0_i32_2 = arith.constant 0 : i32
    return %arg0, %c0_i32, %c0_i32_0, %c0_i32_1 : i32, i32, i32, i32
  }
  func.func @transform_1(%arg0: i32) -> (i32, i32) {
    %c0_i32 = arith.constant 0 : i32
    %c0_i32_0 = arith.constant 0 : i32
    %c0_i32_1 = arith.constant 0 : i32
    return %c0_i32, %c0_i32_0 : i32, i32
  }
  func.func @transform_2(%arg0: i32) -> (i32, i32) {
    %c0_i32 = arith.constant 0 : i32
    %c0_i32_0 = arith.constant 0 : i32
    %c0_i32_1 = arith.constant 0 : i32
    return %c0_i32, %c0_i32_0 : i32, i32
  }
  func.func @transform_3(%arg0: i32) -> (i32, i32) {
    %c0_i32 = arith.constant 0 : i32
    %c0_i32_0 = arith.constant 0 : i32
    %c0_i32_1 = arith.constant 0 : i32
    return %c0_i32, %c0_i32_0 : i32, i32
  }
  func.func @transform_4(%arg0: i32) -> (i32, i32) {
    %c0_i32 = arith.constant 0 : i32
    %c0_i32_0 = arith.constant 0 : i32
    %c0_i32_1 = arith.constant 0 : i32
    return %c0_i32, %c0_i32_0 : i32, i32
  }
  func.func @transform_5(%arg0: i32) -> (i32, i32, i32) {
    %c0_i32 = arith.constant 0 : i32
    %c0_i32_0 = arith.constant 0 : i32
    %c0_i32_1 = arith.constant 0 : i32
    return %arg0, %c0_i32, %c0_i32_0 : i32, i32, i32
  }
}

module attributes {stable_mosaic.version = 11 : i64} {
  func.func @_mbconv_chain_kernel(%arg0: i32, %arg1: memref<1x4x4x8xf32, #tpu.memory_space<vmem>>, %arg2: memref<1x4x4x8xf32, #tpu.memory_space<vmem>>, %arg3: memref<1x4x4x8xf32, #tpu.memory_space<vmem>>, %arg4: memref<1x4x4x8xf32, #tpu.memory_space<vmem>>, %arg5: memref<9x8xf32, #tpu.memory_space<vmem>>, %arg6: memref<1x8xf32, #tpu.memory_space<vmem>>, %arg7: memref<8x16xf32, #tpu.memory_space<vmem>>, %arg8: memref<1x16xf32, #tpu.memory_space<vmem>>, %arg9: memref<9x16xf32, #tpu.memory_space<vmem>>, %arg10: memref<1x16xf32, #tpu.memory_space<vmem>>, %arg11: memref<16x16xf32, #tpu.memory_space<vmem>>, %arg12: memref<1x16xf32, #tpu.memory_space<vmem>>, %arg13: memref<9x16xf32, #tpu.memory_space<vmem>>, %arg14: memref<1x16xf32, #tpu.memory_space<vmem>>, %arg15: memref<16x24xf32, #tpu.memory_space<vmem>>, %arg16: memref<1x24xf32, #tpu.memory_space<vmem>>, %arg17: memref<9x24xf32, #tpu.memory_space<vmem>>, %arg18: memref<1x24xf32, #tpu.memory_space<vmem>>, %arg19: memref<24x24xf32, #tpu.memory_space<vmem>>, %arg20: memref<1x24xf32, #tpu.memory_space<vmem>>, %arg21: memref<1x16x16xf32, #tpu.memory_space<vmem>>, %arg22: memref<1x16x16xf32, #tpu.memory_space<vmem>>, %arg23: memref<1x16x24xf32, #tpu.memory_space<vmem>>, %arg24: memref<1x16x24xf32, #tpu.memory_space<vmem>>, %arg25: memref<6x6x24xf32, #tpu.memory_space<vmem>>) attributes {dimension_semantics = [#tpu.dimension_semantics<parallel>], iteration_bounds = array<i64: 2>, scalar_prefetch = 0 : i64, scratch_operands = 1 : i64, tpu.core_type = #tpu.core_type<tc>, window_params = [{transform_indices = @transform_0, window_bounds = array<i64: 1, 4, 4, 8>}, {transform_indices = @transform_1, window_bounds = array<i64: 1, 4, 4, 8>}, {transform_indices = @transform_2, window_bounds = array<i64: 1, 4, 4, 8>}, {transform_indices = @transform_3, window_bounds = array<i64: 1, 4, 4, 8>}, {pipeline_mode = #tpu.pipeline_mode<synchronous>, transform_indices = @transform_4, window_bounds = array<i64: 9, 8>}, {pipeline_mode = #tpu.pipeline_mode<synchronous>, transform_indices = @transform_5, window_bounds = array<i64: 1, 8>}, {pipeline_mode = #tpu.pipeline_mode<synchronous>, transform_indices = @transform_6, window_bounds = array<i64: 8, 16>}, {pipeline_mode = #tpu.pipeline_mode<synchronous>, transform_indices = @transform_7, window_bounds = array<i64: 1, 16>}, {pipeline_mode = #tpu.pipeline_mode<synchronous>, transform_indices = @transform_8, window_bounds = array<i64: 9, 16>}, {pipeline_mode = #tpu.pipeline_mode<synchronous>, transform_indices = @transform_9, window_bounds = array<i64: 1, 16>}, {pipeline_mode = #tpu.pipeline_mode<synchronous>, transform_indices = @transform_10, window_bounds = array<i64: 16, 16>}, {pipeline_mode = #tpu.pipeline_mode<synchronous>, transform_indices = @transform_11, window_bounds = array<i64: 1, 16>}, {pipeline_mode = #tpu.pipeline_mode<synchronous>, transform_indices = @transform_12, window_bounds = array<i64: 9, 16>}, {pipeline_mode = #tpu.pipeline_mode<synchronous>, transform_indices = @transform_13, window_bounds = array<i64: 1, 16>}, {pipeline_mode = #tpu.pipeline_mode<synchronous>, transform_indices = @transform_14, window_bounds = array<i64: 16, 24>}, {pipeline_mode = #tpu.pipeline_mode<synchronous>, transform_indices = @transform_15, window_bounds = array<i64: 1, 24>}, {pipeline_mode = #tpu.pipeline_mode<synchronous>, transform_indices = @transform_16, window_bounds = array<i64: 9, 24>}, {pipeline_mode = #tpu.pipeline_mode<synchronous>, transform_indices = @transform_17, window_bounds = array<i64: 1, 24>}, {pipeline_mode = #tpu.pipeline_mode<synchronous>, transform_indices = @transform_18, window_bounds = array<i64: 24, 24>}, {pipeline_mode = #tpu.pipeline_mode<synchronous>, transform_indices = @transform_19, window_bounds = array<i64: 1, 24>}, {transform_indices = @transform_20, window_bounds = array<i64: 1, 16, 16>}, {transform_indices = @transform_21, window_bounds = array<i64: 1, 16, 16>}, {transform_indices = @transform_22, window_bounds = array<i64: 1, 16, 24>}, {transform_indices = @transform_23, window_bounds = array<i64: 1, 16, 24>}]} {
    %cst = arith.constant 0.000000e+00 : f32
    %0 = vector.broadcast %cst : f32 to vector<6x6x24xf32>
    %c0 = arith.constant 0 : index
    %c0_0 = arith.constant 0 : index
    %c0_1 = arith.constant 0 : index
    %1 = vector.load %arg25[%c0, %c0_0, %c0_1] : memref<6x6x24xf32, #tpu.memory_space<vmem>>, vector<6x6x24xf32>
    tpu.vector_store %arg25[%c0, %c0_0, %c0_1], %0 {strides = array<i32>} : memref<6x6x24xf32, #tpu.memory_space<vmem>>, vector<6x6x24xf32>,
    %c0_2 = arith.constant 0 : index
    %c0_3 = arith.constant 0 : index
    %2 = vector.load %arg5[%c0_2, %c0_3] : memref<9x8xf32, #tpu.memory_space<vmem>>, vector<9x8xf32>
    %c0_4 = arith.constant 0 : index
    %c0_5 = arith.constant 0 : index
    %3 = vector.load %arg6[%c0_4, %c0_5] : memref<1x8xf32, #tpu.memory_space<vmem>>, vector<1x8xf32>
    %c0_6 = arith.constant 0 : index
    %c0_7 = arith.constant 0 : index
    %4 = vector.load %arg7[%c0_6, %c0_7] : memref<8x16xf32, #tpu.memory_space<vmem>>, vector<8x16xf32>
    %c0_8 = arith.constant 0 : index
    %c0_9 = arith.constant 0 : index
    %5 = vector.load %arg8[%c0_8, %c0_9] : memref<1x16xf32, #tpu.memory_space<vmem>>, vector<1x16xf32>
    %c0_10 = arith.constant 0 : index
    %c0_11 = arith.constant 0 : index
    %c0_12 = arith.constant 0 : index
    %c0_13 = arith.constant 0 : index
    %6 = vector.load %arg1[%c0_10, %c0_11, %c0_12, %c0_13] : memref<1x4x4x8xf32, #tpu.memory_space<vmem>>, vector<1x4x4x8xf32>
    %7 = vector.shape_cast %6 : vector<1x4x4x8xf32> to vector<4x4x8xf32>
    %c0_14 = arith.constant 0 : index
    %c0_15 = arith.constant 0 : index
    %c0_16 = arith.constant 0 : index
    %c0_17 = arith.constant 0 : index
    %8 = vector.load %arg2[%c0_14, %c0_15, %c0_16, %c0_17] : memref<1x4x4x8xf32, #tpu.memory_space<vmem>>, vector<1x4x4x8xf32>
    %9 = vector.shape_cast %8 : vector<1x4x4x8xf32> to vector<4x4x8xf32>
    %c0_18 = arith.constant 0 : index
    %c0_19 = arith.constant 0 : index
    %c0_20 = arith.constant 0 : index
    %c0_21 = arith.constant 0 : index
    %10 = vector.load %arg3[%c0_18, %c0_19, %c0_20, %c0_21] : memref<1x4x4x8xf32, #tpu.memory_space<vmem>>, vector<1x4x4x8xf32>
    %11 = vector.shape_cast %10 : vector<1x4x4x8xf32> to vector<4x4x8xf32>
    %c0_22 = arith.constant 0 : index
    %c0_23 = arith.constant 0 : index
    %c0_24 = arith.constant 0 : index
    %c0_25 = arith.constant 0 : index
    %12 = vector.load %arg4[%c0_22, %c0_23, %c0_24, %c0_25] : memref<1x4x4x8xf32, #tpu.memory_space<vmem>>, vector<1x4x4x8xf32>
    %13 = vector.shape_cast %12 : vector<1x4x4x8xf32> to vector<4x4x8xf32>
    %c1 = arith.constant 1 : index
    %c1_26 = arith.constant 1 : index
    %c0_27 = arith.constant 0 : index
    %14 = vector.load %arg25[%c1, %c1_26, %c0_27] : memref<6x6x24xf32, #tpu.memory_space<vmem>>, vector<4x4x8xf32>
    tpu.vector_store %arg25[%c1, %c1_26, %c0_27], %13 {strides = array<i32>} : memref<6x6x24xf32, #tpu.memory_space<vmem>>, vector<4x4x8xf32>,
    %c0_28 = arith.constant 0 : index
    %c0_29 = arith.constant 0 : index
    %c0_30 = arith.constant 0 : index
    %15 = vector.load %arg25[%c0_28, %c0_29, %c0_30] : memref<6x6x24xf32, #tpu.memory_space<vmem>>, vector<4x4x8xf32>
    %c0_31 = arith.constant 0 : index
    %c1_32 = arith.constant 1 : index
    %c0_33 = arith.constant 0 : index
    %16 = vector.load %arg25[%c0_31, %c1_32, %c0_33] : memref<6x6x24xf32, #tpu.memory_space<vmem>>, vector<4x4x8xf32>
    %c1_34 = arith.constant 1 : index
    %c0_35 = arith.constant 0 : index
    %c0_36 = arith.constant 0 : index
    %17 = vector.load %arg25[%c1_34, %c0_35, %c0_36] : memref<6x6x24xf32, #tpu.memory_space<vmem>>, vector<4x4x8xf32>
    %c1_37 = arith.constant 1 : index
    %c1_38 = arith.constant 1 : index
    %c0_39 = arith.constant 0 : index
    %18 = vector.load %arg25[%c1_37, %c1_38, %c0_39] : memref<6x6x24xf32, #tpu.memory_space<vmem>>, vector<4x4x8xf32>
    %c1_40 = arith.constant 1 : index
    %c1_41 = arith.constant 1 : index
    %c0_42 = arith.constant 0 : index
    %19 = vector.load %arg25[%c1_40, %c1_41, %c0_42] : memref<6x6x24xf32, #tpu.memory_space<vmem>>, vector<4x4x8xf32>
    tpu.vector_store %arg25[%c1_40, %c1_41, %c0_42], %11 {strides = array<i32>} : memref<6x6x24xf32, #tpu.memory_space<vmem>>, vector<4x4x8xf32>,
    %c0_43 = arith.constant 0 : index
    %c1_44 = arith.constant 1 : index
    %c0_45 = arith.constant 0 : index
    %20 = vector.load %arg25[%c0_43, %c1_44, %c0_45] : memref<6x6x24xf32, #tpu.memory_space<vmem>>, vector<4x4x8xf32>
    %c1_46 = arith.constant 1 : index
    %c1_47 = arith.constant 1 : index
    %c0_48 = arith.constant 0 : index
    %21 = vector.load %arg25[%c1_46, %c1_47, %c0_48] : memref<6x6x24xf32, #tpu.memory_space<vmem>>, vector<4x4x8xf32>
    %c1_49 = arith.constant 1 : index
    %c1_50 = arith.constant 1 : index
    %c0_51 = arith.constant 0 : index
    %22 = vector.load %arg25[%c1_49, %c1_50, %c0_51] : memref<6x6x24xf32, #tpu.memory_space<vmem>>, vector<4x4x8xf32>
    tpu.vector_store %arg25[%c1_49, %c1_50, %c0_51], %9 {strides = array<i32>} : memref<6x6x24xf32, #tpu.memory_space<vmem>>, vector<4x4x8xf32>,
    %c1_52 = arith.constant 1 : index
    %c0_53 = arith.constant 0 : index
    %c0_54 = arith.constant 0 : index
    %23 = vector.load %arg25[%c1_52, %c0_53, %c0_54] : memref<6x6x24xf32, #tpu.memory_space<vmem>>, vector<4x4x8xf32>
    %c1_55 = arith.constant 1 : index
    %c1_56 = arith.constant 1 : index
    %c0_57 = arith.constant 0 : index
    %24 = vector.load %arg25[%c1_55, %c1_56, %c0_57] : memref<6x6x24xf32, #tpu.memory_space<vmem>>, vector<4x4x8xf32>
    %c1_58 = arith.constant 1 : index
    %c1_59 = arith.constant 1 : index
    %c0_60 = arith.constant 0 : index
    %25 = vector.load %arg25[%c1_58, %c1_59, %c0_60] : memref<6x6x24xf32, #tpu.memory_space<vmem>>, vector<4x4x8xf32>
    tpu.vector_store %arg25[%c1_58, %c1_59, %c0_60], %7 {strides = array<i32>} : memref<6x6x24xf32, #tpu.memory_space<vmem>>, vector<4x4x8xf32>,
    %c1_61 = arith.constant 1 : index
    %c1_62 = arith.constant 1 : index
    %c0_63 = arith.constant 0 : index
    %26 = vector.load %arg25[%c1_61, %c1_62, %c0_63] : memref<6x6x24xf32, #tpu.memory_space<vmem>>, vector<4x4x8xf32>
    %27 = vector.extract_strided_slice %2 {offsets = [0, 0], sizes = [1, 8], strides = [1, 1]} : vector<9x8xf32> to vector<1x8xf32>
    %28 = vector.shape_cast %27 : vector<1x8xf32> to vector<1x1x8xf32>
    %29 = vector.broadcast %28 : vector<1x1x8xf32> to vector<4x4x8xf32>
    %30 = arith.mulf %15, %29 : vector<4x4x8xf32>
    %31 = vector.extract_strided_slice %2 {offsets = [1, 0], sizes = [1, 8], strides = [1, 1]} : vector<9x8xf32> to vector<1x8xf32>
    %32 = vector.shape_cast %31 : vector<1x8xf32> to vector<1x1x8xf32>
    %33 = vector.broadcast %32 : vector<1x1x8xf32> to vector<4x4x8xf32>
    %34 = arith.mulf %20, %33 : vector<4x4x8xf32>
    %35 = arith.addf %30, %34 : vector<4x4x8xf32>
    %36 = vector.extract_strided_slice %2 {offsets = [2, 0], sizes = [1, 8], strides = [1, 1]} : vector<9x8xf32> to vector<1x8xf32>
    %37 = vector.shape_cast %36 : vector<1x8xf32> to vector<1x1x8xf32>
    %38 = vector.broadcast %37 : vector<1x1x8xf32> to vector<4x4x8xf32>
    %39 = arith.mulf %16, %38 : vector<4x4x8xf32>
    %40 = arith.addf %35, %39 : vector<4x4x8xf32>
    %41 = vector.extract_strided_slice %2 {offsets = [3, 0], sizes = [1, 8], strides = [1, 1]} : vector<9x8xf32> to vector<1x8xf32>
    %42 = vector.shape_cast %41 : vector<1x8xf32> to vector<1x1x8xf32>
    %43 = vector.broadcast %42 : vector<1x1x8xf32> to vector<4x4x8xf32>
    %44 = arith.mulf %23, %43 : vector<4x4x8xf32>
    %45 = arith.addf %40, %44 : vector<4x4x8xf32>
    %46 = vector.extract_strided_slice %2 {offsets = [4, 0], sizes = [1, 8], strides = [1, 1]} : vector<9x8xf32> to vector<1x8xf32>
    %47 = vector.shape_cast %46 : vector<1x8xf32> to vector<1x1x8xf32>
    %48 = vector.broadcast %47 : vector<1x1x8xf32> to vector<4x4x8xf32>
    %49 = arith.mulf %26, %48 : vector<4x4x8xf32>
    %50 = arith.addf %45, %49 : vector<4x4x8xf32>
    %51 = vector.extract_strided_slice %2 {offsets = [5, 0], sizes = [1, 8], strides = [1, 1]} : vector<9x8xf32> to vector<1x8xf32>
    %52 = vector.shape_cast %51 : vector<1x8xf32> to vector<1x1x8xf32>
    %53 = vector.broadcast %52 : vector<1x1x8xf32> to vector<4x4x8xf32>
    %54 = arith.mulf %24, %53 : vector<4x4x8xf32>
    %55 = arith.addf %50, %54 : vector<4x4x8xf32>
    %56 = vector.extract_strided_slice %2 {offsets = [6, 0], sizes = [1, 8], strides = [1, 1]} : vector<9x8xf32> to vector<1x8xf32>
    %57 = vector.shape_cast %56 : vector<1x8xf32> to vector<1x1x8xf32>
    %58 = vector.broadcast %57 : vector<1x1x8xf32> to vector<4x4x8xf32>
    %59 = arith.mulf %17, %58 : vector<4x4x8xf32>
    %60 = arith.addf %55, %59 : vector<4x4x8xf32>
    %61 = vector.extract_strided_slice %2 {offsets = [7, 0], sizes = [1, 8], strides = [1, 1]} : vector<9x8xf32> to vector<1x8xf32>
    %62 = vector.shape_cast %61 : vector<1x8xf32> to vector<1x1x8xf32>
    %63 = vector.broadcast %62 : vector<1x1x8xf32> to vector<4x4x8xf32>
    %64 = arith.mulf %21, %63 : vector<4x4x8xf32>
    %65 = arith.addf %60, %64 : vector<4x4x8xf32>
    %66 = vector.extract_strided_slice %2 {offsets = [8, 0], sizes = [1, 8], strides = [1, 1]} : vector<9x8xf32> to vector<1x8xf32>
    %67 = vector.shape_cast %66 : vector<1x8xf32> to vector<1x1x8xf32>
    %68 = vector.broadcast %67 : vector<1x1x8xf32> to vector<4x4x8xf32>
    %69 = arith.mulf %18, %68 : vector<4x4x8xf32>
    %70 = arith.addf %65, %69 : vector<4x4x8xf32>
    %71 = vector.shape_cast %70 : vector<4x4x8xf32> to vector<16x8xf32>
    %72 = vector.broadcast %3 : vector<1x8xf32> to vector<16x8xf32>
    %73 = arith.addf %71, %72 : vector<16x8xf32>
    %cst_64 = arith.constant 0.000000e+00 : f32
    %74 = vector.broadcast %cst_64 : f32 to vector<16x8xf32>
    %75 = arith.subf %74, %73 : vector<16x8xf32>
    %76 = math.exp %75 : vector<16x8xf32>
    %cst_65 = arith.constant 1.000000e+00 : f32
    %77 = vector.broadcast %cst_65 : f32 to vector<16x8xf32>
    %78 = arith.addf %77, %76 : vector<16x8xf32>
    %79 = tpu.reciprocal %78 {approx = true} : vector<16x8xf32> -> vector<16x8xf32>
    %80 = arith.mulf %73, %79 : vector<16x8xf32>
    %cst_66 = arith.constant dense<0.000000e+00> : vector<16x16xf32>
    %81 = tpu.matmul %80, %4, %cst_66 {dimension_numbers = #tpu.dot_dimension_numbers<[1], [0], [0], [1], [0, 0, 1, 1], [], []>} : vector<16x8xf32>, vector<8x16xf32>, vector<16x16xf32> -> vector<16x16xf32>
    %82 = vector.broadcast %5 : vector<1x16xf32> to vector<16x16xf32>
    %83 = arith.addf %81, %82 : vector<16x16xf32>
    %cst_67 = arith.constant 0.000000e+00 : f32
    %84 = vector.broadcast %cst_67 : f32 to vector<16x16xf32>
    %85 = arith.subf %84, %83 : vector<16x16xf32>
    %86 = math.exp %85 : vector<16x16xf32>
    %cst_68 = arith.constant 1.000000e+00 : f32
    %87 = vector.broadcast %cst_68 : f32 to vector<16x16xf32>
    %88 = arith.addf %87, %86 : vector<16x16xf32>
    %89 = tpu.reciprocal %88 {approx = true} : vector<16x16xf32> -> vector<16x16xf32>
    %90 = arith.mulf %83, %89 : vector<16x16xf32>
    %c0_69 = arith.constant 0 : index
    %c0_70 = arith.constant 0 : index
    %c0_71 = arith.constant 0 : index
    %91 = vector.load %arg21[%c0_69, %c0_70, %c0_71] : memref<1x16x16xf32, #tpu.memory_space<vmem>>, vector<1x16x16xf32>
    %92 = vector.shape_cast %91 : vector<1x16x16xf32> to vector<16x16xf32>
    %93 = vector.shape_cast %90 : vector<16x16xf32> to vector<1x16x16xf32>
    tpu.vector_store %arg21[%c0_69, %c0_70, %c0_71], %93 {strides = array<i32>} : memref<1x16x16xf32, #tpu.memory_space<vmem>>, vector<1x16x16xf32>,
    %94 = vector.shape_cast %90 : vector<16x16xf32> to vector<4x4x16xf32>
    %c0_72 = arith.constant 0 : index
    %c0_73 = arith.constant 0 : index
    %95 = vector.load %arg9[%c0_72, %c0_73] : memref<9x16xf32, #tpu.memory_space<vmem>>, vector<9x16xf32>
    %c0_74 = arith.constant 0 : index
    %c0_75 = arith.constant 0 : index
    %96 = vector.load %arg10[%c0_74, %c0_75] : memref<1x16xf32, #tpu.memory_space<vmem>>, vector<1x16xf32>
    %c0_76 = arith.constant 0 : index
    %c0_77 = arith.constant 0 : index
    %97 = vector.load %arg11[%c0_76, %c0_77] : memref<16x16xf32, #tpu.memory_space<vmem>>, vector<16x16xf32>
    %c0_78 = arith.constant 0 : index
    %c0_79 = arith.constant 0 : index
    %98 = vector.load %arg12[%c0_78, %c0_79] : memref<1x16xf32, #tpu.memory_space<vmem>>, vector<1x16xf32>
    %c1_80 = arith.constant 1 : index
    %c1_81 = arith.constant 1 : index
    %c0_82 = arith.constant 0 : index
    %99 = vector.load %arg25[%c1_80, %c1_81, %c0_82] : memref<6x6x24xf32, #tpu.memory_space<vmem>>, vector<4x4x16xf32>
    tpu.vector_store %arg25[%c1_80, %c1_81, %c0_82], %94 {strides = array<i32>} : memref<6x6x24xf32, #tpu.memory_space<vmem>>, vector<4x4x16xf32>,
    %c0_83 = arith.constant 0 : index
    %c0_84 = arith.constant 0 : index
    %c0_85 = arith.constant 0 : index
    %100 = vector.load %arg25[%c0_83, %c0_84, %c0_85] : memref<6x6x24xf32, #tpu.memory_space<vmem>>, vector<4x4x16xf32>
    %c0_86 = arith.constant 0 : index
    %c1_87 = arith.constant 1 : index
    %c0_88 = arith.constant 0 : index
    %101 = vector.load %arg25[%c0_86, %c1_87, %c0_88] : memref<6x6x24xf32, #tpu.memory_space<vmem>>, vector<4x4x16xf32>
    %c0_89 = arith.constant 0 : index
    %c2 = arith.constant 2 : index
    %c0_90 = arith.constant 0 : index
    %102 = vector.load %arg25[%c0_89, %c2, %c0_90] : memref<6x6x24xf32, #tpu.memory_space<vmem>>, vector<4x4x16xf32>
    %c1_91 = arith.constant 1 : index
    %c0_92 = arith.constant 0 : index
    %c0_93 = arith.constant 0 : index
    %103 = vector.load %arg25[%c1_91, %c0_92, %c0_93] : memref<6x6x24xf32, #tpu.memory_space<vmem>>, vector<4x4x16xf32>
    %c1_94 = arith.constant 1 : index
    %c1_95 = arith.constant 1 : index
    %c0_96 = arith.constant 0 : index
    %104 = vector.load %arg25[%c1_94, %c1_95, %c0_96] : memref<6x6x24xf32, #tpu.memory_space<vmem>>, vector<4x4x16xf32>
    %c1_97 = arith.constant 1 : index
    %c2_98 = arith.constant 2 : index
    %c0_99 = arith.constant 0 : index
    %105 = vector.load %arg25[%c1_97, %c2_98, %c0_99] : memref<6x6x24xf32, #tpu.memory_space<vmem>>, vector<4x4x16xf32>
    %c2_100 = arith.constant 2 : index
    %c0_101 = arith.constant 0 : index
    %c0_102 = arith.constant 0 : index
    %106 = vector.load %arg25[%c2_100, %c0_101, %c0_102] : memref<6x6x24xf32, #tpu.memory_space<vmem>>, vector<4x4x16xf32>
    %c2_103 = arith.constant 2 : index
    %c1_104 = arith.constant 1 : index
    %c0_105 = arith.constant 0 : index
    %107 = vector.load %arg25[%c2_103, %c1_104, %c0_105] : memref<6x6x24xf32, #tpu.memory_space<vmem>>, vector<4x4x16xf32>
    %c2_106 = arith.constant 2 : index
    %c2_107 = arith.constant 2 : index
    %c0_108 = arith.constant 0 : index
    %108 = vector.load %arg25[%c2_106, %c2_107, %c0_108] : memref<6x6x24xf32, #tpu.memory_space<vmem>>, vector<4x4x16xf32>
    %109 = vector.extract_strided_slice %95 {offsets = [0, 0], sizes = [1, 16], strides = [1, 1]} : vector<9x16xf32> to vector<1x16xf32>
    %110 = vector.shape_cast %109 : vector<1x16xf32> to vector<1x1x16xf32>
    %111 = vector.broadcast %110 : vector<1x1x16xf32> to vector<4x4x16xf32>
    %112 = arith.mulf %100, %111 : vector<4x4x16xf32>
    %113 = vector.extract_strided_slice %95 {offsets = [1, 0], sizes = [1, 16], strides = [1, 1]} : vector<9x16xf32> to vector<1x16xf32>
    %114 = vector.shape_cast %113 : vector<1x16xf32> to vector<1x1x16xf32>
    %115 = vector.broadcast %114 : vector<1x1x16xf32> to vector<4x4x16xf32>
    %116 = arith.mulf %101, %115 : vector<4x4x16xf32>
    %117 = arith.addf %112, %116 : vector<4x4x16xf32>
    %118 = vector.extract_strided_slice %95 {offsets = [2, 0], sizes = [1, 16], strides = [1, 1]} : vector<9x16xf32> to vector<1x16xf32>
    %119 = vector.shape_cast %118 : vector<1x16xf32> to vector<1x1x16xf32>
    %120 = vector.broadcast %119 : vector<1x1x16xf32> to vector<4x4x16xf32>
    %121 = arith.mulf %102, %120 : vector<4x4x16xf32>
    %122 = arith.addf %117, %121 : vector<4x4x16xf32>
    %123 = vector.extract_strided_slice %95 {offsets = [3, 0], sizes = [1, 16], strides = [1, 1]} : vector<9x16xf32> to vector<1x16xf32>
    %124 = vector.shape_cast %123 : vector<1x16xf32> to vector<1x1x16xf32>
    %125 = vector.broadcast %124 : vector<1x1x16xf32> to vector<4x4x16xf32>
    %126 = arith.mulf %103, %125 : vector<4x4x16xf32>
    %127 = arith.addf %122, %126 : vector<4x4x16xf32>
    %128 = vector.extract_strided_slice %95 {offsets = [4, 0], sizes = [1, 16], strides = [1, 1]} : vector<9x16xf32> to vector<1x16xf32>
    %129 = vector.shape_cast %128 : vector<1x16xf32> to vector<1x1x16xf32>
    %130 = vector.broadcast %129 : vector<1x1x16xf32> to vector<4x4x16xf32>
    %131 = arith.mulf %104, %130 : vector<4x4x16xf32>
    %132 = arith.addf %127, %131 : vector<4x4x16xf32>
    %133 = vector.extract_strided_slice %95 {offsets = [5, 0], sizes = [1, 16], strides = [1, 1]} : vector<9x16xf32> to vector<1x16xf32>
    %134 = vector.shape_cast %133 : vector<1x16xf32> to vector<1x1x16xf32>
    %135 = vector.broadcast %134 : vector<1x1x16xf32> to vector<4x4x16xf32>
    %136 = arith.mulf %105, %135 : vector<4x4x16xf32>
    %137 = arith.addf %132, %136 : vector<4x4x16xf32>
    %138 = vector.extract_strided_slice %95 {offsets = [6, 0], sizes = [1, 16], strides = [1, 1]} : vector<9x16xf32> to vector<1x16xf32>
    %139 = vector.shape_cast %138 : vector<1x16xf32> to vector<1x1x16xf32>
    %140 = vector.broadcast %139 : vector<1x1x16xf32> to vector<4x4x16xf32>
    %141 = arith.mulf %106, %140 : vector<4x4x16xf32>
    %142 = arith.addf %137, %141 : vector<4x4x16xf32>
    %143 = vector.extract_strided_slice %95 {offsets = [7, 0], sizes = [1, 16], strides = [1, 1]} : vector<9x16xf32> to vector<1x16xf32>
    %144 = vector.shape_cast %143 : vector<1x16xf32> to vector<1x1x16xf32>
    %145 = vector.broadcast %144 : vector<1x1x16xf32> to vector<4x4x16xf32>
    %146 = arith.mulf %107, %145 : vector<4x4x16xf32>
    %147 = arith.addf %142, %146 : vector<4x4x16xf32>
    %148 = vector.extract_strided_slice %95 {offsets = [8, 0], sizes = [1, 16], strides = [1, 1]} : vector<9x16xf32> to vector<1x16xf32>
    %149 = vector.shape_cast %148 : vector<1x16xf32> to vector<1x1x16xf32>
    %150 = vector.broadcast %149 : vector<1x1x16xf32> to vector<4x4x16xf32>
    %151 = arith.mulf %108, %150 : vector<4x4x16xf32>
    %152 = arith.addf %147, %151 : vector<4x4x16xf32>
    %153 = vector.shape_cast %152 : vector<4x4x16xf32> to vector<16x16xf32>
    %154 = vector.broadcast %96 : vector<1x16xf32> to vector<16x16xf32>
    %155 = arith.addf %153, %154 : vector<16x16xf32>
    %cst_109 = arith.constant 0.000000e+00 : f32
    %156 = vector.broadcast %cst_109 : f32 to vector<16x16xf32>
    %157 = arith.subf %156, %155 : vector<16x16xf32>
    %158 = math.exp %157 : vector<16x16xf32>
    %cst_110 = arith.constant 1.000000e+00 : f32
    %159 = vector.broadcast %cst_110 : f32 to vector<16x16xf32>
    %160 = arith.addf %159, %158 : vector<16x16xf32>
    %161 = tpu.reciprocal %160 {approx = true} : vector<16x16xf32> -> vector<16x16xf32>
    %162 = arith.mulf %155, %161 : vector<16x16xf32>
    %cst_111 = arith.constant dense<0.000000e+00> : vector<16x16xf32>
    %163 = tpu.matmul %162, %97, %cst_111 {dimension_numbers = #tpu.dot_dimension_numbers<[1], [0], [0], [1], [0, 0, 1, 1], [], []>} : vector<16x16xf32>, vector<16x16xf32>, vector<16x16xf32> -> vector<16x16xf32>
    %164 = vector.broadcast %98 : vector<1x16xf32> to vector<16x16xf32>
    %165 = arith.addf %163, %164 : vector<16x16xf32>
    %cst_112 = arith.constant 0.000000e+00 : f32
    %166 = vector.broadcast %cst_112 : f32 to vector<16x16xf32>
    %167 = arith.subf %166, %165 : vector<16x16xf32>
    %168 = math.exp %167 : vector<16x16xf32>
    %cst_113 = arith.constant 1.000000e+00 : f32
    %169 = vector.broadcast %cst_113 : f32 to vector<16x16xf32>
    %170 = arith.addf %169, %168 : vector<16x16xf32>
    %171 = tpu.reciprocal %170 {approx = true} : vector<16x16xf32> -> vector<16x16xf32>
    %172 = arith.mulf %165, %171 : vector<16x16xf32>
    %c0_114 = arith.constant 0 : index
    %c0_115 = arith.constant 0 : index
    %c0_116 = arith.constant 0 : index
    %173 = vector.load %arg22[%c0_114, %c0_115, %c0_116] : memref<1x16x16xf32, #tpu.memory_space<vmem>>, vector<1x16x16xf32>
    %174 = vector.shape_cast %173 : vector<1x16x16xf32> to vector<16x16xf32>
    %175 = vector.shape_cast %172 : vector<16x16xf32> to vector<1x16x16xf32>
    tpu.vector_store %arg22[%c0_114, %c0_115, %c0_116], %175 {strides = array<i32>} : memref<1x16x16xf32, #tpu.memory_space<vmem>>, vector<1x16x16xf32>,
    %176 = vector.shape_cast %172 : vector<16x16xf32> to vector<4x4x16xf32>
    %c0_117 = arith.constant 0 : index
    %c0_118 = arith.constant 0 : index
    %177 = vector.load %arg13[%c0_117, %c0_118] : memref<9x16xf32, #tpu.memory_space<vmem>>, vector<9x16xf32>
    %c0_119 = arith.constant 0 : index
    %c0_120 = arith.constant 0 : index
    %178 = vector.load %arg14[%c0_119, %c0_120] : memref<1x16xf32, #tpu.memory_space<vmem>>, vector<1x16xf32>
    %c0_121 = arith.constant 0 : index
    %c0_122 = arith.constant 0 : index
    %179 = vector.load %arg15[%c0_121, %c0_122] : memref<16x24xf32, #tpu.memory_space<vmem>>, vector<16x24xf32>
    %c0_123 = arith.constant 0 : index
    %c0_124 = arith.constant 0 : index
    %180 = vector.load %arg16[%c0_123, %c0_124] : memref<1x24xf32, #tpu.memory_space<vmem>>, vector<1x24xf32>
    %c1_125 = arith.constant 1 : index
    %c1_126 = arith.constant 1 : index
    %c0_127 = arith.constant 0 : index
    %181 = vector.load %arg25[%c1_125, %c1_126, %c0_127] : memref<6x6x24xf32, #tpu.memory_space<vmem>>, vector<4x4x16xf32>
    tpu.vector_store %arg25[%c1_125, %c1_126, %c0_127], %176 {strides = array<i32>} : memref<6x6x24xf32, #tpu.memory_space<vmem>>, vector<4x4x16xf32>,
    %c0_128 = arith.constant 0 : index
    %c0_129 = arith.constant 0 : index
    %c0_130 = arith.constant 0 : index
    %182 = vector.load %arg25[%c0_128, %c0_129, %c0_130] : memref<6x6x24xf32, #tpu.memory_space<vmem>>, vector<4x4x16xf32>
    %c0_131 = arith.constant 0 : index
    %c1_132 = arith.constant 1 : index
    %c0_133 = arith.constant 0 : index
    %183 = vector.load %arg25[%c0_131, %c1_132, %c0_133] : memref<6x6x24xf32, #tpu.memory_space<vmem>>, vector<4x4x16xf32>
    %c0_134 = arith.constant 0 : index
    %c2_135 = arith.constant 2 : index
    %c0_136 = arith.constant 0 : index
    %184 = vector.load %arg25[%c0_134, %c2_135, %c0_136] : memref<6x6x24xf32, #tpu.memory_space<vmem>>, vector<4x4x16xf32>
    %c1_137 = arith.constant 1 : index
    %c0_138 = arith.constant 0 : index
    %c0_139 = arith.constant 0 : index
    %185 = vector.load %arg25[%c1_137, %c0_138, %c0_139] : memref<6x6x24xf32, #tpu.memory_space<vmem>>, vector<4x4x16xf32>
    %c1_140 = arith.constant 1 : index
    %c1_141 = arith.constant 1 : index
    %c0_142 = arith.constant 0 : index
    %186 = vector.load %arg25[%c1_140, %c1_141, %c0_142] : memref<6x6x24xf32, #tpu.memory_space<vmem>>, vector<4x4x16xf32>
    %c1_143 = arith.constant 1 : index
    %c2_144 = arith.constant 2 : index
    %c0_145 = arith.constant 0 : index
    %187 = vector.load %arg25[%c1_143, %c2_144, %c0_145] : memref<6x6x24xf32, #tpu.memory_space<vmem>>, vector<4x4x16xf32>
    %c2_146 = arith.constant 2 : index
    %c0_147 = arith.constant 0 : index
    %c0_148 = arith.constant 0 : index
    %188 = vector.load %arg25[%c2_146, %c0_147, %c0_148] : memref<6x6x24xf32, #tpu.memory_space<vmem>>, vector<4x4x16xf32>
    %c2_149 = arith.constant 2 : index
    %c1_150 = arith.constant 1 : index
    %c0_151 = arith.constant 0 : index
    %189 = vector.load %arg25[%c2_149, %c1_150, %c0_151] : memref<6x6x24xf32, #tpu.memory_space<vmem>>, vector<4x4x16xf32>
    %c2_152 = arith.constant 2 : index
    %c2_153 = arith.constant 2 : index
    %c0_154 = arith.constant 0 : index
    %190 = vector.load %arg25[%c2_152, %c2_153, %c0_154] : memref<6x6x24xf32, #tpu.memory_space<vmem>>, vector<4x4x16xf32>
    %191 = vector.extract_strided_slice %177 {offsets = [0, 0], sizes = [1, 16], strides = [1, 1]} : vector<9x16xf32> to vector<1x16xf32>
    %192 = vector.shape_cast %191 : vector<1x16xf32> to vector<1x1x16xf32>
    %193 = vector.broadcast %192 : vector<1x1x16xf32> to vector<4x4x16xf32>
    %194 = arith.mulf %182, %193 : vector<4x4x16xf32>
    %195 = vector.extract_strided_slice %177 {offsets = [1, 0], sizes = [1, 16], strides = [1, 1]} : vector<9x16xf32> to vector<1x16xf32>
    %196 = vector.shape_cast %195 : vector<1x16xf32> to vector<1x1x16xf32>
    %197 = vector.broadcast %196 : vector<1x1x16xf32> to vector<4x4x16xf32>
    %198 = arith.mulf %183, %197 : vector<4x4x16xf32>
    %199 = arith.addf %194, %198 : vector<4x4x16xf32>
    %200 = vector.extract_strided_slice %177 {offsets = [2, 0], sizes = [1, 16], strides = [1, 1]} : vector<9x16xf32> to vector<1x16xf32>
    %201 = vector.shape_cast %200 : vector<1x16xf32> to vector<1x1x16xf32>
    %202 = vector.broadcast %201 : vector<1x1x16xf32> to vector<4x4x16xf32>
    %203 = arith.mulf %184, %202 : vector<4x4x16xf32>
    %204 = arith.addf %199, %203 : vector<4x4x16xf32>
    %205 = vector.extract_strided_slice %177 {offsets = [3, 0], sizes = [1, 16], strides = [1, 1]} : vector<9x16xf32> to vector<1x16xf32>
    %206 = vector.shape_cast %205 : vector<1x16xf32> to vector<1x1x16xf32>
    %207 = vector.broadcast %206 : vector<1x1x16xf32> to vector<4x4x16xf32>
    %208 = arith.mulf %185, %207 : vector<4x4x16xf32>
    %209 = arith.addf %204, %208 : vector<4x4x16xf32>
    %210 = vector.extract_strided_slice %177 {offsets = [4, 0], sizes = [1, 16], strides = [1, 1]} : vector<9x16xf32> to vector<1x16xf32>
    %211 = vector.shape_cast %210 : vector<1x16xf32> to vector<1x1x16xf32>
    %212 = vector.broadcast %211 : vector<1x1x16xf32> to vector<4x4x16xf32>
    %213 = arith.mulf %186, %212 : vector<4x4x16xf32>
    %214 = arith.addf %209, %213 : vector<4x4x16xf32>
    %215 = vector.extract_strided_slice %177 {offsets = [5, 0], sizes = [1, 16], strides = [1, 1]} : vector<9x16xf32> to vector<1x16xf32>
    %216 = vector.shape_cast %215 : vector<1x16xf32> to vector<1x1x16xf32>
    %217 = vector.broadcast %216 : vector<1x1x16xf32> to vector<4x4x16xf32>
    %218 = arith.mulf %187, %217 : vector<4x4x16xf32>
    %219 = arith.addf %214, %218 : vector<4x4x16xf32>
    %220 = vector.extract_strided_slice %177 {offsets = [6, 0], sizes = [1, 16], strides = [1, 1]} : vector<9x16xf32> to vector<1x16xf32>
    %221 = vector.shape_cast %220 : vector<1x16xf32> to vector<1x1x16xf32>
    %222 = vector.broadcast %221 : vector<1x1x16xf32> to vector<4x4x16xf32>
    %223 = arith.mulf %188, %222 : vector<4x4x16xf32>
    %224 = arith.addf %219, %223 : vector<4x4x16xf32>
    %225 = vector.extract_strided_slice %177 {offsets = [7, 0], sizes = [1, 16], strides = [1, 1]} : vector<9x16xf32> to vector<1x16xf32>
    %226 = vector.shape_cast %225 : vector<1x16xf32> to vector<1x1x16xf32>
    %227 = vector.broadcast %226 : vector<1x1x16xf32> to vector<4x4x16xf32>
    %228 = arith.mulf %189, %227 : vector<4x4x16xf32>
    %229 = arith.addf %224, %228 : vector<4x4x16xf32>
    %230 = vector.extract_strided_slice %177 {offsets = [8, 0], sizes = [1, 16], strides = [1, 1]} : vector<9x16xf32> to vector<1x16xf32>
    %231 = vector.shape_cast %230 : vector<1x16xf32> to vector<1x1x16xf32>
    %232 = vector.broadcast %231 : vector<1x1x16xf32> to vector<4x4x16xf32>
    %233 = arith.mulf %190, %232 : vector<4x4x16xf32>
    %234 = arith.addf %229, %233 : vector<4x4x16xf32>
    %235 = vector.shape_cast %234 : vector<4x4x16xf32> to vector<16x16xf32>
    %236 = vector.broadcast %178 : vector<1x16xf32> to vector<16x16xf32>
    %237 = arith.addf %235, %236 : vector<16x16xf32>
    %cst_155 = arith.constant 0.000000e+00 : f32
    %238 = vector.broadcast %cst_155 : f32 to vector<16x16xf32>
    %239 = arith.subf %238, %237 : vector<16x16xf32>
    %240 = math.exp %239 : vector<16x16xf32>
    %cst_156 = arith.constant 1.000000e+00 : f32
    %241 = vector.broadcast %cst_156 : f32 to vector<16x16xf32>
    %242 = arith.addf %241, %240 : vector<16x16xf32>
    %243 = tpu.reciprocal %242 {approx = true} : vector<16x16xf32> -> vector<16x16xf32>
    %244 = arith.mulf %237, %243 : vector<16x16xf32>
    %cst_157 = arith.constant dense<0.000000e+00> : vector<16x24xf32>
    %245 = tpu.matmul %244, %179, %cst_157 {dimension_numbers = #tpu.dot_dimension_numbers<[1], [0], [0], [1], [0, 0, 1, 1], [], []>} : vector<16x16xf32>, vector<16x24xf32>, vector<16x24xf32> -> vector<16x24xf32>
    %246 = vector.broadcast %180 : vector<1x24xf32> to vector<16x24xf32>
    %247 = arith.addf %245, %246 : vector<16x24xf32>
    %cst_158 = arith.constant 0.000000e+00 : f32
    %248 = vector.broadcast %cst_158 : f32 to vector<16x24xf32>
    %249 = arith.subf %248, %247 : vector<16x24xf32>
    %250 = math.exp %249 : vector<16x24xf32>
    %cst_159 = arith.constant 1.000000e+00 : f32
    %251 = vector.broadcast %cst_159 : f32 to vector<16x24xf32>
    %252 = arith.addf %251, %250 : vector<16x24xf32>
    %253 = tpu.reciprocal %252 {approx = true} : vector<16x24xf32> -> vector<16x24xf32>
    %254 = arith.mulf %247, %253 : vector<16x24xf32>
    %c0_160 = arith.constant 0 : index
    %c0_161 = arith.constant 0 : index
    %c0_162 = arith.constant 0 : index
    %255 = vector.load %arg23[%c0_160, %c0_161, %c0_162] : memref<1x16x24xf32, #tpu.memory_space<vmem>>, vector<1x16x24xf32>
    %256 = vector.shape_cast %255 : vector<1x16x24xf32> to vector<16x24xf32>
    %257 = vector.shape_cast %254 : vector<16x24xf32> to vector<1x16x24xf32>
    tpu.vector_store %arg23[%c0_160, %c0_161, %c0_162], %257 {strides = array<i32>} : memref<1x16x24xf32, #tpu.memory_space<vmem>>, vector<1x16x24xf32>,
    %258 = vector.shape_cast %254 : vector<16x24xf32> to vector<4x4x24xf32>
    %c0_163 = arith.constant 0 : index
    %c0_164 = arith.constant 0 : index
    %259 = vector.load %arg17[%c0_163, %c0_164] : memref<9x24xf32, #tpu.memory_space<vmem>>, vector<9x24xf32>
    %c0_165 = arith.constant 0 : index
    %c0_166 = arith.constant 0 : index
    %260 = vector.load %arg18[%c0_165, %c0_166] : memref<1x24xf32, #tpu.memory_space<vmem>>, vector<1x24xf32>
    %c0_167 = arith.constant 0 : index
    %c0_168 = arith.constant 0 : index
    %261 = vector.load %arg19[%c0_167, %c0_168] : memref<24x24xf32, #tpu.memory_space<vmem>>, vector<24x24xf32>
    %c0_169 = arith.constant 0 : index
    %c0_170 = arith.constant 0 : index
    %262 = vector.load %arg20[%c0_169, %c0_170] : memref<1x24xf32, #tpu.memory_space<vmem>>, vector<1x24xf32>
    %c1_171 = arith.constant 1 : index
    %c1_172 = arith.constant 1 : index
    %c0_173 = arith.constant 0 : index
    %263 = vector.load %arg25[%c1_171, %c1_172, %c0_173] : memref<6x6x24xf32, #tpu.memory_space<vmem>>, vector<4x4x24xf32>
    tpu.vector_store %arg25[%c1_171, %c1_172, %c0_173], %258 {strides = array<i32>} : memref<6x6x24xf32, #tpu.memory_space<vmem>>, vector<4x4x24xf32>,
    %c0_174 = arith.constant 0 : index
    %c0_175 = arith.constant 0 : index
    %c0_176 = arith.constant 0 : index
    %264 = vector.load %arg25[%c0_174, %c0_175, %c0_176] : memref<6x6x24xf32, #tpu.memory_space<vmem>>, vector<4x4x24xf32>
    %c0_177 = arith.constant 0 : index
    %c1_178 = arith.constant 1 : index
    %c0_179 = arith.constant 0 : index
    %265 = vector.load %arg25[%c0_177, %c1_178, %c0_179] : memref<6x6x24xf32, #tpu.memory_space<vmem>>, vector<4x4x24xf32>
    %c0_180 = arith.constant 0 : index
    %c2_181 = arith.constant 2 : index
    %c0_182 = arith.constant 0 : index
    %266 = vector.load %arg25[%c0_180, %c2_181, %c0_182] : memref<6x6x24xf32, #tpu.memory_space<vmem>>, vector<4x4x24xf32>
    %c1_183 = arith.constant 1 : index
    %c0_184 = arith.constant 0 : index
    %c0_185 = arith.constant 0 : index
    %267 = vector.load %arg25[%c1_183, %c0_184, %c0_185] : memref<6x6x24xf32, #tpu.memory_space<vmem>>, vector<4x4x24xf32>
    %c1_186 = arith.constant 1 : index
    %c1_187 = arith.constant 1 : index
    %c0_188 = arith.constant 0 : index
    %268 = vector.load %arg25[%c1_186, %c1_187, %c0_188] : memref<6x6x24xf32, #tpu.memory_space<vmem>>, vector<4x4x24xf32>
    %c1_189 = arith.constant 1 : index
    %c2_190 = arith.constant 2 : index
    %c0_191 = arith.constant 0 : index
    %269 = vector.load %arg25[%c1_189, %c2_190, %c0_191] : memref<6x6x24xf32, #tpu.memory_space<vmem>>, vector<4x4x24xf32>
    %c2_192 = arith.constant 2 : index
    %c0_193 = arith.constant 0 : index
    %c0_194 = arith.constant 0 : index
    %270 = vector.load %arg25[%c2_192, %c0_193, %c0_194] : memref<6x6x24xf32, #tpu.memory_space<vmem>>, vector<4x4x24xf32>
    %c2_195 = arith.constant 2 : index
    %c1_196 = arith.constant 1 : index
    %c0_197 = arith.constant 0 : index
    %271 = vector.load %arg25[%c2_195, %c1_196, %c0_197] : memref<6x6x24xf32, #tpu.memory_space<vmem>>, vector<4x4x24xf32>
    %c2_198 = arith.constant 2 : index
    %c2_199 = arith.constant 2 : index
    %c0_200 = arith.constant 0 : index
    %272 = vector.load %arg25[%c2_198, %c2_199, %c0_200] : memref<6x6x24xf32, #tpu.memory_space<vmem>>, vector<4x4x24xf32>
    %273 = vector.extract_strided_slice %259 {offsets = [0, 0], sizes = [1, 24], strides = [1, 1]} : vector<9x24xf32> to vector<1x24xf32>
    %274 = vector.shape_cast %273 : vector<1x24xf32> to vector<1x1x24xf32>
    %275 = vector.broadcast %274 : vector<1x1x24xf32> to vector<4x4x24xf32>
    %276 = arith.mulf %264, %275 : vector<4x4x24xf32>
    %277 = vector.extract_strided_slice %259 {offsets = [1, 0], sizes = [1, 24], strides = [1, 1]} : vector<9x24xf32> to vector<1x24xf32>
    %278 = vector.shape_cast %277 : vector<1x24xf32> to vector<1x1x24xf32>
    %279 = vector.broadcast %278 : vector<1x1x24xf32> to vector<4x4x24xf32>
    %280 = arith.mulf %265, %279 : vector<4x4x24xf32>
    %281 = arith.addf %276, %280 : vector<4x4x24xf32>
    %282 = vector.extract_strided_slice %259 {offsets = [2, 0], sizes = [1, 24], strides = [1, 1]} : vector<9x24xf32> to vector<1x24xf32>
    %283 = vector.shape_cast %282 : vector<1x24xf32> to vector<1x1x24xf32>
    %284 = vector.broadcast %283 : vector<1x1x24xf32> to vector<4x4x24xf32>
    %285 = arith.mulf %266, %284 : vector<4x4x24xf32>
    %286 = arith.addf %281, %285 : vector<4x4x24xf32>
    %287 = vector.extract_strided_slice %259 {offsets = [3, 0], sizes = [1, 24], strides = [1, 1]} : vector<9x24xf32> to vector<1x24xf32>
    %288 = vector.shape_cast %287 : vector<1x24xf32> to vector<1x1x24xf32>
    %289 = vector.broadcast %288 : vector<1x1x24xf32> to vector<4x4x24xf32>
    %290 = arith.mulf %267, %289 : vector<4x4x24xf32>
    %291 = arith.addf %286, %290 : vector<4x4x24xf32>
    %292 = vector.extract_strided_slice %259 {offsets = [4, 0], sizes = [1, 24], strides = [1, 1]} : vector<9x24xf32> to vector<1x24xf32>
    %293 = vector.shape_cast %292 : vector<1x24xf32> to vector<1x1x24xf32>
    %294 = vector.broadcast %293 : vector<1x1x24xf32> to vector<4x4x24xf32>
    %295 = arith.mulf %268, %294 : vector<4x4x24xf32>
    %296 = arith.addf %291, %295 : vector<4x4x24xf32>
    %297 = vector.extract_strided_slice %259 {offsets = [5, 0], sizes = [1, 24], strides = [1, 1]} : vector<9x24xf32> to vector<1x24xf32>
    %298 = vector.shape_cast %297 : vector<1x24xf32> to vector<1x1x24xf32>
    %299 = vector.broadcast %298 : vector<1x1x24xf32> to vector<4x4x24xf32>
    %300 = arith.mulf %269, %299 : vector<4x4x24xf32>
    %301 = arith.addf %296, %300 : vector<4x4x24xf32>
    %302 = vector.extract_strided_slice %259 {offsets = [6, 0], sizes = [1, 24], strides = [1, 1]} : vector<9x24xf32> to vector<1x24xf32>
    %303 = vector.shape_cast %302 : vector<1x24xf32> to vector<1x1x24xf32>
    %304 = vector.broadcast %303 : vector<1x1x24xf32> to vector<4x4x24xf32>
    %305 = arith.mulf %270, %304 : vector<4x4x24xf32>
    %306 = arith.addf %301, %305 : vector<4x4x24xf32>
    %307 = vector.extract_strided_slice %259 {offsets = [7, 0], sizes = [1, 24], strides = [1, 1]} : vector<9x24xf32> to vector<1x24xf32>
    %308 = vector.shape_cast %307 : vector<1x24xf32> to vector<1x1x24xf32>
    %309 = vector.broadcast %308 : vector<1x1x24xf32> to vector<4x4x24xf32>
    %310 = arith.mulf %271, %309 : vector<4x4x24xf32>
    %311 = arith.addf %306, %310 : vector<4x4x24xf32>
    %312 = vector.extract_strided_slice %259 {offsets = [8, 0], sizes = [1, 24], strides = [1, 1]} : vector<9x24xf32> to vector<1x24xf32>
    %313 = vector.shape_cast %312 : vector<1x24xf32> to vector<1x1x24xf32>
    %314 = vector.broadcast %313 : vector<1x1x24xf32> to vector<4x4x24xf32>
    %315 = arith.mulf %272, %314 : vector<4x4x24xf32>
    %316 = arith.addf %311, %315 : vector<4x4x24xf32>
    %317 = vector.shape_cast %316 : vector<4x4x24xf32> to vector<16x24xf32>
    %318 = vector.broadcast %260 : vector<1x24xf32> to vector<16x24xf32>
    %319 = arith.addf %317, %318 : vector<16x24xf32>
    %cst_201 = arith.constant 0.000000e+00 : f32
    %320 = vector.broadcast %cst_201 : f32 to vector<16x24xf32>
    %321 = arith.subf %320, %319 : vector<16x24xf32>
    %322 = math.exp %321 : vector<16x24xf32>
    %cst_202 = arith.constant 1.000000e+00 : f32
    %323 = vector.broadcast %cst_202 : f32 to vector<16x24xf32>
    %324 = arith.addf %323, %322 : vector<16x24xf32>
    %325 = tpu.reciprocal %324 {approx = true} : vector<16x24xf32> -> vector<16x24xf32>
    %326 = arith.mulf %319, %325 : vector<16x24xf32>
    %cst_203 = arith.constant dense<0.000000e+00> : vector<16x24xf32>
    %327 = tpu.matmul %326, %261, %cst_203 {dimension_numbers = #tpu.dot_dimension_numbers<[1], [0], [0], [1], [0, 0, 1, 1], [], []>} : vector<16x24xf32>, vector<24x24xf32>, vector<16x24xf32> -> vector<16x24xf32>
    %328 = vector.broadcast %262 : vector<1x24xf32> to vector<16x24xf32>
    %329 = arith.addf %327, %328 : vector<16x24xf32>
    %cst_204 = arith.constant 0.000000e+00 : f32
    %330 = vector.broadcast %cst_204 : f32 to vector<16x24xf32>
    %331 = arith.subf %330, %329 : vector<16x24xf32>
    %332 = math.exp %331 : vector<16x24xf32>
    %cst_205 = arith.constant 1.000000e+00 : f32
    %333 = vector.broadcast %cst_205 : f32 to vector<16x24xf32>
    %334 = arith.addf %333, %332 : vector<16x24xf32>
    %335 = tpu.reciprocal %334 {approx = true} : vector<16x24xf32> -> vector<16x24xf32>
    %336 = arith.mulf %329, %335 : vector<16x24xf32>
    %c0_206 = arith.constant 0 : index
    %c0_207 = arith.constant 0 : index
    %c0_208 = arith.constant 0 : index
    %337 = vector.load %arg24[%c0_206, %c0_207, %c0_208] : memref<1x16x24xf32, #tpu.memory_space<vmem>>, vector<1x16x24xf32>
    %338 = vector.shape_cast %337 : vector<1x16x24xf32> to vector<16x24xf32>
    %339 = vector.shape_cast %336 : vector<16x24xf32> to vector<1x16x24xf32>
    tpu.vector_store %arg24[%c0_206, %c0_207, %c0_208], %339 {strides = array<i32>} : memref<1x16x24xf32, #tpu.memory_space<vmem>>, vector<1x16x24xf32>,
    return
  }
  func.func @transform_0(%arg0: i32) -> (i32, i32, i32, i32) {
    %c0_i32 = arith.constant 0 : i32
    %c0_i32_0 = arith.constant 0 : i32
    %c0_i32_1 = arith.constant 0 : i32
    %c0_i32_2 = arith.constant 0 : i32
    return %arg0, %c0_i32, %c0_i32_0, %c0_i32_1 : i32, i32, i32, i32
  }
  func.func @transform_1(%arg0: i32) -> (i32, i32, i32, i32) {
    %c0_i32 = arith.constant 0 : i32
    %c0_i32_0 = arith.constant 0 : i32
    %c0_i32_1 = arith.constant 0 : i32
    %c0_i32_2 = arith.constant 0 : i32
    return %arg0, %c0_i32, %c0_i32_0, %c0_i32_1 : i32, i32, i32, i32
  }
  func.func @transform_2(%arg0: i32) -> (i32, i32, i32, i32) {
    %c0_i32 = arith.constant 0 : i32
    %c0_i32_0 = arith.constant 0 : i32
    %c0_i32_1 = arith.constant 0 : i32
    %c0_i32_2 = arith.constant 0 : i32
    return %arg0, %c0_i32, %c0_i32_0, %c0_i32_1 : i32, i32, i32, i32
  }
  func.func @transform_3(%arg0: i32) -> (i32, i32, i32, i32) {
    %c0_i32 = arith.constant 0 : i32
    %c0_i32_0 = arith.constant 0 : i32
    %c0_i32_1 = arith.constant 0 : i32
    %c0_i32_2 = arith.constant 0 : i32
    return %arg0, %c0_i32, %c0_i32_0, %c0_i32_1 : i32, i32, i32, i32
  }
  func.func @transform_4(%arg0: i32) -> (i32, i32) {
    %c0_i32 = arith.constant 0 : i32
    %c0_i32_0 = arith.constant 0 : i32
    %c0_i32_1 = arith.constant 0 : i32
    return %c0_i32, %c0_i32_0 : i32, i32
  }
  func.func @transform_5(%arg0: i32) -> (i32, i32) {
    %c0_i32 = arith.constant 0 : i32
    %c0_i32_0 = arith.constant 0 : i32
    %c0_i32_1 = arith.constant 0 : i32
    return %c0_i32, %c0_i32_0 : i32, i32
  }
  func.func @transform_6(%arg0: i32) -> (i32, i32) {
    %c0_i32 = arith.constant 0 : i32
    %c0_i32_0 = arith.constant 0 : i32
    %c0_i32_1 = arith.constant 0 : i32
    return %c0_i32, %c0_i32_0 : i32, i32
  }
  func.func @transform_7(%arg0: i32) -> (i32, i32) {
    %c0_i32 = arith.constant 0 : i32
    %c0_i32_0 = arith.constant 0 : i32
    %c0_i32_1 = arith.constant 0 : i32
    return %c0_i32, %c0_i32_0 : i32, i32
  }
  func.func @transform_8(%arg0: i32) -> (i32, i32) {
    %c0_i32 = arith.constant 0 : i32
    %c0_i32_0 = arith.constant 0 : i32
    %c0_i32_1 = arith.constant 0 : i32
    return %c0_i32, %c0_i32_0 : i32, i32
  }
  func.func @transform_9(%arg0: i32) -> (i32, i32) {
    %c0_i32 = arith.constant 0 : i32
    %c0_i32_0 = arith.constant 0 : i32
    %c0_i32_1 = arith.constant 0 : i32
    return %c0_i32, %c0_i32_0 : i32, i32
  }
  func.func @transform_10(%arg0: i32) -> (i32, i32) {
    %c0_i32 = arith.constant 0 : i32
    %c0_i32_0 = arith.constant 0 : i32
    %c0_i32_1 = arith.constant 0 : i32
    return %c0_i32, %c0_i32_0 : i32, i32
  }
  func.func @transform_11(%arg0: i32) -> (i32, i32) {
    %c0_i32 = arith.constant 0 : i32
    %c0_i32_0 = arith.constant 0 : i32
    %c0_i32_1 = arith.constant 0 : i32
    return %c0_i32, %c0_i32_0 : i32, i32
  }
  func.func @transform_12(%arg0: i32) -> (i32, i32) {
    %c0_i32 = arith.constant 0 : i32
    %c0_i32_0 = arith.constant 0 : i32
    %c0_i32_1 = arith.constant 0 : i32
    return %c0_i32, %c0_i32_0 : i32, i32
  }
  func.func @transform_13(%arg0: i32) -> (i32, i32) {
    %c0_i32 = arith.constant 0 : i32
    %c0_i32_0 = arith.constant 0 : i32
    %c0_i32_1 = arith.constant 0 : i32
    return %c0_i32, %c0_i32_0 : i32, i32
  }
  func.func @transform_14(%arg0: i32) -> (i32, i32) {
    %c0_i32 = arith.constant 0 : i32
    %c0_i32_0 = arith.constant 0 : i32
    %c0_i32_1 = arith.constant 0 : i32
    return %c0_i32, %c0_i32_0 : i32, i32
  }
  func.func @transform_15(%arg0: i32) -> (i32, i32) {
    %c0_i32 = arith.constant 0 : i32
    %c0_i32_0 = arith.constant 0 : i32
    %c0_i32_1 = arith.constant 0 : i32
    return %c0_i32, %c0_i32_0 : i32, i32
  }
  func.func @transform_16(%arg0: i32) -> (i32, i32) {
    %c0_i32 = arith.constant 0 : i32
    %c0_i32_0 = arith.constant 0 : i32
    %c0_i32_1 = arith.constant 0 : i32
    return %c0_i32, %c0_i32_0 : i32, i32
  }
  func.func @transform_17(%arg0: i32) -> (i32, i32) {
    %c0_i32 = arith.constant 0 : i32
    %c0_i32_0 = arith.constant 0 : i32
    %c0_i32_1 = arith.constant 0 : i32
    return %c0_i32, %c0_i32_0 : i32, i32
  }
  func.func @transform_18(%arg0: i32) -> (i32, i32) {
    %c0_i32 = arith.constant 0 : i32
    %c0_i32_0 = arith.constant 0 : i32
    %c0_i32_1 = arith.constant 0 : i32
    return %c0_i32, %c0_i32_0 : i32, i32
  }
  func.func @transform_19(%arg0: i32) -> (i32, i32) {
    %c0_i32 = arith.constant 0 : i32
    %c0_i32_0 = arith.constant 0 : i32
    %c0_i32_1 = arith.constant 0 : i32
    return %c0_i32, %c0_i32_0 : i32, i32
  }
  func.func @transform_20(%arg0: i32) -> (i32, i32, i32) {
    %c0_i32 = arith.constant 0 : i32
    %c0_i32_0 = arith.constant 0 : i32
    %c0_i32_1 = arith.constant 0 : i32
    return %arg0, %c0_i32, %c0_i32_0 : i32, i32, i32
  }
  func.func @transform_21(%arg0: i32) -> (i32, i32, i32) {
    %c0_i32 = arith.constant 0 : i32
    %c0_i32_0 = arith.constant 0 : i32
    %c0_i32_1 = arith.constant 0 : i32
    return %arg0, %c0_i32, %c0_i32_0 : i32, i32, i32
  }
  func.func @transform_22(%arg0: i32) -> (i32, i32, i32) {
    %c0_i32 = arith.constant 0 : i32
    %c0_i32_0 = arith.constant 0 : i32
    %c0_i32_1 = arith.constant 0 : i32
    return %arg0, %c0_i32, %c0_i32_0 : i32, i32, i32
  }
  func.func @transform_23(%arg0: i32) -> (i32, i32, i32) {
    %c0_i32 = arith.constant 0 : i32
    %c0_i32_0 = arith.constant 0 : i32
    %c0_i32_1 = arith.constant 0 : i32
    return %arg0, %c0_i32, %c0_i32_0 : i32, i32, i32
  }
}

module attributes {stable_mosaic.version = 11 : i64} {
  func.func @_mbconv_chain_kernel(%arg0: i32, %arg1: memref<1x2x2x24xf32, #tpu.memory_space<vmem>>, %arg2: memref<1x2x2x24xf32, #tpu.memory_space<vmem>>, %arg3: memref<1x2x2x24xf32, #tpu.memory_space<vmem>>, %arg4: memref<1x2x2x24xf32, #tpu.memory_space<vmem>>, %arg5: memref<9x24xf32, #tpu.memory_space<vmem>>, %arg6: memref<1x24xf32, #tpu.memory_space<vmem>>, %arg7: memref<24x32xf32, #tpu.memory_space<vmem>>, %arg8: memref<1x32xf32, #tpu.memory_space<vmem>>, %arg9: memref<9x32xf32, #tpu.memory_space<vmem>>, %arg10: memref<1x32xf32, #tpu.memory_space<vmem>>, %arg11: memref<32x32xf32, #tpu.memory_space<vmem>>, %arg12: memref<1x32xf32, #tpu.memory_space<vmem>>, %arg13: memref<1x4x32xf32, #tpu.memory_space<vmem>>, %arg14: memref<1x4x32xf32, #tpu.memory_space<vmem>>, %arg15: memref<4x4x32xf32, #tpu.memory_space<vmem>>) attributes {dimension_semantics = [#tpu.dimension_semantics<parallel>], iteration_bounds = array<i64: 2>, scalar_prefetch = 0 : i64, scratch_operands = 1 : i64, tpu.core_type = #tpu.core_type<tc>, window_params = [{transform_indices = @transform_0, window_bounds = array<i64: 1, 2, 2, 24>}, {transform_indices = @transform_1, window_bounds = array<i64: 1, 2, 2, 24>}, {transform_indices = @transform_2, window_bounds = array<i64: 1, 2, 2, 24>}, {transform_indices = @transform_3, window_bounds = array<i64: 1, 2, 2, 24>}, {pipeline_mode = #tpu.pipeline_mode<synchronous>, transform_indices = @transform_4, window_bounds = array<i64: 9, 24>}, {pipeline_mode = #tpu.pipeline_mode<synchronous>, transform_indices = @transform_5, window_bounds = array<i64: 1, 24>}, {pipeline_mode = #tpu.pipeline_mode<synchronous>, transform_indices = @transform_6, window_bounds = array<i64: 24, 32>}, {pipeline_mode = #tpu.pipeline_mode<synchronous>, transform_indices = @transform_7, window_bounds = array<i64: 1, 32>}, {pipeline_mode = #tpu.pipeline_mode<synchronous>, transform_indices = @transform_8, window_bounds = array<i64: 9, 32>}, {pipeline_mode = #tpu.pipeline_mode<synchronous>, transform_indices = @transform_9, window_bounds = array<i64: 1, 32>}, {pipeline_mode = #tpu.pipeline_mode<synchronous>, transform_indices = @transform_10, window_bounds = array<i64: 32, 32>}, {pipeline_mode = #tpu.pipeline_mode<synchronous>, transform_indices = @transform_11, window_bounds = array<i64: 1, 32>}, {transform_indices = @transform_12, window_bounds = array<i64: 1, 4, 32>}, {transform_indices = @transform_13, window_bounds = array<i64: 1, 4, 32>}]} {
    %cst = arith.constant 0.000000e+00 : f32
    %0 = vector.broadcast %cst : f32 to vector<4x4x32xf32>
    %c0 = arith.constant 0 : index
    %c0_0 = arith.constant 0 : index
    %c0_1 = arith.constant 0 : index
    %1 = vector.load %arg15[%c0, %c0_0, %c0_1] : memref<4x4x32xf32, #tpu.memory_space<vmem>>, vector<4x4x32xf32>
    tpu.vector_store %arg15[%c0, %c0_0, %c0_1], %0 {strides = array<i32>} : memref<4x4x32xf32, #tpu.memory_space<vmem>>, vector<4x4x32xf32>,
    %c0_2 = arith.constant 0 : index
    %c0_3 = arith.constant 0 : index
    %2 = vector.load %arg5[%c0_2, %c0_3] : memref<9x24xf32, #tpu.memory_space<vmem>>, vector<9x24xf32>
    %c0_4 = arith.constant 0 : index
    %c0_5 = arith.constant 0 : index
    %3 = vector.load %arg6[%c0_4, %c0_5] : memref<1x24xf32, #tpu.memory_space<vmem>>, vector<1x24xf32>
    %c0_6 = arith.constant 0 : index
    %c0_7 = arith.constant 0 : index
    %4 = vector.load %arg7[%c0_6, %c0_7] : memref<24x32xf32, #tpu.memory_space<vmem>>, vector<24x32xf32>
    %c0_8 = arith.constant 0 : index
    %c0_9 = arith.constant 0 : index
    %5 = vector.load %arg8[%c0_8, %c0_9] : memref<1x32xf32, #tpu.memory_space<vmem>>, vector<1x32xf32>
    %c0_10 = arith.constant 0 : index
    %c0_11 = arith.constant 0 : index
    %c0_12 = arith.constant 0 : index
    %c0_13 = arith.constant 0 : index
    %6 = vector.load %arg1[%c0_10, %c0_11, %c0_12, %c0_13] : memref<1x2x2x24xf32, #tpu.memory_space<vmem>>, vector<1x2x2x24xf32>
    %7 = vector.shape_cast %6 : vector<1x2x2x24xf32> to vector<2x2x24xf32>
    %c0_14 = arith.constant 0 : index
    %c0_15 = arith.constant 0 : index
    %c0_16 = arith.constant 0 : index
    %c0_17 = arith.constant 0 : index
    %8 = vector.load %arg2[%c0_14, %c0_15, %c0_16, %c0_17] : memref<1x2x2x24xf32, #tpu.memory_space<vmem>>, vector<1x2x2x24xf32>
    %9 = vector.shape_cast %8 : vector<1x2x2x24xf32> to vector<2x2x24xf32>
    %c0_18 = arith.constant 0 : index
    %c0_19 = arith.constant 0 : index
    %c0_20 = arith.constant 0 : index
    %c0_21 = arith.constant 0 : index
    %10 = vector.load %arg3[%c0_18, %c0_19, %c0_20, %c0_21] : memref<1x2x2x24xf32, #tpu.memory_space<vmem>>, vector<1x2x2x24xf32>
    %11 = vector.shape_cast %10 : vector<1x2x2x24xf32> to vector<2x2x24xf32>
    %c0_22 = arith.constant 0 : index
    %c0_23 = arith.constant 0 : index
    %c0_24 = arith.constant 0 : index
    %c0_25 = arith.constant 0 : index
    %12 = vector.load %arg4[%c0_22, %c0_23, %c0_24, %c0_25] : memref<1x2x2x24xf32, #tpu.memory_space<vmem>>, vector<1x2x2x24xf32>
    %13 = vector.shape_cast %12 : vector<1x2x2x24xf32> to vector<2x2x24xf32>
    %c1 = arith.constant 1 : index
    %c1_26 = arith.constant 1 : index
    %c0_27 = arith.constant 0 : index
    %14 = vector.load %arg15[%c1, %c1_26, %c0_27] : memref<4x4x32xf32, #tpu.memory_space<vmem>>, vector<2x2x24xf32>
    tpu.vector_store %arg15[%c1, %c1_26, %c0_27], %13 {strides = array<i32>} : memref<4x4x32xf32, #tpu.memory_space<vmem>>, vector<2x2x24xf32>,
    %c0_28 = arith.constant 0 : index
    %c0_29 = arith.constant 0 : index
    %c0_30 = arith.constant 0 : index
    %15 = vector.load %arg15[%c0_28, %c0_29, %c0_30] : memref<4x4x32xf32, #tpu.memory_space<vmem>>, vector<2x2x24xf32>
    %c0_31 = arith.constant 0 : index
    %c1_32 = arith.constant 1 : index
    %c0_33 = arith.constant 0 : index
    %16 = vector.load %arg15[%c0_31, %c1_32, %c0_33] : memref<4x4x32xf32, #tpu.memory_space<vmem>>, vector<2x2x24xf32>
    %c1_34 = arith.constant 1 : index
    %c0_35 = arith.constant 0 : index
    %c0_36 = arith.constant 0 : index
    %17 = vector.load %arg15[%c1_34, %c0_35, %c0_36] : memref<4x4x32xf32, #tpu.memory_space<vmem>>, vector<2x2x24xf32>
    %c1_37 = arith.constant 1 : index
    %c1_38 = arith.constant 1 : index
    %c0_39 = arith.constant 0 : index
    %18 = vector.load %arg15[%c1_37, %c1_38, %c0_39] : memref<4x4x32xf32, #tpu.memory_space<vmem>>, vector<2x2x24xf32>
    %c1_40 = arith.constant 1 : index
    %c1_41 = arith.constant 1 : index
    %c0_42 = arith.constant 0 : index
    %19 = vector.load %arg15[%c1_40, %c1_41, %c0_42] : memref<4x4x32xf32, #tpu.memory_space<vmem>>, vector<2x2x24xf32>
    tpu.vector_store %arg15[%c1_40, %c1_41, %c0_42], %11 {strides = array<i32>} : memref<4x4x32xf32, #tpu.memory_space<vmem>>, vector<2x2x24xf32>,
    %c0_43 = arith.constant 0 : index
    %c1_44 = arith.constant 1 : index
    %c0_45 = arith.constant 0 : index
    %20 = vector.load %arg15[%c0_43, %c1_44, %c0_45] : memref<4x4x32xf32, #tpu.memory_space<vmem>>, vector<2x2x24xf32>
    %c1_46 = arith.constant 1 : index
    %c1_47 = arith.constant 1 : index
    %c0_48 = arith.constant 0 : index
    %21 = vector.load %arg15[%c1_46, %c1_47, %c0_48] : memref<4x4x32xf32, #tpu.memory_space<vmem>>, vector<2x2x24xf32>
    %c1_49 = arith.constant 1 : index
    %c1_50 = arith.constant 1 : index
    %c0_51 = arith.constant 0 : index
    %22 = vector.load %arg15[%c1_49, %c1_50, %c0_51] : memref<4x4x32xf32, #tpu.memory_space<vmem>>, vector<2x2x24xf32>
    tpu.vector_store %arg15[%c1_49, %c1_50, %c0_51], %9 {strides = array<i32>} : memref<4x4x32xf32, #tpu.memory_space<vmem>>, vector<2x2x24xf32>,
    %c1_52 = arith.constant 1 : index
    %c0_53 = arith.constant 0 : index
    %c0_54 = arith.constant 0 : index
    %23 = vector.load %arg15[%c1_52, %c0_53, %c0_54] : memref<4x4x32xf32, #tpu.memory_space<vmem>>, vector<2x2x24xf32>
    %c1_55 = arith.constant 1 : index
    %c1_56 = arith.constant 1 : index
    %c0_57 = arith.constant 0 : index
    %24 = vector.load %arg15[%c1_55, %c1_56, %c0_57] : memref<4x4x32xf32, #tpu.memory_space<vmem>>, vector<2x2x24xf32>
    %c1_58 = arith.constant 1 : index
    %c1_59 = arith.constant 1 : index
    %c0_60 = arith.constant 0 : index
    %25 = vector.load %arg15[%c1_58, %c1_59, %c0_60] : memref<4x4x32xf32, #tpu.memory_space<vmem>>, vector<2x2x24xf32>
    tpu.vector_store %arg15[%c1_58, %c1_59, %c0_60], %7 {strides = array<i32>} : memref<4x4x32xf32, #tpu.memory_space<vmem>>, vector<2x2x24xf32>,
    %c1_61 = arith.constant 1 : index
    %c1_62 = arith.constant 1 : index
    %c0_63 = arith.constant 0 : index
    %26 = vector.load %arg15[%c1_61, %c1_62, %c0_63] : memref<4x4x32xf32, #tpu.memory_space<vmem>>, vector<2x2x24xf32>
    %27 = vector.extract_strided_slice %2 {offsets = [0, 0], sizes = [1, 24], strides = [1, 1]} : vector<9x24xf32> to vector<1x24xf32>
    %28 = vector.shape_cast %27 : vector<1x24xf32> to vector<1x1x24xf32>
    %29 = vector.broadcast %28 : vector<1x1x24xf32> to vector<2x2x24xf32>
    %30 = arith.mulf %15, %29 : vector<2x2x24xf32>
    %31 = vector.extract_strided_slice %2 {offsets = [1, 0], sizes = [1, 24], strides = [1, 1]} : vector<9x24xf32> to vector<1x24xf32>
    %32 = vector.shape_cast %31 : vector<1x24xf32> to vector<1x1x24xf32>
    %33 = vector.broadcast %32 : vector<1x1x24xf32> to vector<2x2x24xf32>
    %34 = arith.mulf %20, %33 : vector<2x2x24xf32>
    %35 = arith.addf %30, %34 : vector<2x2x24xf32>
    %36 = vector.extract_strided_slice %2 {offsets = [2, 0], sizes = [1, 24], strides = [1, 1]} : vector<9x24xf32> to vector<1x24xf32>
    %37 = vector.shape_cast %36 : vector<1x24xf32> to vector<1x1x24xf32>
    %38 = vector.broadcast %37 : vector<1x1x24xf32> to vector<2x2x24xf32>
    %39 = arith.mulf %16, %38 : vector<2x2x24xf32>
    %40 = arith.addf %35, %39 : vector<2x2x24xf32>
    %41 = vector.extract_strided_slice %2 {offsets = [3, 0], sizes = [1, 24], strides = [1, 1]} : vector<9x24xf32> to vector<1x24xf32>
    %42 = vector.shape_cast %41 : vector<1x24xf32> to vector<1x1x24xf32>
    %43 = vector.broadcast %42 : vector<1x1x24xf32> to vector<2x2x24xf32>
    %44 = arith.mulf %23, %43 : vector<2x2x24xf32>
    %45 = arith.addf %40, %44 : vector<2x2x24xf32>
    %46 = vector.extract_strided_slice %2 {offsets = [4, 0], sizes = [1, 24], strides = [1, 1]} : vector<9x24xf32> to vector<1x24xf32>
    %47 = vector.shape_cast %46 : vector<1x24xf32> to vector<1x1x24xf32>
    %48 = vector.broadcast %47 : vector<1x1x24xf32> to vector<2x2x24xf32>
    %49 = arith.mulf %26, %48 : vector<2x2x24xf32>
    %50 = arith.addf %45, %49 : vector<2x2x24xf32>
    %51 = vector.extract_strided_slice %2 {offsets = [5, 0], sizes = [1, 24], strides = [1, 1]} : vector<9x24xf32> to vector<1x24xf32>
    %52 = vector.shape_cast %51 : vector<1x24xf32> to vector<1x1x24xf32>
    %53 = vector.broadcast %52 : vector<1x1x24xf32> to vector<2x2x24xf32>
    %54 = arith.mulf %24, %53 : vector<2x2x24xf32>
    %55 = arith.addf %50, %54 : vector<2x2x24xf32>
    %56 = vector.extract_strided_slice %2 {offsets = [6, 0], sizes = [1, 24], strides = [1, 1]} : vector<9x24xf32> to vector<1x24xf32>
    %57 = vector.shape_cast %56 : vector<1x24xf32> to vector<1x1x24xf32>
    %58 = vector.broadcast %57 : vector<1x1x24xf32> to vector<2x2x24xf32>
    %59 = arith.mulf %17, %58 : vector<2x2x24xf32>
    %60 = arith.addf %55, %59 : vector<2x2x24xf32>
    %61 = vector.extract_strided_slice %2 {offsets = [7, 0], sizes = [1, 24], strides = [1, 1]} : vector<9x24xf32> to vector<1x24xf32>
    %62 = vector.shape_cast %61 : vector<1x24xf32> to vector<1x1x24xf32>
    %63 = vector.broadcast %62 : vector<1x1x24xf32> to vector<2x2x24xf32>
    %64 = arith.mulf %21, %63 : vector<2x2x24xf32>
    %65 = arith.addf %60, %64 : vector<2x2x24xf32>
    %66 = vector.extract_strided_slice %2 {offsets = [8, 0], sizes = [1, 24], strides = [1, 1]} : vector<9x24xf32> to vector<1x24xf32>
    %67 = vector.shape_cast %66 : vector<1x24xf32> to vector<1x1x24xf32>
    %68 = vector.broadcast %67 : vector<1x1x24xf32> to vector<2x2x24xf32>
    %69 = arith.mulf %18, %68 : vector<2x2x24xf32>
    %70 = arith.addf %65, %69 : vector<2x2x24xf32>
    %71 = vector.shape_cast %70 : vector<2x2x24xf32> to vector<4x24xf32>
    %72 = vector.broadcast %3 : vector<1x24xf32> to vector<4x24xf32>
    %73 = arith.addf %71, %72 : vector<4x24xf32>
    %cst_64 = arith.constant 0.000000e+00 : f32
    %74 = vector.broadcast %cst_64 : f32 to vector<4x24xf32>
    %75 = arith.subf %74, %73 : vector<4x24xf32>
    %76 = math.exp %75 : vector<4x24xf32>
    %cst_65 = arith.constant 1.000000e+00 : f32
    %77 = vector.broadcast %cst_65 : f32 to vector<4x24xf32>
    %78 = arith.addf %77, %76 : vector<4x24xf32>
    %79 = tpu.reciprocal %78 {approx = true} : vector<4x24xf32> -> vector<4x24xf32>
    %80 = arith.mulf %73, %79 : vector<4x24xf32>
    %cst_66 = arith.constant dense<0.000000e+00> : vector<4x32xf32>
    %81 = tpu.matmul %80, %4, %cst_66 {dimension_numbers = #tpu.dot_dimension_numbers<[1], [0], [0], [1], [0, 0, 1, 1], [], []>} : vector<4x24xf32>, vector<24x32xf32>, vector<4x32xf32> -> vector<4x32xf32>
    %82 = vector.broadcast %5 : vector<1x32xf32> to vector<4x32xf32>
    %83 = arith.addf %81, %82 : vector<4x32xf32>
    %cst_67 = arith.constant 0.000000e+00 : f32
    %84 = vector.broadcast %cst_67 : f32 to vector<4x32xf32>
    %85 = arith.subf %84, %83 : vector<4x32xf32>
    %86 = math.exp %85 : vector<4x32xf32>
    %cst_68 = arith.constant 1.000000e+00 : f32
    %87 = vector.broadcast %cst_68 : f32 to vector<4x32xf32>
    %88 = arith.addf %87, %86 : vector<4x32xf32>
    %89 = tpu.reciprocal %88 {approx = true} : vector<4x32xf32> -> vector<4x32xf32>
    %90 = arith.mulf %83, %89 : vector<4x32xf32>
    %c0_69 = arith.constant 0 : index
    %c0_70 = arith.constant 0 : index
    %c0_71 = arith.constant 0 : index
    %91 = vector.load %arg13[%c0_69, %c0_70, %c0_71] : memref<1x4x32xf32, #tpu.memory_space<vmem>>, vector<1x4x32xf32>
    %92 = vector.shape_cast %91 : vector<1x4x32xf32> to vector<4x32xf32>
    %93 = vector.shape_cast %90 : vector<4x32xf32> to vector<1x4x32xf32>
    tpu.vector_store %arg13[%c0_69, %c0_70, %c0_71], %93 {strides = array<i32>} : memref<1x4x32xf32, #tpu.memory_space<vmem>>, vector<1x4x32xf32>,
    %94 = vector.shape_cast %90 : vector<4x32xf32> to vector<2x2x32xf32>
    %c0_72 = arith.constant 0 : index
    %c0_73 = arith.constant 0 : index
    %95 = vector.load %arg9[%c0_72, %c0_73] : memref<9x32xf32, #tpu.memory_space<vmem>>, vector<9x32xf32>
    %c0_74 = arith.constant 0 : index
    %c0_75 = arith.constant 0 : index
    %96 = vector.load %arg10[%c0_74, %c0_75] : memref<1x32xf32, #tpu.memory_space<vmem>>, vector<1x32xf32>
    %c0_76 = arith.constant 0 : index
    %c0_77 = arith.constant 0 : index
    %97 = vector.load %arg11[%c0_76, %c0_77] : memref<32x32xf32, #tpu.memory_space<vmem>>, vector<32x32xf32>
    %c0_78 = arith.constant 0 : index
    %c0_79 = arith.constant 0 : index
    %98 = vector.load %arg12[%c0_78, %c0_79] : memref<1x32xf32, #tpu.memory_space<vmem>>, vector<1x32xf32>
    %c1_80 = arith.constant 1 : index
    %c1_81 = arith.constant 1 : index
    %c0_82 = arith.constant 0 : index
    %99 = vector.load %arg15[%c1_80, %c1_81, %c0_82] : memref<4x4x32xf32, #tpu.memory_space<vmem>>, vector<2x2x32xf32>
    tpu.vector_store %arg15[%c1_80, %c1_81, %c0_82], %94 {strides = array<i32>} : memref<4x4x32xf32, #tpu.memory_space<vmem>>, vector<2x2x32xf32>,
    %c0_83 = arith.constant 0 : index
    %c0_84 = arith.constant 0 : index
    %c0_85 = arith.constant 0 : index
    %100 = vector.load %arg15[%c0_83, %c0_84, %c0_85] : memref<4x4x32xf32, #tpu.memory_space<vmem>>, vector<2x2x32xf32>
    %c0_86 = arith.constant 0 : index
    %c1_87 = arith.constant 1 : index
    %c0_88 = arith.constant 0 : index
    %101 = vector.load %arg15[%c0_86, %c1_87, %c0_88] : memref<4x4x32xf32, #tpu.memory_space<vmem>>, vector<2x2x32xf32>
    %c0_89 = arith.constant 0 : index
    %c2 = arith.constant 2 : index
    %c0_90 = arith.constant 0 : index
    %102 = vector.load %arg15[%c0_89, %c2, %c0_90] : memref<4x4x32xf32, #tpu.memory_space<vmem>>, vector<2x2x32xf32>
    %c1_91 = arith.constant 1 : index
    %c0_92 = arith.constant 0 : index
    %c0_93 = arith.constant 0 : index
    %103 = vector.load %arg15[%c1_91, %c0_92, %c0_93] : memref<4x4x32xf32, #tpu.memory_space<vmem>>, vector<2x2x32xf32>
    %c1_94 = arith.constant 1 : index
    %c1_95 = arith.constant 1 : index
    %c0_96 = arith.constant 0 : index
    %104 = vector.load %arg15[%c1_94, %c1_95, %c0_96] : memref<4x4x32xf32, #tpu.memory_space<vmem>>, vector<2x2x32xf32>
    %c1_97 = arith.constant 1 : index
    %c2_98 = arith.constant 2 : index
    %c0_99 = arith.constant 0 : index
    %105 = vector.load %arg15[%c1_97, %c2_98, %c0_99] : memref<4x4x32xf32, #tpu.memory_space<vmem>>, vector<2x2x32xf32>
    %c2_100 = arith.constant 2 : index
    %c0_101 = arith.constant 0 : index
    %c0_102 = arith.constant 0 : index
    %106 = vector.load %arg15[%c2_100, %c0_101, %c0_102] : memref<4x4x32xf32, #tpu.memory_space<vmem>>, vector<2x2x32xf32>
    %c2_103 = arith.constant 2 : index
    %c1_104 = arith.constant 1 : index
    %c0_105 = arith.constant 0 : index
    %107 = vector.load %arg15[%c2_103, %c1_104, %c0_105] : memref<4x4x32xf32, #tpu.memory_space<vmem>>, vector<2x2x32xf32>
    %c2_106 = arith.constant 2 : index
    %c2_107 = arith.constant 2 : index
    %c0_108 = arith.constant 0 : index
    %108 = vector.load %arg15[%c2_106, %c2_107, %c0_108] : memref<4x4x32xf32, #tpu.memory_space<vmem>>, vector<2x2x32xf32>
    %109 = vector.extract_strided_slice %95 {offsets = [0, 0], sizes = [1, 32], strides = [1, 1]} : vector<9x32xf32> to vector<1x32xf32>
    %110 = vector.shape_cast %109 : vector<1x32xf32> to vector<1x1x32xf32>
    %111 = vector.broadcast %110 : vector<1x1x32xf32> to vector<2x2x32xf32>
    %112 = arith.mulf %100, %111 : vector<2x2x32xf32>
    %113 = vector.extract_strided_slice %95 {offsets = [1, 0], sizes = [1, 32], strides = [1, 1]} : vector<9x32xf32> to vector<1x32xf32>
    %114 = vector.shape_cast %113 : vector<1x32xf32> to vector<1x1x32xf32>
    %115 = vector.broadcast %114 : vector<1x1x32xf32> to vector<2x2x32xf32>
    %116 = arith.mulf %101, %115 : vector<2x2x32xf32>
    %117 = arith.addf %112, %116 : vector<2x2x32xf32>
    %118 = vector.extract_strided_slice %95 {offsets = [2, 0], sizes = [1, 32], strides = [1, 1]} : vector<9x32xf32> to vector<1x32xf32>
    %119 = vector.shape_cast %118 : vector<1x32xf32> to vector<1x1x32xf32>
    %120 = vector.broadcast %119 : vector<1x1x32xf32> to vector<2x2x32xf32>
    %121 = arith.mulf %102, %120 : vector<2x2x32xf32>
    %122 = arith.addf %117, %121 : vector<2x2x32xf32>
    %123 = vector.extract_strided_slice %95 {offsets = [3, 0], sizes = [1, 32], strides = [1, 1]} : vector<9x32xf32> to vector<1x32xf32>
    %124 = vector.shape_cast %123 : vector<1x32xf32> to vector<1x1x32xf32>
    %125 = vector.broadcast %124 : vector<1x1x32xf32> to vector<2x2x32xf32>
    %126 = arith.mulf %103, %125 : vector<2x2x32xf32>
    %127 = arith.addf %122, %126 : vector<2x2x32xf32>
    %128 = vector.extract_strided_slice %95 {offsets = [4, 0], sizes = [1, 32], strides = [1, 1]} : vector<9x32xf32> to vector<1x32xf32>
    %129 = vector.shape_cast %128 : vector<1x32xf32> to vector<1x1x32xf32>
    %130 = vector.broadcast %129 : vector<1x1x32xf32> to vector<2x2x32xf32>
    %131 = arith.mulf %104, %130 : vector<2x2x32xf32>
    %132 = arith.addf %127, %131 : vector<2x2x32xf32>
    %133 = vector.extract_strided_slice %95 {offsets = [5, 0], sizes = [1, 32], strides = [1, 1]} : vector<9x32xf32> to vector<1x32xf32>
    %134 = vector.shape_cast %133 : vector<1x32xf32> to vector<1x1x32xf32>
    %135 = vector.broadcast %134 : vector<1x1x32xf32> to vector<2x2x32xf32>
    %136 = arith.mulf %105, %135 : vector<2x2x32xf32>
    %137 = arith.addf %132, %136 : vector<2x2x32xf32>
    %138 = vector.extract_strided_slice %95 {offsets = [6, 0], sizes = [1, 32], strides = [1, 1]} : vector<9x32xf32> to vector<1x32xf32>
    %139 = vector.shape_cast %138 : vector<1x32xf32> to vector<1x1x32xf32>
    %140 = vector.broadcast %139 : vector<1x1x32xf32> to vector<2x2x32xf32>
    %141 = arith.mulf %106, %140 : vector<2x2x32xf32>
    %142 = arith.addf %137, %141 : vector<2x2x32xf32>
    %143 = vector.extract_strided_slice %95 {offsets = [7, 0], sizes = [1, 32], strides = [1, 1]} : vector<9x32xf32> to vector<1x32xf32>
    %144 = vector.shape_cast %143 : vector<1x32xf32> to vector<1x1x32xf32>
    %145 = vector.broadcast %144 : vector<1x1x32xf32> to vector<2x2x32xf32>
    %146 = arith.mulf %107, %145 : vector<2x2x32xf32>
    %147 = arith.addf %142, %146 : vector<2x2x32xf32>
    %148 = vector.extract_strided_slice %95 {offsets = [8, 0], sizes = [1, 32], strides = [1, 1]} : vector<9x32xf32> to vector<1x32xf32>
    %149 = vector.shape_cast %148 : vector<1x32xf32> to vector<1x1x32xf32>
    %150 = vector.broadcast %149 : vector<1x1x32xf32> to vector<2x2x32xf32>
    %151 = arith.mulf %108, %150 : vector<2x2x32xf32>
    %152 = arith.addf %147, %151 : vector<2x2x32xf32>
    %153 = vector.shape_cast %152 : vector<2x2x32xf32> to vector<4x32xf32>
    %154 = vector.broadcast %96 : vector<1x32xf32> to vector<4x32xf32>
    %155 = arith.addf %153, %154 : vector<4x32xf32>
    %cst_109 = arith.constant 0.000000e+00 : f32
    %156 = vector.broadcast %cst_109 : f32 to vector<4x32xf32>
    %157 = arith.subf %156, %155 : vector<4x32xf32>
    %158 = math.exp %157 : vector<4x32xf32>
    %cst_110 = arith.constant 1.000000e+00 : f32
    %159 = vector.broadcast %cst_110 : f32 to vector<4x32xf32>
    %160 = arith.addf %159, %158 : vector<4x32xf32>
    %161 = tpu.reciprocal %160 {approx = true} : vector<4x32xf32> -> vector<4x32xf32>
    %162 = arith.mulf %155, %161 : vector<4x32xf32>
    %cst_111 = arith.constant dense<0.000000e+00> : vector<4x32xf32>
    %163 = tpu.matmul %162, %97, %cst_111 {dimension_numbers = #tpu.dot_dimension_numbers<[1], [0], [0], [1], [0, 0, 1, 1], [], []>} : vector<4x32xf32>, vector<32x32xf32>, vector<4x32xf32> -> vector<4x32xf32>
    %164 = vector.broadcast %98 : vector<1x32xf32> to vector<4x32xf32>
    %165 = arith.addf %163, %164 : vector<4x32xf32>
    %cst_112 = arith.constant 0.000000e+00 : f32
    %166 = vector.broadcast %cst_112 : f32 to vector<4x32xf32>
    %167 = arith.subf %166, %165 : vector<4x32xf32>
    %168 = math.exp %167 : vector<4x32xf32>
    %cst_113 = arith.constant 1.000000e+00 : f32
    %169 = vector.broadcast %cst_113 : f32 to vector<4x32xf32>
    %170 = arith.addf %169, %168 : vector<4x32xf32>
    %171 = tpu.reciprocal %170 {approx = true} : vector<4x32xf32> -> vector<4x32xf32>
    %172 = arith.mulf %165, %171 : vector<4x32xf32>
    %c0_114 = arith.constant 0 : index
    %c0_115 = arith.constant 0 : index
    %c0_116 = arith.constant 0 : index
    %173 = vector.load %arg14[%c0_114, %c0_115, %c0_116] : memref<1x4x32xf32, #tpu.memory_space<vmem>>, vector<1x4x32xf32>
    %174 = vector.shape_cast %173 : vector<1x4x32xf32> to vector<4x32xf32>
    %175 = vector.shape_cast %172 : vector<4x32xf32> to vector<1x4x32xf32>
    tpu.vector_store %arg14[%c0_114, %c0_115, %c0_116], %175 {strides = array<i32>} : memref<1x4x32xf32, #tpu.memory_space<vmem>>, vector<1x4x32xf32>,
    return
  }
  func.func @transform_0(%arg0: i32) -> (i32, i32, i32, i32) {
    %c0_i32 = arith.constant 0 : i32
    %c0_i32_0 = arith.constant 0 : i32
    %c0_i32_1 = arith.constant 0 : i32
    %c0_i32_2 = arith.constant 0 : i32
    return %arg0, %c0_i32, %c0_i32_0, %c0_i32_1 : i32, i32, i32, i32
  }
  func.func @transform_1(%arg0: i32) -> (i32, i32, i32, i32) {
    %c0_i32 = arith.constant 0 : i32
    %c0_i32_0 = arith.constant 0 : i32
    %c0_i32_1 = arith.constant 0 : i32
    %c0_i32_2 = arith.constant 0 : i32
    return %arg0, %c0_i32, %c0_i32_0, %c0_i32_1 : i32, i32, i32, i32
  }
  func.func @transform_2(%arg0: i32) -> (i32, i32, i32, i32) {
    %c0_i32 = arith.constant 0 : i32
    %c0_i32_0 = arith.constant 0 : i32
    %c0_i32_1 = arith.constant 0 : i32
    %c0_i32_2 = arith.constant 0 : i32
    return %arg0, %c0_i32, %c0_i32_0, %c0_i32_1 : i32, i32, i32, i32
  }
  func.func @transform_3(%arg0: i32) -> (i32, i32, i32, i32) {
    %c0_i32 = arith.constant 0 : i32
    %c0_i32_0 = arith.constant 0 : i32
    %c0_i32_1 = arith.constant 0 : i32
    %c0_i32_2 = arith.constant 0 : i32
    return %arg0, %c0_i32, %c0_i32_0, %c0_i32_1 : i32, i32, i32, i32
  }
  func.func @transform_4(%arg0: i32) -> (i32, i32) {
    %c0_i32 = arith.constant 0 : i32
    %c0_i32_0 = arith.constant 0 : i32
    %c0_i32_1 = arith.constant 0 : i32
    return %c0_i32, %c0_i32_0 : i32, i32
  }
  func.func @transform_5(%arg0: i32) -> (i32, i32) {
    %c0_i32 = arith.constant 0 : i32
    %c0_i32_0 = arith.constant 0 : i32
    %c0_i32_1 = arith.constant 0 : i32
    return %c0_i32, %c0_i32_0 : i32, i32
  }
  func.func @transform_6(%arg0: i32) -> (i32, i32) {
    %c0_i32 = arith.constant 0 : i32
    %c0_i32_0 = arith.constant 0 : i32
    %c0_i32_1 = arith.constant 0 : i32
    return %c0_i32, %c0_i32_0 : i32, i32
  }
  func.func @transform_7(%arg0: i32) -> (i32, i32) {
    %c0_i32 = arith.constant 0 : i32
    %c0_i32_0 = arith.constant 0 : i32
    %c0_i32_1 = arith.constant 0 : i32
    return %c0_i32, %c0_i32_0 : i32, i32
  }
  func.func @transform_8(%arg0: i32) -> (i32, i32) {
    %c0_i32 = arith.constant 0 : i32
    %c0_i32_0 = arith.constant 0 : i32
    %c0_i32_1 = arith.constant 0 : i32
    return %c0_i32, %c0_i32_0 : i32, i32
  }
  func.func @transform_9(%arg0: i32) -> (i32, i32) {
    %c0_i32 = arith.constant 0 : i32
    %c0_i32_0 = arith.constant 0 : i32
    %c0_i32_1 = arith.constant 0 : i32
    return %c0_i32, %c0_i32_0 : i32, i32
  }
  func.func @transform_10(%arg0: i32) -> (i32, i32) {
    %c0_i32 = arith.constant 0 : i32
    %c0_i32_0 = arith.constant 0 : i32
    %c0_i32_1 = arith.constant 0 : i32
    return %c0_i32, %c0_i32_0 : i32, i32
  }
  func.func @transform_11(%arg0: i32) -> (i32, i32) {
    %c0_i32 = arith.constant 0 : i32
    %c0_i32_0 = arith.constant 0 : i32
    %c0_i32_1 = arith.constant 0 : i32
    return %c0_i32, %c0_i32_0 : i32, i32
  }
  func.func @transform_12(%arg0: i32) -> (i32, i32, i32) {
    %c0_i32 = arith.constant 0 : i32
    %c0_i32_0 = arith.constant 0 : i32
    %c0_i32_1 = arith.constant 0 : i32
    return %arg0, %c0_i32, %c0_i32_0 : i32, i32, i32
  }
  func.func @transform_13(%arg0: i32) -> (i32, i32, i32) {
    %c0_i32 = arith.constant 0 : i32
    %c0_i32_0 = arith.constant 0 : i32
    %c0_i32_1 = arith.constant 0 : i32
    return %arg0, %c0_i32, %c0_i32_0 : i32, i32, i32
  }
}

module attributes {stable_mosaic.version = 11 : i64} {
  func.func @_head_kernel(%arg0: i32, %arg1: memref<8x32xf32, #tpu.memory_space<vmem>>, %arg2: memref<32x64xf32, #tpu.memory_space<vmem>>, %arg3: memref<1x64xf32, #tpu.memory_space<vmem>>, %arg4: memref<1x64xf32, #tpu.memory_space<vmem>>, %arg5: memref<8x64xf32, #tpu.memory_space<vmem>>, %arg6: memref<8x64xf32, #tpu.memory_space<vmem>>, %arg7: memref<8x64xf32, #tpu.memory_space<vmem>>) attributes {dimension_semantics = [#tpu.dimension_semantics<parallel>], iteration_bounds = array<i64: 1>, scalar_prefetch = 0 : i64, scratch_operands = 0 : i64, tpu.core_type = #tpu.core_type<tc>, window_params = [{transform_indices = @transform_0, window_bounds = array<i64: 8, 32>}, {pipeline_mode = #tpu.pipeline_mode<synchronous>, transform_indices = @transform_1, window_bounds = array<i64: 32, 64>}, {pipeline_mode = #tpu.pipeline_mode<synchronous>, transform_indices = @transform_2, window_bounds = array<i64: 1, 64>}, {pipeline_mode = #tpu.pipeline_mode<synchronous>, transform_indices = @transform_3, window_bounds = array<i64: 1, 64>}, {transform_indices = @transform_4, window_bounds = array<i64: 8, 64>}, {transform_indices = @transform_5, window_bounds = array<i64: 8, 64>}, {transform_indices = @transform_6, window_bounds = array<i64: 8, 64>}]} {
    %c0 = arith.constant 0 : index
    %c0_0 = arith.constant 0 : index
    %0 = vector.load %arg1[%c0, %c0_0] : memref<8x32xf32, #tpu.memory_space<vmem>>, vector<8x32xf32>
    %c0_1 = arith.constant 0 : index
    %c0_2 = arith.constant 0 : index
    %1 = vector.load %arg2[%c0_1, %c0_2] : memref<32x64xf32, #tpu.memory_space<vmem>>, vector<32x64xf32>
    %cst = arith.constant dense<0.000000e+00> : vector<8x64xf32>
    %2 = tpu.matmul %0, %1, %cst {dimension_numbers = #tpu.dot_dimension_numbers<[1], [0], [0], [1], [0, 0, 1, 1], [], []>} : vector<8x32xf32>, vector<32x64xf32>, vector<8x64xf32> -> vector<8x64xf32>
    %c0_3 = arith.constant 0 : index
    %c0_4 = arith.constant 0 : index
    %3 = vector.load %arg5[%c0_3, %c0_4] : memref<8x64xf32, #tpu.memory_space<vmem>>, vector<8x64xf32>
    tpu.vector_store %arg5[%c0_3, %c0_4], %2 {strides = array<i32>} : memref<8x64xf32, #tpu.memory_space<vmem>>, vector<8x64xf32>,
    %c0_5 = arith.constant 0 : index
    %c0_6 = arith.constant 0 : index
    %4 = vector.load %arg3[%c0_5, %c0_6] : memref<1x64xf32, #tpu.memory_space<vmem>>, vector<1x64xf32>
    %5 = vector.broadcast %4 : vector<1x64xf32> to vector<8x64xf32>
    %6 = arith.mulf %2, %5 : vector<8x64xf32>
    %c0_7 = arith.constant 0 : index
    %c0_8 = arith.constant 0 : index
    %7 = vector.load %arg4[%c0_7, %c0_8] : memref<1x64xf32, #tpu.memory_space<vmem>>, vector<1x64xf32>
    %8 = vector.broadcast %7 : vector<1x64xf32> to vector<8x64xf32>
    %9 = arith.addf %6, %8 : vector<8x64xf32>
    %c0_9 = arith.constant 0 : index
    %c0_10 = arith.constant 0 : index
    %10 = vector.load %arg6[%c0_9, %c0_10] : memref<8x64xf32, #tpu.memory_space<vmem>>, vector<8x64xf32>
    tpu.vector_store %arg6[%c0_9, %c0_10], %9 {strides = array<i32>} : memref<8x64xf32, #tpu.memory_space<vmem>>, vector<8x64xf32>,
    %cst_11 = arith.constant 0.000000e+00 : f32
    %11 = vector.broadcast %cst_11 : f32 to vector<8x64xf32>
    %12 = arith.subf %11, %9 : vector<8x64xf32>
    %13 = math.exp %12 : vector<8x64xf32>
    %cst_12 = arith.constant 1.000000e+00 : f32
    %14 = vector.broadcast %cst_12 : f32 to vector<8x64xf32>
    %15 = arith.addf %14, %13 : vector<8x64xf32>
    %16 = tpu.reciprocal %15 {approx = true} : vector<8x64xf32> -> vector<8x64xf32>
    %17 = arith.mulf %9, %16 : vector<8x64xf32>
    %c0_13 = arith.constant 0 : index
    %c0_14 = arith.constant 0 : index
    %18 = vector.load %arg7[%c0_13, %c0_14] : memref<8x64xf32, #tpu.memory_space<vmem>>, vector<8x64xf32>
    tpu.vector_store %arg7[%c0_13, %c0_14], %17 {strides = array<i32>} : memref<8x64xf32, #tpu.memory_space<vmem>>, vector<8x64xf32>,
    return
  }
  func.func @transform_0(%arg0: i32) -> (i32, i32) {
    %c0_i32 = arith.constant 0 : i32
    %c0_i32_0 = arith.constant 0 : i32
    return %arg0, %c0_i32 : i32, i32
  }
  func.func @transform_1(%arg0: i32) -> (i32, i32) {
    %c0_i32 = arith.constant 0 : i32
    %c0_i32_0 = arith.constant 0 : i32
    %c0_i32_1 = arith.constant 0 : i32
    return %c0_i32, %c0_i32_0 : i32, i32
  }
  func.func @transform_2(%arg0: i32) -> (i32, i32) {
    %c0_i32 = arith.constant 0 : i32
    %c0_i32_0 = arith.constant 0 : i32
    %c0_i32_1 = arith.constant 0 : i32
    return %c0_i32, %c0_i32_0 : i32, i32
  }
  func.func @transform_3(%arg0: i32) -> (i32, i32) {
    %c0_i32 = arith.constant 0 : i32
    %c0_i32_0 = arith.constant 0 : i32
    %c0_i32_1 = arith.constant 0 : i32
    return %c0_i32, %c0_i32_0 : i32, i32
  }
  func.func @transform_4(%arg0: i32) -> (i32, i32) {
    %c0_i32 = arith.constant 0 : i32
    %c0_i32_0 = arith.constant 0 : i32
    return %arg0, %c0_i32 : i32, i32
  }
  func.func @transform_5(%arg0: i32) -> (i32, i32) {
    %c0_i32 = arith.constant 0 : i32
    %c0_i32_0 = arith.constant 0 : i32
    return %arg0, %c0_i32 : i32, i32
  }
  func.func @transform_6(%arg0: i32) -> (i32, i32) {
    %c0_i32 = arith.constant 0 : i32
    %c0_i32_0 = arith.constant 0 : i32
    return %arg0, %c0_i32 : i32, i32
  }
}

</mosaic_0001>

<llo_original>
// kernel: encoder_forward.6
$region0: #{encoder_forward.6}
  #allocation0 [shape = 'u32[]', space=smem, size = 0x4, offset = 0x4, fixed_abs, tag = 'smem constant byte address 0x4 - core index']
  #allocation1 [shape = 'u32[72,128]{1,0:T(1,128)}', space=vmem, size = 0x9000, scoped, tag = 'internal scratch']
  #allocation2 [shape = 'f32[10,10,8]{2,1,0:T(8,128)}', space=vmem, size = 0x14000, scoped, tag = 'scratch operand']
  %s0 = inlined_call_operand.vmem [shape: f32[2,8,8,8], index: 0, kind: input, shape index: {}]
  %s1 = inlined_call_operand.vmem [shape: f32[9,8], index: 1, kind: input, shape index: {}]
  %s2 = inlined_call_operand.vmem [shape: f32[1,8], index: 2, kind: input, shape index: {}]
  %s3 = inlined_call_operand.vmem [shape: f32[8,8], index: 3, kind: input, shape index: {}]
  %s4 = inlined_call_operand.vmem [shape: f32[1,8], index: 4, kind: input, shape index: {}]
  %s5 = inlined_call_operand.vmem [shape: f32[2,64,8], index: 5, kind: output, shape index: {}]
  %s6 = sld [smem:[#allocation0]]
  $region53: #{encoder_forward.6} parent=0
    _
  %s8 = ssub.s32 1, %s6
  %s9 = scalar_select 0, %s8, %s6
  loop: start=0, step=1, limit=4
  $region2: #{encoder_forward.6} parent=0 // loop_pre_header
    _
  $region3: #{encoder_forward.6} parent=0 // loop_header
    %s11 = sphi 0, %s15
    %p12 = scmp.ge.s32.totalorder %s11, 4
    %s21 = sphi 0, %s23
    %s24 = sphi 0, %s21
    %s25 = sphi 0, %s24
    %s41 = sphi 0, %s25
    %s45 = sphi 0, %s45
    %s47 = sphi 0, %s45
    %s48 = sphi 0, %s47
    %s62 = sphi 0, %s48
    %s66 = sphi 0, %s66
    %s68 = sphi 0, %s66
    %s69 = sphi 0, %s68
    %s83 = sphi 0, %s69
    %s87 = sphi 0, %s87
    %s89 = sphi 0, %s87
    %s90 = sphi 0, %s89
    %s104 = sphi 0, %s90
    %s108 = sphi 0, %s108
    %s110 = sphi 0, %s108
    %s111 = sphi 0, %s110
    %s125 = sphi 0, %s111
    %s131 = sphi 0, %s133
    %s134 = sphi 0, %s131
    %s135 = sphi 0, %s134
    %s151 = sphi 0, %s135
  $region4: #{encoder_forward.6} parent=0 // loop_header_branch
    %14 = sbr.rel (%p12) target = $region8
  $region5: #{encoder_forward.6} parent=0 // loop_body
    %s16 = ssub.s32 %s11, 1
    %s17 = ssub.s32 %s11, 2
    %s18 = sadd.s32 %s11, 1
    %s19 = ssub.s32 %s11, %s18
    %p20 = scmp.eq.s32.totalorder %s19, 0
    %s22 = sadd.s32 %s21, 1
    %s23 = scalar_select %p20, %s21, %s22
    %p26 = pneg %p20
    %p27 = scmp.eq.s32.totalorder %s11, 1
    %p28 = por %p26, %p27
    %p29 = scmp.ne.s32.totalorder %s21, %s24
    %p30 = scmp.eq.s32.totalorder %s11, 0
    %p31 = por %p29, %p30
    %p32 = scmp.ne.s32.totalorder %s21, %s24
    %p33 = scmp.eq.s32.totalorder %s16, 1
    %p34 = por %p32, %p33
    %p35 = scmp.ne.s32.totalorder %s24, %s25
    %p36 = scmp.eq.s32.totalorder %s16, 0
    %p37 = por %p35, %p36
    %p38 = scmp.ne.s32.totalorder %s24, %s25
    %p39 = scmp.eq.s32.totalorder %s17, 1
    %p40 = por %p38, %p39
    %p42 = scmp.ne.s32.totalorder %s25, %s41
    %p43 = scmp.eq.s32.totalorder %s17, 0
    %p44 = por %p42, %p43
    %s46 = sadd.s32 %s45, 1
    %p49 = scmp.eq.s32.totalorder %s11, 1
    %p50 = scmp.ne.s32.totalorder %s45, %s47
    %p51 = scmp.eq.s32.totalorder %s11, 0
    %p52 = por %p50, %p51
    %p53 = scmp.ne.s32.totalorder %s45, %s47
    %p54 = scmp.eq.s32.totalorder %s16, 1
    %p55 = por %p53, %p54
    %p56 = scmp.ne.s32.totalorder %s47, %s48
    %p57 = scmp.eq.s32.totalorder %s16, 0
    %p58 = por %p56, %p57
    %p59 = scmp.ne.s32.totalorder %s47, %s48
    %p60 = scmp.eq.s32.totalorder %s17, 1
    %p61 = por %p59, %p60
    %p63 = scmp.ne.s32.totalorder %s48, %s62
    %p64 = scmp.eq.s32.totalorder %s17, 0
    %p65 = por %p63, %p64
    %s67 = sadd.s32 %s66, 1
    %p70 = scmp.eq.s32.totalorder %s11, 1
    %p71 = scmp.ne.s32.totalorder %s66, %s68
    %p72 = scmp.eq.s32.totalorder %s11, 0
    %p73 = por %p71, %p72
    %p74 = scmp.ne.s32.totalorder %s66, %s68
    %p75 = scmp.eq.s32.totalorder %s16, 1
    %p76 = por %p74, %p75
    %p77 = scmp.ne.s32.totalorder %s68, %s69
    %p78 = scmp.eq.s32.totalorder %s16, 0
    %p79 = por %p77, %p78
    %p80 = scmp.ne.s32.totalorder %s68, %s69
    %p81 = scmp.eq.s32.totalorder %s17, 1
    %p82 = por %p80, %p81
    %p84 = scmp.ne.s32.totalorder %s69, %s83
    %p85 = scmp.eq.s32.totalorder %s17, 0
    %p86 = por %p84, %p85
    %s88 = sadd.s32 %s87, 1
    %p91 = scmp.eq.s32.totalorder %s11, 1
    %p92 = scmp.ne.s32.totalorder %s87, %s89
    %p93 = scmp.eq.s32.totalorder %s11, 0
    %p94 = por %p92, %p93
    %p95 = scmp.ne.s32.totalorder %s87, %s89
    %p96 = scmp.eq.s32.totalorder %s16, 1
    %p97 = por %p95, %p96
    %p98 = scmp.ne.s32.totalorder %s89, %s90
    %p99 = scmp.eq.s32.totalorder %s16, 0
    %p100 = por %p98, %p99
    %p101 = scmp.ne.s32.totalorder %s89, %s90
    %p102 = scmp.eq.s32.totalorder %s17, 1
    %p103 = por %p101, %p102
    %p105 = scmp.ne.s32.totalorder %s90, %s104
    %p106 = scmp.eq.s32.totalorder %s17, 0
    %p107 = por %p105, %p106
    %s109 = sadd.s32 %s108, 1
    %p112 = scmp.eq.s32.totalorder %s11, 1
    %p113 = scmp.ne.s32.totalorder %s108, %s110
    %p114 = scmp.eq.s32.totalorder %s11, 0
    %p115 = por %p113, %p114
    %p116 = scmp.ne.s32.totalorder %s108, %s110
    %p117 = scmp.eq.s32.totalorder %s16, 1
    %p118 = por %p116, %p117
    %p119 = scmp.ne.s32.totalorder %s110, %s111
    %p120 = scmp.eq.s32.totalorder %s16, 0
    %p121 = por %p119, %p120
    %p122 = scmp.ne.s32.totalorder %s110, %s111
    %p123 = scmp.eq.s32.totalorder %s17, 1
    %p124 = por %p122, %p123
    %p126 = scmp.ne.s32.totalorder %s111, %s125
    %p127 = scmp.eq.s32.totalorder %s17, 0
    %p128 = por %p126, %p127
    %s129 = ssub.s32 %s11, %s18
    %p130 = scmp.eq.s32.totalorder %s129, 0
    %s132 = sadd.s32 %s131, 1
    %s133 = scalar_select %p130, %s131, %s132
    %p136 = pneg %p130
    %p137 = scmp.eq.s32.totalorder %s11, 1
    %p138 = por %p136, %p137
    %p139 = scmp.ne.s32.totalorder %s131, %s134
    %p140 = scmp.eq.s32.totalorder %s11, 0
    %p141 = por %p139, %p140
    %p142 = scmp.ne.s32.totalorder %s131, %s134
    %p143 = scmp.eq.s32.totalorder %s16, 1
    %p144 = por %p142, %p143
    %p145 = scmp.ne.s32.totalorder %s134, %s135
    %p146 = scmp.eq.s32.totalorder %s16, 0
    %p147 = por %p145, %p146
    %p148 = scmp.ne.s32.totalorder %s134, %s135
    %p149 = scmp.eq.s32.totalorder %s17, 1
    %p150 = por %p148, %p149
    %p152 = scmp.ne.s32.totalorder %s135, %s151
    %p153 = scmp.eq.s32.totalorder %s17, 0
    %p154 = por %p152, %p153
    %p155 = scmp.le.s32.totalorder 1, %s11
    %p156 = scmp.lt.s32.totalorder %s11, 3
    %p157 = pnand %p155, %p156
    %p158 = pneg %p157
    // Predicated region
    $region9: #{encoder_forward.6} parent=5 // pred_check
      _
    $region10: #{encoder_forward.6} parent=5 // pred_check_branch
      %160 = sbr.rel (%p157) target = $region12
    $region11: #{encoder_forward.6} parent=5 // pred_region
      %s161 = ssub.s32 %s11, 1
      // Predicated region
      $region13: #{encoder_forward.6} parent=11 // pred_check
        %p162 = pneg %p58
      $region14: #{encoder_forward.6} parent=11 // pred_check_branch
        %164 = sbr.rel (%p162) target = $region16
      $region15: #{encoder_forward.6} parent=11 // pred_region
        _
      $region16: #{encoder_forward.6} parent=11 // pred_fallthru
        _
      // Predicated region
      $region17: #{encoder_forward.6} parent=11 // pred_check
        %p165 = pneg %p79
      $region18: #{encoder_forward.6} parent=11 // pred_check_branch
        %167 = sbr.rel (%p165) target = $region20
      $region19: #{encoder_forward.6} parent=11 // pred_region
        _
      $region20: #{encoder_forward.6} parent=11 // pred_fallthru
        _
      // Predicated region
      $region21: #{encoder_forward.6} parent=11 // pred_check
        %p168 = pneg %p100
      $region22: #{encoder_forward.6} parent=11 // pred_check_branch
        %170 = sbr.rel (%p168) target = $region24
      $region23: #{encoder_forward.6} parent=11 // pred_region
        _
      $region24: #{encoder_forward.6} parent=11 // pred_fallthru
        _
      // Predicated region
      $region25: #{encoder_forward.6} parent=11 // pred_check
        %p171 = pneg %p121
      $region26: #{encoder_forward.6} parent=11 // pred_check_branch
        %173 = sbr.rel (%p171) target = $region28
      $region27: #{encoder_forward.6} parent=11 // pred_region
        _
      $region28: #{encoder_forward.6} parent=11 // pred_fallthru
        _
    $region12: #{encoder_forward.6} parent=5 // pred_fallthru
      _
    %p174 = scmp.lt.s32.totalorder %s11, 2
    // Predicated region
    $region29: #{encoder_forward.6} parent=5 // pred_check
      %p175 = pneg %p174
    $region30: #{encoder_forward.6} parent=5 // pred_check_branch
      %177 = sbr.rel (%p175) target = $region32
    $region31: #{encoder_forward.6} parent=5 // pred_region
      // Predicated region
      $region33: #{encoder_forward.6} parent=31 // pred_check
        %p178 = pneg %p31
      $region34: #{encoder_forward.6} parent=31 // pred_check_branch
        %180 = sbr.rel (%p178) target = $region36
      $region35: #{encoder_forward.6} parent=31 // pred_region
        %p181 = scmp.lt.s32.totalorder %s11, 1
        %s182 = scalar_select %p181, %s11, 1
        %s183 = smul.addr %s182, 8
        %s184 = smul.addr %s183, 8
        %s185 = scalar_lea.vmem %s0, %s184
      $region36: #{encoder_forward.6} parent=31 // pred_fallthru
        _
    $region32: #{encoder_forward.6} parent=5 // pred_fallthru
      _
    %p186 = scmp.le.s32.totalorder 1, %s11
    %p187 = scmp.lt.s32.totalorder %s11, 3
    %p188 = pnand %p186, %p187
    %p189 = pneg %p188
    // Predicated region
    $region37: #{encoder_forward.6} parent=5 // pred_check
      _
    $region38: #{encoder_forward.6} parent=5 // pred_check_branch
      %191 = sbr.rel (%p188) target = $region40
    $region39: #{encoder_forward.6} parent=5 // pred_region
      %s192 = ssub.s32 %s11, 1
      %p193 = scmp.lt.s32.totalorder %s16, 1
      %s194 = scalar_select %p193, %s16, 1
      %s195 = smul.addr %s194, 8
      %s196 = smul.addr %s195, 8
      %s197 = scalar_lea.vmem %s0, %s196
      %p198 = pneg %p37
      %p199 = pneg %p34
      %p200 = pneg %p58
      %p201 = pneg %p55
      %p202 = pneg %p79
      %p203 = pneg %p76
      %p204 = pneg %p100
      %p205 = pneg %p97
      %p206 = pneg %p121
      %p207 = pneg %p118
      %p208 = pneg %p147
      %p209 = pneg %p144
      %p210 = scmp.lt.s32.totalorder %s16, 1
      %s211 = scalar_select %p210, %s16, 1
      %s212 = smul.addr %s211, 8
      %s213 = smul.addr %s212, 8
      %s214 = scalar_lea.vmem %s5, %s213
      %p215 = scmp.lt.s32.totalorder %s16, 1
      %s216 = scalar_select %p215, %s16, 1
      %s217 = smul.addr %s216, 8
      %s218 = smul.addr %s217, 8
      %s219 = scalar_lea.vmem %s0, %s218
      %p220 = scmp.lt.s32.totalorder %s16, 1
      %s221 = scalar_select %p220, %s16, 1
      %s222 = smul.addr %s221, 8
      %s223 = smul.addr %s222, 8
      %s224 = scalar_lea.vmem %s5, %s223
      %vm225 = vcmask 64512
      %226 = vst.msk [vmem:[#allocation2] sm:$0xff] %vm225, 0.0
      %vm227 = vcmask 58368
      %228 = vst.msk [vmem:[#allocation2 + $0x8] sm:$0x3] %vm227, 0.0
      %229 = vst.msk [vmem:[#allocation2 + $0x10] sm:$0xff] %vm225, 0.0
      %230 = vst.msk [vmem:[#allocation2 + $0x18] sm:$0x3] %vm227, 0.0
      %231 = vst.msk [vmem:[#allocation2 + $0x20] sm:$0xff] %vm225, 0.0
      %232 = vst.msk [vmem:[#allocation2 + $0x28] sm:$0x3] %vm227, 0.0
      %233 = vst.msk [vmem:[#allocation2 + $0x30] sm:$0xff] %vm225, 0.0
      %234 = vst.msk [vmem:[#allocation2 + $0x38] sm:$0x3] %vm227, 0.0
      %235 = vst.msk [vmem:[#allocation2 + $0x40] sm:$0xff] %vm225, 0.0
      %236 = vst.msk [vmem:[#allocation2 + $0x48] sm:$0x3] %vm227, 0.0
      %237 = vst.msk [vmem:[#allocation2 + $0x50] sm:$0xff] %vm225, 0.0
      %238 = vst.msk [vmem:[#allocation2 + $0x58] sm:$0x3] %vm227, 0.0
      %239 = vst.msk [vmem:[#allocation2 + $0x60] sm:$0xff] %vm225, 0.0
      %240 = vst.msk [vmem:[#allocation2 + $0x68] sm:$0x3] %vm227, 0.0
      %241 = vst.msk [vmem:[#allocation2 + $0x70] sm:$0xff] %vm225, 0.0
      %242 = vst.msk [vmem:[#allocation2 + $0x78] sm:$0x3] %vm227, 0.0
      %243 = vst.msk [vmem:[#allocation2 + $0x80] sm:$0xff] %vm225, 0.0
      %244 = vst.msk [vmem:[#allocation2 + $0x88] sm:$0x3] %vm227, 0.0
      %245 = vst.msk [vmem:[#allocation2 + $0x90] sm:$0xff] %vm225, 0.0
      %246 = vst.msk [vmem:[#allocation2 + $0x98] sm:$0x3] %vm227, 0.0
      %v247 = vld [vmem:[%s1] sm:$0xff]
      %v248 = vld [vmem:[%s1 + $0x8] sm:$0x1]
      %v249 = vld [vmem:[%s2] sm:$0x1]
      %v250 = vld [vmem:[%s3] sm:$0xff]
      %v251 = vld [vmem:[%s4] sm:$0x1]
      %v252 = vld [vmem:[%s219] sm:$0xff]
      %v253 = vld [vmem:[%s219 + $0x8] sm:$0xff]
      %v254 = vld [vmem:[%s219 + $0x10] sm:$0xff]
      %v255 = vld [vmem:[%s219 + $0x18] sm:$0xff]
      %v256 = vld [vmem:[%s219 + $0x20] sm:$0xff]
      %v257 = vld [vmem:[%s219 + $0x28] sm:$0xff]
      %v258 = vld [vmem:[%s219 + $0x30] sm:$0xff]
      %v259 = vld [vmem:[%s219 + $0x38] sm:$0xff]
      %s260 = scalar_lea.vmem [#allocation2], 16
      %261 = vst.msk [vmem:[%s260 + $0x1] sm:$0xff] %vm225, %v252
      %262 = vst.msk [vmem:[%s260 + $0x11] sm:$0xff] %vm225, %v253
      %263 = vst.msk [vmem:[%s260 + $0x21] sm:$0xff] %vm225, %v254
      %264 = vst.msk [vmem:[%s260 + $0x31] sm:$0xff] %vm225, %v255
      %265 = vst.msk [vmem:[%s260 + $0x41] sm:$0xff] %vm225, %v256
      %266 = vst.msk [vmem:[%s260 + $0x51] sm:$0xff] %vm225, %v257
      %267 = vst.msk [vmem:[%s260 + $0x61] sm:$0xff] %vm225, %v258
      %268 = vst.msk [vmem:[%s260 + $0x71] sm:$0xff] %vm225, %v259
      %v269 = vld [vmem:[#allocation2] sm:$0xff]
      %v270 = vld [vmem:[#allocation2 + $0x10] sm:$0xff]
      %v271 = vld [vmem:[#allocation2 + $0x20] sm:$0xff]
      %v272 = vld [vmem:[#allocation2 + $0x30] sm:$0xff]
      %v273 = vld [vmem:[#allocation2 + $0x40] sm:$0xff]
      %v274 = vld [vmem:[#allocation2 + $0x50] sm:$0xff]
      %v275 = vld [vmem:[#allocation2 + $0x60] sm:$0xff]
      %v276 = vld [vmem:[#allocation2 + $0x70] sm:$0xff]
      %v277 = vld [vmem:[#allocation2 + $0x1] sm:$0xff]
      %v278 = vld [vmem:[#allocation2 + $0x11] sm:$0xff]
      %v279 = vld [vmem:[#allocation2 + $0x21] sm:$0xff]
      %v280 = vld [vmem:[#allocation2 + $0x31] sm:$0xff]
      %v281 = vld [vmem:[#allocation2 + $0x41] sm:$0xff]
      %v282 = vld [vmem:[#allocation2 + $0x51] sm:$0xff]
      %v283 = vld [vmem:[#allocation2 + $0x61] sm:$0xff]
      %v284 = vld [vmem:[#allocation2 + $0x71] sm:$0xff]
      %v285 = vld [vmem:[#allocation2 + $0x2] sm:$0xff]
      %v286 = vld [vmem:[#allocation2 + $0x12] sm:$0xff]
      %v287 = vld [vmem:[#allocation2 + $0x22] sm:$0xff]
      %v288 = vld [vmem:[#allocation2 + $0x32] sm:$0xff]
      %v289 = vld [vmem:[#allocation2 + $0x42] sm:$0xff]
      %v290 = vld [vmem:[#allocation2 + $0x52] sm:$0xff]
      %v291 = vld [vmem:[#allocation2 + $0x62] sm:$0xff]
      %v292 = vld [vmem:[#allocation2 + $0x72] sm:$0xff]
      %v293 = vld [vmem:[%s260] sm:$0xff]
      %v294 = vld [vmem:[%s260 + $0x10] sm:$0xff]
      %v295 = vld [vmem:[%s260 + $0x20] sm:$0xff]
      %v296 = vld [vmem:[%s260 + $0x30] sm:$0xff]
      %v297 = vld [vmem:[%s260 + $0x40] sm:$0xff]
      %v298 = vld [vmem:[%s260 + $0x50] sm:$0xff]
      %v299 = vld [vmem:[%s260 + $0x60] sm:$0xff]
      %v300 = vld [vmem:[%s260 + $0x70] sm:$0xff]
      %v301 = vld [vmem:[%s260 + $0x1] sm:$0xff]
      %v302 = vld [vmem:[%s260 + $0x11] sm:$0xff]
      %v303 = vld [vmem:[%s260 + $0x21] sm:$0xff]
      %v304 = vld [vmem:[%s260 + $0x31] sm:$0xff]
      %v305 = vld [vmem:[%s260 + $0x41] sm:$0xff]
      %v306 = vld [vmem:[%s260 + $0x51] sm:$0xff]
      %v307 = vld [vmem:[%s260 + $0x61] sm:$0xff]
      %v308 = vld [vmem:[%s260 + $0x71] sm:$0xff]
      %v309 = vld [vmem:[%s260 + $0x2] sm:$0xff]
      %v310 = vld [vmem:[%s260 + $0x12] sm:$0xff]
      %v311 = vld [vmem:[%s260 + $0x22] sm:$0xff]
      %v312 = vld [vmem:[%s260 + $0x32] sm:$0xff]
      %v313 = vld [vmem:[%s260 + $0x42] sm:$0xff]
      %v314 = vld [vmem:[%s260 + $0x52] sm:$0xff]
      %v315 = vld [vmem:[%s260 + $0x62] sm:$0xff]
      %v316 = vld [vmem:[%s260 + $0x72] sm:$0xff]
      %s317 = scalar_lea.vmem [#allocation2], 32
      %v318 = vld [vmem:[%s317] sm:$0xff]
      %v319 = vld [vmem:[%s317 + $0x10] sm:$0xff]
      %v320 = vld [vmem:[%s317 + $0x20] sm:$0xff]
      %v321 = vld [vmem:[%s317 + $0x30] sm:$0xff]
      %v322 = vld [vmem:[%s317 + $0x40] sm:$0xff]
      %v323 = vld [vmem:[%s317 + $0x50] sm:$0xff]
      %v324 = vld [vmem:[%s317 + $0x60] sm:$0xff]
      %v325 = vld [vmem:[%s317 + $0x70] sm:$0xff]
      %v326 = vld [vmem:[%s317 + $0x1] sm:$0xff]
      %v327 = vld [vmem:[%s317 + $0x11] sm:$0xff]
      %v328 = vld [vmem:[%s317 + $0x21] sm:$0xff]
      %v329 = vld [vmem:[%s317 + $0x31] sm:$0xff]
      %v330 = vld [vmem:[%s317 + $0x41] sm:$0xff]
      %v331 = vld [vmem:[%s317 + $0x51] sm:$0xff]
      %v332 = vld [vmem:[%s317 + $0x61] sm:$0xff]
      %v333 = vld [vmem:[%s317 + $0x71] sm:$0xff]
      %v334 = vld [vmem:[%s317 + $0x2] sm:$0xff]
      %v335 = vld [vmem:[%s317 + $0x12] sm:$0xff]
      %v336 = vld [vmem:[%s317 + $0x22] sm:$0xff]
      %v337 = vld [vmem:[%s317 + $0x32] sm:$0xff]
      %v338 = vld [vmem:[%s317 + $0x42] sm:$0xff]
      %v339 = vld [vmem:[%s317 + $0x52] sm:$0xff]
      %v340 = vld [vmem:[%s317 + $0x62] sm:$0xff]
      %v341 = vld [vmem:[%s317 + $0x72] sm:$0xff]
      %v342 = vperm.slane %v247, 0
      %v343 = vmul.f32 %v269, %v342
      %v344 = vmul.f32 %v270, %v342
      %v345 = vmul.f32 %v271, %v342
      %v346 = vmul.f32 %v272, %v342
      %v347 = vmul.f32 %v273, %v342
      %v348 = vmul.f32 %v274, %v342
      %v349 = vmul.f32 %v275, %v342
      %v350 = vmul.f32 %v276, %v342
      %v351 = vperm.slane %v247, 1
      %v352 = vmul.f32 %v277, %v351
      %v353 = vmul.f32 %v278, %v351
      %v354 = vmul.f32 %v279, %v351
      %v355 = vmul.f32 %v280, %v351
      %v356 = vmul.f32 %v281, %v351
      %v357 = vmul.f32 %v282, %v351
      %v358 = vmul.f32 %v283, %v351
      %v359 = vmul.f32 %v284, %v351
      %v360 = vadd.f32 %v343, %v352
      %v361 = vadd.f32 %v344, %v353
      %v362 = vadd.f32 %v345, %v354
      %v363 = vadd.f32 %v346, %v355
      %v364 = vadd.f32 %v347, %v356
      %v365 = vadd.f32 %v348, %v357
      %v366 = vadd.f32 %v349, %v358
      %v367 = vadd.f32 %v350, %v359
      %v368 = vperm.slane %v247, 2
      %v369 = vmul.f32 %v285, %v368
      %v370 = vmul.f32 %v286, %v368
      %v371 = vmul.f32 %v287, %v368
      %v372 = vmul.f32 %v288, %v368
      %v373 = vmul.f32 %v289, %v368
      %v374 = vmul.f32 %v290, %v368
      %v375 = vmul.f32 %v291, %v368
      %v376 = vmul.f32 %v292, %v368
      %v377 = vadd.f32 %v360, %v369
      %v378 = vadd.f32 %v361, %v370
      %v379 = vadd.f32 %v362, %v371
      %v380 = vadd.f32 %v363, %v372
      %v381 = vadd.f32 %v364, %v373
      %v382 = vadd.f32 %v365, %v374
      %v383 = vadd.f32 %v366, %v375
      %v384 = vadd.f32 %v367, %v376
      %v385 = vperm.slane %v247, 3
      %v386 = vmul.f32 %v293, %v385
      %v387 = vmul.f32 %v294, %v385
      %v388 = vmul.f32 %v295, %v385
      %v389 = vmul.f32 %v296, %v385
      %v390 = vmul.f32 %v297, %v385
      %v391 = vmul.f32 %v298, %v385
      %v392 = vmul.f32 %v299, %v385
      %v393 = vmul.f32 %v300, %v385
      %v394 = vadd.f32 %v377, %v386
      %v395 = vadd.f32 %v378, %v387
      %v396 = vadd.f32 %v379, %v388
      %v397 = vadd.f32 %v380, %v389
      %v398 = vadd.f32 %v381, %v390
      %v399 = vadd.f32 %v382, %v391
      %v400 = vadd.f32 %v383, %v392
      %v401 = vadd.f32 %v384, %v393
      %v402 = vperm.slane %v247, 4
      %v403 = vmul.f32 %v301, %v402
      %v404 = vmul.f32 %v302, %v402
      %v405 = vmul.f32 %v303, %v402
      %v406 = vmul.f32 %v304, %v402
      %v407 = vmul.f32 %v305, %v402
      %v408 = vmul.f32 %v306, %v402
      %v409 = vmul.f32 %v307, %v402
      %v410 = vmul.f32 %v308, %v402
      %v411 = vadd.f32 %v394, %v403
      %v412 = vadd.f32 %v395, %v404
      %v413 = vadd.f32 %v396, %v405
      %v414 = vadd.f32 %v397, %v406
      %v415 = vadd.f32 %v398, %v407
      %v416 = vadd.f32 %v399, %v408
      %v417 = vadd.f32 %v400, %v409
      %v418 = vadd.f32 %v401, %v410
      %v419 = vperm.slane %v247, 5
      %v420 = vmul.f32 %v309, %v419
      %v421 = vmul.f32 %v310, %v419
      %v422 = vmul.f32 %v311, %v419
      %v423 = vmul.f32 %v312, %v419
      %v424 = vmul.f32 %v313, %v419
      %v425 = vmul.f32 %v314, %v419
      %v426 = vmul.f32 %v315, %v419
      %v427 = vmul.f32 %v316, %v419
      %v428 = vadd.f32 %v411, %v420
      %v429 = vadd.f32 %v412, %v421
      %v430 = vadd.f32 %v413, %v422
      %v431 = vadd.f32 %v414, %v423
      %v432 = vadd.f32 %v415, %v424
      %v433 = vadd.f32 %v416, %v425
      %v434 = vadd.f32 %v417, %v426
      %v435 = vadd.f32 %v418, %v427
      %v436 = vperm.slane %v247, 6
      %v437 = vmul.f32 %v318, %v436
      %v438 = vmul.f32 %v319, %v436
      %v439 = vmul.f32 %v320, %v436
      %v440 = vmul.f32 %v321, %v436
      %v441 = vmul.f32 %v322, %v436
      %v442 = vmul.f32 %v323, %v436
      %v443 = vmul.f32 %v324, %v436
      %v444 = vmul.f32 %v325, %v436
      %v445 = vadd.f32 %v428, %v437
      %v446 = vadd.f32 %v429, %v438
      %v447 = vadd.f32 %v430, %v439
      %v448 = vadd.f32 %v431, %v440
      %v449 = vadd.f32 %v432, %v441
      %v450 = vadd.f32 %v433, %v442
      %v451 = vadd.f32 %v434, %v443
      %v452 = vadd.f32 %v435, %v444
      %v453 = vperm.slane %v247, 7
      %v454 = vmul.f32 %v326, %v453
      %v455 = vmul.f32 %v327, %v453
      %v456 = vmul.f32 %v328, %v453
      %v457 = vmul.f32 %v329, %v453
      %v458 = vmul.f32 %v330, %v453
      %v459 = vmul.f32 %v331, %v453
      %v460 = vmul.f32 %v332, %v453
      %v461 = vmul.f32 %v333, %v453
      %v462 = vadd.f32 %v445, %v454
      %v463 = vadd.f32 %v446, %v455
      %v464 = vadd.f32 %v447, %v456
      %v465 = vadd.f32 %v448, %v457
      %v466 = vadd.f32 %v449, %v458
      %v467 = vadd.f32 %v450, %v459
      %v468 = vadd.f32 %v451, %v460
      %v469 = vadd.f32 %v452, %v461
      %v470 = vperm.slane %v248, 0
      %v471 = vmul.f32 %v334, %v470
      %v472 = vmul.f32 %v335, %v470
      %v473 = vmul.f32 %v336, %v470
      %v474 = vmul.f32 %v337, %v470
      %v475 = vmul.f32 %v338, %v470
      %v476 = vmul.f32 %v339, %v470
      %v477 = vmul.f32 %v340, %v470
      %v478 = vmul.f32 %v341, %v470
      %v479 = vadd.f32 %v462, %v471
      %v480 = vadd.f32 %v463, %v472
      %v481 = vadd.f32 %v464, %v473
      %v482 = vadd.f32 %v465, %v474
      %v483 = vadd.f32 %v466, %v475
      %v484 = vadd.f32 %v467, %v476
      %v485 = vadd.f32 %v468, %v477
      %v486 = vadd.f32 %v469, %v478
      %v488 = vperm.slane %v249, 0
      %v490 = vadd.f32 %v479, %v488
      %v491 = vadd.f32 %v480, %v488
      %v492 = vadd.f32 %v481, %v488
      %v493 = vadd.f32 %v482, %v488
      %v494 = vadd.f32 %v483, %v488
      %v495 = vadd.f32 %v484, %v488
      %v496 = vadd.f32 %v485, %v488
      %v497 = vadd.f32 %v486, %v488
      %v498 = vsub.f32 0.0, %v490
      %v499 = vsub.f32 0.0, %v491
      %v500 = vsub.f32 0.0, %v492
      %v501 = vsub.f32 0.0, %v493
      %v502 = vsub.f32 0.0, %v494
      %v503 = vsub.f32 0.0, %v495
      %v504 = vsub.f32 0.0, %v496
      %v505 = vsub.f32 0.0, %v497
      %v506 = vmul.f32 %v498, 1.442695
      %v507 = vpow.pop %v506
      %v508 = vmul.f32 %v499, 1.442695
      %v509 = vpow.pop %v508
      %v510 = vmul.f32 %v500, 1.442695
      %v511 = vpow.pop %v510
      %v512 = vmul.f32 %v501, 1.442695
      %v513 = vpow.pop %v512
      %v514 = vmul.f32 %v502, 1.442695
      %v515 = vpow.pop %v514
      %v516 = vmul.f32 %v503, 1.442695
      %v517 = vpow.pop %v516
      %v518 = vmul.f32 %v504, 1.442695
      %v519 = vpow.pop %v518
      %v520 = vmul.f32 %v505, 1.442695
      %v521 = vpow.pop %v520
      %v522 = vadd.f32 %v507, 1.0
      %v523 = vadd.f32 %v509, 1.0
      %v524 = vadd.f32 %v511, 1.0
      %v525 = vadd.f32 %v513, 1.0
      %v526 = vadd.f32 %v515, 1.0
      %v527 = vadd.f32 %v517, 1.0
      %v528 = vadd.f32 %v519, 1.0
      %v529 = vadd.f32 %v521, 1.0
      %v530 = vrcp.pop %v522
      %v531 = vrcp.pop %v523
      %v532 = vrcp.pop %v524
      %v533 = vrcp.pop %v525
      %v534 = vrcp.pop %v526
      %v535 = vrcp.pop %v527
      %v536 = vrcp.pop %v528
      %v537 = vrcp.pop %v529
      %v538 = vmul.f32 %v490, %v530
      %v539 = vmul.f32 %v491, %v531
      %v540 = vmul.f32 %v492, %v532
      %v541 = vmul.f32 %v493, %v533
      %v542 = vmul.f32 %v494, %v534
      %v543 = vmul.f32 %v495, %v535
      %v544 = vmul.f32 %v496, %v536
      %v545 = vmul.f32 %v497, %v537
      %v547 = vperm.slane %v251, 0
      %v550 = vsel %vm225, %v538, 0
      %v553 = vsel %vm225, %v539, 0
      %v556 = vsel %vm225, %v540, 0
      %v559 = vsel %vm225, %v541, 0
      %v562 = vsel %vm225, %v542, 0
      %v565 = vsel %vm225, %v543, 0
      %v568 = vsel %vm225, %v544, 0
      %v571 = vsel %vm225, %v545, 0
      %573 = vmatpush.msra.mxu0 0.0
      %574 = vmatpush.msra.mxu0 0.0
      %575 = vmatpush.msra.mxu0 0.0
      %576 = vmatpush.msra.mxu0 0.0
      %577 = vmatpush.msra.mxu0 0.0
      %578 = vmatpush.msra.mxu0 0.0
      %579 = vmatpush.msra.mxu0 0.0
      %580 = vmatpush.msra.mxu0 0.0
      %581 = vmatpush.msra.mxu0 0.0
      %582 = vmatpush.msra.mxu0 0.0
      %583 = vmatpush.msra.mxu0 0.0
      %584 = vmatpush.msra.mxu0 0.0
      %585 = vmatpush.msra.mxu0 0.0
      %586 = vmatpush.msra.mxu0 0.0
      %587 = vmatpush.msra.mxu0 0.0
      %588 = vmatpush.msra.mxu0 %v250
      %589 = vmatmul.f32.gmra.mxu0 %v550
      %v590 = vpop.f32.mrf.mxu0
      %v591 = vadd.f32 %v547, %v590
      %592 = vmatmul.f32.gmra.mxu0 %v553
      %v593 = vpop.f32.mrf.mxu0
      %v594 = vadd.f32 %v547, %v593
      %595 = vmatmul.f32.gmra.mxu0 %v556
      %v596 = vpop.f32.mrf.mxu0
      %v597 = vadd.f32 %v547, %v596
      %598 = vmatmul.f32.gmra.mxu0 %v559
      %v599 = vpop.f32.mrf.mxu0
      %v600 = vadd.f32 %v547, %v599
      %601 = vmatmul.f32.gmra.mxu0 %v562
      %v602 = vpop.f32.mrf.mxu0
      %v603 = vadd.f32 %v547, %v602
      %604 = vmatmul.f32.gmra.mxu0 %v565
      %v605 = vpop.f32.mrf.mxu0
      %v606 = vadd.f32 %v547, %v605
      %607 = vmatmul.f32.gmra.mxu0 %v568
      %v608 = vpop.f32.mrf.mxu0
      %v609 = vadd.f32 %v547, %v608
      %610 = vmatmul.f32.gmra.mxu0 %v571
      %v611 = vpop.f32.mrf.mxu0
      %v612 = vadd.f32 %v547, %v611
      %613 = vdwg.mxu0
      %v614 = vsub.f32 0.0, %v591
      %v615 = vsub.f32 0.0, %v594
      %v616 = vsub.f32 0.0, %v597
      %v617 = vsub.f32 0.0, %v600
      %v618 = vsub.f32 0.0, %v603
      %v619 = vsub.f32 0.0, %v606
      %v620 = vsub.f32 0.0, %v609
      %v621 = vsub.f32 0.0, %v612
      %v622 = vmul.f32 %v614, 1.442695
      %v623 = vpow.pop %v622
      %v624 = vmul.f32 %v615, 1.442695
      %v625 = vpow.pop %v624
      %v626 = vmul.f32 %v616, 1.442695
      %v627 = vpow.pop %v626
      %v628 = vmul.f32 %v617, 1.442695
      %v629 = vpow.pop %v628
      %v630 = vmul.f32 %v618, 1.442695
      %v631 = vpow.pop %v630
      %v632 = vmul.f32 %v619, 1.442695
      %v633 = vpow.pop %v632
      %v634 = vmul.f32 %v620, 1.442695
      %v635 = vpow.pop %v634
      %v636 = vmul.f32 %v621, 1.442695
      %v637 = vpow.pop %v636
      %v638 = vadd.f32 %v623, 1.0
      %v639 = vadd.f32 %v625, 1.0
      %v640 = vadd.f32 %v627, 1.0
      %v641 = vadd.f32 %v629, 1.0
      %v642 = vadd.f32 %v631, 1.0
      %v643 = vadd.f32 %v633, 1.0
      %v644 = vadd.f32 %v635, 1.0
      %v645 = vadd.f32 %v637, 1.0
      %v646 = vrcp.pop %v638
      %v647 = vrcp.pop %v639
      %v648 = vrcp.pop %v640
      %v649 = vrcp.pop %v641
      %v650 = vrcp.pop %v642
      %v651 = vrcp.pop %v643
      %v652 = vrcp.pop %v644
      %v653 = vrcp.pop %v645
      %v654 = vmul.f32 %v591, %v646
      %v655 = vmul.f32 %v594, %v647
      %v656 = vmul.f32 %v597, %v648
      %v657 = vmul.f32 %v600, %v649
      %v658 = vmul.f32 %v603, %v650
      %v659 = vmul.f32 %v606, %v651
      %v660 = vmul.f32 %v609, %v652
      %v661 = vmul.f32 %v612, %v653
      %662 = vst.msk [vmem:[%s224] sm:$0xff] %vm225, %v654
      %663 = vst.msk [vmem:[%s224 + $0x8] sm:$0xff] %vm225, %v655
      %664 = vst.msk [vmem:[%s224 + $0x10] sm:$0xff] %vm225, %v656
      %665 = vst.msk [vmem:[%s224 + $0x18] sm:$0xff] %vm225, %v657
      %666 = vst.msk [vmem:[%s224 + $0x20] sm:$0xff] %vm225, %v658
      %667 = vst.msk [vmem:[%s224 + $0x28] sm:$0xff] %vm225, %v659
      %668 = vst.msk [vmem:[%s224 + $0x30] sm:$0xff] %vm225, %v660
      %669 = vst.msk [vmem:[%s224 + $0x38] sm:$0xff] %vm225, %v661
      %p670 = scmp.lt.s32.totalorder %s16, 1
      %s671 = scalar_select %p670, %s16, 1
      %s672 = smul.addr %s671, 8
      %s673 = smul.addr %s672, 8
      %s674 = scalar_lea.vmem %s5, %s673
      // Predicated region
      $region41: #{encoder_forward.6} parent=39 // pred_check
        %p675 = pneg %p144
      $region42: #{encoder_forward.6} parent=39 // pred_check_branch
        %677 = sbr.rel (%p675) target = $region44
      $region43: #{encoder_forward.6} parent=39 // pred_region
        _
      $region44: #{encoder_forward.6} parent=39 // pred_fallthru
        _
    $region40: #{encoder_forward.6} parent=5 // pred_fallthru
      _
    %p678 = scmp.le.s32.totalorder 2, %s11
    // Predicated region
    $region45: #{encoder_forward.6} parent=5 // pred_check
      %p679 = pneg %p678
    $region46: #{encoder_forward.6} parent=5 // pred_check_branch
      %681 = sbr.rel (%p679) target = $region48
    $region47: #{encoder_forward.6} parent=5 // pred_region
      %s682 = ssub.s32 %s11, 2
      // Predicated region
      $region49: #{encoder_forward.6} parent=47 // pred_check
        %p683 = pneg %p150
      $region50: #{encoder_forward.6} parent=47 // pred_check_branch
        %685 = sbr.rel (%p683) target = $region52
      $region51: #{encoder_forward.6} parent=47 // pred_region
        %p686 = scmp.lt.s32.totalorder %s17, 1
        %s687 = scalar_select %p686, %s17, 1
        %s688 = smul.addr %s687, 8
        %s689 = smul.addr %s688, 8
        %s690 = scalar_lea.vmem %s5, %s689
      $region52: #{encoder_forward.6} parent=47 // pred_fallthru
        _
    $region48: #{encoder_forward.6} parent=5 // pred_fallthru
      _
  $region6: #{encoder_forward.6} parent=0 // loop_footer
    %s15 = sadd.s32 1, %s11
  $region7: #{encoder_forward.6} parent=0 // loop_footer_branch
    %10 = sbr.rel target = $region3
  $region8: #{encoder_forward.6} parent=0 // loop_exit
    _

// kernel: encoder_forward.5
$region0: #{encoder_forward.5}
  #allocation0 [shape = 'u32[]', space=smem, size = 0x4, offset = 0x4, fixed_abs, tag = 'smem constant byte address 0x4 - core index']
  #allocation1 [shape = 'u32[72,128]{1,0:T(1,128)}', space=vmem, size = 0x9000, scoped, tag = 'internal scratch']
  #allocation2 [shape = 'f32[10,10,3]{2,1,0:T(8,128)}', space=vmem, size = 0x14000, scoped, tag = 'scratch operand']
  #allocation3 [shape = 'f32[64,27]{1,0:T(8,128)}', space=vmem, size = 0x8000, scoped, tag = 'scratch operand']
  %s0 = inlined_call_operand.vmem [shape: f32[2,8,8,3], index: 0, kind: input, shape index: {}]
  %s1 = inlined_call_operand.vmem [shape: f32[2,8,8,3], index: 1, kind: input, shape index: {}]
  %s2 = inlined_call_operand.vmem [shape: f32[2,8,8,3], index: 2, kind: input, shape index: {}]
  %s3 = inlined_call_operand.vmem [shape: f32[2,8,8,3], index: 3, kind: input, shape index: {}]
  %s4 = inlined_call_operand.vmem [shape: f32[27,8], index: 4, kind: input, shape index: {}]
  %s5 = inlined_call_operand.vmem [shape: f32[1,8], index: 5, kind: input, shape index: {}]
  %s6 = inlined_call_operand.vmem [shape: f32[1,8], index: 6, kind: input, shape index: {}]
  %s7 = inlined_call_operand.vmem [shape: f32[2,64,8], index: 7, kind: output, shape index: {0}]
  %s8 = inlined_call_operand.vmem [shape: f32[2,64,8], index: 8, kind: output, shape index: {1}]
  %s9 = inlined_call_operand.vmem [shape: f32[2,64,8], index: 9, kind: output, shape index: {2}]
  %10 = xla_tuple %s7, %s8, %s9
  %s11 = sld [smem:[#allocation0]]
  $region77: #{encoder_forward.5} parent=0
    _
  %s13 = ssub.s32 1, %s11
  %s14 = scalar_select 0, %s13, %s11
  loop: start=0, step=1, limit=4
  $region2: #{encoder_forward.5} parent=0 // loop_pre_header
    _
  $region3: #{encoder_forward.5} parent=0 // loop_header
    %s16 = sphi 0, %s20
    %p17 = scmp.ge.s32.totalorder %s16, 4
    %s26 = sphi 0, %s28
    %s29 = sphi 0, %s26
    %s30 = sphi 0, %s29
    %s46 = sphi 0, %s30
    %s52 = sphi 0, %s54
    %s55 = sphi 0, %s52
    %s56 = sphi 0, %s55
    %s72 = sphi 0, %s56
    %s78 = sphi 0, %s80
    %s81 = sphi 0, %s78
    %s82 = sphi 0, %s81
    %s98 = sphi 0, %s82
    %s104 = sphi 0, %s106
    %s107 = sphi 0, %s104
    %s108 = sphi 0, %s107
    %s124 = sphi 0, %s108
    %s128 = sphi 0, %s128
    %s130 = sphi 0, %s128
    %s131 = sphi 0, %s130
    %s145 = sphi 0, %s131
    %s149 = sphi 0, %s149
    %s151 = sphi 0, %s149
    %s152 = sphi 0, %s151
    %s166 = sphi 0, %s152
    %s170 = sphi 0, %s170
    %s172 = sphi 0, %s170
    %s173 = sphi 0, %s172
    %s187 = sphi 0, %s173
    %s193 = sphi 0, %s195
    %s196 = sphi 0, %s193
    %s197 = sphi 0, %s196
    %s213 = sphi 0, %s197
    %s219 = sphi 0, %s221
    %s222 = sphi 0, %s219
    %s223 = sphi 0, %s222
    %s239 = sphi 0, %s223
    %s245 = sphi 0, %s247
    %s248 = sphi 0, %s245
    %s249 = sphi 0, %s248
    %s265 = sphi 0, %s249
  $region4: #{encoder_forward.5} parent=0 // loop_header_branch
    %19 = sbr.rel (%p17) target = $region8
  $region5: #{encoder_forward.5} parent=0 // loop_body
    %s21 = ssub.s32 %s16, 1
    %s22 = ssub.s32 %s16, 2
    %s23 = sadd.s32 %s16, 1
    %s24 = ssub.s32 %s16, %s23
    %p25 = scmp.eq.s32.totalorder %s24, 0
    %s27 = sadd.s32 %s26, 1
    %s28 = scalar_select %p25, %s26, %s27
    %p31 = pneg %p25
    %p32 = scmp.eq.s32.totalorder %s16, 1
    %p33 = por %p31, %p32
    %p34 = scmp.ne.s32.totalorder %s26, %s29
    %p35 = scmp.eq.s32.totalorder %s16, 0
    %p36 = por %p34, %p35
    %p37 = scmp.ne.s32.totalorder %s26, %s29
    %p38 = scmp.eq.s32.totalorder %s21, 1
    %p39 = por %p37, %p38
    %p40 = scmp.ne.s32.totalorder %s29, %s30
    %p41 = scmp.eq.s32.totalorder %s21, 0
    %p42 = por %p40, %p41
    %p43 = scmp.ne.s32.totalorder %s29, %s30
    %p44 = scmp.eq.s32.totalorder %s22, 1
    %p45 = por %p43, %p44
    %p47 = scmp.ne.s32.totalorder %s30, %s46
    %p48 = scmp.eq.s32.totalorder %s22, 0
    %p49 = por %p47, %p48
    %s50 = ssub.s32 %s16, %s23
    %p51 = scmp.eq.s32.totalorder %s50, 0
    %s53 = sadd.s32 %s52, 1
    %s54 = scalar_select %p51, %s52, %s53
    %p57 = pneg %p51
    %p58 = scmp.eq.s32.totalorder %s16, 1
    %p59 = por %p57, %p58
    %p60 = scmp.ne.s32.totalorder %s52, %s55
    %p61 = scmp.eq.s32.totalorder %s16, 0
    %p62 = por %p60, %p61
    %p63 = scmp.ne.s32.totalorder %s52, %s55
    %p64 = scmp.eq.s32.totalorder %s21, 1
    %p65 = por %p63, %p64
    %p66 = scmp.ne.s32.totalorder %s55, %s56
    %p67 = scmp.eq.s32.totalorder %s21, 0
    %p68 = por %p66, %p67
    %p69 = scmp.ne.s32.totalorder %s55, %s56
    %p70 = scmp.eq.s32.totalorder %s22, 1
    %p71 = por %p69, %p70
    %p73 = scmp.ne.s32.totalorder %s56, %s72
    %p74 = scmp.eq.s32.totalorder %s22, 0
    %p75 = por %p73, %p74
    %s76 = ssub.s32 %s16, %s23
    %p77 = scmp.eq.s32.totalorder %s76, 0
    %s79 = sadd.s32 %s78, 1
    %s80 = scalar_select %p77, %s78, %s79
    %p83 = pneg %p77
    %p84 = scmp.eq.s32.totalorder %s16, 1
    %p85 = por %p83, %p84
    %p86 = scmp.ne.s32.totalorder %s78, %s81
    %p87 = scmp.eq.s32.totalorder %s16, 0
    %p88 = por %p86, %p87
    %p89 = scmp.ne.s32.totalorder %s78, %s81
    %p90 = scmp.eq.s32.totalorder %s21, 1
    %p91 = por %p89, %p90
    %p92 = scmp.ne.s32.totalorder %s81, %s82
    %p93 = scmp.eq.s32.totalorder %s21, 0
    %p94 = por %p92, %p93
    %p95 = scmp.ne.s32.totalorder %s81, %s82
    %p96 = scmp.eq.s32.totalorder %s22, 1
    %p97 = por %p95, %p96
    %p99 = scmp.ne.s32.totalorder %s82, %s98
    %p100 = scmp.eq.s32.totalorder %s22, 0
    %p101 = por %p99, %p100
    %s102 = ssub.s32 %s16, %s23
    %p103 = scmp.eq.s32.totalorder %s102, 0
    %s105 = sadd.s32 %s104, 1
    %s106 = scalar_select %p103, %s104, %s105
    %p109 = pneg %p103
    %p110 = scmp.eq.s32.totalorder %s16, 1
    %p111 = por %p109, %p110
    %p112 = scmp.ne.s32.totalorder %s104, %s107
    %p113 = scmp.eq.s32.totalorder %s16, 0
    %p114 = por %p112, %p113
    %p115 = scmp.ne.s32.totalorder %s104, %s107
    %p116 = scmp.eq.s32.totalorder %s21, 1
    %p117 = por %p115, %p116
    %p118 = scmp.ne.s32.totalorder %s107, %s108
    %p119 = scmp.eq.s32.totalorder %s21, 0
    %p120 = por %p118, %p119
    %p121 = scmp.ne.s32.totalorder %s107, %s108
    %p122 = scmp.eq.s32.totalorder %s22, 1
    %p123 = por %p121, %p122
    %p125 = scmp.ne.s32.totalorder %s108, %s124
    %p126 = scmp.eq.s32.totalorder %s22, 0
    %p127 = por %p125, %p126
    %s129 = sadd.s32 %s128, 1
    %p132 = scmp.eq.s32.totalorder %s16, 1
    %p133 = scmp.ne.s32.totalorder %s128, %s130
    %p134 = scmp.eq.s32.totalorder %s16, 0
    %p135 = por %p133, %p134
    %p136 = scmp.ne.s32.totalorder %s128, %s130
    %p137 = scmp.eq.s32.totalorder %s21, 1
    %p138 = por %p136, %p137
    %p139 = scmp.ne.s32.totalorder %s130, %s131
    %p140 = scmp.eq.s32.totalorder %s21, 0
    %p141 = por %p139, %p140
    %p142 = scmp.ne.s32.totalorder %s130, %s131
    %p143 = scmp.eq.s32.totalorder %s22, 1
    %p144 = por %p142, %p143
    %p146 = scmp.ne.s32.totalorder %s131, %s145
    %p147 = scmp.eq.s32.totalorder %s22, 0
    %p148 = por %p146, %p147
    %s150 = sadd.s32 %s149, 1
    %p153 = scmp.eq.s32.totalorder %s16, 1
    %p154 = scmp.ne.s32.totalorder %s149, %s151
    %p155 = scmp.eq.s32.totalorder %s16, 0
    %p156 = por %p154, %p155
    %p157 = scmp.ne.s32.totalorder %s149, %s151
    %p158 = scmp.eq.s32.totalorder %s21, 1
    %p159 = por %p157, %p158
    %p160 = scmp.ne.s32.totalorder %s151, %s152
    %p161 = scmp.eq.s32.totalorder %s21, 0
    %p162 = por %p160, %p161
    %p163 = scmp.ne.s32.totalorder %s151, %s152
    %p164 = scmp.eq.s32.totalorder %s22, 1
    %p165 = por %p163, %p164
    %p167 = scmp.ne.s32.totalorder %s152, %s166
    %p168 = scmp.eq.s32.totalorder %s22, 0
    %p169 = por %p167, %p168
    %s171 = sadd.s32 %s170, 1
    %p174 = scmp.eq.s32.totalorder %s16, 1
    %p175 = scmp.ne.s32.totalorder %s170, %s172
    %p176 = scmp.eq.s32.totalorder %s16, 0
    %p177 = por %p175, %p176
    %p178 = scmp.ne.s32.totalorder %s170, %s172
    %p179 = scmp.eq.s32.totalorder %s21, 1
    %p180 = por %p178, %p179
    %p181 = scmp.ne.s32.totalorder %s172, %s173
    %p182 = scmp.eq.s32.totalorder %s21, 0
    %p183 = por %p181, %p182
    %p184 = scmp.ne.s32.totalorder %s172, %s173
    %p185 = scmp.eq.s32.totalorder %s22, 1
    %p186 = por %p184, %p185
    %p188 = scmp.ne.s32.totalorder %s173, %s187
    %p189 = scmp.eq.s32.totalorder %s22, 0
    %p190 = por %p188, %p189
    %s191 = ssub.s32 %s16, %s23
    %p192 = scmp.eq.s32.totalorder %s191, 0
    %s194 = sadd.s32 %s193, 1
    %s195 = scalar_select %p192, %s193, %s194
    %p198 = pneg %p192
    %p199 = scmp.eq.s32.totalorder %s16, 1
    %p200 = por %p198, %p199
    %p201 = scmp.ne.s32.totalorder %s193, %s196
    %p202 = scmp.eq.s32.totalorder %s16, 0
    %p203 = por %p201, %p202
    %p204 = scmp.ne.s32.totalorder %s193, %s196
    %p205 = scmp.eq.s32.totalorder %s21, 1
    %p206 = por %p204, %p205
    %p207 = scmp.ne.s32.totalorder %s196, %s197
    %p208 = scmp.eq.s32.totalorder %s21, 0
    %p209 = por %p207, %p208
    %p210 = scmp.ne.s32.totalorder %s196, %s197
    %p211 = scmp.eq.s32.totalorder %s22, 1
    %p212 = por %p210, %p211
    %p214 = scmp.ne.s32.totalorder %s197, %s213
    %p215 = scmp.eq.s32.totalorder %s22, 0
    %p216 = por %p214, %p215
    %s217 = ssub.s32 %s16, %s23
    %p218 = scmp.eq.s32.totalorder %s217, 0
    %s220 = sadd.s32 %s219, 1
    %s221 = scalar_select %p218, %s219, %s220
    %p224 = pneg %p218
    %p225 = scmp.eq.s32.totalorder %s16, 1
    %p226 = por %p224, %p225
    %p227 = scmp.ne.s32.totalorder %s219, %s222
    %p228 = scmp.eq.s32.totalorder %s16, 0
    %p229 = por %p227, %p228
    %p230 = scmp.ne.s32.totalorder %s219, %s222
    %p231 = scmp.eq.s32.totalorder %s21, 1
    %p232 = por %p230, %p231
    %p233 = scmp.ne.s32.totalorder %s222, %s223
    %p234 = scmp.eq.s32.totalorder %s21, 0
    %p235 = por %p233, %p234
    %p236 = scmp.ne.s32.totalorder %s222, %s223
    %p237 = scmp.eq.s32.totalorder %s22, 1
    %p238 = por %p236, %p237
    %p240 = scmp.ne.s32.totalorder %s223, %s239
    %p241 = scmp.eq.s32.totalorder %s22, 0
    %p242 = por %p240, %p241
    %s243 = ssub.s32 %s16, %s23
    %p244 = scmp.eq.s32.totalorder %s243, 0
    %s246 = sadd.s32 %s245, 1
    %s247 = scalar_select %p244, %s245, %s246
    %p250 = pneg %p244
    %p251 = scmp.eq.s32.totalorder %s16, 1
    %p252 = por %p250, %p251
    %p253 = scmp.ne.s32.totalorder %s245, %s248
    %p254 = scmp.eq.s32.totalorder %s16, 0
    %p255 = por %p253, %p254
    %p256 = scmp.ne.s32.totalorder %s245, %s248
    %p257 = scmp.eq.s32.totalorder %s21, 1
    %p258 = por %p256, %p257
    %p259 = scmp.ne.s32.totalorder %s248, %s249
    %p260 = scmp.eq.s32.totalorder %s21, 0
    %p261 = por %p259, %p260
    %p262 = scmp.ne.s32.totalorder %s248, %s249
    %p263 = scmp.eq.s32.totalorder %s22, 1
    %p264 = por %p262, %p263
    %p266 = scmp.ne.s32.totalorder %s249, %s265
    %p267 = scmp.eq.s32.totalorder %s22, 0
    %p268 = por %p266, %p267
    %p269 = scmp.le.s32.totalorder 1, %s16
    %p270 = scmp.lt.s32.totalorder %s16, 3
    %p271 = pnand %p269, %p270
    %p272 = pneg %p271
    // Predicated region
    $region9: #{encoder_forward.5} parent=5 // pred_check
      _
    $region10: #{encoder_forward.5} parent=5 // pred_check_branch
      %274 = sbr.rel (%p271) target = $region12
    $region11: #{encoder_forward.5} parent=5 // pred_region
      %s275 = ssub.s32 %s16, 1
      // Predicated region
      $region13: #{encoder_forward.5} parent=11 // pred_check
        %p276 = pneg %p141
      $region14: #{encoder_forward.5} parent=11 // pred_check_branch
        %278 = sbr.rel (%p276) target = $region16
      $region15: #{encoder_forward.5} parent=11 // pred_region
        _
      $region16: #{encoder_forward.5} parent=11 // pred_fallthru
        _
      // Predicated region
      $region17: #{encoder_forward.5} parent=11 // pred_check
        %p279 = pneg %p162
      $region18: #{encoder_forward.5} parent=11 // pred_check_branch
        %281 = sbr.rel (%p279) target = $region20
      $region19: #{encoder_forward.5} parent=11 // pred_region
        _
      $region20: #{encoder_forward.5} parent=11 // pred_fallthru
        _
      // Predicated region
      $region21: #{encoder_forward.5} parent=11 // pred_check
        %p282 = pneg %p183
      $region22: #{encoder_forward.5} parent=11 // pred_check_branch
        %284 = sbr.rel (%p282) target = $region24
      $region23: #{encoder_forward.5} parent=11 // pred_region
        _
      $region24: #{encoder_forward.5} parent=11 // pred_fallthru
        _
    $region12: #{encoder_forward.5} parent=5 // pred_fallthru
      _
    %p285 = scmp.lt.s32.totalorder %s16, 2
    // Predicated region
    $region25: #{encoder_forward.5} parent=5 // pred_check
      %p286 = pneg %p285
    $region26: #{encoder_forward.5} parent=5 // pred_check_branch
      %288 = sbr.rel (%p286) target = $region28
    $region27: #{encoder_forward.5} parent=5 // pred_region
      // Predicated region
      $region29: #{encoder_forward.5} parent=27 // pred_check
        %p289 = pneg %p36
      $region30: #{encoder_forward.5} parent=27 // pred_check_branch
        %291 = sbr.rel (%p289) target = $region32
      $region31: #{encoder_forward.5} parent=27 // pred_region
        %p292 = scmp.lt.s32.totalorder %s16, 1
        %s293 = scalar_select %p292, %s16, 1
        %s294 = smul.addr %s293, 8
        %s295 = smul.addr %s294, 8
        %s296 = scalar_lea.vmem %s0, %s295
      $region32: #{encoder_forward.5} parent=27 // pred_fallthru
        _
      // Predicated region
      $region33: #{encoder_forward.5} parent=27 // pred_check
        %p297 = pneg %p62
      $region34: #{encoder_forward.5} parent=27 // pred_check_branch
        %299 = sbr.rel (%p297) target = $region36
      $region35: #{encoder_forward.5} parent=27 // pred_region
        %p300 = scmp.lt.s32.totalorder %s16, 1
        %s301 = scalar_select %p300, %s16, 1
        %s302 = smul.addr %s301, 8
        %s303 = smul.addr %s302, 8
        %s304 = scalar_lea.vmem %s1, %s303
      $region36: #{encoder_forward.5} parent=27 // pred_fallthru
        _
      // Predicated region
      $region37: #{encoder_forward.5} parent=27 // pred_check
        %p305 = pneg %p88
      $region38: #{encoder_forward.5} parent=27 // pred_check_branch
        %307 = sbr.rel (%p305) target = $region40
      $region39: #{encoder_forward.5} parent=27 // pred_region
        %p308 = scmp.lt.s32.totalorder %s16, 1
        %s309 = scalar_select %p308, %s16, 1
        %s310 = smul.addr %s309, 8
        %s311 = smul.addr %s310, 8
        %s312 = scalar_lea.vmem %s2, %s311
      $region40: #{encoder_forward.5} parent=27 // pred_fallthru
        _
      // Predicated region
      $region41: #{encoder_forward.5} parent=27 // pred_check
        %p313 = pneg %p114
      $region42: #{encoder_forward.5} parent=27 // pred_check_branch
        %315 = sbr.rel (%p313) target = $region44
      $region43: #{encoder_forward.5} parent=27 // pred_region
        %p316 = scmp.lt.s32.totalorder %s16, 1
        %s317 = scalar_select %p316, %s16, 1
        %s318 = smul.addr %s317, 8
        %s319 = smul.addr %s318, 8
        %s320 = scalar_lea.vmem %s3, %s319
      $region44: #{encoder_forward.5} parent=27 // pred_fallthru
        _
    $region28: #{encoder_forward.5} parent=5 // pred_fallthru
      _
    %p321 = scmp.le.s32.totalorder 1, %s16
    %p322 = scmp.lt.s32.totalorder %s16, 3
    %p323 = pnand %p321, %p322
    %p324 = pneg %p323
    // Predicated region
    $region45: #{encoder_forward.5} parent=5 // pred_check
      _
    $region46: #{encoder_forward.5} parent=5 // pred_check_branch
      %326 = sbr.rel (%p323) target = $region48
    $region47: #{encoder_forward.5} parent=5 // pred_region
      %s327 = ssub.s32 %s16, 1
      %p328 = scmp.lt.s32.totalorder %s21, 1
      %s329 = scalar_select %p328, %s21, 1
      %s330 = smul.addr %s329, 8
      %s331 = smul.addr %s330, 8
      %s332 = scalar_lea.vmem %s0, %s331
      %p333 = pneg %p42
      %p334 = pneg %p39
      %p335 = scmp.lt.s32.totalorder %s21, 1
      %s336 = scalar_select %p335, %s21, 1
      %s337 = smul.addr %s336, 8
      %s338 = smul.addr %s337, 8
      %s339 = scalar_lea.vmem %s1, %s338
      %p340 = pneg %p68
      %p341 = pneg %p65
      %p342 = scmp.lt.s32.totalorder %s21, 1
      %s343 = scalar_select %p342, %s21, 1
      %s344 = smul.addr %s343, 8
      %s345 = smul.addr %s344, 8
      %s346 = scalar_lea.vmem %s2, %s345
      %p347 = pneg %p94
      %p348 = pneg %p91
      %p349 = scmp.lt.s32.totalorder %s21, 1
      %s350 = scalar_select %p349, %s21, 1
      %s351 = smul.addr %s350, 8
      %s352 = smul.addr %s351, 8
      %s353 = scalar_lea.vmem %s3, %s352
      %p354 = pneg %p120
      %p355 = pneg %p117
      %p356 = pneg %p141
      %p357 = pneg %p138
      %p358 = pneg %p162
      %p359 = pneg %p159
      %p360 = pneg %p183
      %p361 = pneg %p180
      %p362 = pneg %p209
      %p363 = pneg %p206
      %p364 = scmp.lt.s32.totalorder %s21, 1
      %s365 = scalar_select %p364, %s21, 1
      %s366 = smul.addr %s365, 8
      %s367 = smul.addr %s366, 8
      %s368 = scalar_lea.vmem %s7, %s367
      %p369 = pneg %p235
      %p370 = pneg %p232
      %p371 = scmp.lt.s32.totalorder %s21, 1
      %s372 = scalar_select %p371, %s21, 1
      %s373 = smul.addr %s372, 8
      %s374 = smul.addr %s373, 8
      %s375 = scalar_lea.vmem %s8, %s374
      %p376 = pneg %p261
      %p377 = pneg %p258
      %p378 = scmp.lt.s32.totalorder %s21, 1
      %s379 = scalar_select %p378, %s21, 1
      %s380 = smul.addr %s379, 8
      %s381 = smul.addr %s380, 8
      %s382 = scalar_lea.vmem %s9, %s381
      %p383 = scmp.lt.s32.totalorder %s21, 1
      %s384 = scalar_select %p383, %s21, 1
      %s385 = smul.addr %s384, 8
      %s386 = smul.addr %s385, 8
      %s387 = scalar_lea.vmem %s0, %s386
      %p388 = scmp.lt.s32.totalorder %s21, 1
      %s389 = scalar_select %p388, %s21, 1
      %s390 = smul.addr %s389, 8
      %s391 = smul.addr %s390, 8
      %s392 = scalar_lea.vmem %s1, %s391
      %p393 = scmp.lt.s32.totalorder %s21, 1
      %s394 = scalar_select %p393, %s21, 1
      %s395 = smul.addr %s394, 8
      %s396 = smul.addr %s395, 8
      %s397 = scalar_lea.vmem %s2, %s396
      %p398 = scmp.lt.s32.totalorder %s21, 1
      %s399 = scalar_select %p398, %s21, 1
      %s400 = smul.addr %s399, 8
      %s401 = smul.addr %s400, 8
      %s402 = scalar_lea.vmem %s3, %s401
      %p403 = scmp.lt.s32.totalorder %s21, 1
      %s404 = scalar_select %p403, %s21, 1
      %s405 = smul.addr %s404, 8
      %s406 = smul.addr %s405, 8
      %s407 = scalar_lea.vmem %s7, %s406
      %p408 = scmp.lt.s32.totalorder %s21, 1
      %s409 = scalar_select %p408, %s21, 1
      %s410 = smul.addr %s409, 8
      %s411 = smul.addr %s410, 8
      %s412 = scalar_lea.vmem %s8, %s411
      %p413 = scmp.lt.s32.totalorder %s21, 1
      %s414 = scalar_select %p413, %s21, 1
      %s415 = smul.addr %s414, 8
      %s416 = smul.addr %s415, 8
      %s417 = scalar_lea.vmem %s9, %s416
      %vm418 = vcmask 23552
      %419 = vst.msk [vmem:[#allocation2] sm:$0xff] %vm418, 0.0
      %vm420 = vcmask 17408
      %421 = vst.msk [vmem:[#allocation2 + $0x8] sm:$0x3] %vm420, 0.0
      %422 = vst.msk [vmem:[#allocation2 + $0x10] sm:$0xff] %vm418, 0.0
      %423 = vst.msk [vmem:[#allocation2 + $0x18] sm:$0x3] %vm420, 0.0
      %424 = vst.msk [vmem:[#allocation2 + $0x20] sm:$0xff] %vm418, 0.0
      %425 = vst.msk [vmem:[#allocation2 + $0x28] sm:$0x3] %vm420, 0.0
      %426 = vst.msk [vmem:[#allocation2 + $0x30] sm:$0xff] %vm418, 0.0
      %427 = vst.msk [vmem:[#allocation2 + $0x38] sm:$0x3] %vm420, 0.0
      %428 = vst.msk [vmem:[#allocation2 + $0x40] sm:$0xff] %vm418, 0.0
      %429 = vst.msk [vmem:[#allocation2 + $0x48] sm:$0x3] %vm420, 0.0
      %430 = vst.msk [vmem:[#allocation2 + $0x50] sm:$0xff] %vm418, 0.0
      %431 = vst.msk [vmem:[#allocation2 + $0x58] sm:$0x3] %vm420, 0.0
      %432 = vst.msk [vmem:[#allocation2 + $0x60] sm:$0xff] %vm418, 0.0
      %433 = vst.msk [vmem:[#allocation2 + $0x68] sm:$0x3] %vm420, 0.0
      %434 = vst.msk [vmem:[#allocation2 + $0x70] sm:$0xff] %vm418, 0.0
      %435 = vst.msk [vmem:[#allocation2 + $0x78] sm:$0x3] %vm420, 0.0
      %436 = vst.msk [vmem:[#allocation2 + $0x80] sm:$0xff] %vm418, 0.0
      %437 = vst.msk [vmem:[#allocation2 + $0x88] sm:$0x3] %vm420, 0.0
      %438 = vst.msk [vmem:[#allocation2 + $0x90] sm:$0xff] %vm418, 0.0
      %439 = vst.msk [vmem:[#allocation2 + $0x98] sm:$0x3] %vm420, 0.0
      %v440 = vld [vmem:[%s387] sm:$0xff]
      %v441 = vld [vmem:[%s387 + $0x8] sm:$0xff]
      %v442 = vld [vmem:[%s387 + $0x10] sm:$0xff]
      %v443 = vld [vmem:[%s387 + $0x18] sm:$0xff]
      %v444 = vld [vmem:[%s387 + $0x20] sm:$0xff]
      %v445 = vld [vmem:[%s387 + $0x28] sm:$0xff]
      %v446 = vld [vmem:[%s387 + $0x30] sm:$0xff]
      %v447 = vld [vmem:[%s387 + $0x38] sm:$0xff]
      %v448 = vld [vmem:[%s392] sm:$0xff]
      %v449 = vld [vmem:[%s392 + $0x8] sm:$0xff]
      %v450 = vld [vmem:[%s392 + $0x10] sm:$0xff]
      %v451 = vld [vmem:[%s392 + $0x18] sm:$0xff]
      %v452 = vld [vmem:[%s392 + $0x20] sm:$0xff]
      %v453 = vld [vmem:[%s392 + $0x28] sm:$0xff]
      %v454 = vld [vmem:[%s392 + $0x30] sm:$0xff]
      %v455 = vld [vmem:[%s392 + $0x38] sm:$0xff]
      %v456 = vld [vmem:[%s397] sm:$0xff]
      %v457 = vld [vmem:[%s397 + $0x8] sm:$0xff]
      %v458 = vld [vmem:[%s397 + $0x10] sm:$0xff]
      %v459 = vld [vmem:[%s397 + $0x18] sm:$0xff]
      %v460 = vld [vmem:[%s397 + $0x20] sm:$0xff]
      %v461 = vld [vmem:[%s397 + $0x28] sm:$0xff]
      %v462 = vld [vmem:[%s397 + $0x30] sm:$0xff]
      %v463 = vld [vmem:[%s397 + $0x38] sm:$0xff]
      %v464 = vld [vmem:[%s402] sm:$0xff]
      %v465 = vld [vmem:[%s402 + $0x8] sm:$0xff]
      %v466 = vld [vmem:[%s402 + $0x10] sm:$0xff]
      %v467 = vld [vmem:[%s402 + $0x18] sm:$0xff]
      %v468 = vld [vmem:[%s402 + $0x20] sm:$0xff]
      %v469 = vld [vmem:[%s402 + $0x28] sm:$0xff]
      %v470 = vld [vmem:[%s402 + $0x30] sm:$0xff]
      %v471 = vld [vmem:[%s402 + $0x38] sm:$0xff]
      %s472 = scalar_lea.vmem [#allocation2], 16
      %473 = vst.msk [vmem:[%s472 + $0x1] sm:$0xff] %vm418, %v464
      %474 = vst.msk [vmem:[%s472 + $0x11] sm:$0xff] %vm418, %v465
      %475 = vst.msk [vmem:[%s472 + $0x21] sm:$0xff] %vm418, %v466
      %476 = vst.msk [vmem:[%s472 + $0x31] sm:$0xff] %vm418, %v467
      %477 = vst.msk [vmem:[%s472 + $0x41] sm:$0xff] %vm418, %v468
      %478 = vst.msk [vmem:[%s472 + $0x51] sm:$0xff] %vm418, %v469
      %479 = vst.msk [vmem:[%s472 + $0x61] sm:$0xff] %vm418, %v470
      %480 = vst.msk [vmem:[%s472 + $0x71] sm:$0xff] %vm418, %v471
      %v481 = vld [vmem:[#allocation2] sm:$0xff]
      %v482 = vld [vmem:[#allocation2 + $0x10] sm:$0xff]
      %v483 = vld [vmem:[#allocation2 + $0x20] sm:$0xff]
      %v484 = vld [vmem:[#allocation2 + $0x30] sm:$0xff]
      %v485 = vld [vmem:[#allocation2 + $0x40] sm:$0xff]
      %v486 = vld [vmem:[#allocation2 + $0x50] sm:$0xff]
      %v487 = vld [vmem:[#allocation2 + $0x60] sm:$0xff]
      %v488 = vld [vmem:[#allocation2 + $0x70] sm:$0xff]
      %v489 = vld [vmem:[#allocation2 + $0x1] sm:$0xff]
      %v490 = vld [vmem:[#allocation2 + $0x11] sm:$0xff]
      %v491 = vld [vmem:[#allocation2 + $0x21] sm:$0xff]
      %v492 = vld [vmem:[#allocation2 + $0x31] sm:$0xff]
      %v493 = vld [vmem:[#allocation2 + $0x41] sm:$0xff]
      %v494 = vld [vmem:[#allocation2 + $0x51] sm:$0xff]
      %v495 = vld [vmem:[#allocation2 + $0x61] sm:$0xff]
      %v496 = vld [vmem:[#allocation2 + $0x71] sm:$0xff]
      %v497 = vld [vmem:[%s472] sm:$0xff]
      %v498 = vld [vmem:[%s472 + $0x10] sm:$0xff]
      %v499 = vld [vmem:[%s472 + $0x20] sm:$0xff]
      %v500 = vld [vmem:[%s472 + $0x30] sm:$0xff]
      %v501 = vld [vmem:[%s472 + $0x40] sm:$0xff]
      %v502 = vld [vmem:[%s472 + $0x50] sm:$0xff]
      %v503 = vld [vmem:[%s472 + $0x60] sm:$0xff]
      %v504 = vld [vmem:[%s472 + $0x70] sm:$0xff]
      %v505 = vld [vmem:[%s472 + $0x1] sm:$0xff]
      %v506 = vld [vmem:[%s472 + $0x11] sm:$0xff]
      %v507 = vld [vmem:[%s472 + $0x21] sm:$0xff]
      %v508 = vld [vmem:[%s472 + $0x31] sm:$0xff]
      %v509 = vld [vmem:[%s472 + $0x41] sm:$0xff]
      %v510 = vld [vmem:[%s472 + $0x51] sm:$0xff]
      %v511 = vld [vmem:[%s472 + $0x61] sm:$0xff]
      %v512 = vld [vmem:[%s472 + $0x71] sm:$0xff]
      %513 = vst.msk [vmem:[%s472 + $0x1] sm:$0xff] %vm418, %v456
      %514 = vst.msk [vmem:[%s472 + $0x11] sm:$0xff] %vm418, %v457
      %515 = vst.msk [vmem:[%s472 + $0x21] sm:$0xff] %vm418, %v458
      %516 = vst.msk [vmem:[%s472 + $0x31] sm:$0xff] %vm418, %v459
      %517 = vst.msk [vmem:[%s472 + $0x41] sm:$0xff] %vm418, %v460
      %518 = vst.msk [vmem:[%s472 + $0x51] sm:$0xff] %vm418, %v461
      %519 = vst.msk [vmem:[%s472 + $0x61] sm:$0xff] %vm418, %v462
      %520 = vst.msk [vmem:[%s472 + $0x71] sm:$0xff] %vm418, %v463
      %v521 = vld [vmem:[#allocation2 + $0x1] sm:$0xff]
      %v522 = vld [vmem:[#allocation2 + $0x11] sm:$0xff]
      %v523 = vld [vmem:[#allocation2 + $0x21] sm:$0xff]
      %v524 = vld [vmem:[#allocation2 + $0x31] sm:$0xff]
      %v525 = vld [vmem:[#allocation2 + $0x41] sm:$0xff]
      %v526 = vld [vmem:[#allocation2 + $0x51] sm:$0xff]
      %v527 = vld [vmem:[#allocation2 + $0x61] sm:$0xff]
      %v528 = vld [vmem:[#allocation2 + $0x71] sm:$0xff]
      %v529 = vld [vmem:[%s472 + $0x1] sm:$0xff]
      %v530 = vld [vmem:[%s472 + $0x11] sm:$0xff]
      %v531 = vld [vmem:[%s472 + $0x21] sm:$0xff]
      %v532 = vld [vmem:[%s472 + $0x31] sm:$0xff]
      %v533 = vld [vmem:[%s472 + $0x41] sm:$0xff]
      %v534 = vld [vmem:[%s472 + $0x51] sm:$0xff]
      %v535 = vld [vmem:[%s472 + $0x61] sm:$0xff]
      %v536 = vld [vmem:[%s472 + $0x71] sm:$0xff]
      %537 = vst.msk [vmem:[%s472 + $0x1] sm:$0xff] %vm418, %v448
      %538 = vst.msk [vmem:[%s472 + $0x11] sm:$0xff] %vm418, %v449
      %539 = vst.msk [vmem:[%s472 + $0x21] sm:$0xff] %vm418, %v450
      %540 = vst.msk [vmem:[%s472 + $0x31] sm:$0xff] %vm418, %v451
      %541 = vst.msk [vmem:[%s472 + $0x41] sm:$0xff] %vm418, %v452
      %542 = vst.msk [vmem:[%s472 + $0x51] sm:$0xff] %vm418, %v453
      %543 = vst.msk [vmem:[%s472 + $0x61] sm:$0xff] %vm418, %v454
      %544 = vst.msk [vmem:[%s472 + $0x71] sm:$0xff] %vm418, %v455
      %v545 = vld [vmem:[%s472] sm:$0xff]
      %v546 = vld [vmem:[%s472 + $0x10] sm:$0xff]
      %v547 = vld [vmem:[%s472 + $0x20] sm:$0xff]
      %v548 = vld [vmem:[%s472 + $0x30] sm:$0xff]
      %v549 = vld [vmem:[%s472 + $0x40] sm:$0xff]
      %v550 = vld [vmem:[%s472 + $0x50] sm:$0xff]
      %v551 = vld [vmem:[%s472 + $0x60] sm:$0xff]
      %v552 = vld [vmem:[%s472 + $0x70] sm:$0xff]
      %v553 = vld [vmem:[%s472 + $0x1] sm:$0xff]
      %v554 = vld [vmem:[%s472 + $0x11] sm:$0xff]
      %v555 = vld [vmem:[%s472 + $0x21] sm:$0xff]
      %v556 = vld [vmem:[%s472 + $0x31] sm:$0xff]
      %v557 = vld [vmem:[%s472 + $0x41] sm:$0xff]
      %v558 = vld [vmem:[%s472 + $0x51] sm:$0xff]
      %v559 = vld [vmem:[%s472 + $0x61] sm:$0xff]
      %v560 = vld [vmem:[%s472 + $0x71] sm:$0xff]
      %561 = vst.msk [vmem:[%s472 + $0x1] sm:$0xff] %vm418, %v440
      %562 = vst.msk [vmem:[%s472 + $0x11] sm:$0xff] %vm418, %v441
      %563 = vst.msk [vmem:[%s472 + $0x21] sm:$0xff] %vm418, %v442
      %564 = vst.msk [vmem:[%s472 + $0x31] sm:$0xff] %vm418, %v443
      %565 = vst.msk [vmem:[%s472 + $0x41] sm:$0xff] %vm418, %v444
      %566 = vst.msk [vmem:[%s472 + $0x51] sm:$0xff] %vm418, %v445
      %567 = vst.msk [vmem:[%s472 + $0x61] sm:$0xff] %vm418, %v446
      %568 = vst.msk [vmem:[%s472 + $0x71] sm:$0xff] %vm418, %v447
      %v569 = vld [vmem:[%s472 + $0x1] sm:$0xff]
      %v570 = vld [vmem:[%s472 + $0x11] sm:$0xff]
      %v571 = vld [vmem:[%s472 + $0x21] sm:$0xff]
      %v572 = vld [vmem:[%s472 + $0x31] sm:$0xff]
      %v573 = vld [vmem:[%s472 + $0x41] sm:$0xff]
      %v574 = vld [vmem:[%s472 + $0x51] sm:$0xff]
      %v575 = vld [vmem:[%s472 + $0x61] sm:$0xff]
      %v576 = vld [vmem:[%s472 + $0x71] sm:$0xff]
      %577 = vst.msk [vmem:[#allocation3] sm:$0xff] %vm418, %v481
      %578 = vst.msk [vmem:[#allocation3 + $0x8] sm:$0xff] %vm418, %v482
      %579 = vst.msk [vmem:[#allocation3 + $0x10] sm:$0xff] %vm418, %v483
      %580 = vst.msk [vmem:[#allocation3 + $0x18] sm:$0xff] %vm418, %v484
      %581 = vst.msk [vmem:[#allocation3 + $0x20] sm:$0xff] %vm418, %v485
      %582 = vst.msk [vmem:[#allocation3 + $0x28] sm:$0xff] %vm418, %v486
      %583 = vst.msk [vmem:[#allocation3 + $0x30] sm:$0xff] %vm418, %v487
      %584 = vst.msk [vmem:[#allocation3 + $0x38] sm:$0xff] %vm418, %v488
      %593 = vrot.lane.b32.xlu0 %v521, 3
      %v594 = vpop.permute.xlu0 %593
      %595 = vrot.lane.b32.xlu0 %v522, 3
      %v596 = vpop.permute.xlu0 %595
      %597 = vrot.lane.b32.xlu0 %v523, 3
      %v598 = vpop.permute.xlu0 %597
      %599 = vrot.lane.b32.xlu0 %v524, 3
      %v600 = vpop.permute.xlu0 %599
      %601 = vrot.lane.b32.xlu0 %v525, 3
      %v602 = vpop.permute.xlu0 %601
      %603 = vrot.lane.b32.xlu0 %v526, 3
      %v604 = vpop.permute.xlu0 %603
      %605 = vrot.lane.b32.xlu0 %v527, 3
      %v606 = vpop.permute.xlu0 %605
      %607 = vrot.lane.b32.xlu0 %v528, 3
      %v608 = vpop.permute.xlu0 %607
      %vm617 = vcmask 48152
      %618 = vst.msk [vmem:[#allocation3] sm:$0xff] %vm617, %v594
      %619 = vst.msk [vmem:[#allocation3 + $0x8] sm:$0xff] %vm617, %v596
      %620 = vst.msk [vmem:[#allocation3 + $0x10] sm:$0xff] %vm617, %v598
      %621 = vst.msk [vmem:[#allocation3 + $0x18] sm:$0xff] %vm617, %v600
      %622 = vst.msk [vmem:[#allocation3 + $0x20] sm:$0xff] %vm617, %v602
      %623 = vst.msk [vmem:[#allocation3 + $0x28] sm:$0xff] %vm617, %v604
      %624 = vst.msk [vmem:[#allocation3 + $0x30] sm:$0xff] %vm617, %v606
      %625 = vst.msk [vmem:[#allocation3 + $0x38] sm:$0xff] %vm617, %v608
      %634 = vrot.lane.b32.xlu0 %v489, 6
      %v635 = vpop.permute.xlu0 %634
      %636 = vrot.lane.b32.xlu0 %v490, 6
      %v637 = vpop.permute.xlu0 %636
      %638 = vrot.lane.b32.xlu0 %v491, 6
      %v639 = vpop.permute.xlu0 %638
      %640 = vrot.lane.b32.xlu0 %v492, 6
      %v641 = vpop.permute.xlu0 %640
      %642 = vrot.lane.b32.xlu0 %v493, 6
      %v643 = vpop.permute.xlu0 %642
      %644 = vrot.lane.b32.xlu0 %v494, 6
      %v645 = vpop.permute.xlu0 %644
      %646 = vrot.lane.b32.xlu0 %v495, 6
      %v647 = vpop.permute.xlu0 %646
      %648 = vrot.lane.b32.xlu0 %v496, 6
      %v649 = vpop.permute.xlu0 %648
      %vm658 = vcmask 72752
      %659 = vst.msk [vmem:[#allocation3] sm:$0xff] %vm658, %v635
      %660 = vst.msk [vmem:[#allocation3 + $0x8] sm:$0xff] %vm658, %v637
      %661 = vst.msk [vmem:[#allocation3 + $0x10] sm:$0xff] %vm658, %v639
      %662 = vst.msk [vmem:[#allocation3 + $0x18] sm:$0xff] %vm658, %v641
      %663 = vst.msk [vmem:[#allocation3 + $0x20] sm:$0xff] %vm658, %v643
      %664 = vst.msk [vmem:[#allocation3 + $0x28] sm:$0xff] %vm658, %v645
      %665 = vst.msk [vmem:[#allocation3 + $0x30] sm:$0xff] %vm658, %v647
      %666 = vst.msk [vmem:[#allocation3 + $0x38] sm:$0xff] %vm658, %v649
      %675 = vrot.lane.b32.xlu0 %v545, 9
      %v676 = vpop.permute.xlu0 %675
      %677 = vrot.lane.b32.xlu0 %v546, 9
      %v678 = vpop.permute.xlu0 %677
      %679 = vrot.lane.b32.xlu0 %v547, 9
      %v680 = vpop.permute.xlu0 %679
      %681 = vrot.lane.b32.xlu0 %v548, 9
      %v682 = vpop.permute.xlu0 %681
      %683 = vrot.lane.b32.xlu0 %v549, 9
      %v684 = vpop.permute.xlu0 %683
      %685 = vrot.lane.b32.xlu0 %v550, 9
      %v686 = vpop.permute.xlu0 %685
      %687 = vrot.lane.b32.xlu0 %v551, 9
      %v688 = vpop.permute.xlu0 %687
      %689 = vrot.lane.b32.xlu0 %v552, 9
      %v690 = vpop.permute.xlu0 %689
      %vm699 = vcmask 97352
      %700 = vst.msk [vmem:[#allocation3] sm:$0xff] %vm699, %v676
      %701 = vst.msk [vmem:[#allocation3 + $0x8] sm:$0xff] %vm699, %v678
      %702 = vst.msk [vmem:[#allocation3 + $0x10] sm:$0xff] %vm699, %v680
      %703 = vst.msk [vmem:[#allocation3 + $0x18] sm:$0xff] %vm699, %v682
      %704 = vst.msk [vmem:[#allocation3 + $0x20] sm:$0xff] %vm699, %v684
      %705 = vst.msk [vmem:[#allocation3 + $0x28] sm:$0xff] %vm699, %v686
      %706 = vst.msk [vmem:[#allocation3 + $0x30] sm:$0xff] %vm699, %v688
      %707 = vst.msk [vmem:[#allocation3 + $0x38] sm:$0xff] %vm699, %v690
      %716 = vrot.lane.b32.xlu0 %v569, 12
      %v717 = vpop.permute.xlu0 %716
      %718 = vrot.lane.b32.xlu0 %v570, 12
      %v719 = vpop.permute.xlu0 %718
      %720 = vrot.lane.b32.xlu0 %v571, 12
      %v721 = vpop.permute.xlu0 %720
      %722 = vrot.lane.b32.xlu0 %v572, 12
      %v723 = vpop.permute.xlu0 %722
      %724 = vrot.lane.b32.xlu0 %v573, 12
      %v725 = vpop.permute.xlu0 %724
      %726 = vrot.lane.b32.xlu0 %v574, 12
      %v727 = vpop.permute.xlu0 %726
      %728 = vrot.lane.b32.xlu0 %v575, 12
      %v729 = vpop.permute.xlu0 %728
      %730 = vrot.lane.b32.xlu0 %v576, 12
      %v731 = vpop.permute.xlu0 %730
      %vm740 = vcmask 121952
      %741 = vst.msk [vmem:[#allocation3] sm:$0xff] %vm740, %v717
      %742 = vst.msk [vmem:[#allocation3 + $0x8] sm:$0xff] %vm740, %v719
      %743 = vst.msk [vmem:[#allocation3 + $0x10] sm:$0xff] %vm740, %v721
      %744 = vst.msk [vmem:[#allocation3 + $0x18] sm:$0xff] %vm740, %v723
      %745 = vst.msk [vmem:[#allocation3 + $0x20] sm:$0xff] %vm740, %v725
      %746 = vst.msk [vmem:[#allocation3 + $0x28] sm:$0xff] %vm740, %v727
      %747 = vst.msk [vmem:[#allocation3 + $0x30] sm:$0xff] %vm740, %v729
      %748 = vst.msk [vmem:[#allocation3 + $0x38] sm:$0xff] %vm740, %v731
      %757 = vrot.lane.b32.xlu0 %v553, 15
      %v758 = vpop.permute.xlu0 %757
      %759 = vrot.lane.b32.xlu0 %v554, 15
      %v760 = vpop.permute.xlu0 %759
      %761 = vrot.lane.b32.xlu0 %v555, 15
      %v762 = vpop.permute.xlu0 %761
      %763 = vrot.lane.b32.xlu0 %v556, 15
      %v764 = vpop.permute.xlu0 %763
      %765 = vrot.lane.b32.xlu0 %v557, 15
      %v766 = vpop.permute.xlu0 %765
      %767 = vrot.lane.b32.xlu0 %v558, 15
      %v768 = vpop.permute.xlu0 %767
      %769 = vrot.lane.b32.xlu0 %v559, 15
      %v770 = vpop.permute.xlu0 %769
      %771 = vrot.lane.b32.xlu0 %v560, 15
      %v772 = vpop.permute.xlu0 %771
      %vm781 = vcmask 146552
      %782 = vst.msk [vmem:[#allocation3] sm:$0xff] %vm781, %v758
      %783 = vst.msk [vmem:[#allocation3 + $0x8] sm:$0xff] %vm781, %v760
      %784 = vst.msk [vmem:[#allocation3 + $0x10] sm:$0xff] %vm781, %v762
      %785 = vst.msk [vmem:[#allocation3 + $0x18] sm:$0xff] %vm781, %v764
      %786 = vst.msk [vmem:[#allocation3 + $0x20] sm:$0xff] %vm781, %v766
      %787 = vst.msk [vmem:[#allocation3 + $0x28] sm:$0xff] %vm781, %v768
      %788 = vst.msk [vmem:[#allocation3 + $0x30] sm:$0xff] %vm781, %v770
      %789 = vst.msk [vmem:[#allocation3 + $0x38] sm:$0xff] %vm781, %v772
      %798 = vrot.lane.b32.xlu0 %v497, 18
      %v799 = vpop.permute.xlu0 %798
      %800 = vrot.lane.b32.xlu0 %v498, 18
      %v801 = vpop.permute.xlu0 %800
      %802 = vrot.lane.b32.xlu0 %v499, 18
      %v803 = vpop.permute.xlu0 %802
      %804 = vrot.lane.b32.xlu0 %v500, 18
      %v805 = vpop.permute.xlu0 %804
      %806 = vrot.lane.b32.xlu0 %v501, 18
      %v807 = vpop.permute.xlu0 %806
      %808 = vrot.lane.b32.xlu0 %v502, 18
      %v809 = vpop.permute.xlu0 %808
      %810 = vrot.lane.b32.xlu0 %v503, 18
      %v811 = vpop.permute.xlu0 %810
      %812 = vrot.lane.b32.xlu0 %v504, 18
      %v813 = vpop.permute.xlu0 %812
      %vm822 = vcmask 171152
      %823 = vst.msk [vmem:[#allocation3] sm:$0xff] %vm822, %v799
      %824 = vst.msk [vmem:[#allocation3 + $0x8] sm:$0xff] %vm822, %v801
      %825 = vst.msk [vmem:[#allocation3 + $0x10] sm:$0xff] %vm822, %v803
      %826 = vst.msk [vmem:[#allocation3 + $0x18] sm:$0xff] %vm822, %v805
      %827 = vst.msk [vmem:[#allocation3 + $0x20] sm:$0xff] %vm822, %v807
      %828 = vst.msk [vmem:[#allocation3 + $0x28] sm:$0xff] %vm822, %v809
      %829 = vst.msk [vmem:[#allocation3 + $0x30] sm:$0xff] %vm822, %v811
      %830 = vst.msk [vmem:[#allocation3 + $0x38] sm:$0xff] %vm822, %v813
      %839 = vrot.lane.b32.xlu0 %v529, 21
      %v840 = vpop.permute.xlu0 %839
      %841 = vrot.lane.b32.xlu0 %v530, 21
      %v842 = vpop.permute.xlu0 %841
      %843 = vrot.lane.b32.xlu0 %v531, 21
      %v844 = vpop.permute.xlu0 %843
      %845 = vrot.lane.b32.xlu0 %v532, 21
      %v846 = vpop.permute.xlu0 %845
      %847 = vrot.lane.b32.xlu0 %v533, 21
      %v848 = vpop.permute.xlu0 %847
      %849 = vrot.lane.b32.xlu0 %v534, 21
      %v850 = vpop.permute.xlu0 %849
      %851 = vrot.lane.b32.xlu0 %v535, 21
      %v852 = vpop.permute.xlu0 %851
      %853 = vrot.lane.b32.xlu0 %v536, 21
      %v854 = vpop.permute.xlu0 %853
      %vm863 = vcmask 195752
      %864 = vst.msk [vmem:[#allocation3] sm:$0xff] %vm863, %v840
      %865 = vst.msk [vmem:[#allocation3 + $0x8] sm:$0xff] %vm863, %v842
      %866 = vst.msk [vmem:[#allocation3 + $0x10] sm:$0xff] %vm863, %v844
      %867 = vst.msk [vmem:[#allocation3 + $0x18] sm:$0xff] %vm863, %v846
      %868 = vst.msk [vmem:[#allocation3 + $0x20] sm:$0xff] %vm863, %v848
      %869 = vst.msk [vmem:[#allocation3 + $0x28] sm:$0xff] %vm863, %v850
      %870 = vst.msk [vmem:[#allocation3 + $0x30] sm:$0xff] %vm863, %v852
      %871 = vst.msk [vmem:[#allocation3 + $0x38] sm:$0xff] %vm863, %v854
      %880 = vrot.lane.b32.xlu0 %v505, 24
      %v881 = vpop.permute.xlu0 %880
      %882 = vrot.lane.b32.xlu0 %v506, 24
      %v883 = vpop.permute.xlu0 %882
      %884 = vrot.lane.b32.xlu0 %v507, 24
      %v885 = vpop.permute.xlu0 %884
      %886 = vrot.lane.b32.xlu0 %v508, 24
      %v887 = vpop.permute.xlu0 %886
      %888 = vrot.lane.b32.xlu0 %v509, 24
      %v889 = vpop.permute.xlu0 %888
      %890 = vrot.lane.b32.xlu0 %v510, 24
      %v891 = vpop.permute.xlu0 %890
      %892 = vrot.lane.b32.xlu0 %v511, 24
      %v893 = vpop.permute.xlu0 %892
      %894 = vrot.lane.b32.xlu0 %v512, 24
      %v895 = vpop.permute.xlu0 %894
      %vm904 = vcmask 220352
      %905 = vst.msk [vmem:[#allocation3] sm:$0xff] %vm904, %v881
      %906 = vst.msk [vmem:[#allocation3 + $0x8] sm:$0xff] %vm904, %v883
      %907 = vst.msk [vmem:[#allocation3 + $0x10] sm:$0xff] %vm904, %v885
      %908 = vst.msk [vmem:[#allocation3 + $0x18] sm:$0xff] %vm904, %v887
      %909 = vst.msk [vmem:[#allocation3 + $0x20] sm:$0xff] %vm904, %v889
      %910 = vst.msk [vmem:[#allocation3 + $0x28] sm:$0xff] %vm904, %v891
      %911 = vst.msk [vmem:[#allocation3 + $0x30] sm:$0xff] %vm904, %v893
      %912 = vst.msk [vmem:[#allocation3 + $0x38] sm:$0xff] %vm904, %v895
      %v913 = vld [vmem:[#allocation3] sm:$0xff]
      %v914 = vld [vmem:[#allocation3 + $0x8] sm:$0xff]
      %v915 = vld [vmem:[#allocation3 + $0x10] sm:$0xff]
      %v916 = vld [vmem:[#allocation3 + $0x18] sm:$0xff]
      %v917 = vld [vmem:[#allocation3 + $0x20] sm:$0xff]
      %v918 = vld [vmem:[#allocation3 + $0x28] sm:$0xff]
      %v919 = vld [vmem:[#allocation3 + $0x30] sm:$0xff]
      %v920 = vld [vmem:[#allocation3 + $0x38] sm:$0xff]
      %v921 = vld [vmem:[%s4] sm:$0xff]
      %v922 = vld [vmem:[%s4 + $0x8] sm:$0xff]
      %v923 = vld [vmem:[%s4 + $0x10] sm:$0xff]
      %v924 = vld [vmem:[%s4 + $0x18] sm:$0x7]
      %vm925 = vcmask 220160
      %v927 = vsel %vm925, %v913, 0
      %v930 = vsel %vm925, %v914, 0
      %v933 = vsel %vm925, %v915, 0
      %v936 = vsel %vm925, %v916, 0
      %v939 = vsel %vm925, %v917, 0
      %v942 = vsel %vm925, %v918, 0
      %v945 = vsel %vm925, %v919, 0
      %v948 = vsel %vm925, %v920, 0
      %vm950 = vcmask 1042432
      %v952 = vsel %vm950, %v924, 0
      %954 = vmatpush.msra.mxu0 0.0
      %955 = vmatpush.msra.mxu0 0.0
      %956 = vmatpush.msra.mxu0 0.0
      %957 = vmatpush.msra.mxu0 0.0
      %958 = vmatpush.msra.mxu0 0.0
      %959 = vmatpush.msra.mxu0 0.0
      %960 = vmatpush.msra.mxu0 0.0
      %961 = vmatpush.msra.mxu0 0.0
      %962 = vmatpush.msra.mxu0 0.0
      %963 = vmatpush.msra.mxu0 0.0
      %964 = vmatpush.msra.mxu0 0.0
      %965 = vmatpush.msra.mxu0 0.0
      %966 = vmatpush.msra.mxu0 %v952
      %967 = vmatpush.msra.mxu0 %v923
      %968 = vmatpush.msra.mxu0 %v922
      %969 = vmatpush.msra.mxu0 %v921
      %970 = vmatmul.f32.gmra.mxu0 %v927
      %v971 = vpop.f32.mrf.mxu0
      %v972 = vadd.f32 0.0, %v971
      %973 = vmatmul.f32.gmra.mxu0 %v930
      %v974 = vpop.f32.mrf.mxu0
      %v975 = vadd.f32 0.0, %v974
      %976 = vmatmul.f32.gmra.mxu0 %v933
      %v977 = vpop.f32.mrf.mxu0
      %v978 = vadd.f32 0.0, %v977
      %979 = vmatmul.f32.gmra.mxu0 %v936
      %v980 = vpop.f32.mrf.mxu0
      %v981 = vadd.f32 0.0, %v980
      %982 = vmatmul.f32.gmra.mxu0 %v939
      %v983 = vpop.f32.mrf.mxu0
      %v984 = vadd.f32 0.0, %v983
      %985 = vmatmul.f32.gmra.mxu0 %v942
      %v986 = vpop.f32.mrf.mxu0
      %v987 = vadd.f32 0.0, %v986
      %988 = vmatmul.f32.gmra.mxu0 %v945
      %v989 = vpop.f32.mrf.mxu0
      %v990 = vadd.f32 0.0, %v989
      %991 = vmatmul.f32.gmra.mxu0 %v948
      %v992 = vpop.f32.mrf.mxu0
      %v993 = vadd.f32 0.0, %v992
      %994 = vdwg.mxu0
      %vm995 = vcmask 64512
      %996 = vst.msk [vmem:[%s407] sm:$0xff] %vm995, %v972
      %997 = vst.msk [vmem:[%s407 + $0x8] sm:$0xff] %vm995, %v975
      %998 = vst.msk [vmem:[%s407 + $0x10] sm:$0xff] %vm995, %v978
      %999 = vst.msk [vmem:[%s407 + $0x18] sm:$0xff] %vm995, %v981
      %1000 = vst.msk [vmem:[%s407 + $0x20] sm:$0xff] %vm995, %v984
      %1001 = vst.msk [vmem:[%s407 + $0x28] sm:$0xff] %vm995, %v987
      %1002 = vst.msk [vmem:[%s407 + $0x30] sm:$0xff] %vm995, %v990
      %1003 = vst.msk [vmem:[%s407 + $0x38] sm:$0xff] %vm995, %v993
      %v1004 = vld [vmem:[%s5] sm:$0x1]
      %v1006 = vperm.slane %v1004, 0
      %v1008 = vmul.f32 %v972, %v1006
      %v1009 = vmul.f32 %v975, %v1006
      %v1010 = vmul.f32 %v978, %v1006
      %v1011 = vmul.f32 %v981, %v1006
      %v1012 = vmul.f32 %v984, %v1006
      %v1013 = vmul.f32 %v987, %v1006
      %v1014 = vmul.f32 %v990, %v1006
      %v1015 = vmul.f32 %v993, %v1006
      %v1016 = vld [vmem:[%s6] sm:$0x1]
      %v1018 = vperm.slane %v1016, 0
      %v1020 = vadd.f32 %v1008, %v1018
      %v1021 = vadd.f32 %v1009, %v1018
      %v1022 = vadd.f32 %v1010, %v1018
      %v1023 = vadd.f32 %v1011, %v1018
      %v1024 = vadd.f32 %v1012, %v1018
      %v1025 = vadd.f32 %v1013, %v1018
      %v1026 = vadd.f32 %v1014, %v1018
      %v1027 = vadd.f32 %v1015, %v1018
      %1028 = vst.msk [vmem:[%s412] sm:$0xff] %vm995, %v1020
      %1029 = vst.msk [vmem:[%s412 + $0x8] sm:$0xff] %vm995, %v1021
      %1030 = vst.msk [vmem:[%s412 + $0x10] sm:$0xff] %vm995, %v1022
      %1031 = vst.msk [vmem:[%s412 + $0x18] sm:$0xff] %vm995, %v1023
      %1032 = vst.msk [vmem:[%s412 + $0x20] sm:$0xff] %vm995, %v1024
      %1033 = vst.msk [vmem:[%s412 + $0x28] sm:$0xff] %vm995, %v1025
      %1034 = vst.msk [vmem:[%s412 + $0x30] sm:$0xff] %vm995, %v1026
      %1035 = vst.msk [vmem:[%s412 + $0x38] sm:$0xff] %vm995, %v1027
      %v1036 = vsub.f32 0.0, %v1020
      %v1037 = vsub.f32 0.0, %v1021
      %v1038 = vsub.f32 0.0, %v1022
      %v1039 = vsub.f32 0.0, %v1023
      %v1040 = vsub.f32 0.0, %v1024
      %v1041 = vsub.f32 0.0, %v1025
      %v1042 = vsub.f32 0.0, %v1026
      %v1043 = vsub.f32 0.0, %v1027
      %v1044 = vmul.f32 %v1036, 1.442695
      %v1045 = vpow.pop %v1044
      %v1046 = vmul.f32 %v1037, 1.442695
      %v1047 = vpow.pop %v1046
      %v1048 = vmul.f32 %v1038, 1.442695
      %v1049 = vpow.pop %v1048
      %v1050 = vmul.f32 %v1039, 1.442695
      %v1051 = vpow.pop %v1050
      %v1052 = vmul.f32 %v1040, 1.442695
      %v1053 = vpow.pop %v1052
      %v1054 = vmul.f32 %v1041, 1.442695
      %v1055 = vpow.pop %v1054
      %v1056 = vmul.f32 %v1042, 1.442695
      %v1057 = vpow.pop %v1056
      %v1058 = vmul.f32 %v1043, 1.442695
      %v1059 = vpow.pop %v1058
      %v1060 = vadd.f32 %v1045, 1.0
      %v1061 = vadd.f32 %v1047, 1.0
      %v1062 = vadd.f32 %v1049, 1.0
      %v1063 = vadd.f32 %v1051, 1.0
      %v1064 = vadd.f32 %v1053, 1.0
      %v1065 = vadd.f32 %v1055, 1.0
      %v1066 = vadd.f32 %v1057, 1.0
      %v1067 = vadd.f32 %v1059, 1.0
      %v1068 = vrcp.pop %v1060
      %v1069 = vrcp.pop %v1061
      %v1070 = vrcp.pop %v1062
      %v1071 = vrcp.pop %v1063
      %v1072 = vrcp.pop %v1064
      %v1073 = vrcp.pop %v1065
      %v1074 = vrcp.pop %v1066
      %v1075 = vrcp.pop %v1067
      %v1076 = vmul.f32 %v1020, %v1068
      %v1077 = vmul.f32 %v1021, %v1069
      %v1078 = vmul.f32 %v1022, %v1070
      %v1079 = vmul.f32 %v1023, %v1071
      %v1080 = vmul.f32 %v1024, %v1072
      %v1081 = vmul.f32 %v1025, %v1073
      %v1082 = vmul.f32 %v1026, %v1074
      %v1083 = vmul.f32 %v1027, %v1075
      %1084 = vst.msk [vmem:[%s417] sm:$0xff] %vm995, %v1076
      %1085 = vst.msk [vmem:[%s417 + $0x8] sm:$0xff] %vm995, %v1077
      %1086 = vst.msk [vmem:[%s417 + $0x10] sm:$0xff] %vm995, %v1078
      %1087 = vst.msk [vmem:[%s417 + $0x18] sm:$0xff] %vm995, %v1079
      %1088 = vst.msk [vmem:[%s417 + $0x20] sm:$0xff] %vm995, %v1080
      %1089 = vst.msk [vmem:[%s417 + $0x28] sm:$0xff] %vm995, %v1081
      %1090 = vst.msk [vmem:[%s417 + $0x30] sm:$0xff] %vm995, %v1082
      %1091 = vst.msk [vmem:[%s417 + $0x38] sm:$0xff] %vm995, %v1083
      %p1092 = scmp.lt.s32.totalorder %s21, 1
      %s1093 = scalar_select %p1092, %s21, 1
      %s1094 = smul.addr %s1093, 8
      %s1095 = smul.addr %s1094, 8
      %s1096 = scalar_lea.vmem %s7, %s1095
      %p1097 = scmp.lt.s32.totalorder %s21, 1
      %s1098 = scalar_select %p1097, %s21, 1
      %s1099 = smul.addr %s1098, 8
      %s1100 = smul.addr %s1099, 8
      %s1101 = scalar_lea.vmem %s8, %s1100
      %p1102 = scmp.lt.s32.totalorder %s21, 1
      %s1103 = scalar_select %p1102, %s21, 1
      %s1104 = smul.addr %s1103, 8
      %s1105 = smul.addr %s1104, 8
      %s1106 = scalar_lea.vmem %s9, %s1105
      // Predicated region
      $region49: #{encoder_forward.5} parent=47 // pred_check
        %p1107 = pneg %p206
      $region50: #{encoder_forward.5} parent=47 // pred_check_branch
        %1109 = sbr.rel (%p1107) target = $region52
      $region51: #{encoder_forward.5} parent=47 // pred_region
        _
      $region52: #{encoder_forward.5} parent=47 // pred_fallthru
        _
      // Predicated region
      $region53: #{encoder_forward.5} parent=47 // pred_check
        %p1110 = pneg %p232
      $region54: #{encoder_forward.5} parent=47 // pred_check_branch
        %1112 = sbr.rel (%p1110) target = $region56
      $region55: #{encoder_forward.5} parent=47 // pred_region
        _
      $region56: #{encoder_forward.5} parent=47 // pred_fallthru
        _
      // Predicated region
      $region57: #{encoder_forward.5} parent=47 // pred_check
        %p1113 = pneg %p258
      $region58: #{encoder_forward.5} parent=47 // pred_check_branch
        %1115 = sbr.rel (%p1113) target = $region60
      $region59: #{encoder_forward.5} parent=47 // pred_region
        _
      $region60: #{encoder_forward.5} parent=47 // pred_fallthru
        _
    $region48: #{encoder_forward.5} parent=5 // pred_fallthru
      _
    %p1116 = scmp.le.s32.totalorder 2, %s16
    // Predicated region
    $region61: #{encoder_forward.5} parent=5 // pred_check
      %p1117 = pneg %p1116
    $region62: #{encoder_forward.5} parent=5 // pred_check_branch
      %1119 = sbr.rel (%p1117) target = $region64
    $region63: #{encoder_forward.5} parent=5 // pred_region
      %s1120 = ssub.s32 %s16, 2
      // Predicated region
      $region65: #{encoder_forward.5} parent=63 // pred_check
        %p1121 = pneg %p212
      $region66: #{encoder_forward.5} parent=63 // pred_check_branch
        %1123 = sbr.rel (%p1121) target = $region68
      $region67: #{encoder_forward.5} parent=63 // pred_region
        %p1124 = scmp.lt.s32.totalorder %s22, 1
        %s1125 = scalar_select %p1124, %s22, 1
        %s1126 = smul.addr %s1125, 8
        %s1127 = smul.addr %s1126, 8
        %s1128 = scalar_lea.vmem %s7, %s1127
      $region68: #{encoder_forward.5} parent=63 // pred_fallthru
        _
      // Predicated region
      $region69: #{encoder_forward.5} parent=63 // pred_check
        %p1129 = pneg %p238
      $region70: #{encoder_forward.5} parent=63 // pred_check_branch
        %1131 = sbr.rel (%p1129) target = $region72
      $region71: #{encoder_forward.5} parent=63 // pred_region
        %p1132 = scmp.lt.s32.totalorder %s22, 1
        %s1133 = scalar_select %p1132, %s22, 1
        %s1134 = smul.addr %s1133, 8
        %s1135 = smul.addr %s1134, 8
        %s1136 = scalar_lea.vmem %s8, %s1135
      $region72: #{encoder_forward.5} parent=63 // pred_fallthru
        _
      // Predicated region
      $region73: #{encoder_forward.5} parent=63 // pred_check
        %p1137 = pneg %p264
      $region74: #{encoder_forward.5} parent=63 // pred_check_branch
        %1139 = sbr.rel (%p1137) target = $region76
      $region75: #{encoder_forward.5} parent=63 // pred_region
        %p1140 = scmp.lt.s32.totalorder %s22, 1
        %s1141 = scalar_select %p1140, %s22, 1
        %s1142 = smul.addr %s1141, 8
        %s1143 = smul.addr %s1142, 8
        %s1144 = scalar_lea.vmem %s9, %s1143
      $region76: #{encoder_forward.5} parent=63 // pred_fallthru
        _
    $region64: #{encoder_forward.5} parent=5 // pred_fallthru
      _
  $region6: #{encoder_forward.5} parent=0 // loop_footer
    %s20 = sadd.s32 1, %s16
  $region7: #{encoder_forward.5} parent=0 // loop_footer_branch
    %15 = sbr.rel target = $region3
  $region8: #{encoder_forward.5} parent=0 // loop_exit
    _

// kernel: encoder_forward.7
$region0: #{encoder_forward.7}
  #allocation0 [shape = 'u32[]', space=smem, size = 0x4, offset = 0x4, fixed_abs, tag = 'smem constant byte address 0x4 - core index']
  #allocation1 [shape = 'u32[72,128]{1,0:T(1,128)}', space=vmem, size = 0x9000, scoped, tag = 'internal scratch']
  #allocation2 [shape = 'f32[6,6,24]{2,1,0:T(8,128)}', space=vmem, size = 0x6000, scoped, tag = 'scratch operand']
  %s0 = inlined_call_operand.vmem [shape: f32[2,4,4,8], index: 0, kind: input, shape index: {}]
  %s1 = inlined_call_operand.vmem [shape: f32[2,4,4,8], index: 1, kind: input, shape index: {}]
  %s2 = inlined_call_operand.vmem [shape: f32[2,4,4,8], index: 2, kind: input, shape index: {}]
  %s3 = inlined_call_operand.vmem [shape: f32[2,4,4,8], index: 3, kind: input, shape index: {}]
  %s4 = inlined_call_operand.vmem [shape: f32[9,8], index: 4, kind: input, shape index: {}]
  %s5 = inlined_call_operand.vmem [shape: f32[1,8], index: 5, kind: input, shape index: {}]
  %s6 = inlined_call_operand.vmem [shape: f32[8,16], index: 6, kind: input, shape index: {}]
  %s7 = inlined_call_operand.vmem [shape: f32[1,16], index: 7, kind: input, shape index: {}]
  %s8 = inlined_call_operand.vmem [shape: f32[9,16], index: 8, kind: input, shape index: {}]
  %s9 = inlined_call_operand.vmem [shape: f32[1,16], index: 9, kind: input, shape index: {}]
  %s10 = inlined_call_operand.vmem [shape: f32[16,16], index: 10, kind: input, shape index: {}]
  %s11 = inlined_call_operand.vmem [shape: f32[1,16], index: 11, kind: input, shape index: {}]
  %s12 = inlined_call_operand.vmem [shape: f32[9,16], index: 12, kind: input, shape index: {}]
  %s13 = inlined_call_operand.vmem [shape: f32[1,16], index: 13, kind: input, shape index: {}]
  %s14 = inlined_call_operand.vmem [shape: f32[16,24], index: 14, kind: input, shape index: {}]
  %s15 = inlined_call_operand.vmem [shape: f32[1,24], index: 15, kind: input, shape index: {}]
  %s16 = inlined_call_operand.vmem [shape: f32[9,24], index: 16, kind: input, shape index: {}]
  %s17 = inlined_call_operand.vmem [shape: f32[1,24], index: 17, kind: input, shape index: {}]
  %s18 = inlined_call_operand.vmem [shape: f32[24,24], index: 18, kind: input, shape index: {}]
  %s19 = inlined_call_operand.vmem [shape: f32[1,24], index: 19, kind: input, shape index: {}]
  %s20 = inlined_call_operand.hbm [shape: f32[2,16,16], index: 20, kind: output, shape index: {0}]
  %s21 = inlined_call_operand.hbm [shape: f32[2,16,16], index: 21, kind: output, shape index: {1}]
  %s22 = inlined_call_operand.hbm [shape: f32[2,16,24], index: 22, kind: output, shape index: {2}]
  %s23 = inlined_call_operand.vmem [shape: f32[2,16,24], index: 23, kind: output, shape index: {3}]
  %24 = xla_tuple %s20, %s21, %s22, %s23
  %s25 = sld [smem:[#allocation0]]
  $region137: #{encoder_forward.7} parent=0
    _
  %s27 = ssub.s32 1, %s25
  %s28 = scalar_select 0, %s27, %s25
  $region1: #{encoder_forward.7} parent=0
    #allocation3 [shape = 'u8[16384]{0}', space=vmem, size = 0x4000, scoped, tag = 'output window, operand 0']
    #allocation4 [shape = 's32[2]{0}', space=sflag, size = 0x8, scoped, tag = 'scoped memory for encoder_forward.7']
    #allocation5 [shape = 'u8[16384]{0}', space=vmem, size = 0x4000, scoped, tag = 'output window, operand 1']
    #allocation6 [shape = 's32[2]{0}', space=sflag, size = 0x8, scoped, tag = 'scoped memory for encoder_forward.7']
    #allocation7 [shape = 'u8[16384]{0}', space=vmem, size = 0x4000, scoped, tag = 'output window, operand 2']
    %29 = vsyncpa [#allocation4], 0
    %s30 = scalar_lea.sflag [#allocation4], 1
    %31 = vsyncpa %s30, 0
    %32 = vsyncpa [#allocation6], 0
    %s33 = scalar_lea.sflag [#allocation6], 1
    %34 = vsyncpa %s33, 0
    loop: start=0, step=1, limit=4
    $region2: #{encoder_forward.7} parent=1 // loop_pre_header
      _
    $region3: #{encoder_forward.7} parent=1 // loop_header
      %s36 = sphi 0, %s40
      %p37 = scmp.ge.s32.totalorder %s36, 4
      %s46 = sphi 0, %s48
      %s49 = sphi 0, %s46
      %s50 = sphi 0, %s49
      %s66 = sphi 0, %s50
      %s72 = sphi 0, %s74
      %s75 = sphi 0, %s72
      %s76 = sphi 0, %s75
      %s92 = sphi 0, %s76
      %s98 = sphi 0, %s100
      %s101 = sphi 0, %s98
      %s102 = sphi 0, %s101
      %s118 = sphi 0, %s102
      %s124 = sphi 0, %s126
      %s127 = sphi 0, %s124
      %s128 = sphi 0, %s127
      %s144 = sphi 0, %s128
      %s148 = sphi 0, %s148
      %s150 = sphi 0, %s148
      %s151 = sphi 0, %s150
      %s165 = sphi 0, %s151
      %s169 = sphi 0, %s169
      %s171 = sphi 0, %s169
      %s172 = sphi 0, %s171
      %s186 = sphi 0, %s172
      %s190 = sphi 0, %s190
      %s192 = sphi 0, %s190
      %s193 = sphi 0, %s192
      %s207 = sphi 0, %s193
      %s211 = sphi 0, %s211
      %s213 = sphi 0, %s211
      %s214 = sphi 0, %s213
      %s228 = sphi 0, %s214
      %s232 = sphi 0, %s232
      %s234 = sphi 0, %s232
      %s235 = sphi 0, %s234
      %s249 = sphi 0, %s235
      %s253 = sphi 0, %s253
      %s255 = sphi 0, %s253
      %s256 = sphi 0, %s255
      %s270 = sphi 0, %s256
      %s274 = sphi 0, %s274
      %s276 = sphi 0, %s274
      %s277 = sphi 0, %s276
      %s291 = sphi 0, %s277
      %s295 = sphi 0, %s295
      %s297 = sphi 0, %s295
      %s298 = sphi 0, %s297
      %s312 = sphi 0, %s298
      %s316 = sphi 0, %s316
      %s318 = sphi 0, %s316
      %s319 = sphi 0, %s318
      %s333 = sphi 0, %s319
      %s337 = sphi 0, %s337
      %s339 = sphi 0, %s337
      %s340 = sphi 0, %s339
      %s354 = sphi 0, %s340
      %s358 = sphi 0, %s358
      %s360 = sphi 0, %s358
      %s361 = sphi 0, %s360
      %s375 = sphi 0, %s361
      %s379 = sphi 0, %s379
      %s381 = sphi 0, %s379
      %s382 = sphi 0, %s381
      %s396 = sphi 0, %s382
      %s400 = sphi 0, %s400
      %s402 = sphi 0, %s400
      %s403 = sphi 0, %s402
      %s417 = sphi 0, %s403
      %s421 = sphi 0, %s421
      %s423 = sphi 0, %s421
      %s424 = sphi 0, %s423
      %s438 = sphi 0, %s424
      %s442 = sphi 0, %s442
      %s444 = sphi 0, %s442
      %s445 = sphi 0, %s444
      %s459 = sphi 0, %s445
      %s463 = sphi 0, %s463
      %s465 = sphi 0, %s463
      %s466 = sphi 0, %s465
      %s480 = sphi 0, %s466
      %s486 = sphi 0, %s488
      %s489 = sphi 0, %s486
      %s490 = sphi 0, %s489
      %s506 = sphi 0, %s490
      %s512 = sphi 0, %s514
      %s515 = sphi 0, %s512
      %s516 = sphi 0, %s515
      %s532 = sphi 0, %s516
      %s538 = sphi 0, %s540
      %s541 = sphi 0, %s538
      %s542 = sphi 0, %s541
      %s558 = sphi 0, %s542
      %s564 = sphi 0, %s566
      %s567 = sphi 0, %s564
      %s568 = sphi 0, %s567
      %s584 = sphi 0, %s568
    $region4: #{encoder_forward.7} parent=1 // loop_header_branch
      %39 = sbr.rel (%p37) target = $region8
    $region5: #{encoder_forward.7} parent=1 // loop_body
      %s41 = ssub.s32 %s36, 1
      %s42 = ssub.s32 %s36, 2
      %s43 = sadd.s32 %s36, 1
      %s44 = ssub.s32 %s36, %s43
      %p45 = scmp.eq.s32.totalorder %s44, 0
      %s47 = sadd.s32 %s46, 1
      %s48 = scalar_select %p45, %s46, %s47
      %p51 = pneg %p45
      %p52 = scmp.eq.s32.totalorder %s36, 1
      %p53 = por %p51, %p52
      %p54 = scmp.ne.s32.totalorder %s46, %s49
      %p55 = scmp.eq.s32.totalorder %s36, 0
      %p56 = por %p54, %p55
      %p57 = scmp.ne.s32.totalorder %s46, %s49
      %p58 = scmp.eq.s32.totalorder %s41, 1
      %p59 = por %p57, %p58
      %p60 = scmp.ne.s32.totalorder %s49, %s50
      %p61 = scmp.eq.s32.totalorder %s41, 0
      %p62 = por %p60, %p61
      %p63 = scmp.ne.s32.totalorder %s49, %s50
      %p64 = scmp.eq.s32.totalorder %s42, 1
      %p65 = por %p63, %p64
      %p67 = scmp.ne.s32.totalorder %s50, %s66
      %p68 = scmp.eq.s32.totalorder %s42, 0
      %p69 = por %p67, %p68
      %s70 = ssub.s32 %s36, %s43
      %p71 = scmp.eq.s32.totalorder %s70, 0
      %s73 = sadd.s32 %s72, 1
      %s74 = scalar_select %p71, %s72, %s73
      %p77 = pneg %p71
      %p78 = scmp.eq.s32.totalorder %s36, 1
      %p79 = por %p77, %p78
      %p80 = scmp.ne.s32.totalorder %s72, %s75
      %p81 = scmp.eq.s32.totalorder %s36, 0
      %p82 = por %p80, %p81
      %p83 = scmp.ne.s32.totalorder %s72, %s75
      %p84 = scmp.eq.s32.totalorder %s41, 1
      %p85 = por %p83, %p84
      %p86 = scmp.ne.s32.totalorder %s75, %s76
      %p87 = scmp.eq.s32.totalorder %s41, 0
      %p88 = por %p86, %p87
      %p89 = scmp.ne.s32.totalorder %s75, %s76
      %p90 = scmp.eq.s32.totalorder %s42, 1
      %p91 = por %p89, %p90
      %p93 = scmp.ne.s32.totalorder %s76, %s92
      %p94 = scmp.eq.s32.totalorder %s42, 0
      %p95 = por %p93, %p94
      %s96 = ssub.s32 %s36, %s43
      %p97 = scmp.eq.s32.totalorder %s96, 0
      %s99 = sadd.s32 %s98, 1
      %s100 = scalar_select %p97, %s98, %s99
      %p103 = pneg %p97
      %p104 = scmp.eq.s32.totalorder %s36, 1
      %p105 = por %p103, %p104
      %p106 = scmp.ne.s32.totalorder %s98, %s101
      %p107 = scmp.eq.s32.totalorder %s36, 0
      %p108 = por %p106, %p107
      %p109 = scmp.ne.s32.totalorder %s98, %s101
      %p110 = scmp.eq.s32.totalorder %s41, 1
      %p111 = por %p109, %p110
      %p112 = scmp.ne.s32.totalorder %s101, %s102
      %p113 = scmp.eq.s32.totalorder %s41, 0
      %p114 = por %p112, %p113
      %p115 = scmp.ne.s32.totalorder %s101, %s102
      %p116 = scmp.eq.s32.totalorder %s42, 1
      %p117 = por %p115, %p116
      %p119 = scmp.ne.s32.totalorder %s102, %s118
      %p120 = scmp.eq.s32.totalorder %s42, 0
      %p121 = por %p119, %p120
      %s122 = ssub.s32 %s36, %s43
      %p123 = scmp.eq.s32.totalorder %s122, 0
      %s125 = sadd.s32 %s124, 1
      %s126 = scalar_select %p123, %s124, %s125
      %p129 = pneg %p123
      %p130 = scmp.eq.s32.totalorder %s36, 1
      %p131 = por %p129, %p130
      %p132 = scmp.ne.s32.totalorder %s124, %s127
      %p133 = scmp.eq.s32.totalorder %s36, 0
      %p134 = por %p132, %p133
      %p135 = scmp.ne.s32.totalorder %s124, %s127
      %p136 = scmp.eq.s32.totalorder %s41, 1
      %p137 = por %p135, %p136
      %p138 = scmp.ne.s32.totalorder %s127, %s128
      %p139 = scmp.eq.s32.totalorder %s41, 0
      %p140 = por %p138, %p139
      %p141 = scmp.ne.s32.totalorder %s127, %s128
      %p142 = scmp.eq.s32.totalorder %s42, 1
      %p143 = por %p141, %p142
      %p145 = scmp.ne.s32.totalorder %s128, %s144
      %p146 = scmp.eq.s32.totalorder %s42, 0
      %p147 = por %p145, %p146
      %s149 = sadd.s32 %s148, 1
      %p152 = scmp.eq.s32.totalorder %s36, 1
      %p153 = scmp.ne.s32.totalorder %s148, %s150
      %p154 = scmp.eq.s32.totalorder %s36, 0
      %p155 = por %p153, %p154
      %p156 = scmp.ne.s32.totalorder %s148, %s150
      %p157 = scmp.eq.s32.totalorder %s41, 1
      %p158 = por %p156, %p157
      %p159 = scmp.ne.s32.totalorder %s150, %s151
      %p160 = scmp.eq.s32.totalorder %s41, 0
      %p161 = por %p159, %p160
      %p162 = scmp.ne.s32.totalorder %s150, %s151
      %p163 = scmp.eq.s32.totalorder %s42, 1
      %p164 = por %p162, %p163
      %p166 = scmp.ne.s32.totalorder %s151, %s165
      %p167 = scmp.eq.s32.totalorder %s42, 0
      %p168 = por %p166, %p167
      %s170 = sadd.s32 %s169, 1
      %p173 = scmp.eq.s32.totalorder %s36, 1
      %p174 = scmp.ne.s32.totalorder %s169, %s171
      %p175 = scmp.eq.s32.totalorder %s36, 0
      %p176 = por %p174, %p175
      %p177 = scmp.ne.s32.totalorder %s169, %s171
      %p178 = scmp.eq.s32.totalorder %s41, 1
      %p179 = por %p177, %p178
      %p180 = scmp.ne.s32.totalorder %s171, %s172
      %p181 = scmp.eq.s32.totalorder %s41, 0
      %p182 = por %p180, %p181
      %p183 = scmp.ne.s32.totalorder %s171, %s172
      %p184 = scmp.eq.s32.totalorder %s42, 1
      %p185 = por %p183, %p184
      %p187 = scmp.ne.s32.totalorder %s172, %s186
      %p188 = scmp.eq.s32.totalorder %s42, 0
      %p189 = por %p187, %p188
      %s191 = sadd.s32 %s190, 1
      %p194 = scmp.eq.s32.totalorder %s36, 1
      %p195 = scmp.ne.s32.totalorder %s190, %s192
      %p196 = scmp.eq.s32.totalorder %s36, 0
      %p197 = por %p195, %p196
      %p198 = scmp.ne.s32.totalorder %s190, %s192
      %p199 = scmp.eq.s32.totalorder %s41, 1
      %p200 = por %p198, %p199
      %p201 = scmp.ne.s32.totalorder %s192, %s193
      %p202 = scmp.eq.s32.totalorder %s41, 0
      %p203 = por %p201, %p202
      %p204 = scmp.ne.s32.totalorder %s192, %s193
      %p205 = scmp.eq.s32.totalorder %s42, 1
      %p206 = por %p204, %p205
      %p208 = scmp.ne.s32.totalorder %s193, %s207
      %p209 = scmp.eq.s32.totalorder %s42, 0
      %p210 = por %p208, %p209
      %s212 = sadd.s32 %s211, 1
      %p215 = scmp.eq.s32.totalorder %s36, 1
      %p216 = scmp.ne.s32.totalorder %s211, %s213
      %p217 = scmp.eq.s32.totalorder %s36, 0
      %p218 = por %p216, %p217
      %p219 = scmp.ne.s32.totalorder %s211, %s213
      %p220 = scmp.eq.s32.totalorder %s41, 1
      %p221 = por %p219, %p220
      %p222 = scmp.ne.s32.totalorder %s213, %s214
      %p223 = scmp.eq.s32.totalorder %s41, 0
      %p224 = por %p222, %p223
      %p225 = scmp.ne.s32.totalorder %s213, %s214
      %p226 = scmp.eq.s32.totalorder %s42, 1
      %p227 = por %p225, %p226
      %p229 = scmp.ne.s32.totalorder %s214, %s228
      %p230 = scmp.eq.s32.totalorder %s42, 0
      %p231 = por %p229, %p230
      %s233 = sadd.s32 %s232, 1
      %p236 = scmp.eq.s32.totalorder %s36, 1
      %p237 = scmp.ne.s32.totalorder %s232, %s234
      %p238 = scmp.eq.s32.totalorder %s36, 0
      %p239 = por %p237, %p238
      %p240 = scmp.ne.s32.totalorder %s232, %s234
      %p241 = scmp.eq.s32.totalorder %s41, 1
      %p242 = por %p240, %p241
      %p243 = scmp.ne.s32.totalorder %s234, %s235
      %p244 = scmp.eq.s32.totalorder %s41, 0
      %p245 = por %p243, %p244
      %p246 = scmp.ne.s32.totalorder %s234, %s235
      %p247 = scmp.eq.s32.totalorder %s42, 1
      %p248 = por %p246, %p247
      %p250 = scmp.ne.s32.totalorder %s235, %s249
      %p251 = scmp.eq.s32.totalorder %s42, 0
      %p252 = por %p250, %p251
      %s254 = sadd.s32 %s253, 1
      %p257 = scmp.eq.s32.totalorder %s36, 1
      %p258 = scmp.ne.s32.totalorder %s253, %s255
      %p259 = scmp.eq.s32.totalorder %s36, 0
      %p260 = por %p258, %p259
      %p261 = scmp.ne.s32.totalorder %s253, %s255
      %p262 = scmp.eq.s32.totalorder %s41, 1
      %p263 = por %p261, %p262
      %p264 = scmp.ne.s32.totalorder %s255, %s256
      %p265 = scmp.eq.s32.totalorder %s41, 0
      %p266 = por %p264, %p265
      %p267 = scmp.ne.s32.totalorder %s255, %s256
      %p268 = scmp.eq.s32.totalorder %s42, 1
      %p269 = por %p267, %p268
      %p271 = scmp.ne.s32.totalorder %s256, %s270
      %p272 = scmp.eq.s32.totalorder %s42, 0
      %p273 = por %p271, %p272
      %s275 = sadd.s32 %s274, 1
      %p278 = scmp.eq.s32.totalorder %s36, 1
      %p279 = scmp.ne.s32.totalorder %s274, %s276
      %p280 = scmp.eq.s32.totalorder %s36, 0
      %p281 = por %p279, %p280
      %p282 = scmp.ne.s32.totalorder %s274, %s276
      %p283 = scmp.eq.s32.totalorder %s41, 1
      %p284 = por %p282, %p283
      %p285 = scmp.ne.s32.totalorder %s276, %s277
      %p286 = scmp.eq.s32.totalorder %s41, 0
      %p287 = por %p285, %p286
      %p288 = scmp.ne.s32.totalorder %s276, %s277
      %p289 = scmp.eq.s32.totalorder %s42, 1
      %p290 = por %p288, %p289
      %p292 = scmp.ne.s32.totalorder %s277, %s291
      %p293 = scmp.eq.s32.totalorder %s42, 0
      %p294 = por %p292, %p293
      %s296 = sadd.s32 %s295, 1
      %p299 = scmp.eq.s32.totalorder %s36, 1
      %p300 = scmp.ne.s32.totalorder %s295, %s297
      %p301 = scmp.eq.s32.totalorder %s36, 0
      %p302 = por %p300, %p301
      %p303 = scmp.ne.s32.totalorder %s295, %s297
      %p304 = scmp.eq.s32.totalorder %s41, 1
      %p305 = por %p303, %p304
      %p306 = scmp.ne.s32.totalorder %s297, %s298
      %p307 = scmp.eq.s32.totalorder %s41, 0
      %p308 = por %p306, %p307
      %p309 = scmp.ne.s32.totalorder %s297, %s298
      %p310 = scmp.eq.s32.totalorder %s42, 1
      %p311 = por %p309, %p310
      %p313 = scmp.ne.s32.totalorder %s298, %s312
      %p314 = scmp.eq.s32.totalorder %s42, 0
      %p315 = por %p313, %p314
      %s317 = sadd.s32 %s316, 1
      %p320 = scmp.eq.s32.totalorder %s36, 1
      %p321 = scmp.ne.s32.totalorder %s316, %s318
      %p322 = scmp.eq.s32.totalorder %s36, 0
      %p323 = por %p321, %p322
      %p324 = scmp.ne.s32.totalorder %s316, %s318
      %p325 = scmp.eq.s32.totalorder %s41, 1
      %p326 = por %p324, %p325
      %p327 = scmp.ne.s32.totalorder %s318, %s319
      %p328 = scmp.eq.s32.totalorder %s41, 0
      %p329 = por %p327, %p328
      %p330 = scmp.ne.s32.totalorder %s318, %s319
      %p331 = scmp.eq.s32.totalorder %s42, 1
      %p332 = por %p330, %p331
      %p334 = scmp.ne.s32.totalorder %s319, %s333
      %p335 = scmp.eq.s32.totalorder %s42, 0
      %p336 = por %p334, %p335
      %s338 = sadd.s32 %s337, 1
      %p341 = scmp.eq.s32.totalorder %s36, 1
      %p342 = scmp.ne.s32.totalorder %s337, %s339
      %p343 = scmp.eq.s32.totalorder %s36, 0
      %p344 = por %p342, %p343
      %p345 = scmp.ne.s32.totalorder %s337, %s339
      %p346 = scmp.eq.s32.totalorder %s41, 1
      %p347 = por %p345, %p346
      %p348 = scmp.ne.s32.totalorder %s339, %s340
      %p349 = scmp.eq.s32.totalorder %s41, 0
      %p350 = por %p348, %p349
      %p351 = scmp.ne.s32.totalorder %s339, %s340
      %p352 = scmp.eq.s32.totalorder %s42, 1
      %p353 = por %p351, %p352
      %p355 = scmp.ne.s32.totalorder %s340, %s354
      %p356 = scmp.eq.s32.totalorder %s42, 0
      %p357 = por %p355, %p356
      %s359 = sadd.s32 %s358, 1
      %p362 = scmp.eq.s32.totalorder %s36, 1
      %p363 = scmp.ne.s32.totalorder %s358, %s360
      %p364 = scmp.eq.s32.totalorder %s36, 0
      %p365 = por %p363, %p364
      %p366 = scmp.ne.s32.totalorder %s358, %s360
      %p367 = scmp.eq.s32.totalorder %s41, 1
      %p368 = por %p366, %p367
      %p369 = scmp.ne.s32.totalorder %s360, %s361
      %p370 = scmp.eq.s32.totalorder %s41, 0
      %p371 = por %p369, %p370
      %p372 = scmp.ne.s32.totalorder %s360, %s361
      %p373 = scmp.eq.s32.totalorder %s42, 1
      %p374 = por %p372, %p373
      %p376 = scmp.ne.s32.totalorder %s361, %s375
      %p377 = scmp.eq.s32.totalorder %s42, 0
      %p378 = por %p376, %p377
      %s380 = sadd.s32 %s379, 1
      %p383 = scmp.eq.s32.totalorder %s36, 1
      %p384 = scmp.ne.s32.totalorder %s379, %s381
      %p385 = scmp.eq.s32.totalorder %s36, 0
      %p386 = por %p384, %p385
      %p387 = scmp.ne.s32.totalorder %s379, %s381
      %p388 = scmp.eq.s32.totalorder %s41, 1
      %p389 = por %p387, %p388
      %p390 = scmp.ne.s32.totalorder %s381, %s382
      %p391 = scmp.eq.s32.totalorder %s41, 0
      %p392 = por %p390, %p391
      %p393 = scmp.ne.s32.totalorder %s381, %s382
      %p394 = scmp.eq.s32.totalorder %s42, 1
      %p395 = por %p393, %p394
      %p397 = scmp.ne.s32.totalorder %s382, %s396
      %p398 = scmp.eq.s32.totalorder %s42, 0
      %p399 = por %p397, %p398
      %s401 = sadd.s32 %s400, 1
      %p404 = scmp.eq.s32.totalorder %s36, 1
      %p405 = scmp.ne.s32.totalorder %s400, %s402
      %p406 = scmp.eq.s32.totalorder %s36, 0
      %p407 = por %p405, %p406
      %p408 = scmp.ne.s32.totalorder %s400, %s402
      %p409 = scmp.eq.s32.totalorder %s41, 1
      %p410 = por %p408, %p409
      %p411 = scmp.ne.s32.totalorder %s402, %s403
      %p412 = scmp.eq.s32.totalorder %s41, 0
      %p413 = por %p411, %p412
      %p414 = scmp.ne.s32.totalorder %s402, %s403
      %p415 = scmp.eq.s32.totalorder %s42, 1
      %p416 = por %p414, %p415
      %p418 = scmp.ne.s32.totalorder %s403, %s417
      %p419 = scmp.eq.s32.totalorder %s42, 0
      %p420 = por %p418, %p419
      %s422 = sadd.s32 %s421, 1
      %p425 = scmp.eq.s32.totalorder %s36, 1
      %p426 = scmp.ne.s32.totalorder %s421, %s423
      %p427 = scmp.eq.s32.totalorder %s36, 0
      %p428 = por %p426, %p427
      %p429 = scmp.ne.s32.totalorder %s421, %s423
      %p430 = scmp.eq.s32.totalorder %s41, 1
      %p431 = por %p429, %p430
      %p432 = scmp.ne.s32.totalorder %s423, %s424
      %p433 = scmp.eq.s32.totalorder %s41, 0
      %p434 = por %p432, %p433
      %p435 = scmp.ne.s32.totalorder %s423, %s424
      %p436 = scmp.eq.s32.totalorder %s42, 1
      %p437 = por %p435, %p436
      %p439 = scmp.ne.s32.totalorder %s424, %s438
      %p440 = scmp.eq.s32.totalorder %s42, 0
      %p441 = por %p439, %p440
      %s443 = sadd.s32 %s442, 1
      %p446 = scmp.eq.s32.totalorder %s36, 1
      %p447 = scmp.ne.s32.totalorder %s442, %s444
      %p448 = scmp.eq.s32.totalorder %s36, 0
      %p449 = por %p447, %p448
      %p450 = scmp.ne.s32.totalorder %s442, %s444
      %p451 = scmp.eq.s32.totalorder %s41, 1
      %p452 = por %p450, %p451
      %p453 = scmp.ne.s32.totalorder %s444, %s445
      %p454 = scmp.eq.s32.totalorder %s41, 0
      %p455 = por %p453, %p454
      %p456 = scmp.ne.s32.totalorder %s444, %s445
      %p457 = scmp.eq.s32.totalorder %s42, 1
      %p458 = por %p456, %p457
      %p460 = scmp.ne.s32.totalorder %s445, %s459
      %p461 = scmp.eq.s32.totalorder %s42, 0
      %p462 = por %p460, %p461
      %s464 = sadd.s32 %s463, 1
      %p467 = scmp.eq.s32.totalorder %s36, 1
      %p468 = scmp.ne.s32.totalorder %s463, %s465
      %p469 = scmp.eq.s32.totalorder %s36, 0
      %p470 = por %p468, %p469
      %p471 = scmp.ne.s32.totalorder %s463, %s465
      %p472 = scmp.eq.s32.totalorder %s41, 1
      %p473 = por %p471, %p472
      %p474 = scmp.ne.s32.totalorder %s465, %s466
      %p475 = scmp.eq.s32.totalorder %s41, 0
      %p476 = por %p474, %p475
      %p477 = scmp.ne.s32.totalorder %s465, %s466
      %p478 = scmp.eq.s32.totalorder %s42, 1
      %p479 = por %p477, %p478
      %p481 = scmp.ne.s32.totalorder %s466, %s480
      %p482 = scmp.eq.s32.totalorder %s42, 0
      %p483 = por %p481, %p482
      %s484 = ssub.s32 %s36, %s43
      %p485 = scmp.eq.s32.totalorder %s484, 0
      %s487 = sadd.s32 %s486, 1
      %s488 = scalar_select %p485, %s486, %s487
      %p491 = pneg %p485
      %p492 = scmp.eq.s32.totalorder %s36, 1
      %p493 = por %p491, %p492
      %p494 = scmp.ne.s32.totalorder %s486, %s489
      %p495 = scmp.eq.s32.totalorder %s36, 0
      %p496 = por %p494, %p495
      %p497 = scmp.ne.s32.totalorder %s486, %s489
      %p498 = scmp.eq.s32.totalorder %s41, 1
      %p499 = por %p497, %p498
      %p500 = scmp.ne.s32.totalorder %s489, %s490
      %p501 = scmp.eq.s32.totalorder %s41, 0
      %p502 = por %p500, %p501
      %p503 = scmp.ne.s32.totalorder %s489, %s490
      %p504 = scmp.eq.s32.totalorder %s42, 1
      %p505 = por %p503, %p504
      %p507 = scmp.ne.s32.totalorder %s490, %s506
      %p508 = scmp.eq.s32.totalorder %s42, 0
      %p509 = por %p507, %p508
      %s510 = ssub.s32 %s36, %s43
      %p511 = scmp.eq.s32.totalorder %s510, 0
      %s513 = sadd.s32 %s512, 1
      %s514 = scalar_select %p511, %s512, %s513
      %p517 = pneg %p511
      %p518 = scmp.eq.s32.totalorder %s36, 1
      %p519 = por %p517, %p518
      %p520 = scmp.ne.s32.totalorder %s512, %s515
      %p521 = scmp.eq.s32.totalorder %s36, 0
      %p522 = por %p520, %p521
      %p523 = scmp.ne.s32.totalorder %s512, %s515
      %p524 = scmp.eq.s32.totalorder %s41, 1
      %p525 = por %p523, %p524
      %p526 = scmp.ne.s32.totalorder %s515, %s516
      %p527 = scmp.eq.s32.totalorder %s41, 0
      %p528 = por %p526, %p527
      %p529 = scmp.ne.s32.totalorder %s515, %s516
      %p530 = scmp.eq.s32.totalorder %s42, 1
      %p531 = por %p529, %p530
      %p533 = scmp.ne.s32.totalorder %s516, %s532
      %p534 = scmp.eq.s32.totalorder %s42, 0
      %p535 = por %p533, %p534
      %s536 = ssub.s32 %s36, %s43
      %p537 = scmp.eq.s32.totalorder %s536, 0
      %s539 = sadd.s32 %s538, 1
      %s540 = scalar_select %p537, %s538, %s539
      %p543 = pneg %p537
      %p544 = scmp.eq.s32.totalorder %s36, 1
      %p545 = por %p543, %p544
      %p546 = scmp.ne.s32.totalorder %s538, %s541
      %p547 = scmp.eq.s32.totalorder %s36, 0
      %p548 = por %p546, %p547
      %p549 = scmp.ne.s32.totalorder %s538, %s541
      %p550 = scmp.eq.s32.totalorder %s41, 1
      %p551 = por %p549, %p550
      %p552 = scmp.ne.s32.totalorder %s541, %s542
      %p553 = scmp.eq.s32.totalorder %s41, 0
      %p554 = por %p552, %p553
      %p555 = scmp.ne.s32.totalorder %s541, %s542
      %p556 = scmp.eq.s32.totalorder %s42, 1
      %p557 = por %p555, %p556
      %p559 = scmp.ne.s32.totalorder %s542, %s558
      %p560 = scmp.eq.s32.totalorder %s42, 0
      %p561 = por %p559, %p560
      %s562 = ssub.s32 %s36, %s43
      %p563 = scmp.eq.s32.totalorder %s562, 0
      %s565 = sadd.s32 %s564, 1
      %s566 = scalar_select %p563, %s564, %s565
      %p569 = pneg %p563
      %p570 = scmp.eq.s32.totalorder %s36, 1
      %p571 = por %p569, %p570
      %p572 = scmp.ne.s32.totalorder %s564, %s567
      %p573 = scmp.eq.s32.totalorder %s36, 0
      %p574 = por %p572, %p573
      %p575 = scmp.ne.s32.totalorder %s564, %s567
      %p576 = scmp.eq.s32.totalorder %s41, 1
      %p577 = por %p575, %p576
      %p578 = scmp.ne.s32.totalorder %s567, %s568
      %p579 = scmp.eq.s32.totalorder %s41, 0
      %p580 = por %p578, %p579
      %p581 = scmp.ne.s32.totalorder %s567, %s568
      %p582 = scmp.eq.s32.totalorder %s42, 1
      %p583 = por %p581, %p582
      %p585 = scmp.ne.s32.totalorder %s568, %s584
      %p586 = scmp.eq.s32.totalorder %s42, 0
      %p587 = por %p585, %p586
      %p588 = scmp.le.s32.totalorder 1, %s36
      %p589 = scmp.lt.s32.totalorder %s36, 3
      %p590 = pnand %p588, %p589
      %p591 = pneg %p590
      // Predicated region
      $region9: #{encoder_forward.7} parent=5 // pred_check
        _
      $region10: #{encoder_forward.7} parent=5 // pred_check_branch
        %593 = sbr.rel (%p590) target = $region12
      $region11: #{encoder_forward.7} parent=5 // pred_region
        %s594 = ssub.s32 %s36, 1
        // Predicated region
        $region13: #{encoder_forward.7} parent=11 // pred_check
          %p595 = pneg %p161
        $region14: #{encoder_forward.7} parent=11 // pred_check_branch
          %597 = sbr.rel (%p595) target = $region16
        $region15: #{encoder_forward.7} parent=11 // pred_region
          _
        $region16: #{encoder_forward.7} parent=11 // pred_fallthru
          _
        // Predicated region
        $region17: #{encoder_forward.7} parent=11 // pred_check
          %p598 = pneg %p182
        $region18: #{encoder_forward.7} parent=11 // pred_check_branch
          %600 = sbr.rel (%p598) target = $region20
        $region19: #{encoder_forward.7} parent=11 // pred_region
          _
        $region20: #{encoder_forward.7} parent=11 // pred_fallthru
          _
        // Predicated region
        $region21: #{encoder_forward.7} parent=11 // pred_check
          %p601 = pneg %p203
        $region22: #{encoder_forward.7} parent=11 // pred_check_branch
          %603 = sbr.rel (%p601) target = $region24
        $region23: #{encoder_forward.7} parent=11 // pred_region
          _
        $region24: #{encoder_forward.7} parent=11 // pred_fallthru
          _
        // Predicated region
        $region25: #{encoder_forward.7} parent=11 // pred_check
          %p604 = pneg %p224
        $region26: #{encoder_forward.7} parent=11 // pred_check_branch
          %606 = sbr.rel (%p604) target = $region28
        $region27: #{encoder_forward.7} parent=11 // pred_region
          _
        $region28: #{encoder_forward.7} parent=11 // pred_fallthru
          _
        // Predicated region
        $region29: #{encoder_forward.7} parent=11 // pred_check
          %p607 = pneg %p245
        $region30: #{encoder_forward.7} parent=11 // pred_check_branch
          %609 = sbr.rel (%p607) target = $region32
        $region31: #{encoder_forward.7} parent=11 // pred_region
          _
        $region32: #{encoder_forward.7} parent=11 // pred_fallthru
          _
        // Predicated region
        $region33: #{encoder_forward.7} parent=11 // pred_check
          %p610 = pneg %p266
        $region34: #{encoder_forward.7} parent=11 // pred_check_branch
          %612 = sbr.rel (%p610) target = $region36
        $region35: #{encoder_forward.7} parent=11 // pred_region
          _
        $region36: #{encoder_forward.7} parent=11 // pred_fallthru
          _
        // Predicated region
        $region37: #{encoder_forward.7} parent=11 // pred_check
          %p613 = pneg %p287
        $region38: #{encoder_forward.7} parent=11 // pred_check_branch
          %615 = sbr.rel (%p613) target = $region40
        $region39: #{encoder_forward.7} parent=11 // pred_region
          _
        $region40: #{encoder_forward.7} parent=11 // pred_fallthru
          _
        // Predicated region
        $region41: #{encoder_forward.7} parent=11 // pred_check
          %p616 = pneg %p308
        $region42: #{encoder_forward.7} parent=11 // pred_check_branch
          %618 = sbr.rel (%p616) target = $region44
        $region43: #{encoder_forward.7} parent=11 // pred_region
          _
        $region44: #{encoder_forward.7} parent=11 // pred_fallthru
          _
        // Predicated region
        $region45: #{encoder_forward.7} parent=11 // pred_check
          %p619 = pneg %p329
        $region46: #{encoder_forward.7} parent=11 // pred_check_branch
          %621 = sbr.rel (%p619) target = $region48
        $region47: #{encoder_forward.7} parent=11 // pred_region
          _
        $region48: #{encoder_forward.7} parent=11 // pred_fallthru
          _
        // Predicated region
        $region49: #{encoder_forward.7} parent=11 // pred_check
          %p622 = pneg %p350
        $region50: #{encoder_forward.7} parent=11 // pred_check_branch
          %624 = sbr.rel (%p622) target = $region52
        $region51: #{encoder_forward.7} parent=11 // pred_region
          _
        $region52: #{encoder_forward.7} parent=11 // pred_fallthru
          _
        // Predicated region
        $region53: #{encoder_forward.7} parent=11 // pred_check
          %p625 = pneg %p371
        $region54: #{encoder_forward.7} parent=11 // pred_check_branch
          %627 = sbr.rel (%p625) target = $region56
        $region55: #{encoder_forward.7} parent=11 // pred_region
          _
        $region56: #{encoder_forward.7} parent=11 // pred_fallthru
          _
        // Predicated region
        $region57: #{encoder_forward.7} parent=11 // pred_check
          %p628 = pneg %p392
        $region58: #{encoder_forward.7} parent=11 // pred_check_branch
          %630 = sbr.rel (%p628) target = $region60
        $region59: #{encoder_forward.7} parent=11 // pred_region
          _
        $region60: #{encoder_forward.7} parent=11 // pred_fallthru
          _
        // Predicated region
        $region61: #{encoder_forward.7} parent=11 // pred_check
          %p631 = pneg %p413
        $region62: #{encoder_forward.7} parent=11 // pred_check_branch
          %633 = sbr.rel (%p631) target = $region64
        $region63: #{encoder_forward.7} parent=11 // pred_region
          _
        $region64: #{encoder_forward.7} parent=11 // pred_fallthru
          _
        // Predicated region
        $region65: #{encoder_forward.7} parent=11 // pred_check
          %p634 = pneg %p434
        $region66: #{encoder_forward.7} parent=11 // pred_check_branch
          %636 = sbr.rel (%p634) target = $region68
        $region67: #{encoder_forward.7} parent=11 // pred_region
          _
        $region68: #{encoder_forward.7} parent=11 // pred_fallthru
          _
        // Predicated region
        $region69: #{encoder_forward.7} parent=11 // pred_check
          %p637 = pneg %p455
        $region70: #{encoder_forward.7} parent=11 // pred_check_branch
          %639 = sbr.rel (%p637) target = $region72
        $region71: #{encoder_forward.7} parent=11 // pred_region
          _
        $region72: #{encoder_forward.7} parent=11 // pred_fallthru
          _
        // Predicated region
        $region73: #{encoder_forward.7} parent=11 // pred_check
          %p640 = pneg %p476
        $region74: #{encoder_forward.7} parent=11 // pred_check_branch
          %642 = sbr.rel (%p640) target = $region76
        $region75: #{encoder_forward.7} parent=11 // pred_region
          _
        $region76: #{encoder_forward.7} parent=11 // pred_fallthru
          _
      $region12: #{encoder_forward.7} parent=5 // pred_fallthru
        _
      %p643 = scmp.lt.s32.totalorder %s36, 2
      // Predicated region
      $region77: #{encoder_forward.7} parent=5 // pred_check
        %p644 = pneg %p643
      $region78: #{encoder_forward.7} parent=5 // pred_check_branch
        %646 = sbr.rel (%p644) target = $region80
      $region79: #{encoder_forward.7} parent=5 // pred_region
        // Predicated region
        $region81: #{encoder_forward.7} parent=79 // pred_check
          %p647 = pneg %p56
        $region82: #{encoder_forward.7} parent=79 // pred_check_branch
          %649 = sbr.rel (%p647) target = $region84
        $region83: #{encoder_forward.7} parent=79 // pred_region
          %p650 = scmp.lt.s32.totalorder %s36, 1
          %s651 = scalar_select %p650, %s36, 1
          %s652 = smul.addr %s651, 4
          %s653 = smul.addr %s652, 4
          %s654 = scalar_lea.vmem %s0, %s653
        $region84: #{encoder_forward.7} parent=79 // pred_fallthru
          _
        // Predicated region
        $region85: #{encoder_forward.7} parent=79 // pred_check
          %p655 = pneg %p82
        $region86: #{encoder_forward.7} parent=79 // pred_check_branch
          %657 = sbr.rel (%p655) target = $region88
        $region87: #{encoder_forward.7} parent=79 // pred_region
          %p658 = scmp.lt.s32.totalorder %s36, 1
          %s659 = scalar_select %p658, %s36, 1
          %s660 = smul.addr %s659, 4
          %s661 = smul.addr %s660, 4
          %s662 = scalar_lea.vmem %s1, %s661
        $region88: #{encoder_forward.7} parent=79 // pred_fallthru
          _
        // Predicated region
        $region89: #{encoder_forward.7} parent=79 // pred_check
          %p663 = pneg %p108
        $region90: #{encoder_forward.7} parent=79 // pred_check_branch
          %665 = sbr.rel (%p663) target = $region92
        $region91: #{encoder_forward.7} parent=79 // pred_region
          %p666 = scmp.lt.s32.totalorder %s36, 1
          %s667 = scalar_select %p666, %s36, 1
          %s668 = smul.addr %s667, 4
          %s669 = smul.addr %s668, 4
          %s670 = scalar_lea.vmem %s2, %s669
        $region92: #{encoder_forward.7} parent=79 // pred_fallthru
          _
        // Predicated region
        $region93: #{encoder_forward.7} parent=79 // pred_check
          %p671 = pneg %p134
        $region94: #{encoder_forward.7} parent=79 // pred_check_branch
          %673 = sbr.rel (%p671) target = $region96
        $region95: #{encoder_forward.7} parent=79 // pred_region
          %p674 = scmp.lt.s32.totalorder %s36, 1
          %s675 = scalar_select %p674, %s36, 1
          %s676 = smul.addr %s675, 4
          %s677 = smul.addr %s676, 4
          %s678 = scalar_lea.vmem %s3, %s677
        $region96: #{encoder_forward.7} parent=79 // pred_fallthru
          _
      $region80: #{encoder_forward.7} parent=5 // pred_fallthru
        _
      %p679 = scmp.le.s32.totalorder 1, %s36
      %p680 = scmp.lt.s32.totalorder %s36, 3
      %p681 = pnand %p679, %p680
      %p682 = pneg %p681
      // Predicated region
      $region97: #{encoder_forward.7} parent=5 // pred_check
        _
      $region98: #{encoder_forward.7} parent=5 // pred_check_branch
        %684 = sbr.rel (%p681) target = $region100
      $region99: #{encoder_forward.7} parent=5 // pred_region
        %s685 = ssub.s32 %s36, 1
        %p686 = scmp.lt.s32.totalorder %s41, 1
        %s687 = scalar_select %p686, %s41, 1
        %s688 = smul.addr %s687, 4
        %s689 = smul.addr %s688, 4
        %s690 = scalar_lea.vmem %s0, %s689
        %p691 = pneg %p62
        %p692 = pneg %p59
        %p693 = scmp.lt.s32.totalorder %s41, 1
        %s694 = scalar_select %p693, %s41, 1
        %s695 = smul.addr %s694, 4
        %s696 = smul.addr %s695, 4
        %s697 = scalar_lea.vmem %s1, %s696
        %p698 = pneg %p88
        %p699 = pneg %p85
        %p700 = scmp.lt.s32.totalorder %s41, 1
        %s701 = scalar_select %p700, %s41, 1
        %s702 = smul.addr %s701, 4
        %s703 = smul.addr %s702, 4
        %s704 = scalar_lea.vmem %s2, %s703
        %p705 = pneg %p114
        %p706 = pneg %p111
        %p707 = scmp.lt.s32.totalorder %s41, 1
        %s708 = scalar_select %p707, %s41, 1
        %s709 = smul.addr %s708, 4
        %s710 = smul.addr %s709, 4
        %s711 = scalar_lea.vmem %s3, %s710
        %p712 = pneg %p140
        %p713 = pneg %p137
        %p714 = pneg %p161
        %p715 = pneg %p158
        %p716 = pneg %p182
        %p717 = pneg %p179
        %p718 = pneg %p203
        %p719 = pneg %p200
        %p720 = pneg %p224
        %p721 = pneg %p221
        %p722 = pneg %p245
        %p723 = pneg %p242
        %p724 = pneg %p266
        %p725 = pneg %p263
        %p726 = pneg %p287
        %p727 = pneg %p284
        %p728 = pneg %p308
        %p729 = pneg %p305
        %p730 = pneg %p329
        %p731 = pneg %p326
        %p732 = pneg %p350
        %p733 = pneg %p347
        %p734 = pneg %p371
        %p735 = pneg %p368
        %p736 = pneg %p392
        %p737 = pneg %p389
        %p738 = pneg %p413
        %p739 = pneg %p410
        %p740 = pneg %p434
        %p741 = pneg %p431
        %p742 = pneg %p455
        %p743 = pneg %p452
        %p744 = pneg %p476
        %p745 = pneg %p473
        %p746 = pneg %p502
        %p747 = pneg %p499
        %s748 = sand.u32 %s489, 1
        %s749 = scalar_lea.sflag [#allocation4], %s748
        %s750 = sand.u32 %s489, 1
        %s751 = smul.addr %s750, 16
        %s752 = scalar_lea.vmem [#allocation3], %s751
        %p753 = pneg %p528
        %p754 = pneg %p525
        %s755 = sand.u32 %s41, 1
        %s756 = scalar_lea.sflag [#allocation6], %s755
        %s757 = sand.u32 %s515, 1
        %s758 = smul.addr %s757, 16
        %s759 = scalar_lea.vmem [#allocation5], %s758
        %p760 = pneg %p554
        %p761 = pneg %p551
        %s762 = sand.u32 %s41, 1
        %s763 = scalar_lea.sflag [#allocation6], %s762
        %s764 = sand.u32 %s541, 1
        %s765 = smul.addr %s764, 16
        %s766 = scalar_lea.vmem [#allocation7], %s765
        %p767 = pneg %p580
        %p768 = pneg %p577
        %p769 = scmp.lt.s32.totalorder %s41, 1
        %s770 = scalar_select %p769, %s41, 1
        %s771 = smul.addr %s770, 2
        %s772 = smul.addr %s771, 8
        %s773 = scalar_lea.vmem %s23, %s772
        %p774 = scmp.lt.s32.totalorder %s41, 1
        %s775 = scalar_select %p774, %s41, 1
        %s776 = smul.addr %s775, 4
        %s777 = smul.addr %s776, 4
        %s778 = scalar_lea.vmem %s0, %s777
        %p779 = scmp.lt.s32.totalorder %s41, 1
        %s780 = scalar_select %p779, %s41, 1
        %s781 = smul.addr %s780, 4
        %s782 = smul.addr %s781, 4
        %s783 = scalar_lea.vmem %s1, %s782
        %p784 = scmp.lt.s32.totalorder %s41, 1
        %s785 = scalar_select %p784, %s41, 1
        %s786 = smul.addr %s785, 4
        %s787 = smul.addr %s786, 4
        %s788 = scalar_lea.vmem %s2, %s787
        %p789 = scmp.lt.s32.totalorder %s41, 1
        %s790 = scalar_select %p789, %s41, 1
        %s791 = smul.addr %s790, 4
        %s792 = smul.addr %s791, 4
        %s793 = scalar_lea.vmem %s3, %s792
        %p794 = scmp.lt.s32.totalorder %s41, 1
        %s795 = scalar_select %p794, %s41, 1
        %s796 = smul.addr %s795, 2
        %s797 = smul.addr %s796, 8
        %s798 = scalar_lea.vmem %s23, %s797
        %vm799 = vcmask 193536
        %800 = vst.msk [vmem:[#allocation2] sm:$0x3f] %vm799, 0.0
        %801 = vst.msk [vmem:[#allocation2 + $0x8] sm:$0x3f] %vm799, 0.0
        %802 = vst.msk [vmem:[#allocation2 + $0x10] sm:$0x3f] %vm799, 0.0
        %803 = vst.msk [vmem:[#allocation2 + $0x18] sm:$0x3f] %vm799, 0.0
        %804 = vst.msk [vmem:[#allocation2 + $0x20] sm:$0x3f] %vm799, 0.0
        %805 = vst.msk [vmem:[#allocation2 + $0x28] sm:$0x3f] %vm799, 0.0
        %v806 = vld [vmem:[%s4] sm:$0xff]
        %v807 = vld [vmem:[%s4 + $0x8] sm:$0x1]
        %v808 = vld [vmem:[%s5] sm:$0x1]
        %v809 = vld [vmem:[%s6] sm:$0xff]
        %v810 = vld [vmem:[%s7] sm:$0x1]
        %v811 = vld [vmem:[%s778] sm:$0xf]
        %v812 = vld [vmem:[%s778 + $0x4] sm:$0xf]
        %v813 = vld [vmem:[%s778 + $0x8] sm:$0xf]
        %v814 = vld [vmem:[%s778 + $0xc] sm:$0xf]
        %v815 = vld [vmem:[%s783] sm:$0xf]
        %v816 = vld [vmem:[%s783 + $0x4] sm:$0xf]
        %v817 = vld [vmem:[%s783 + $0x8] sm:$0xf]
        %v818 = vld [vmem:[%s783 + $0xc] sm:$0xf]
        %v819 = vld [vmem:[%s788] sm:$0xf]
        %v820 = vld [vmem:[%s788 + $0x4] sm:$0xf]
        %v821 = vld [vmem:[%s788 + $0x8] sm:$0xf]
        %v822 = vld [vmem:[%s788 + $0xc] sm:$0xf]
        %v823 = vld [vmem:[%s793] sm:$0xf]
        %v824 = vld [vmem:[%s793 + $0x4] sm:$0xf]
        %v825 = vld [vmem:[%s793 + $0x8] sm:$0xf]
        %v826 = vld [vmem:[%s793 + $0xc] sm:$0xf]
        %s827 = scalar_lea.vmem [#allocation2], 8
        %vm828 = vcmask 60416
        %829 = vst.msk [vmem:[%s827 + $0x1] sm:$0xf] %vm828, %v823
        %830 = vst.msk [vmem:[%s827 + $0x9] sm:$0xf] %vm828, %v824
        %831 = vst.msk [vmem:[%s827 + $0x11] sm:$0xf] %vm828, %v825
        %832 = vst.msk [vmem:[%s827 + $0x19] sm:$0xf] %vm828, %v826
        %v833 = vld [vmem:[#allocation2] sm:$0xf]
        %v834 = vld [vmem:[#allocation2 + $0x8] sm:$0xf]
        %v835 = vld [vmem:[#allocation2 + $0x10] sm:$0xf]
        %v836 = vld [vmem:[#allocation2 + $0x18] sm:$0xf]
        %v837 = vld [vmem:[#allocation2 + $0x1] sm:$0xf]
        %v838 = vld [vmem:[#allocation2 + $0x9] sm:$0xf]
        %v839 = vld [vmem:[#allocation2 + $0x11] sm:$0xf]
        %v840 = vld [vmem:[#allocation2 + $0x19] sm:$0xf]
        %v841 = vld [vmem:[%s827] sm:$0xf]
        %v842 = vld [vmem:[%s827 + $0x8] sm:$0xf]
        %v843 = vld [vmem:[%s827 + $0x10] sm:$0xf]
        %v844 = vld [vmem:[%s827 + $0x18] sm:$0xf]
        %v845 = vld [vmem:[%s827 + $0x1] sm:$0xf]
        %v846 = vld [vmem:[%s827 + $0x9] sm:$0xf]
        %v847 = vld [vmem:[%s827 + $0x11] sm:$0xf]
        %v848 = vld [vmem:[%s827 + $0x19] sm:$0xf]
        %849 = vst.msk [vmem:[%s827 + $0x1] sm:$0xf] %vm828, %v819
        %850 = vst.msk [vmem:[%s827 + $0x9] sm:$0xf] %vm828, %v820
        %851 = vst.msk [vmem:[%s827 + $0x11] sm:$0xf] %vm828, %v821
        %852 = vst.msk [vmem:[%s827 + $0x19] sm:$0xf] %vm828, %v822
        %v853 = vld [vmem:[#allocation2 + $0x1] sm:$0xf]
        %v854 = vld [vmem:[#allocation2 + $0x9] sm:$0xf]
        %v855 = vld [vmem:[#allocation2 + $0x11] sm:$0xf]
        %v856 = vld [vmem:[#allocation2 + $0x19] sm:$0xf]
        %v857 = vld [vmem:[%s827 + $0x1] sm:$0xf]
        %v858 = vld [vmem:[%s827 + $0x9] sm:$0xf]
        %v859 = vld [vmem:[%s827 + $0x11] sm:$0xf]
        %v860 = vld [vmem:[%s827 + $0x19] sm:$0xf]
        %861 = vst.msk [vmem:[%s827 + $0x1] sm:$0xf] %vm828, %v815
        %862 = vst.msk [vmem:[%s827 + $0x9] sm:$0xf] %vm828, %v816
        %863 = vst.msk [vmem:[%s827 + $0x11] sm:$0xf] %vm828, %v817
        %864 = vst.msk [vmem:[%s827 + $0x19] sm:$0xf] %vm828, %v818
        %v865 = vld [vmem:[%s827] sm:$0xf]
        %v866 = vld [vmem:[%s827 + $0x8] sm:$0xf]
        %v867 = vld [vmem:[%s827 + $0x10] sm:$0xf]
        %v868 = vld [vmem:[%s827 + $0x18] sm:$0xf]
        %v869 = vld [vmem:[%s827 + $0x1] sm:$0xf]
        %v870 = vld [vmem:[%s827 + $0x9] sm:$0xf]
        %v871 = vld [vmem:[%s827 + $0x11] sm:$0xf]
        %v872 = vld [vmem:[%s827 + $0x19] sm:$0xf]
        %873 = vst.msk [vmem:[%s827 + $0x1] sm:$0xf] %vm828, %v811
        %874 = vst.msk [vmem:[%s827 + $0x9] sm:$0xf] %vm828, %v812
        %875 = vst.msk [vmem:[%s827 + $0x11] sm:$0xf] %vm828, %v813
        %876 = vst.msk [vmem:[%s827 + $0x19] sm:$0xf] %vm828, %v814
        %v877 = vld [vmem:[%s827 + $0x1] sm:$0xf]
        %v878 = vld [vmem:[%s827 + $0x9] sm:$0xf]
        %v879 = vld [vmem:[%s827 + $0x11] sm:$0xf]
        %v880 = vld [vmem:[%s827 + $0x19] sm:$0xf]
        %v881 = vperm.slane %v806, 0
        %v882 = vmul.f32 %v833, %v881
        %v883 = vmul.f32 %v834, %v881
        %v884 = vmul.f32 %v835, %v881
        %v885 = vmul.f32 %v836, %v881
        %v886 = vperm.slane %v806, 1
        %v887 = vmul.f32 %v853, %v886
        %v888 = vmul.f32 %v854, %v886
        %v889 = vmul.f32 %v855, %v886
        %v890 = vmul.f32 %v856, %v886
        %v891 = vadd.f32 %v882, %v887
        %v892 = vadd.f32 %v883, %v888
        %v893 = vadd.f32 %v884, %v889
        %v894 = vadd.f32 %v885, %v890
        %v895 = vperm.slane %v806, 2
        %v896 = vmul.f32 %v837, %v895
        %v897 = vmul.f32 %v838, %v895
        %v898 = vmul.f32 %v839, %v895
        %v899 = vmul.f32 %v840, %v895
        %v900 = vadd.f32 %v891, %v896
        %v901 = vadd.f32 %v892, %v897
        %v902 = vadd.f32 %v893, %v898
        %v903 = vadd.f32 %v894, %v899
        %v904 = vperm.slane %v806, 3
        %v905 = vmul.f32 %v865, %v904
        %v906 = vmul.f32 %v866, %v904
        %v907 = vmul.f32 %v867, %v904
        %v908 = vmul.f32 %v868, %v904
        %v909 = vadd.f32 %v900, %v905
        %v910 = vadd.f32 %v901, %v906
        %v911 = vadd.f32 %v902, %v907
        %v912 = vadd.f32 %v903, %v908
        %v913 = vperm.slane %v806, 4
        %v914 = vmul.f32 %v877, %v913
        %v915 = vmul.f32 %v878, %v913
        %v916 = vmul.f32 %v879, %v913
        %v917 = vmul.f32 %v880, %v913
        %v918 = vadd.f32 %v909, %v914
        %v919 = vadd.f32 %v910, %v915
        %v920 = vadd.f32 %v911, %v916
        %v921 = vadd.f32 %v912, %v917
        %v922 = vperm.slane %v806, 5
        %v923 = vmul.f32 %v869, %v922
        %v924 = vmul.f32 %v870, %v922
        %v925 = vmul.f32 %v871, %v922
        %v926 = vmul.f32 %v872, %v922
        %v927 = vadd.f32 %v918, %v923
        %v928 = vadd.f32 %v919, %v924
        %v929 = vadd.f32 %v920, %v925
        %v930 = vadd.f32 %v921, %v926
        %v931 = vperm.slane %v806, 6
        %v932 = vmul.f32 %v841, %v931
        %v933 = vmul.f32 %v842, %v931
        %v934 = vmul.f32 %v843, %v931
        %v935 = vmul.f32 %v844, %v931
        %v936 = vadd.f32 %v927, %v932
        %v937 = vadd.f32 %v928, %v933
        %v938 = vadd.f32 %v929, %v934
        %v939 = vadd.f32 %v930, %v935
        %v940 = vperm.slane %v806, 7
        %v941 = vmul.f32 %v857, %v940
        %v942 = vmul.f32 %v858, %v940
        %v943 = vmul.f32 %v859, %v940
        %v944 = vmul.f32 %v860, %v940
        %v945 = vadd.f32 %v936, %v941
        %v946 = vadd.f32 %v937, %v942
        %v947 = vadd.f32 %v938, %v943
        %v948 = vadd.f32 %v939, %v944
        %v949 = vperm.slane %v807, 0
        %v950 = vmul.f32 %v845, %v949
        %v951 = vmul.f32 %v846, %v949
        %v952 = vmul.f32 %v847, %v949
        %v953 = vmul.f32 %v848, %v949
        %v954 = vadd.f32 %v945, %v950
        %v955 = vadd.f32 %v946, %v951
        %v956 = vadd.f32 %v947, %v952
        %v957 = vadd.f32 %v948, %v953
        %v959 = vperm.slane %v808, 0
        %v961 = vrot.slane %v959, 4
        %v963 = vadd.f32 %v954, %v959
        %v964 = vadd.f32 %v955, %v961
        %v965 = vadd.f32 %v956, %v959
        %v966 = vadd.f32 %v957, %v961
        %v967 = vsub.f32 0.0, %v963
        %v968 = vsub.f32 0.0, %v964
        %v969 = vsub.f32 0.0, %v965
        %v970 = vsub.f32 0.0, %v966
        %v971 = vmul.f32 %v967, 1.442695
        %v972 = vpow.pop %v971
        %v973 = vmul.f32 %v968, 1.442695
        %v974 = vpow.pop %v973
        %v975 = vmul.f32 %v969, 1.442695
        %v976 = vpow.pop %v975
        %v977 = vmul.f32 %v970, 1.442695
        %v978 = vpow.pop %v977
        %v979 = vadd.f32 %v972, 1.0
        %v980 = vadd.f32 %v974, 1.0
        %v981 = vadd.f32 %v976, 1.0
        %v982 = vadd.f32 %v978, 1.0
        %v983 = vrcp.pop %v979
        %v984 = vrcp.pop %v980
        %v985 = vrcp.pop %v981
        %v986 = vrcp.pop %v982
        %v987 = vmul.f32 %v963, %v983
        %v988 = vmul.f32 %v964, %v984
        %v989 = vmul.f32 %v965, %v985
        %v990 = vmul.f32 %v966, %v986
        %v992 = vperm.slane %v810, 0
        %998 = vst [vmem:[#allocation1] ss:$2 sm:$0xff] %v987
        %s999 = scalar_lea.vmem [#allocation1], 1
        %1000 = vst [vmem:[%s999] ss:$2 sm:$0xff] %v988
        %s1001 = scalar_lea.vmem [#allocation1], 16
        %1002 = vst [vmem:[%s1001] ss:$2 sm:$0xff] %v989
        %s1003 = scalar_lea.vmem [#allocation1], 17
        %1004 = vst [vmem:[%s1003] ss:$2 sm:$0xff] %v990
        %v1005 = vld.sshfl [vmem:[#allocation1] sm:$0xff pattern:$0x75316420]
        %v1006 = vld.sshfl [vmem:[#allocation1 + $0x10] sm:$0xff pattern:$0x75316420]
        %vm1007 = vcmask 64512
        %v1008 = vsel %vm1007, %v1005, 0
        %v1010 = vsel %vm1007, %v1006, 0
        %1012 = vmatpush.msra.mxu0 0.0
        %1013 = vmatpush.msra.mxu0 0.0
        %1014 = vmatpush.msra.mxu0 0.0
        %1015 = vmatpush.msra.mxu0 0.0
        %1016 = vmatpush.msra.mxu0 0.0
        %1017 = vmatpush.msra.mxu0 0.0
        %1018 = vmatpush.msra.mxu0 0.0
        %1019 = vmatpush.msra.mxu0 0.0
        %1020 = vmatpush.msra.mxu0 0.0
        %1021 = vmatpush.msra.mxu0 0.0
        %1022 = vmatpush.msra.mxu0 0.0
        %1023 = vmatpush.msra.mxu0 0.0
        %1024 = vmatpush.msra.mxu0 0.0
        %1025 = vmatpush.msra.mxu0 0.0
        %1026 = vmatpush.msra.mxu0 0.0
        %1027 = vmatpush.msra.mxu0 %v809
        %1028 = vmatmul.f32.gmra.mxu0 %v1008
        %v1029 = vpop.f32.mrf.mxu0
        %v1030 = vadd.f32 %v992, %v1029
        %1031 = vmatmul.f32.gmra.mxu0 %v1010
        %v1032 = vpop.f32.mrf.mxu0
        %v1033 = vadd.f32 %v992, %v1032
        %1034 = vdwg.mxu0
        %v1035 = vsub.f32 0.0, %v1030
        %v1036 = vsub.f32 0.0, %v1033
        %v1037 = vmul.f32 %v1035, 1.442695
        %v1038 = vpow.pop %v1037
        %v1039 = vmul.f32 %v1036, 1.442695
        %v1040 = vpow.pop %v1039
        %v1041 = vadd.f32 %v1038, 1.0
        %v1042 = vadd.f32 %v1040, 1.0
        %v1043 = vrcp.pop %v1041
        %v1044 = vrcp.pop %v1042
        %v1045 = vmul.f32 %v1030, %v1043
        %v1046 = vmul.f32 %v1033, %v1044
        %vm1047 = vcmask 130048
        %1048 = vst.msk [vmem:[%s752] sm:$0xff] %vm1047, %v1045
        %1049 = vst.msk [vmem:[%s752 + $0x8] sm:$0xff] %vm1047, %v1046
        %v1052 = vrot.slane %v1045, 4
        %v1053 = vrot.slane %v1046, 4
        %v1056 = vld [vmem:[%s8] sm:$0xff]
        %v1057 = vld [vmem:[%s8 + $0x8] sm:$0x1]
        %v1058 = vld [vmem:[%s9] sm:$0x1]
        %v1059 = vld [vmem:[%s10] sm:$0xff]
        %v1060 = vld [vmem:[%s10 + $0x8] sm:$0xff]
        %v1061 = vld [vmem:[%s11] sm:$0x1]
        %vm1062 = vcmask 125952
        %1063 = vst.msk [vmem:[%s827 + $0x1] sm:$0xf] %vm1062, %v1045
        %1064 = vst.msk [vmem:[%s827 + $0x9] sm:$0xf] %vm1062, %v1052
        %1065 = vst.msk [vmem:[%s827 + $0x11] sm:$0xf] %vm1062, %v1046
        %1066 = vst.msk [vmem:[%s827 + $0x19] sm:$0xf] %vm1062, %v1053
        %v1067 = vld [vmem:[#allocation2] sm:$0xf]
        %v1068 = vld [vmem:[#allocation2 + $0x8] sm:$0xf]
        %v1069 = vld [vmem:[#allocation2 + $0x10] sm:$0xf]
        %v1070 = vld [vmem:[#allocation2 + $0x18] sm:$0xf]
        %v1071 = vld [vmem:[#allocation2 + $0x1] sm:$0xf]
        %v1072 = vld [vmem:[#allocation2 + $0x9] sm:$0xf]
        %v1073 = vld [vmem:[#allocation2 + $0x11] sm:$0xf]
        %v1074 = vld [vmem:[#allocation2 + $0x19] sm:$0xf]
        %v1075 = vld [vmem:[#allocation2 + $0x2] sm:$0xf]
        %v1076 = vld [vmem:[#allocation2 + $0xa] sm:$0xf]
        %v1077 = vld [vmem:[#allocation2 + $0x12] sm:$0xf]
        %v1078 = vld [vmem:[#allocation2 + $0x1a] sm:$0xf]
        %v1079 = vld [vmem:[%s827] sm:$0xf]
        %v1080 = vld [vmem:[%s827 + $0x8] sm:$0xf]
        %v1081 = vld [vmem:[%s827 + $0x10] sm:$0xf]
        %v1082 = vld [vmem:[%s827 + $0x18] sm:$0xf]
        %v1083 = vld [vmem:[%s827 + $0x1] sm:$0xf]
        %v1084 = vld [vmem:[%s827 + $0x9] sm:$0xf]
        %v1085 = vld [vmem:[%s827 + $0x11] sm:$0xf]
        %v1086 = vld [vmem:[%s827 + $0x19] sm:$0xf]
        %v1087 = vld [vmem:[%s827 + $0x2] sm:$0xf]
        %v1088 = vld [vmem:[%s827 + $0xa] sm:$0xf]
        %v1089 = vld [vmem:[%s827 + $0x12] sm:$0xf]
        %v1090 = vld [vmem:[%s827 + $0x1a] sm:$0xf]
        %s1091 = scalar_lea.vmem [#allocation2], 16
        %v1092 = vld [vmem:[%s1091] sm:$0xf]
        %v1093 = vld [vmem:[%s1091 + $0x8] sm:$0xf]
        %v1094 = vld [vmem:[%s1091 + $0x10] sm:$0xf]
        %v1095 = vld [vmem:[%s1091 + $0x18] sm:$0xf]
        %v1096 = vld [vmem:[%s1091 + $0x1] sm:$0xf]
        %v1097 = vld [vmem:[%s1091 + $0x9] sm:$0xf]
        %v1098 = vld [vmem:[%s1091 + $0x11] sm:$0xf]
        %v1099 = vld [vmem:[%s1091 + $0x19] sm:$0xf]
        %v1100 = vld [vmem:[%s1091 + $0x2] sm:$0xf]
        %v1101 = vld [vmem:[%s1091 + $0xa] sm:$0xf]
        %v1102 = vld [vmem:[%s1091 + $0x12] sm:$0xf]
        %v1103 = vld [vmem:[%s1091 + $0x1a] sm:$0xf]
        %v1104 = vperm.slane %v1056, 0
        %v1105 = vmul.f32 %v1067, %v1104
        %v1106 = vmul.f32 %v1068, %v1104
        %v1107 = vmul.f32 %v1069, %v1104
        %v1108 = vmul.f32 %v1070, %v1104
        %v1109 = vperm.slane %v1056, 1
        %v1110 = vmul.f32 %v1071, %v1109
        %v1111 = vmul.f32 %v1072, %v1109
        %v1112 = vmul.f32 %v1073, %v1109
        %v1113 = vmul.f32 %v1074, %v1109
        %v1114 = vadd.f32 %v1105, %v1110
        %v1115 = vadd.f32 %v1106, %v1111
        %v1116 = vadd.f32 %v1107, %v1112
        %v1117 = vadd.f32 %v1108, %v1113
        %v1118 = vperm.slane %v1056, 2
        %v1119 = vmul.f32 %v1075, %v1118
        %v1120 = vmul.f32 %v1076, %v1118
        %v1121 = vmul.f32 %v1077, %v1118
        %v1122 = vmul.f32 %v1078, %v1118
        %v1123 = vadd.f32 %v1114, %v1119
        %v1124 = vadd.f32 %v1115, %v1120
        %v1125 = vadd.f32 %v1116, %v1121
        %v1126 = vadd.f32 %v1117, %v1122
        %v1127 = vperm.slane %v1056, 3
        %v1128 = vmul.f32 %v1079, %v1127
        %v1129 = vmul.f32 %v1080, %v1127
        %v1130 = vmul.f32 %v1081, %v1127
        %v1131 = vmul.f32 %v1082, %v1127
        %v1132 = vadd.f32 %v1123, %v1128
        %v1133 = vadd.f32 %v1124, %v1129
        %v1134 = vadd.f32 %v1125, %v1130
        %v1135 = vadd.f32 %v1126, %v1131
        %v1136 = vperm.slane %v1056, 4
        %v1137 = vmul.f32 %v1083, %v1136
        %v1138 = vmul.f32 %v1084, %v1136
        %v1139 = vmul.f32 %v1085, %v1136
        %v1140 = vmul.f32 %v1086, %v1136
        %v1141 = vadd.f32 %v1132, %v1137
        %v1142 = vadd.f32 %v1133, %v1138
        %v1143 = vadd.f32 %v1134, %v1139
        %v1144 = vadd.f32 %v1135, %v1140
        %v1145 = vperm.slane %v1056, 5
        %v1146 = vmul.f32 %v1087, %v1145
        %v1147 = vmul.f32 %v1088, %v1145
        %v1148 = vmul.f32 %v1089, %v1145
        %v1149 = vmul.f32 %v1090, %v1145
        %v1150 = vadd.f32 %v1141, %v1146
        %v1151 = vadd.f32 %v1142, %v1147
        %v1152 = vadd.f32 %v1143, %v1148
        %v1153 = vadd.f32 %v1144, %v1149
        %v1154 = vperm.slane %v1056, 6
        %v1155 = vmul.f32 %v1092, %v1154
        %v1156 = vmul.f32 %v1093, %v1154
        %v1157 = vmul.f32 %v1094, %v1154
        %v1158 = vmul.f32 %v1095, %v1154
        %v1159 = vadd.f32 %v1150, %v1155
        %v1160 = vadd.f32 %v1151, %v1156
        %v1161 = vadd.f32 %v1152, %v1157
        %v1162 = vadd.f32 %v1153, %v1158
        %v1163 = vperm.slane %v1056, 7
        %v1164 = vmul.f32 %v1096, %v1163
        %v1165 = vmul.f32 %v1097, %v1163
        %v1166 = vmul.f32 %v1098, %v1163
        %v1167 = vmul.f32 %v1099, %v1163
        %v1168 = vadd.f32 %v1159, %v1164
        %v1169 = vadd.f32 %v1160, %v1165
        %v1170 = vadd.f32 %v1161, %v1166
        %v1171 = vadd.f32 %v1162, %v1167
        %v1172 = vperm.slane %v1057, 0
        %v1173 = vmul.f32 %v1100, %v1172
        %v1174 = vmul.f32 %v1101, %v1172
        %v1175 = vmul.f32 %v1102, %v1172
        %v1176 = vmul.f32 %v1103, %v1172
        %v1177 = vadd.f32 %v1168, %v1173
        %v1178 = vadd.f32 %v1169, %v1174
        %v1179 = vadd.f32 %v1170, %v1175
        %v1180 = vadd.f32 %v1171, %v1176
        %v1182 = vperm.slane %v1058, 0
        %v1184 = vrot.slane %v1182, 4
        %v1186 = vadd.f32 %v1177, %v1182
        %v1187 = vadd.f32 %v1178, %v1184
        %v1188 = vadd.f32 %v1179, %v1182
        %v1189 = vadd.f32 %v1180, %v1184
        %v1190 = vsub.f32 0.0, %v1186
        %v1191 = vsub.f32 0.0, %v1187
        %v1192 = vsub.f32 0.0, %v1188
        %v1193 = vsub.f32 0.0, %v1189
        %v1194 = vmul.f32 %v1190, 1.442695
        %v1195 = vpow.pop %v1194
        %v1196 = vmul.f32 %v1191, 1.442695
        %v1197 = vpow.pop %v1196
        %v1198 = vmul.f32 %v1192, 1.442695
        %v1199 = vpow.pop %v1198
        %v1200 = vmul.f32 %v1193, 1.442695
        %v1201 = vpow.pop %v1200
        %v1202 = vadd.f32 %v1195, 1.0
        %v1203 = vadd.f32 %v1197, 1.0
        %v1204 = vadd.f32 %v1199, 1.0
        %v1205 = vadd.f32 %v1201, 1.0
        %v1206 = vrcp.pop %v1202
        %v1207 = vrcp.pop %v1203
        %v1208 = vrcp.pop %v1204
        %v1209 = vrcp.pop %v1205
        %v1210 = vmul.f32 %v1186, %v1206
        %v1211 = vmul.f32 %v1187, %v1207
        %v1212 = vmul.f32 %v1188, %v1208
        %v1213 = vmul.f32 %v1189, %v1209
        %v1215 = vperm.slane %v1061, 0
        %1221 = vst [vmem:[#allocation1] ss:$2 sm:$0xff] %v1210
        %s1222 = scalar_lea.vmem [#allocation1], 1
        %1223 = vst [vmem:[%s1222] ss:$2 sm:$0xff] %v1211
        %s1224 = scalar_lea.vmem [#allocation1], 16
        %1225 = vst [vmem:[%s1224] ss:$2 sm:$0xff] %v1212
        %s1226 = scalar_lea.vmem [#allocation1], 17
        %1227 = vst [vmem:[%s1226] ss:$2 sm:$0xff] %v1213
        %v1228 = vld.sshfl [vmem:[#allocation1] sm:$0xff pattern:$0x75316420]
        %v1229 = vld.sshfl [vmem:[#allocation1 + $0x10] sm:$0xff pattern:$0x75316420]
        %v1230 = vsel %vm1047, %v1228, 0
        %v1232 = vsel %vm1047, %v1229, 0
        %1234 = vmatpush.msra.mxu0 0.0
        %1235 = vmatpush.msra.mxu0 0.0
        %1236 = vmatpush.msra.mxu0 0.0
        %1237 = vmatpush.msra.mxu0 0.0
        %1238 = vmatpush.msra.mxu0 0.0
        %1239 = vmatpush.msra.mxu0 0.0
        %1240 = vmatpush.msra.mxu0 0.0
        %1241 = vmatpush.msra.mxu0 0.0
        %1242 = vmatpush.msra.mxu0 0.0
        %1243 = vmatpush.msra.mxu0 0.0
        %1244 = vmatpush.msra.mxu0 0.0
        %1245 = vmatpush.msra.mxu0 0.0
        %1246 = vmatpush.msra.mxu0 0.0
        %1247 = vmatpush.msra.mxu0 0.0
        %1248 = vmatpush.msra.mxu0 %v1060
        %1249 = vmatpush.msra.mxu0 %v1059
        %1250 = vmatmul.f32.gmra.mxu0 %v1230
        %v1251 = vpop.f32.mrf.mxu0
        %v1252 = vadd.f32 %v1215, %v1251
        %1253 = vmatmul.f32.gmra.mxu0 %v1232
        %v1254 = vpop.f32.mrf.mxu0
        %v1255 = vadd.f32 %v1215, %v1254
        %1256 = vdwg.mxu0
        %v1257 = vsub.f32 0.0, %v1252
        %v1258 = vsub.f32 0.0, %v1255
        %v1259 = vmul.f32 %v1257, 1.442695
        %v1260 = vpow.pop %v1259
        %v1261 = vmul.f32 %v1258, 1.442695
        %v1262 = vpow.pop %v1261
        %v1263 = vadd.f32 %v1260, 1.0
        %v1264 = vadd.f32 %v1262, 1.0
        %v1265 = vrcp.pop %v1263
        %v1266 = vrcp.pop %v1264
        %v1267 = vmul.f32 %v1252, %v1265
        %v1268 = vmul.f32 %v1255, %v1266
        %1269 = vst.msk [vmem:[%s759] sm:$0xff] %vm1047, %v1267
        %1270 = vst.msk [vmem:[%s759 + $0x8] sm:$0xff] %vm1047, %v1268
        %v1273 = vrot.slane %v1267, 4
        %v1274 = vrot.slane %v1268, 4
        %v1277 = vld [vmem:[%s12] sm:$0xff]
        %v1278 = vld [vmem:[%s12 + $0x8] sm:$0x1]
        %v1279 = vld [vmem:[%s13] sm:$0x1]
        %v1280 = vld [vmem:[%s14] sm:$0xff]
        %v1281 = vld [vmem:[%s14 + $0x8] sm:$0xff]
        %v1282 = vld [vmem:[%s15] sm:$0x1]
        %1283 = vst.msk [vmem:[%s827 + $0x1] sm:$0xf] %vm1062, %v1267
        %1284 = vst.msk [vmem:[%s827 + $0x9] sm:$0xf] %vm1062, %v1273
        %1285 = vst.msk [vmem:[%s827 + $0x11] sm:$0xf] %vm1062, %v1268
        %1286 = vst.msk [vmem:[%s827 + $0x19] sm:$0xf] %vm1062, %v1274
        %v1287 = vld [vmem:[#allocation2] sm:$0xf]
        %v1288 = vld [vmem:[#allocation2 + $0x8] sm:$0xf]
        %v1289 = vld [vmem:[#allocation2 + $0x10] sm:$0xf]
        %v1290 = vld [vmem:[#allocation2 + $0x18] sm:$0xf]
        %v1291 = vld [vmem:[#allocation2 + $0x1] sm:$0xf]
        %v1292 = vld [vmem:[#allocation2 + $0x9] sm:$0xf]
        %v1293 = vld [vmem:[#allocation2 + $0x11] sm:$0xf]
        %v1294 = vld [vmem:[#allocation2 + $0x19] sm:$0xf]
        %v1295 = vld [vmem:[#allocation2 + $0x2] sm:$0xf]
        %v1296 = vld [vmem:[#allocation2 + $0xa] sm:$0xf]
        %v1297 = vld [vmem:[#allocation2 + $0x12] sm:$0xf]
        %v1298 = vld [vmem:[#allocation2 + $0x1a] sm:$0xf]
        %v1299 = vld [vmem:[%s827] sm:$0xf]
        %v1300 = vld [vmem:[%s827 + $0x8] sm:$0xf]
        %v1301 = vld [vmem:[%s827 + $0x10] sm:$0xf]
        %v1302 = vld [vmem:[%s827 + $0x18] sm:$0xf]
        %v1303 = vld [vmem:[%s827 + $0x1] sm:$0xf]
        %v1304 = vld [vmem:[%s827 + $0x9] sm:$0xf]
        %v1305 = vld [vmem:[%s827 + $0x11] sm:$0xf]
        %v1306 = vld [vmem:[%s827 + $0x19] sm:$0xf]
        %v1307 = vld [vmem:[%s827 + $0x2] sm:$0xf]
        %v1308 = vld [vmem:[%s827 + $0xa] sm:$0xf]
        %v1309 = vld [vmem:[%s827 + $0x12] sm:$0xf]
        %v1310 = vld [vmem:[%s827 + $0x1a] sm:$0xf]
        %v1311 = vld [vmem:[%s1091] sm:$0xf]
        %v1312 = vld [vmem:[%s1091 + $0x8] sm:$0xf]
        %v1313 = vld [vmem:[%s1091 + $0x10] sm:$0xf]
        %v1314 = vld [vmem:[%s1091 + $0x18] sm:$0xf]
        %v1315 = vld [vmem:[%s1091 + $0x1] sm:$0xf]
        %v1316 = vld [vmem:[%s1091 + $0x9] sm:$0xf]
        %v1317 = vld [vmem:[%s1091 + $0x11] sm:$0xf]
        %v1318 = vld [vmem:[%s1091 + $0x19] sm:$0xf]
        %v1319 = vld [vmem:[%s1091 + $0x2] sm:$0xf]
        %v1320 = vld [vmem:[%s1091 + $0xa] sm:$0xf]
        %v1321 = vld [vmem:[%s1091 + $0x12] sm:$0xf]
        %v1322 = vld [vmem:[%s1091 + $0x1a] sm:$0xf]
        %v1323 = vperm.slane %v1277, 0
        %v1324 = vmul.f32 %v1287, %v1323
        %v1325 = vmul.f32 %v1288, %v1323
        %v1326 = vmul.f32 %v1289, %v1323
        %v1327 = vmul.f32 %v1290, %v1323
        %v1328 = vperm.slane %v1277, 1
        %v1329 = vmul.f32 %v1291, %v1328
        %v1330 = vmul.f32 %v1292, %v1328
        %v1331 = vmul.f32 %v1293, %v1328
        %v1332 = vmul.f32 %v1294, %v1328
        %v1333 = vadd.f32 %v1324, %v1329
        %v1334 = vadd.f32 %v1325, %v1330
        %v1335 = vadd.f32 %v1326, %v1331
        %v1336 = vadd.f32 %v1327, %v1332
        %v1337 = vperm.slane %v1277, 2
        %v1338 = vmul.f32 %v1295, %v1337
        %v1339 = vmul.f32 %v1296, %v1337
        %v1340 = vmul.f32 %v1297, %v1337
        %v1341 = vmul.f32 %v1298, %v1337
        %v1342 = vadd.f32 %v1333, %v1338
        %v1343 = vadd.f32 %v1334, %v1339
        %v1344 = vadd.f32 %v1335, %v1340
        %v1345 = vadd.f32 %v1336, %v1341
        %v1346 = vperm.slane %v1277, 3
        %v1347 = vmul.f32 %v1299, %v1346
        %v1348 = vmul.f32 %v1300, %v1346
        %v1349 = vmul.f32 %v1301, %v1346
        %v1350 = vmul.f32 %v1302, %v1346
        %v1351 = vadd.f32 %v1342, %v1347
        %v1352 = vadd.f32 %v1343, %v1348
        %v1353 = vadd.f32 %v1344, %v1349
        %v1354 = vadd.f32 %v1345, %v1350
        %v1355 = vperm.slane %v1277, 4
        %v1356 = vmul.f32 %v1303, %v1355
        %v1357 = vmul.f32 %v1304, %v1355
        %v1358 = vmul.f32 %v1305, %v1355
        %v1359 = vmul.f32 %v1306, %v1355
        %v1360 = vadd.f32 %v1351, %v1356
        %v1361 = vadd.f32 %v1352, %v1357
        %v1362 = vadd.f32 %v1353, %v1358
        %v1363 = vadd.f32 %v1354, %v1359
        %v1364 = vperm.slane %v1277, 5
        %v1365 = vmul.f32 %v1307, %v1364
        %v1366 = vmul.f32 %v1308, %v1364
        %v1367 = vmul.f32 %v1309, %v1364
        %v1368 = vmul.f32 %v1310, %v1364
        %v1369 = vadd.f32 %v1360, %v1365
        %v1370 = vadd.f32 %v1361, %v1366
        %v1371 = vadd.f32 %v1362, %v1367
        %v1372 = vadd.f32 %v1363, %v1368
        %v1373 = vperm.slane %v1277, 6
        %v1374 = vmul.f32 %v1311, %v1373
        %v1375 = vmul.f32 %v1312, %v1373
        %v1376 = vmul.f32 %v1313, %v1373
        %v1377 = vmul.f32 %v1314, %v1373
        %v1378 = vadd.f32 %v1369, %v1374
        %v1379 = vadd.f32 %v1370, %v1375
        %v1380 = vadd.f32 %v1371, %v1376
        %v1381 = vadd.f32 %v1372, %v1377
        %v1382 = vperm.slane %v1277, 7
        %v1383 = vmul.f32 %v1315, %v1382
        %v1384 = vmul.f32 %v1316, %v1382
        %v1385 = vmul.f32 %v1317, %v1382
        %v1386 = vmul.f32 %v1318, %v1382
        %v1387 = vadd.f32 %v1378, %v1383
        %v1388 = vadd.f32 %v1379, %v1384
        %v1389 = vadd.f32 %v1380, %v1385
        %v1390 = vadd.f32 %v1381, %v1386
        %v1391 = vperm.slane %v1278, 0
        %v1392 = vmul.f32 %v1319, %v1391
        %v1393 = vmul.f32 %v1320, %v1391
        %v1394 = vmul.f32 %v1321, %v1391
        %v1395 = vmul.f32 %v1322, %v1391
        %v1396 = vadd.f32 %v1387, %v1392
        %v1397 = vadd.f32 %v1388, %v1393
        %v1398 = vadd.f32 %v1389, %v1394
        %v1399 = vadd.f32 %v1390, %v1395
        %v1401 = vperm.slane %v1279, 0
        %v1403 = vrot.slane %v1401, 4
        %v1405 = vadd.f32 %v1396, %v1401
        %v1406 = vadd.f32 %v1397, %v1403
        %v1407 = vadd.f32 %v1398, %v1401
        %v1408 = vadd.f32 %v1399, %v1403
        %v1409 = vsub.f32 0.0, %v1405
        %v1410 = vsub.f32 0.0, %v1406
        %v1411 = vsub.f32 0.0, %v1407
        %v1412 = vsub.f32 0.0, %v1408
        %v1413 = vmul.f32 %v1409, 1.442695
        %v1414 = vpow.pop %v1413
        %v1415 = vmul.f32 %v1410, 1.442695
        %v1416 = vpow.pop %v1415
        %v1417 = vmul.f32 %v1411, 1.442695
        %v1418 = vpow.pop %v1417
        %v1419 = vmul.f32 %v1412, 1.442695
        %v1420 = vpow.pop %v1419
        %v1421 = vadd.f32 %v1414, 1.0
        %v1422 = vadd.f32 %v1416, 1.0
        %v1423 = vadd.f32 %v1418, 1.0
        %v1424 = vadd.f32 %v1420, 1.0
        %v1425 = vrcp.pop %v1421
        %v1426 = vrcp.pop %v1422
        %v1427 = vrcp.pop %v1423
        %v1428 = vrcp.pop %v1424
        %v1429 = vmul.f32 %v1405, %v1425
        %v1430 = vmul.f32 %v1406, %v1426
        %v1431 = vmul.f32 %v1407, %v1427
        %v1432 = vmul.f32 %v1408, %v1428
        %v1434 = vperm.slane %v1282, 0
        %1440 = vst [vmem:[#allocation1] ss:$2 sm:$0xff] %v1429
        %s1441 = scalar_lea.vmem [#allocation1], 1
        %1442 = vst [vmem:[%s1441] ss:$2 sm:$0xff] %v1430
        %s1443 = scalar_lea.vmem [#allocation1], 16
        %1444 = vst [vmem:[%s1443] ss:$2 sm:$0xff] %v1431
        %s1445 = scalar_lea.vmem [#allocation1], 17
        %1446 = vst [vmem:[%s1445] ss:$2 sm:$0xff] %v1432
        %v1447 = vld.sshfl [vmem:[#allocation1] sm:$0xff pattern:$0x75316420]
        %v1448 = vld.sshfl [vmem:[#allocation1 + $0x10] sm:$0xff pattern:$0x75316420]
        %v1449 = vsel %vm1047, %v1447, 0
        %v1451 = vsel %vm1047, %v1448, 0
        %1453 = vmatpush.msra.mxu0 0.0
        %1454 = vmatpush.msra.mxu0 0.0
        %1455 = vmatpush.msra.mxu0 0.0
        %1456 = vmatpush.msra.mxu0 0.0
        %1457 = vmatpush.msra.mxu0 0.0
        %1458 = vmatpush.msra.mxu0 0.0
        %1459 = vmatpush.msra.mxu0 0.0
        %1460 = vmatpush.msra.mxu0 0.0
        %1461 = vmatpush.msra.mxu0 0.0
        %1462 = vmatpush.msra.mxu0 0.0
        %1463 = vmatpush.msra.mxu0 0.0
        %1464 = vmatpush.msra.mxu0 0.0
        %1465 = vmatpush.msra.mxu0 0.0
        %1466 = vmatpush.msra.mxu0 0.0
        %1467 = vmatpush.msra.mxu0 %v1281
        %1468 = vmatpush.msra.mxu0 %v1280
        %1469 = vmatmul.f32.gmra.mxu0 %v1449
        %v1470 = vpop.f32.mrf.mxu0
        %v1471 = vadd.f32 %v1434, %v1470
        %1472 = vmatmul.f32.gmra.mxu0 %v1451
        %v1473 = vpop.f32.mrf.mxu0
        %v1474 = vadd.f32 %v1434, %v1473
        %1475 = vdwg.mxu0
        %v1476 = vsub.f32 0.0, %v1471
        %v1477 = vsub.f32 0.0, %v1474
        %v1478 = vmul.f32 %v1476, 1.442695
        %v1479 = vpow.pop %v1478
        %v1480 = vmul.f32 %v1477, 1.442695
        %v1481 = vpow.pop %v1480
        %v1482 = vadd.f32 %v1479, 1.0
        %v1483 = vadd.f32 %v1481, 1.0
        %v1484 = vrcp.pop %v1482
        %v1485 = vrcp.pop %v1483
        %v1486 = vmul.f32 %v1471, %v1484
        %v1487 = vmul.f32 %v1474, %v1485
        %vm1488 = vcmask 195584
        %1489 = vst.msk [vmem:[%s766] sm:$0xff] %vm1488, %v1486
        %1490 = vst.msk [vmem:[%s766 + $0x8] sm:$0xff] %vm1488, %v1487
        %v1493 = vrot.slane %v1486, 4
        %v1494 = vrot.slane %v1487, 4
        %v1497 = vld [vmem:[%s16] sm:$0xff]
        %v1498 = vld [vmem:[%s16 + $0x8] sm:$0x1]
        %v1499 = vld [vmem:[%s17] sm:$0x1]
        %v1500 = vld [vmem:[%s18] sm:$0xff]
        %v1501 = vld [vmem:[%s18 + $0x8] sm:$0xff]
        %v1502 = vld [vmem:[%s18 + $0x10] sm:$0xff]
        %v1503 = vld [vmem:[%s19] sm:$0x1]
        %vm1504 = vcmask 191488
        %1505 = vst.msk [vmem:[%s827 + $0x1] sm:$0xf] %vm1504, %v1486
        %1506 = vst.msk [vmem:[%s827 + $0x9] sm:$0xf] %vm1504, %v1493
        %1507 = vst.msk [vmem:[%s827 + $0x11] sm:$0xf] %vm1504, %v1487
        %1508 = vst.msk [vmem:[%s827 + $0x19] sm:$0xf] %vm1504, %v1494
        %v1509 = vld [vmem:[#allocation2] sm:$0xf]
        %v1510 = vld [vmem:[#allocation2 + $0x8] sm:$0xf]
        %v1511 = vld [vmem:[#allocation2 + $0x10] sm:$0xf]
        %v1512 = vld [vmem:[#allocation2 + $0x18] sm:$0xf]
        %v1513 = vld [vmem:[#allocation2 + $0x1] sm:$0xf]
        %v1514 = vld [vmem:[#allocation2 + $0x9] sm:$0xf]
        %v1515 = vld [vmem:[#allocation2 + $0x11] sm:$0xf]
        %v1516 = vld [vmem:[#allocation2 + $0x19] sm:$0xf]
        %v1517 = vld [vmem:[#allocation2 + $0x2] sm:$0xf]
        %v1518 = vld [vmem:[#allocation2 + $0xa] sm:$0xf]
        %v1519 = vld [vmem:[#allocation2 + $0x12] sm:$0xf]
        %v1520 = vld [vmem:[#allocation2 + $0x1a] sm:$0xf]
        %v1521 = vld [vmem:[%s827] sm:$0xf]
        %v1522 = vld [vmem:[%s827 + $0x8] sm:$0xf]
        %v1523 = vld [vmem:[%s827 + $0x10] sm:$0xf]
        %v1524 = vld [vmem:[%s827 + $0x18] sm:$0xf]
        %v1525 = vld [vmem:[%s827 + $0x1] sm:$0xf]
        %v1526 = vld [vmem:[%s827 + $0x9] sm:$0xf]
        %v1527 = vld [vmem:[%s827 + $0x11] sm:$0xf]
        %v1528 = vld [vmem:[%s827 + $0x19] sm:$0xf]
        %v1529 = vld [vmem:[%s827 + $0x2] sm:$0xf]
        %v1530 = vld [vmem:[%s827 + $0xa] sm:$0xf]
        %v1531 = vld [vmem:[%s827 + $0x12] sm:$0xf]
        %v1532 = vld [vmem:[%s827 + $0x1a] sm:$0xf]
        %v1533 = vld [vmem:[%s1091] sm:$0xf]
        %v1534 = vld [vmem:[%s1091 + $0x8] sm:$0xf]
        %v1535 = vld [vmem:[%s1091 + $0x10] sm:$0xf]
        %v1536 = vld [vmem:[%s1091 + $0x18] sm:$0xf]
        %v1537 = vld [vmem:[%s1091 + $0x1] sm:$0xf]
        %v1538 = vld [vmem:[%s1091 + $0x9] sm:$0xf]
        %v1539 = vld [vmem:[%s1091 + $0x11] sm:$0xf]
        %v1540 = vld [vmem:[%s1091 + $0x19] sm:$0xf]
        %v1541 = vld [vmem:[%s1091 + $0x2] sm:$0xf]
        %v1542 = vld [vmem:[%s1091 + $0xa] sm:$0xf]
        %v1543 = vld [vmem:[%s1091 + $0x12] sm:$0xf]
        %v1544 = vld [vmem:[%s1091 + $0x1a] sm:$0xf]
        %v1545 = vperm.slane %v1497, 0
        %v1546 = vmul.f32 %v1509, %v1545
        %v1547 = vmul.f32 %v1510, %v1545
        %v1548 = vmul.f32 %v1511, %v1545
        %v1549 = vmul.f32 %v1512, %v1545
        %v1550 = vperm.slane %v1497, 1
        %v1551 = vmul.f32 %v1513, %v1550
        %v1552 = vmul.f32 %v1514, %v1550
        %v1553 = vmul.f32 %v1515, %v1550
        %v1554 = vmul.f32 %v1516, %v1550
        %v1555 = vadd.f32 %v1546, %v1551
        %v1556 = vadd.f32 %v1547, %v1552
        %v1557 = vadd.f32 %v1548, %v1553
        %v1558 = vadd.f32 %v1549, %v1554
        %v1559 = vperm.slane %v1497, 2
        %v1560 = vmul.f32 %v1517, %v1559
        %v1561 = vmul.f32 %v1518, %v1559
        %v1562 = vmul.f32 %v1519, %v1559
        %v1563 = vmul.f32 %v1520, %v1559
        %v1564 = vadd.f32 %v1555, %v1560
        %v1565 = vadd.f32 %v1556, %v1561
        %v1566 = vadd.f32 %v1557, %v1562
        %v1567 = vadd.f32 %v1558, %v1563
        %v1568 = vperm.slane %v1497, 3
        %v1569 = vmul.f32 %v1521, %v1568
        %v1570 = vmul.f32 %v1522, %v1568
        %v1571 = vmul.f32 %v1523, %v1568
        %v1572 = vmul.f32 %v1524, %v1568
        %v1573 = vadd.f32 %v1564, %v1569
        %v1574 = vadd.f32 %v1565, %v1570
        %v1575 = vadd.f32 %v1566, %v1571
        %v1576 = vadd.f32 %v1567, %v1572
        %v1577 = vperm.slane %v1497, 4
        %v1578 = vmul.f32 %v1525, %v1577
        %v1579 = vmul.f32 %v1526, %v1577
        %v1580 = vmul.f32 %v1527, %v1577
        %v1581 = vmul.f32 %v1528, %v1577
        %v1582 = vadd.f32 %v1573, %v1578
        %v1583 = vadd.f32 %v1574, %v1579
        %v1584 = vadd.f32 %v1575, %v1580
        %v1585 = vadd.f32 %v1576, %v1581
        %v1586 = vperm.slane %v1497, 5
        %v1587 = vmul.f32 %v1529, %v1586
        %v1588 = vmul.f32 %v1530, %v1586
        %v1589 = vmul.f32 %v1531, %v1586
        %v1590 = vmul.f32 %v1532, %v1586
        %v1591 = vadd.f32 %v1582, %v1587
        %v1592 = vadd.f32 %v1583, %v1588
        %v1593 = vadd.f32 %v1584, %v1589
        %v1594 = vadd.f32 %v1585, %v1590
        %v1595 = vperm.slane %v1497, 6
        %v1596 = vmul.f32 %v1533, %v1595
        %v1597 = vmul.f32 %v1534, %v1595
        %v1598 = vmul.f32 %v1535, %v1595
        %v1599 = vmul.f32 %v1536, %v1595
        %v1600 = vadd.f32 %v1591, %v1596
        %v1601 = vadd.f32 %v1592, %v1597
        %v1602 = vadd.f32 %v1593, %v1598
        %v1603 = vadd.f32 %v1594, %v1599
        %v1604 = vperm.slane %v1497, 7
        %v1605 = vmul.f32 %v1537, %v1604
        %v1606 = vmul.f32 %v1538, %v1604
        %v1607 = vmul.f32 %v1539, %v1604
        %v1608 = vmul.f32 %v1540, %v1604
        %v1609 = vadd.f32 %v1600, %v1605
        %v1610 = vadd.f32 %v1601, %v1606
        %v1611 = vadd.f32 %v1602, %v1607
        %v1612 = vadd.f32 %v1603, %v1608
        %v1613 = vperm.slane %v1498, 0
        %v1614 = vmul.f32 %v1541, %v1613
        %v1615 = vmul.f32 %v1542, %v1613
        %v1616 = vmul.f32 %v1543, %v1613
        %v1617 = vmul.f32 %v1544, %v1613
        %v1618 = vadd.f32 %v1609, %v1614
        %v1619 = vadd.f32 %v1610, %v1615
        %v1620 = vadd.f32 %v1611, %v1616
        %v1621 = vadd.f32 %v1612, %v1617
        %v1623 = vperm.slane %v1499, 0
        %v1625 = vrot.slane %v1623, 4
        %v1627 = vadd.f32 %v1618, %v1623
        %v1628 = vadd.f32 %v1619, %v1625
        %v1629 = vadd.f32 %v1620, %v1623
        %v1630 = vadd.f32 %v1621, %v1625
        %v1631 = vsub.f32 0.0, %v1627
        %v1632 = vsub.f32 0.0, %v1628
        %v1633 = vsub.f32 0.0, %v1629
        %v1634 = vsub.f32 0.0, %v1630
        %v1635 = vmul.f32 %v1631, 1.442695
        %v1636 = vpow.pop %v1635
        %v1637 = vmul.f32 %v1632, 1.442695
        %v1638 = vpow.pop %v1637
        %v1639 = vmul.f32 %v1633, 1.442695
        %v1640 = vpow.pop %v1639
        %v1641 = vmul.f32 %v1634, 1.442695
        %v1642 = vpow.pop %v1641
        %v1643 = vadd.f32 %v1636, 1.0
        %v1644 = vadd.f32 %v1638, 1.0
        %v1645 = vadd.f32 %v1640, 1.0
        %v1646 = vadd.f32 %v1642, 1.0
        %v1647 = vrcp.pop %v1643
        %v1648 = vrcp.pop %v1644
        %v1649 = vrcp.pop %v1645
        %v1650 = vrcp.pop %v1646
        %v1651 = vmul.f32 %v1627, %v1647
        %v1652 = vmul.f32 %v1628, %v1648
        %v1653 = vmul.f32 %v1629, %v1649
        %v1654 = vmul.f32 %v1630, %v1650
        %v1656 = vperm.slane %v1503, 0
        %1662 = vst [vmem:[#allocation1] ss:$2 sm:$0xff] %v1651
        %s1663 = scalar_lea.vmem [#allocation1], 1
        %1664 = vst [vmem:[%s1663] ss:$2 sm:$0xff] %v1652
        %s1665 = scalar_lea.vmem [#allocation1], 16
        %1666 = vst [vmem:[%s1665] ss:$2 sm:$0xff] %v1653
        %s1667 = scalar_lea.vmem [#allocation1], 17
        %1668 = vst [vmem:[%s1667] ss:$2 sm:$0xff] %v1654
        %v1669 = vld.sshfl [vmem:[#allocation1] sm:$0xff pattern:$0x75316420]
        %v1670 = vld.sshfl [vmem:[#allocation1 + $0x10] sm:$0xff pattern:$0x75316420]
        %v1671 = vsel %vm1488, %v1669, 0
        %v1673 = vsel %vm1488, %v1670, 0
        %1675 = vmatpush.msra.mxu0 0.0
        %1676 = vmatpush.msra.mxu0 0.0
        %1677 = vmatpush.msra.mxu0 0.0
        %1678 = vmatpush.msra.mxu0 0.0
        %1679 = vmatpush.msra.mxu0 0.0
        %1680 = vmatpush.msra.mxu0 0.0
        %1681 = vmatpush.msra.mxu0 0.0
        %1682 = vmatpush.msra.mxu0 0.0
        %1683 = vmatpush.msra.mxu0 0.0
        %1684 = vmatpush.msra.mxu0 0.0
        %1685 = vmatpush.msra.mxu0 0.0
        %1686 = vmatpush.msra.mxu0 0.0
        %1687 = vmatpush.msra.mxu0 0.0
        %1688 = vmatpush.msra.mxu0 %v1502
        %1689 = vmatpush.msra.mxu0 %v1501
        %1690 = vmatpush.msra.mxu0 %v1500
        %1691 = vmatmul.f32.gmra.mxu0 %v1671
        %v1692 = vpop.f32.mrf.mxu0
        %v1693 = vadd.f32 %v1656, %v1692
        %1694 = vmatmul.f32.gmra.mxu0 %v1673
        %v1695 = vpop.f32.mrf.mxu0
        %v1696 = vadd.f32 %v1656, %v1695
        %1697 = vdwg.mxu0
        %v1698 = vsub.f32 0.0, %v1693
        %v1699 = vsub.f32 0.0, %v1696
        %v1700 = vmul.f32 %v1698, 1.442695
        %v1701 = vpow.pop %v1700
        %v1702 = vmul.f32 %v1699, 1.442695
        %v1703 = vpow.pop %v1702
        %v1704 = vadd.f32 %v1701, 1.0
        %v1705 = vadd.f32 %v1703, 1.0
        %v1706 = vrcp.pop %v1704
        %v1707 = vrcp.pop %v1705
        %v1708 = vmul.f32 %v1693, %v1706
        %v1709 = vmul.f32 %v1696, %v1707
        %1710 = vst.msk [vmem:[%s798] sm:$0xff] %vm1488, %v1708
        %1711 = vst.msk [vmem:[%s798 + $0x8] sm:$0xff] %vm1488, %v1709
        %s1712 = sand.u32 %s489, 1
        %s1713 = scalar_lea.sflag [#allocation4], %s1712
        %s1714 = sand.u32 %s489, 1
        %s1715 = smul.addr %s1714, 16
        %s1716 = scalar_lea.vmem [#allocation3], %s1715
        %s1717 = sand.u32 %s41, 1
        %s1718 = scalar_lea.sflag [#allocation6], %s1717
        %s1719 = sand.u32 %s515, 1
        %s1720 = smul.addr %s1719, 16
        %s1721 = scalar_lea.vmem [#allocation5], %s1720
        %s1722 = sand.u32 %s41, 1
        %s1723 = scalar_lea.sflag [#allocation6], %s1722
        %s1724 = sand.u32 %s541, 1
        %s1725 = smul.addr %s1724, 16
        %s1726 = scalar_lea.vmem [#allocation7], %s1725
        %p1727 = scmp.lt.s32.totalorder %s41, 1
        %s1728 = scalar_select %p1727, %s41, 1
        %s1729 = smul.addr %s1728, 2
        %s1730 = smul.addr %s1729, 8
        %s1731 = scalar_lea.vmem %s23, %s1730
        // Predicated region
        $region101: #{encoder_forward.7} parent=99 // pred_check
          %p1732 = pneg %p499
        $region102: #{encoder_forward.7} parent=99 // pred_check_branch
          %1734 = sbr.rel (%p1732) target = $region104
        $region103: #{encoder_forward.7} parent=99 // pred_region
          %1736 = vsyncadd %s1713, 0
          %s1737 = smul.addr %s41, 2
          %s1738 = smul.addr %s1737, 8
          %s1739 = scalar_lea.hbm %s20, %s1738
          %s1740 = sshll.u32 %s1716, 4
          %s1741 = int_to_ptr.vmem [resolvable:$true] %s1740
          %s1742 = sshll.u32 %s1739, 4
          %s1743 = int_to_ptr.hbm [resolvable:$true] %s1742
          %1748 = dma.vmem_to_hbm [thread:$0]  %s1741, 256, %s1743, %s1713, 128, 128, 8
        $region104: #{encoder_forward.7} parent=99 // pred_fallthru
          _
        // Predicated region
        $region105: #{encoder_forward.7} parent=99 // pred_check
          %p1749 = pneg %p525
        $region106: #{encoder_forward.7} parent=99 // pred_check_branch
          %1751 = sbr.rel (%p1749) target = $region108
        $region107: #{encoder_forward.7} parent=99 // pred_region
          %1753 = vsyncadd %s1718, 0
          %s1754 = smul.addr %s41, 2
          %s1755 = smul.addr %s1754, 8
          %s1756 = scalar_lea.hbm %s21, %s1755
          %s1757 = sshll.u32 %s1721, 4
          %s1758 = int_to_ptr.vmem [resolvable:$true] %s1757
          %s1759 = sshll.u32 %s1756, 4
          %s1760 = int_to_ptr.hbm [resolvable:$true] %s1759
          %1765 = dma.vmem_to_hbm [thread:$0]  %s1758, 256, %s1760, %s1718, 128, 128, 8
        $region108: #{encoder_forward.7} parent=99 // pred_fallthru
          _
        // Predicated region
        $region109: #{encoder_forward.7} parent=99 // pred_check
          %p1766 = pneg %p551
        $region110: #{encoder_forward.7} parent=99 // pred_check_branch
          %1768 = sbr.rel (%p1766) target = $region112
        $region111: #{encoder_forward.7} parent=99 // pred_region
          %1770 = vsyncadd %s1723, 0
          %s1771 = smul.addr %s41, 2
          %s1772 = smul.addr %s1771, 8
          %s1773 = scalar_lea.hbm %s22, %s1772
          %s1774 = sshll.u32 %s1726, 4
          %s1775 = int_to_ptr.vmem [resolvable:$true] %s1774
          %s1776 = sshll.u32 %s1773, 4
          %s1777 = int_to_ptr.hbm [resolvable:$true] %s1776
          %1782 = dma.vmem_to_hbm [thread:$0]  %s1775, 256, %s1777, %s1723, 128, 128, 8
        $region112: #{encoder_forward.7} parent=99 // pred_fallthru
          _
        // Predicated region
        $region113: #{encoder_forward.7} parent=99 // pred_check
          %p1783 = pneg %p577
        $region114: #{encoder_forward.7} parent=99 // pred_check_branch
          %1785 = sbr.rel (%p1783) target = $region116
        $region115: #{encoder_forward.7} parent=99 // pred_region
          _
        $region116: #{encoder_forward.7} parent=99 // pred_fallthru
          _
      $region100: #{encoder_forward.7} parent=5 // pred_fallthru
        _
      %p1786 = scmp.le.s32.totalorder 2, %s36
      // Predicated region
      $region117: #{encoder_forward.7} parent=5 // pred_check
        %p1787 = pneg %p1786
      $region118: #{encoder_forward.7} parent=5 // pred_check_branch
        %1789 = sbr.rel (%p1787) target = $region120
      $region119: #{encoder_forward.7} parent=5 // pred_region
        %s1790 = ssub.s32 %s36, 2
        // Predicated region
        $region121: #{encoder_forward.7} parent=119 // pred_check
          %p1791 = pneg %p505
        $region122: #{encoder_forward.7} parent=119 // pred_check_branch
          %1793 = sbr.rel (%p1791) target = $region124
        $region123: #{encoder_forward.7} parent=119 // pred_region
          %s1794 = sand.u32 %s490, 1
          %s1795 = scalar_lea.sflag [#allocation4], %s1794
          %s1796 = sand.u32 %s490, 1
          %s1797 = smul.addr %s1796, 16
          %s1798 = scalar_lea.vmem [#allocation3], %s1797
          %1800 = dma.done %s1795, 256
        $region124: #{encoder_forward.7} parent=119 // pred_fallthru
          _
        // Predicated region
        $region125: #{encoder_forward.7} parent=119 // pred_check
          %p1801 = pneg %p531
        $region126: #{encoder_forward.7} parent=119 // pred_check_branch
          %1803 = sbr.rel (%p1801) target = $region128
        $region127: #{encoder_forward.7} parent=119 // pred_region
          %s1804 = sand.u32 %s42, 1
          %s1805 = scalar_lea.sflag [#allocation6], %s1804
          %s1806 = sand.u32 %s516, 1
          %s1807 = smul.addr %s1806, 16
          %s1808 = scalar_lea.vmem [#allocation5], %s1807
          %1810 = dma.done %s1805, 256
        $region128: #{encoder_forward.7} parent=119 // pred_fallthru
          _
        // Predicated region
        $region129: #{encoder_forward.7} parent=119 // pred_check
          %p1811 = pneg %p557
        $region130: #{encoder_forward.7} parent=119 // pred_check_branch
          %1813 = sbr.rel (%p1811) target = $region132
        $region131: #{encoder_forward.7} parent=119 // pred_region
          %s1814 = sand.u32 %s42, 1
          %s1815 = scalar_lea.sflag [#allocation6], %s1814
          %s1816 = sand.u32 %s542, 1
          %s1817 = smul.addr %s1816, 16
          %s1818 = scalar_lea.vmem [#allocation7], %s1817
          %1820 = dma.done %s1815, 256
        $region132: #{encoder_forward.7} parent=119 // pred_fallthru
          _
        // Predicated region
        $region133: #{encoder_forward.7} parent=119 // pred_check
          %p1821 = pneg %p583
        $region134: #{encoder_forward.7} parent=119 // pred_check_branch
          %1823 = sbr.rel (%p1821) target = $region136
        $region135: #{encoder_forward.7} parent=119 // pred_region
          %p1824 = scmp.lt.s32.totalorder %s42, 1
          %s1825 = scalar_select %p1824, %s42, 1
          %s1826 = smul.addr %s1825, 2
          %s1827 = smul.addr %s1826, 8
          %s1828 = scalar_lea.vmem %s23, %s1827
        $region136: #{encoder_forward.7} parent=119 // pred_fallthru
          _
      $region120: #{encoder_forward.7} parent=5 // pred_fallthru
        _
    $region6: #{encoder_forward.7} parent=1 // loop_footer
      %s40 = sadd.s32 1, %s36
    $region7: #{encoder_forward.7} parent=1 // loop_footer_branch
      %35 = sbr.rel target = $region3
    $region8: #{encoder_forward.7} parent=1 // loop_exit
      _
    %1829 = vsyncpa [#allocation4], 1
    %s1830 = scalar_lea.sflag [#allocation4], 1
    %1831 = vsyncpa %s1830, 1
    %1832 = vsyncpa [#allocation6], 1
    %s1833 = scalar_lea.sflag [#allocation6], 1
    %1834 = vsyncpa %s1833, 1

// kernel: encoder_forward.9
$region0: #{encoder_forward.9}
  #allocation0 [shape = 'u32[]', space=smem, size = 0x4, offset = 0x4, fixed_abs, tag = 'smem constant byte address 0x4 - core index']
  #allocation1 [shape = 'u32[72,128]{1,0:T(1,128)}', space=vmem, size = 0x9000, scoped, tag = 'internal scratch']
  %s0 = inlined_call_operand.vmem [shape: f32[8,32], index: 0, kind: input, shape index: {}]
  %s1 = inlined_call_operand.vmem [shape: f32[32,64], index: 1, kind: input, shape index: {}]
  %s2 = inlined_call_operand.vmem [shape: f32[1,64], index: 2, kind: input, shape index: {}]
  %s3 = inlined_call_operand.vmem [shape: f32[1,64], index: 3, kind: input, shape index: {}]
  %s4 = inlined_call_operand.hbm [shape: f32[8,64], index: 4, kind: output, shape index: {0}]
  %s5 = inlined_call_operand.hbm [shape: f32[8,64], index: 5, kind: output, shape index: {1}]
  %s6 = inlined_call_operand.vmem [shape: f32[8,64], index: 6, kind: output, shape index: {2}]
  %7 = xla_tuple %s4, %s5, %s6
  %s8 = sld [smem:[#allocation0]]
  $region42: #{encoder_forward.9} parent=0
    _
  %s10 = ssub.s32 1, %s8
  %s11 = scalar_select 0, %s10, %s8
  $region1: #{encoder_forward.9} parent=0
    #allocation2 [shape = 'u8[4096]{0}', space=vmem, size = 0x1000, scoped, tag = 'output window, operand 0, single buffered']
    #allocation3 [shape = 's32[1]{0}', space=sflag, size = 0x4, scoped, tag = 'scoped memory for encoder_forward.9']
    #allocation4 [shape = 'u8[4096]{0}', space=vmem, size = 0x1000, scoped, tag = 'output window, operand 1, single buffered']
    #allocation5 [shape = 's32[1]{0}', space=sflag, size = 0x4, scoped, tag = 'scoped memory for encoder_forward.9']
    %12 = vsyncpa [#allocation3], 0
    %13 = vsyncpa [#allocation5], 0
    // Predicated region
    $region2: #{encoder_forward.9} parent=1 // pred_check
      _
    $region3: #{encoder_forward.9} parent=1 // pred_check_branch
      %15 = sbr.rel (0) target = $region5
    $region4: #{encoder_forward.9} parent=1 // pred_region
      _
    $region5: #{encoder_forward.9} parent=1 // pred_fallthru
      _
    // Predicated region
    $region6: #{encoder_forward.9} parent=1 // pred_check
      _
    $region7: #{encoder_forward.9} parent=1 // pred_check_branch
      %17 = sbr.rel (0) target = $region9
    $region8: #{encoder_forward.9} parent=1 // pred_region
      _
    $region9: #{encoder_forward.9} parent=1 // pred_fallthru
      _
    // Predicated region
    $region10: #{encoder_forward.9} parent=1 // pred_check
      _
    $region11: #{encoder_forward.9} parent=1 // pred_check_branch
      %19 = sbr.rel (0) target = $region13
    $region12: #{encoder_forward.9} parent=1 // pred_region
      _
    $region13: #{encoder_forward.9} parent=1 // pred_fallthru
      _
    // Predicated region
    $region14: #{encoder_forward.9} parent=1 // pred_check
      _
    $region15: #{encoder_forward.9} parent=1 // pred_check_branch
      %21 = sbr.rel (0) target = $region17
    $region16: #{encoder_forward.9} parent=1 // pred_region
      _
    $region17: #{encoder_forward.9} parent=1 // pred_fallthru
      _
    %v22 = vld [vmem:[%s0] sm:$0xff]
    %v23 = vld [vmem:[%s1] sm:$0xff]
    %v24 = vld [vmem:[%s1 + $0x8] sm:$0xff]
    %v25 = vld [vmem:[%s1 + $0x10] sm:$0xff]
    %v26 = vld [vmem:[%s1 + $0x18] sm:$0xff]
    %vm27 = vcmask 261120
    %v29 = vsel %vm27, %v22, 0
    %31 = vmatpush.msra.mxu0 0.0
    %32 = vmatpush.msra.mxu0 0.0
    %33 = vmatpush.msra.mxu0 0.0
    %34 = vmatpush.msra.mxu0 0.0
    %35 = vmatpush.msra.mxu0 0.0
    %36 = vmatpush.msra.mxu0 0.0
    %37 = vmatpush.msra.mxu0 0.0
    %38 = vmatpush.msra.mxu0 0.0
    %39 = vmatpush.msra.mxu0 0.0
    %40 = vmatpush.msra.mxu0 0.0
    %41 = vmatpush.msra.mxu0 0.0
    %42 = vmatpush.msra.mxu0 0.0
    %43 = vmatpush.msra.mxu0 %v26
    %44 = vmatpush.msra.mxu0 %v25
    %45 = vmatpush.msra.mxu0 %v24
    %46 = vmatpush.msra.mxu0 %v23
    %47 = vmatmul.f32.gmra.mxu0 %v29
    %v48 = vpop.f32.mrf.mxu0
    %v49 = vadd.f32 0.0, %v48
    %50 = vdwg.mxu0
    %vm51 = vcmask 523264
    %52 = vst.msk [vmem:[#allocation2] sm:$0xff] %vm51, %v49
    %v53 = vld [vmem:[%s2] sm:$0x1]
    %v55 = vperm.slane %v53, 0
    %v57 = vmul.f32 %v49, %v55
    %v58 = vld [vmem:[%s3] sm:$0x1]
    %v60 = vperm.slane %v58, 0
    %v62 = vadd.f32 %v57, %v60
    %63 = vst.msk [vmem:[#allocation4] sm:$0xff] %vm51, %v62
    %v64 = vsub.f32 0.0, %v62
    %v65 = vmul.f32 %v64, 1.442695
    %v66 = vpow.pop %v65
    %v67 = vadd.f32 %v66, 1.0
    %v68 = vrcp.pop %v67
    %v69 = vmul.f32 %v62, %v68
    %70 = vst.msk [vmem:[%s6] sm:$0xff] %vm51, %v69
    // Predicated region
    $region18: #{encoder_forward.9} parent=1 // pred_check
      _
    $region19: #{encoder_forward.9} parent=1 // pred_check_branch
      %72 = sbr.rel (0) target = $region21
    $region20: #{encoder_forward.9} parent=1 // pred_region
      %74 = vsyncadd [#allocation3], 0
      %s76 = sshll.u32 [#allocation2], 4
      %s77 = int_to_ptr.vmem [resolvable:$true] %s76
      %s78 = sshll.u32 %s4, 4
      %s79 = int_to_ptr.hbm [resolvable:$true] %s78
      %81 = dma.vmem_to_hbm [thread:$0]  %s77, 128, %s79, [#allocation3]
    $region21: #{encoder_forward.9} parent=1 // pred_fallthru
      _
    // Predicated region
    $region22: #{encoder_forward.9} parent=1 // pred_check
      _
    $region23: #{encoder_forward.9} parent=1 // pred_check_branch
      %83 = sbr.rel (0) target = $region25
    $region24: #{encoder_forward.9} parent=1 // pred_region
      %85 = vsyncadd [#allocation5], 0
      %s87 = sshll.u32 [#allocation4], 4
      %s88 = int_to_ptr.vmem [resolvable:$true] %s87
      %s89 = sshll.u32 %s5, 4
      %s90 = int_to_ptr.hbm [resolvable:$true] %s89
      %92 = dma.vmem_to_hbm [thread:$0]  %s88, 128, %s90, [#allocation5]
    $region25: #{encoder_forward.9} parent=1 // pred_fallthru
      _
    // Predicated region
    $region26: #{encoder_forward.9} parent=1 // pred_check
      _
    $region27: #{encoder_forward.9} parent=1 // pred_check_branch
      %94 = sbr.rel (0) target = $region29
    $region28: #{encoder_forward.9} parent=1 // pred_region
      _
    $region29: #{encoder_forward.9} parent=1 // pred_fallthru
      _
    // Predicated region
    $region30: #{encoder_forward.9} parent=1 // pred_check
      _
    $region31: #{encoder_forward.9} parent=1 // pred_check_branch
      %96 = sbr.rel (0) target = $region33
    $region32: #{encoder_forward.9} parent=1 // pred_region
      %98 = dma.done [#allocation3], 128
    $region33: #{encoder_forward.9} parent=1 // pred_fallthru
      _
    // Predicated region
    $region34: #{encoder_forward.9} parent=1 // pred_check
      _
    $region35: #{encoder_forward.9} parent=1 // pred_check_branch
      %100 = sbr.rel (0) target = $region37
    $region36: #{encoder_forward.9} parent=1 // pred_region
      %102 = dma.done [#allocation5], 128
    $region37: #{encoder_forward.9} parent=1 // pred_fallthru
      _
    // Predicated region
    $region38: #{encoder_forward.9} parent=1 // pred_check
      _
    $region39: #{encoder_forward.9} parent=1 // pred_check_branch
      %104 = sbr.rel (0) target = $region41
    $region40: #{encoder_forward.9} parent=1 // pred_region
      _
    $region41: #{encoder_forward.9} parent=1 // pred_fallthru
      _
    %105 = vsyncpa [#allocation3], 1
    %106 = vsyncpa [#allocation5], 1

// kernel: encoder_forward.8
$region0: #{encoder_forward.8}
  #allocation0 [shape = 'u32[]', space=smem, size = 0x4, offset = 0x4, fixed_abs, tag = 'smem constant byte address 0x4 - core index']
  #allocation1 [shape = 'u32[72,128]{1,0:T(1,128)}', space=vmem, size = 0x9000, scoped, tag = 'internal scratch']
  #allocation2 [shape = 'f32[4,4,32]{2,1,0:T(4,128)}', space=vmem, size = 0x2000, scoped, tag = 'scratch operand']
  %s0 = inlined_call_operand.vmem [shape: f32[2,2,2,24], index: 0, kind: input, shape index: {}]
  %s1 = inlined_call_operand.vmem [shape: f32[2,2,2,24], index: 1, kind: input, shape index: {}]
  %s2 = inlined_call_operand.vmem [shape: f32[2,2,2,24], index: 2, kind: input, shape index: {}]
  %s3 = inlined_call_operand.vmem [shape: f32[2,2,2,24], index: 3, kind: input, shape index: {}]
  %s4 = inlined_call_operand.vmem [shape: f32[9,24], index: 4, kind: input, shape index: {}]
  %s5 = inlined_call_operand.vmem [shape: f32[1,24], index: 5, kind: input, shape index: {}]
  %s6 = inlined_call_operand.vmem [shape: f32[24,32], index: 6, kind: input, shape index: {}]
  %s7 = inlined_call_operand.vmem [shape: f32[1,32], index: 7, kind: input, shape index: {}]
  %s8 = inlined_call_operand.vmem [shape: f32[9,32], index: 8, kind: input, shape index: {}]
  %s9 = inlined_call_operand.vmem [shape: f32[1,32], index: 9, kind: input, shape index: {}]
  %s10 = inlined_call_operand.vmem [shape: f32[32,32], index: 10, kind: input, shape index: {}]
  %s11 = inlined_call_operand.vmem [shape: f32[1,32], index: 11, kind: input, shape index: {}]
  %s12 = inlined_call_operand.hbm [shape: f32[2,4,32], index: 12, kind: output, shape index: {0}]
  %s13 = inlined_call_operand.vmem [shape: f32[2,4,32], index: 13, kind: output, shape index: {1}]
  %14 = xla_tuple %s12, %s13
  %s15 = sld [smem:[#allocation0]]
  $region89: #{encoder_forward.8} parent=0
    _
  %s17 = ssub.s32 1, %s15
  %s18 = scalar_select 0, %s17, %s15
  $region1: #{encoder_forward.8} parent=0
    #allocation3 [shape = 'u8[4096]{0}', space=vmem, size = 0x1000, scoped, tag = 'output window, operand 0']
    #allocation4 [shape = 's32[2]{0}', space=sflag, size = 0x8, scoped, tag = 'scoped memory for encoder_forward.8']
    %19 = vsyncpa [#allocation4], 0
    %s20 = scalar_lea.sflag [#allocation4], 1
    %21 = vsyncpa %s20, 0
    loop: start=0, step=1, limit=4
    $region2: #{encoder_forward.8} parent=1 // loop_pre_header
      _
    $region3: #{encoder_forward.8} parent=1 // loop_header
      %s23 = sphi 0, %s27
      %p24 = scmp.ge.s32.totalorder %s23, 4
      %s33 = sphi 0, %s35
      %s36 = sphi 0, %s33
      %s37 = sphi 0, %s36
      %s53 = sphi 0, %s37
      %s59 = sphi 0, %s61
      %s62 = sphi 0, %s59
      %s63 = sphi 0, %s62
      %s79 = sphi 0, %s63
      %s85 = sphi 0, %s87
      %s88 = sphi 0, %s85
      %s89 = sphi 0, %s88
      %s105 = sphi 0, %s89
      %s111 = sphi 0, %s113
      %s114 = sphi 0, %s111
      %s115 = sphi 0, %s114
      %s131 = sphi 0, %s115
      %s135 = sphi 0, %s135
      %s137 = sphi 0, %s135
      %s138 = sphi 0, %s137
      %s152 = sphi 0, %s138
      %s156 = sphi 0, %s156
      %s158 = sphi 0, %s156
      %s159 = sphi 0, %s158
      %s173 = sphi 0, %s159
      %s177 = sphi 0, %s177
      %s179 = sphi 0, %s177
      %s180 = sphi 0, %s179
      %s194 = sphi 0, %s180
      %s198 = sphi 0, %s198
      %s200 = sphi 0, %s198
      %s201 = sphi 0, %s200
      %s215 = sphi 0, %s201
      %s219 = sphi 0, %s219
      %s221 = sphi 0, %s219
      %s222 = sphi 0, %s221
      %s236 = sphi 0, %s222
      %s240 = sphi 0, %s240
      %s242 = sphi 0, %s240
      %s243 = sphi 0, %s242
      %s257 = sphi 0, %s243
      %s261 = sphi 0, %s261
      %s263 = sphi 0, %s261
      %s264 = sphi 0, %s263
      %s278 = sphi 0, %s264
      %s282 = sphi 0, %s282
      %s284 = sphi 0, %s282
      %s285 = sphi 0, %s284
      %s299 = sphi 0, %s285
      %s305 = sphi 0, %s307
      %s308 = sphi 0, %s305
      %s309 = sphi 0, %s308
      %s325 = sphi 0, %s309
      %s331 = sphi 0, %s333
      %s334 = sphi 0, %s331
      %s335 = sphi 0, %s334
      %s351 = sphi 0, %s335
    $region4: #{encoder_forward.8} parent=1 // loop_header_branch
      %26 = sbr.rel (%p24) target = $region8
    $region5: #{encoder_forward.8} parent=1 // loop_body
      %s28 = ssub.s32 %s23, 1
      %s29 = ssub.s32 %s23, 2
      %s30 = sadd.s32 %s23, 1
      %s31 = ssub.s32 %s23, %s30
      %p32 = scmp.eq.s32.totalorder %s31, 0
      %s34 = sadd.s32 %s33, 1
      %s35 = scalar_select %p32, %s33, %s34
      %p38 = pneg %p32
      %p39 = scmp.eq.s32.totalorder %s23, 1
      %p40 = por %p38, %p39
      %p41 = scmp.ne.s32.totalorder %s33, %s36
      %p42 = scmp.eq.s32.totalorder %s23, 0
      %p43 = por %p41, %p42
      %p44 = scmp.ne.s32.totalorder %s33, %s36
      %p45 = scmp.eq.s32.totalorder %s28, 1
      %p46 = por %p44, %p45
      %p47 = scmp.ne.s32.totalorder %s36, %s37
      %p48 = scmp.eq.s32.totalorder %s28, 0
      %p49 = por %p47, %p48
      %p50 = scmp.ne.s32.totalorder %s36, %s37
      %p51 = scmp.eq.s32.totalorder %s29, 1
      %p52 = por %p50, %p51
      %p54 = scmp.ne.s32.totalorder %s37, %s53
      %p55 = scmp.eq.s32.totalorder %s29, 0
      %p56 = por %p54, %p55
      %s57 = ssub.s32 %s23, %s30
      %p58 = scmp.eq.s32.totalorder %s57, 0
      %s60 = sadd.s32 %s59, 1
      %s61 = scalar_select %p58, %s59, %s60
      %p64 = pneg %p58
      %p65 = scmp.eq.s32.totalorder %s23, 1
      %p66 = por %p64, %p65
      %p67 = scmp.ne.s32.totalorder %s59, %s62
      %p68 = scmp.eq.s32.totalorder %s23, 0
      %p69 = por %p67, %p68
      %p70 = scmp.ne.s32.totalorder %s59, %s62
      %p71 = scmp.eq.s32.totalorder %s28, 1
      %p72 = por %p70, %p71
      %p73 = scmp.ne.s32.totalorder %s62, %s63
      %p74 = scmp.eq.s32.totalorder %s28, 0
      %p75 = por %p73, %p74
      %p76 = scmp.ne.s32.totalorder %s62, %s63
      %p77 = scmp.eq.s32.totalorder %s29, 1
      %p78 = por %p76, %p77
      %p80 = scmp.ne.s32.totalorder %s63, %s79
      %p81 = scmp.eq.s32.totalorder %s29, 0
      %p82 = por %p80, %p81
      %s83 = ssub.s32 %s23, %s30
      %p84 = scmp.eq.s32.totalorder %s83, 0
      %s86 = sadd.s32 %s85, 1
      %s87 = scalar_select %p84, %s85, %s86
      %p90 = pneg %p84
      %p91 = scmp.eq.s32.totalorder %s23, 1
      %p92 = por %p90, %p91
      %p93 = scmp.ne.s32.totalorder %s85, %s88
      %p94 = scmp.eq.s32.totalorder %s23, 0
      %p95 = por %p93, %p94
      %p96 = scmp.ne.s32.totalorder %s85, %s88
      %p97 = scmp.eq.s32.totalorder %s28, 1
      %p98 = por %p96, %p97
      %p99 = scmp.ne.s32.totalorder %s88, %s89
      %p100 = scmp.eq.s32.totalorder %s28, 0
      %p101 = por %p99, %p100
      %p102 = scmp.ne.s32.totalorder %s88, %s89
      %p103 = scmp.eq.s32.totalorder %s29, 1
      %p104 = por %p102, %p103
      %p106 = scmp.ne.s32.totalorder %s89, %s105
      %p107 = scmp.eq.s32.totalorder %s29, 0
      %p108 = por %p106, %p107
      %s109 = ssub.s32 %s23, %s30
      %p110 = scmp.eq.s32.totalorder %s109, 0
      %s112 = sadd.s32 %s111, 1
      %s113 = scalar_select %p110, %s111, %s112
      %p116 = pneg %p110
      %p117 = scmp.eq.s32.totalorder %s23, 1
      %p118 = por %p116, %p117
      %p119 = scmp.ne.s32.totalorder %s111, %s114
      %p120 = scmp.eq.s32.totalorder %s23, 0
      %p121 = por %p119, %p120
      %p122 = scmp.ne.s32.totalorder %s111, %s114
      %p123 = scmp.eq.s32.totalorder %s28, 1
      %p124 = por %p122, %p123
      %p125 = scmp.ne.s32.totalorder %s114, %s115
      %p126 = scmp.eq.s32.totalorder %s28, 0
      %p127 = por %p125, %p126
      %p128 = scmp.ne.s32.totalorder %s114, %s115
      %p129 = scmp.eq.s32.totalorder %s29, 1
      %p130 = por %p128, %p129
      %p132 = scmp.ne.s32.totalorder %s115, %s131
      %p133 = scmp.eq.s32.totalorder %s29, 0
      %p134 = por %p132, %p133
      %s136 = sadd.s32 %s135, 1
      %p139 = scmp.eq.s32.totalorder %s23, 1
      %p140 = scmp.ne.s32.totalorder %s135, %s137
      %p141 = scmp.eq.s32.totalorder %s23, 0
      %p142 = por %p140, %p141
      %p143 = scmp.ne.s32.totalorder %s135, %s137
      %p144 = scmp.eq.s32.totalorder %s28, 1
      %p145 = por %p143, %p144
      %p146 = scmp.ne.s32.totalorder %s137, %s138
      %p147 = scmp.eq.s32.totalorder %s28, 0
      %p148 = por %p146, %p147
      %p149 = scmp.ne.s32.totalorder %s137, %s138
      %p150 = scmp.eq.s32.totalorder %s29, 1
      %p151 = por %p149, %p150
      %p153 = scmp.ne.s32.totalorder %s138, %s152
      %p154 = scmp.eq.s32.totalorder %s29, 0
      %p155 = por %p153, %p154
      %s157 = sadd.s32 %s156, 1
      %p160 = scmp.eq.s32.totalorder %s23, 1
      %p161 = scmp.ne.s32.totalorder %s156, %s158
      %p162 = scmp.eq.s32.totalorder %s23, 0
      %p163 = por %p161, %p162
      %p164 = scmp.ne.s32.totalorder %s156, %s158
      %p165 = scmp.eq.s32.totalorder %s28, 1
      %p166 = por %p164, %p165
      %p167 = scmp.ne.s32.totalorder %s158, %s159
      %p168 = scmp.eq.s32.totalorder %s28, 0
      %p169 = por %p167, %p168
      %p170 = scmp.ne.s32.totalorder %s158, %s159
      %p171 = scmp.eq.s32.totalorder %s29, 1
      %p172 = por %p170, %p171
      %p174 = scmp.ne.s32.totalorder %s159, %s173
      %p175 = scmp.eq.s32.totalorder %s29, 0
      %p176 = por %p174, %p175
      %s178 = sadd.s32 %s177, 1
      %p181 = scmp.eq.s32.totalorder %s23, 1
      %p182 = scmp.ne.s32.totalorder %s177, %s179
      %p183 = scmp.eq.s32.totalorder %s23, 0
      %p184 = por %p182, %p183
      %p185 = scmp.ne.s32.totalorder %s177, %s179
      %p186 = scmp.eq.s32.totalorder %s28, 1
      %p187 = por %p185, %p186
      %p188 = scmp.ne.s32.totalorder %s179, %s180
      %p189 = scmp.eq.s32.totalorder %s28, 0
      %p190 = por %p188, %p189
      %p191 = scmp.ne.s32.totalorder %s179, %s180
      %p192 = scmp.eq.s32.totalorder %s29, 1
      %p193 = por %p191, %p192
      %p195 = scmp.ne.s32.totalorder %s180, %s194
      %p196 = scmp.eq.s32.totalorder %s29, 0
      %p197 = por %p195, %p196
      %s199 = sadd.s32 %s198, 1
      %p202 = scmp.eq.s32.totalorder %s23, 1
      %p203 = scmp.ne.s32.totalorder %s198, %s200
      %p204 = scmp.eq.s32.totalorder %s23, 0
      %p205 = por %p203, %p204
      %p206 = scmp.ne.s32.totalorder %s198, %s200
      %p207 = scmp.eq.s32.totalorder %s28, 1
      %p208 = por %p206, %p207
      %p209 = scmp.ne.s32.totalorder %s200, %s201
      %p210 = scmp.eq.s32.totalorder %s28, 0
      %p211 = por %p209, %p210
      %p212 = scmp.ne.s32.totalorder %s200, %s201
      %p213 = scmp.eq.s32.totalorder %s29, 1
      %p214 = por %p212, %p213
      %p216 = scmp.ne.s32.totalorder %s201, %s215
      %p217 = scmp.eq.s32.totalorder %s29, 0
      %p218 = por %p216, %p217
      %s220 = sadd.s32 %s219, 1
      %p223 = scmp.eq.s32.totalorder %s23, 1
      %p224 = scmp.ne.s32.totalorder %s219, %s221
      %p225 = scmp.eq.s32.totalorder %s23, 0
      %p226 = por %p224, %p225
      %p227 = scmp.ne.s32.totalorder %s219, %s221
      %p228 = scmp.eq.s32.totalorder %s28, 1
      %p229 = por %p227, %p228
      %p230 = scmp.ne.s32.totalorder %s221, %s222
      %p231 = scmp.eq.s32.totalorder %s28, 0
      %p232 = por %p230, %p231
      %p233 = scmp.ne.s32.totalorder %s221, %s222
      %p234 = scmp.eq.s32.totalorder %s29, 1
      %p235 = por %p233, %p234
      %p237 = scmp.ne.s32.totalorder %s222, %s236
      %p238 = scmp.eq.s32.totalorder %s29, 0
      %p239 = por %p237, %p238
      %s241 = sadd.s32 %s240, 1
      %p244 = scmp.eq.s32.totalorder %s23, 1
      %p245 = scmp.ne.s32.totalorder %s240, %s242
      %p246 = scmp.eq.s32.totalorder %s23, 0
      %p247 = por %p245, %p246
      %p248 = scmp.ne.s32.totalorder %s240, %s242
      %p249 = scmp.eq.s32.totalorder %s28, 1
      %p250 = por %p248, %p249
      %p251 = scmp.ne.s32.totalorder %s242, %s243
      %p252 = scmp.eq.s32.totalorder %s28, 0
      %p253 = por %p251, %p252
      %p254 = scmp.ne.s32.totalorder %s242, %s243
      %p255 = scmp.eq.s32.totalorder %s29, 1
      %p256 = por %p254, %p255
      %p258 = scmp.ne.s32.totalorder %s243, %s257
      %p259 = scmp.eq.s32.totalorder %s29, 0
      %p260 = por %p258, %p259
      %s262 = sadd.s32 %s261, 1
      %p265 = scmp.eq.s32.totalorder %s23, 1
      %p266 = scmp.ne.s32.totalorder %s261, %s263
      %p267 = scmp.eq.s32.totalorder %s23, 0
      %p268 = por %p266, %p267
      %p269 = scmp.ne.s32.totalorder %s261, %s263
      %p270 = scmp.eq.s32.totalorder %s28, 1
      %p271 = por %p269, %p270
      %p272 = scmp.ne.s32.totalorder %s263, %s264
      %p273 = scmp.eq.s32.totalorder %s28, 0
      %p274 = por %p272, %p273
      %p275 = scmp.ne.s32.totalorder %s263, %s264
      %p276 = scmp.eq.s32.totalorder %s29, 1
      %p277 = por %p275, %p276
      %p279 = scmp.ne.s32.totalorder %s264, %s278
      %p280 = scmp.eq.s32.totalorder %s29, 0
      %p281 = por %p279, %p280
      %s283 = sadd.s32 %s282, 1
      %p286 = scmp.eq.s32.totalorder %s23, 1
      %p287 = scmp.ne.s32.totalorder %s282, %s284
      %p288 = scmp.eq.s32.totalorder %s23, 0
      %p289 = por %p287, %p288
      %p290 = scmp.ne.s32.totalorder %s282, %s284
      %p291 = scmp.eq.s32.totalorder %s28, 1
      %p292 = por %p290, %p291
      %p293 = scmp.ne.s32.totalorder %s284, %s285
      %p294 = scmp.eq.s32.totalorder %s28, 0
      %p295 = por %p293, %p294
      %p296 = scmp.ne.s32.totalorder %s284, %s285
      %p297 = scmp.eq.s32.totalorder %s29, 1
      %p298 = por %p296, %p297
      %p300 = scmp.ne.s32.totalorder %s285, %s299
      %p301 = scmp.eq.s32.totalorder %s29, 0
      %p302 = por %p300, %p301
      %s303 = ssub.s32 %s23, %s30
      %p304 = scmp.eq.s32.totalorder %s303, 0
      %s306 = sadd.s32 %s305, 1
      %s307 = scalar_select %p304, %s305, %s306
      %p310 = pneg %p304
      %p311 = scmp.eq.s32.totalorder %s23, 1
      %p312 = por %p310, %p311
      %p313 = scmp.ne.s32.totalorder %s305, %s308
      %p314 = scmp.eq.s32.totalorder %s23, 0
      %p315 = por %p313, %p314
      %p316 = scmp.ne.s32.totalorder %s305, %s308
      %p317 = scmp.eq.s32.totalorder %s28, 1
      %p318 = por %p316, %p317
      %p319 = scmp.ne.s32.totalorder %s308, %s309
      %p320 = scmp.eq.s32.totalorder %s28, 0
      %p321 = por %p319, %p320
      %p322 = scmp.ne.s32.totalorder %s308, %s309
      %p323 = scmp.eq.s32.totalorder %s29, 1
      %p324 = por %p322, %p323
      %p326 = scmp.ne.s32.totalorder %s309, %s325
      %p327 = scmp.eq.s32.totalorder %s29, 0
      %p328 = por %p326, %p327
      %s329 = ssub.s32 %s23, %s30
      %p330 = scmp.eq.s32.totalorder %s329, 0
      %s332 = sadd.s32 %s331, 1
      %s333 = scalar_select %p330, %s331, %s332
      %p336 = pneg %p330
      %p337 = scmp.eq.s32.totalorder %s23, 1
      %p338 = por %p336, %p337
      %p339 = scmp.ne.s32.totalorder %s331, %s334
      %p340 = scmp.eq.s32.totalorder %s23, 0
      %p341 = por %p339, %p340
      %p342 = scmp.ne.s32.totalorder %s331, %s334
      %p343 = scmp.eq.s32.totalorder %s28, 1
      %p344 = por %p342, %p343
      %p345 = scmp.ne.s32.totalorder %s334, %s335
      %p346 = scmp.eq.s32.totalorder %s28, 0
      %p347 = por %p345, %p346
      %p348 = scmp.ne.s32.totalorder %s334, %s335
      %p349 = scmp.eq.s32.totalorder %s29, 1
      %p350 = por %p348, %p349
      %p352 = scmp.ne.s32.totalorder %s335, %s351
      %p353 = scmp.eq.s32.totalorder %s29, 0
      %p354 = por %p352, %p353
      %p355 = scmp.le.s32.totalorder 1, %s23
      %p356 = scmp.lt.s32.totalorder %s23, 3
      %p357 = pnand %p355, %p356
      %p358 = pneg %p357
      // Predicated region
      $region9: #{encoder_forward.8} parent=5 // pred_check
        _
      $region10: #{encoder_forward.8} parent=5 // pred_check_branch
        %360 = sbr.rel (%p357) target = $region12
      $region11: #{encoder_forward.8} parent=5 // pred_region
        %s361 = ssub.s32 %s23, 1
        // Predicated region
        $region13: #{encoder_forward.8} parent=11 // pred_check
          %p362 = pneg %p148
        $region14: #{encoder_forward.8} parent=11 // pred_check_branch
          %364 = sbr.rel (%p362) target = $region16
        $region15: #{encoder_forward.8} parent=11 // pred_region
          _
        $region16: #{encoder_forward.8} parent=11 // pred_fallthru
          _
        // Predicated region
        $region17: #{encoder_forward.8} parent=11 // pred_check
          %p365 = pneg %p169
        $region18: #{encoder_forward.8} parent=11 // pred_check_branch
          %367 = sbr.rel (%p365) target = $region20
        $region19: #{encoder_forward.8} parent=11 // pred_region
          _
        $region20: #{encoder_forward.8} parent=11 // pred_fallthru
          _
        // Predicated region
        $region21: #{encoder_forward.8} parent=11 // pred_check
          %p368 = pneg %p190
        $region22: #{encoder_forward.8} parent=11 // pred_check_branch
          %370 = sbr.rel (%p368) target = $region24
        $region23: #{encoder_forward.8} parent=11 // pred_region
          _
        $region24: #{encoder_forward.8} parent=11 // pred_fallthru
          _
        // Predicated region
        $region25: #{encoder_forward.8} parent=11 // pred_check
          %p371 = pneg %p211
        $region26: #{encoder_forward.8} parent=11 // pred_check_branch
          %373 = sbr.rel (%p371) target = $region28
        $region27: #{encoder_forward.8} parent=11 // pred_region
          _
        $region28: #{encoder_forward.8} parent=11 // pred_fallthru
          _
        // Predicated region
        $region29: #{encoder_forward.8} parent=11 // pred_check
          %p374 = pneg %p232
        $region30: #{encoder_forward.8} parent=11 // pred_check_branch
          %376 = sbr.rel (%p374) target = $region32
        $region31: #{encoder_forward.8} parent=11 // pred_region
          _
        $region32: #{encoder_forward.8} parent=11 // pred_fallthru
          _
        // Predicated region
        $region33: #{encoder_forward.8} parent=11 // pred_check
          %p377 = pneg %p253
        $region34: #{encoder_forward.8} parent=11 // pred_check_branch
          %379 = sbr.rel (%p377) target = $region36
        $region35: #{encoder_forward.8} parent=11 // pred_region
          _
        $region36: #{encoder_forward.8} parent=11 // pred_fallthru
          _
        // Predicated region
        $region37: #{encoder_forward.8} parent=11 // pred_check
          %p380 = pneg %p274
        $region38: #{encoder_forward.8} parent=11 // pred_check_branch
          %382 = sbr.rel (%p380) target = $region40
        $region39: #{encoder_forward.8} parent=11 // pred_region
          _
        $region40: #{encoder_forward.8} parent=11 // pred_fallthru
          _
        // Predicated region
        $region41: #{encoder_forward.8} parent=11 // pred_check
          %p383 = pneg %p295
        $region42: #{encoder_forward.8} parent=11 // pred_check_branch
          %385 = sbr.rel (%p383) target = $region44
        $region43: #{encoder_forward.8} parent=11 // pred_region
          _
        $region44: #{encoder_forward.8} parent=11 // pred_fallthru
          _
      $region12: #{encoder_forward.8} parent=5 // pred_fallthru
        _
      %p386 = scmp.lt.s32.totalorder %s23, 2
      // Predicated region
      $region45: #{encoder_forward.8} parent=5 // pred_check
        %p387 = pneg %p386
      $region46: #{encoder_forward.8} parent=5 // pred_check_branch
        %389 = sbr.rel (%p387) target = $region48
      $region47: #{encoder_forward.8} parent=5 // pred_region
        // Predicated region
        $region49: #{encoder_forward.8} parent=47 // pred_check
          %p390 = pneg %p43
        $region50: #{encoder_forward.8} parent=47 // pred_check_branch
          %392 = sbr.rel (%p390) target = $region52
        $region51: #{encoder_forward.8} parent=47 // pred_region
          %p393 = scmp.lt.s32.totalorder %s23, 1
          %s394 = scalar_select %p393, %s23, 1
          %s395 = smul.addr %s394, 2
          %s396 = smul.addr %s395, 2
          %s397 = scalar_lea.vmem %s0, %s396
        $region52: #{encoder_forward.8} parent=47 // pred_fallthru
          _
        // Predicated region
        $region53: #{encoder_forward.8} parent=47 // pred_check
          %p398 = pneg %p69
        $region54: #{encoder_forward.8} parent=47 // pred_check_branch
          %400 = sbr.rel (%p398) target = $region56
        $region55: #{encoder_forward.8} parent=47 // pred_region
          %p401 = scmp.lt.s32.totalorder %s23, 1
          %s402 = scalar_select %p401, %s23, 1
          %s403 = smul.addr %s402, 2
          %s404 = smul.addr %s403, 2
          %s405 = scalar_lea.vmem %s1, %s404
        $region56: #{encoder_forward.8} parent=47 // pred_fallthru
          _
        // Predicated region
        $region57: #{encoder_forward.8} parent=47 // pred_check
          %p406 = pneg %p95
        $region58: #{encoder_forward.8} parent=47 // pred_check_branch
          %408 = sbr.rel (%p406) target = $region60
        $region59: #{encoder_forward.8} parent=47 // pred_region
          %p409 = scmp.lt.s32.totalorder %s23, 1
          %s410 = scalar_select %p409, %s23, 1
          %s411 = smul.addr %s410, 2
          %s412 = smul.addr %s411, 2
          %s413 = scalar_lea.vmem %s2, %s412
        $region60: #{encoder_forward.8} parent=47 // pred_fallthru
          _
        // Predicated region
        $region61: #{encoder_forward.8} parent=47 // pred_check
          %p414 = pneg %p121
        $region62: #{encoder_forward.8} parent=47 // pred_check_branch
          %416 = sbr.rel (%p414) target = $region64
        $region63: #{encoder_forward.8} parent=47 // pred_region
          %p417 = scmp.lt.s32.totalorder %s23, 1
          %s418 = scalar_select %p417, %s23, 1
          %s419 = smul.addr %s418, 2
          %s420 = smul.addr %s419, 2
          %s421 = scalar_lea.vmem %s3, %s420
        $region64: #{encoder_forward.8} parent=47 // pred_fallthru
          _
      $region48: #{encoder_forward.8} parent=5 // pred_fallthru
        _
      %p422 = scmp.le.s32.totalorder 1, %s23
      %p423 = scmp.lt.s32.totalorder %s23, 3
      %p424 = pnand %p422, %p423
      %p425 = pneg %p424
      // Predicated region
      $region65: #{encoder_forward.8} parent=5 // pred_check
        _
      $region66: #{encoder_forward.8} parent=5 // pred_check_branch
        %427 = sbr.rel (%p424) target = $region68
      $region67: #{encoder_forward.8} parent=5 // pred_region
        %s428 = ssub.s32 %s23, 1
        %p429 = scmp.lt.s32.totalorder %s28, 1
        %s430 = scalar_select %p429, %s28, 1
        %s431 = smul.addr %s430, 2
        %s432 = smul.addr %s431, 2
        %s433 = scalar_lea.vmem %s0, %s432
        %p434 = pneg %p49
        %p435 = pneg %p46
        %p436 = scmp.lt.s32.totalorder %s28, 1
        %s437 = scalar_select %p436, %s28, 1
        %s438 = smul.addr %s437, 2
        %s439 = smul.addr %s438, 2
        %s440 = scalar_lea.vmem %s1, %s439
        %p441 = pneg %p75
        %p442 = pneg %p72
        %p443 = scmp.lt.s32.totalorder %s28, 1
        %s444 = scalar_select %p443, %s28, 1
        %s445 = smul.addr %s444, 2
        %s446 = smul.addr %s445, 2
        %s447 = scalar_lea.vmem %s2, %s446
        %p448 = pneg %p101
        %p449 = pneg %p98
        %p450 = scmp.lt.s32.totalorder %s28, 1
        %s451 = scalar_select %p450, %s28, 1
        %s452 = smul.addr %s451, 2
        %s453 = smul.addr %s452, 2
        %s454 = scalar_lea.vmem %s3, %s453
        %p455 = pneg %p127
        %p456 = pneg %p124
        %p457 = pneg %p148
        %p458 = pneg %p145
        %p459 = pneg %p169
        %p460 = pneg %p166
        %p461 = pneg %p190
        %p462 = pneg %p187
        %p463 = pneg %p211
        %p464 = pneg %p208
        %p465 = pneg %p232
        %p466 = pneg %p229
        %p467 = pneg %p253
        %p468 = pneg %p250
        %p469 = pneg %p274
        %p470 = pneg %p271
        %p471 = pneg %p295
        %p472 = pneg %p292
        %p473 = pneg %p321
        %p474 = pneg %p318
        %s475 = sand.u32 %s308, 1
        %s476 = scalar_lea.sflag [#allocation4], %s475
        %s477 = sand.u32 %s308, 1
        %s478 = smul.addr %s477, 4
        %s479 = scalar_lea.vmem [#allocation3], %s478
        %p480 = pneg %p347
        %p481 = pneg %p344
        %p482 = scmp.lt.s32.totalorder %s28, 1
        %s483 = scalar_select %p482, %s28, 1
        %s484 = smul.addr %s483, 4
        %s485 = scalar_lea.vmem %s13, %s484
        %p486 = scmp.lt.s32.totalorder %s28, 1
        %s487 = scalar_select %p486, %s28, 1
        %s488 = smul.addr %s487, 2
        %s489 = smul.addr %s488, 2
        %s490 = scalar_lea.vmem %s0, %s489
        %p491 = scmp.lt.s32.totalorder %s28, 1
        %s492 = scalar_select %p491, %s28, 1
        %s493 = smul.addr %s492, 2
        %s494 = smul.addr %s493, 2
        %s495 = scalar_lea.vmem %s1, %s494
        %p496 = scmp.lt.s32.totalorder %s28, 1
        %s497 = scalar_select %p496, %s28, 1
        %s498 = smul.addr %s497, 2
        %s499 = smul.addr %s498, 2
        %s500 = scalar_lea.vmem %s2, %s499
        %p501 = scmp.lt.s32.totalorder %s28, 1
        %s502 = scalar_select %p501, %s28, 1
        %s503 = smul.addr %s502, 2
        %s504 = smul.addr %s503, 2
        %s505 = scalar_lea.vmem %s3, %s504
        %p506 = scmp.lt.s32.totalorder %s28, 1
        %s507 = scalar_select %p506, %s28, 1
        %s508 = smul.addr %s507, 4
        %s509 = scalar_lea.vmem %s13, %s508
        %vm510 = vcmask 257024
        %511 = vst.msk [vmem:[#allocation2] sm:$0xf] %vm510, 0.0
        %512 = vst.msk [vmem:[#allocation2 + $0x4] sm:$0xf] %vm510, 0.0
        %513 = vst.msk [vmem:[#allocation2 + $0x8] sm:$0xf] %vm510, 0.0
        %514 = vst.msk [vmem:[#allocation2 + $0xc] sm:$0xf] %vm510, 0.0
        %v515 = vld [vmem:[%s4] sm:$0xff]
        %v516 = vld [vmem:[%s4 + $0x8] sm:$0x1]
        %v517 = vld [vmem:[%s5] sm:$0x1]
        %v518 = vld [vmem:[%s6] sm:$0xff]
        %v519 = vld [vmem:[%s6 + $0x8] sm:$0xff]
        %v520 = vld [vmem:[%s6 + $0x10] sm:$0xff]
        %v521 = vld [vmem:[%s7] sm:$0x1]
        %v522 = vld [vmem:[%s490] sm:$0x3]
        %v523 = vld [vmem:[%s490 + $0x2] sm:$0x3]
        %v524 = vld [vmem:[%s495] sm:$0x3]
        %v525 = vld [vmem:[%s495 + $0x2] sm:$0x3]
        %v526 = vld [vmem:[%s500] sm:$0x3]
        %v527 = vld [vmem:[%s500 + $0x2] sm:$0x3]
        %v528 = vld [vmem:[%s505] sm:$0x3]
        %v529 = vld [vmem:[%s505 + $0x2] sm:$0x3]
        %s530 = scalar_lea.vmem [#allocation2], 4
        %vm531 = vcmask 189440
        %532 = vst.msk [vmem:[%s530 + $0x1] sm:$0x3] %vm531, %v528
        %533 = vst.msk [vmem:[%s530 + $0x5] sm:$0x3] %vm531, %v529
        %v534 = vld [vmem:[#allocation2] sm:$0x3]
        %v535 = vld [vmem:[#allocation2 + $0x4] sm:$0x3]
        %v536 = vld [vmem:[#allocation2 + $0x1] sm:$0x3]
        %v537 = vld [vmem:[#allocation2 + $0x5] sm:$0x3]
        %v538 = vld [vmem:[%s530] sm:$0x3]
        %v539 = vld [vmem:[%s530 + $0x4] sm:$0x3]
        %v540 = vld [vmem:[%s530 + $0x1] sm:$0x3]
        %v541 = vld [vmem:[%s530 + $0x5] sm:$0x3]
        %542 = vst.msk [vmem:[%s530 + $0x1] sm:$0x3] %vm531, %v526
        %543 = vst.msk [vmem:[%s530 + $0x5] sm:$0x3] %vm531, %v527
        %v544 = vld [vmem:[#allocation2 + $0x1] sm:$0x3]
        %v545 = vld [vmem:[#allocation2 + $0x5] sm:$0x3]
        %v546 = vld [vmem:[%s530 + $0x1] sm:$0x3]
        %v547 = vld [vmem:[%s530 + $0x5] sm:$0x3]
        %548 = vst.msk [vmem:[%s530 + $0x1] sm:$0x3] %vm531, %v524
        %549 = vst.msk [vmem:[%s530 + $0x5] sm:$0x3] %vm531, %v525
        %v550 = vld [vmem:[%s530] sm:$0x3]
        %v551 = vld [vmem:[%s530 + $0x4] sm:$0x3]
        %v552 = vld [vmem:[%s530 + $0x1] sm:$0x3]
        %v553 = vld [vmem:[%s530 + $0x5] sm:$0x3]
        %554 = vst.msk [vmem:[%s530 + $0x1] sm:$0x3] %vm531, %v522
        %555 = vst.msk [vmem:[%s530 + $0x5] sm:$0x3] %vm531, %v523
        %v556 = vld [vmem:[%s530 + $0x1] sm:$0x3]
        %v557 = vld [vmem:[%s530 + $0x5] sm:$0x3]
        %v558 = vperm.slane %v515, 0
        %v559 = vmul.f32 %v534, %v558
        %v560 = vmul.f32 %v535, %v558
        %v561 = vperm.slane %v515, 1
        %v562 = vmul.f32 %v544, %v561
        %v563 = vmul.f32 %v545, %v561
        %v564 = vadd.f32 %v559, %v562
        %v565 = vadd.f32 %v560, %v563
        %v566 = vperm.slane %v515, 2
        %v567 = vmul.f32 %v536, %v566
        %v568 = vmul.f32 %v537, %v566
        %v569 = vadd.f32 %v564, %v567
        %v570 = vadd.f32 %v565, %v568
        %v571 = vperm.slane %v515, 3
        %v572 = vmul.f32 %v550, %v571
        %v573 = vmul.f32 %v551, %v571
        %v574 = vadd.f32 %v569, %v572
        %v575 = vadd.f32 %v570, %v573
        %v576 = vperm.slane %v515, 4
        %v577 = vmul.f32 %v556, %v576
        %v578 = vmul.f32 %v557, %v576
        %v579 = vadd.f32 %v574, %v577
        %v580 = vadd.f32 %v575, %v578
        %v581 = vperm.slane %v515, 5
        %v582 = vmul.f32 %v552, %v581
        %v583 = vmul.f32 %v553, %v581
        %v584 = vadd.f32 %v579, %v582
        %v585 = vadd.f32 %v580, %v583
        %v586 = vperm.slane %v515, 6
        %v587 = vmul.f32 %v538, %v586
        %v588 = vmul.f32 %v539, %v586
        %v589 = vadd.f32 %v584, %v587
        %v590 = vadd.f32 %v585, %v588
        %v591 = vperm.slane %v515, 7
        %v592 = vmul.f32 %v546, %v591
        %v593 = vmul.f32 %v547, %v591
        %v594 = vadd.f32 %v589, %v592
        %v595 = vadd.f32 %v590, %v593
        %v596 = vperm.slane %v516, 0
        %v597 = vmul.f32 %v540, %v596
        %v598 = vmul.f32 %v541, %v596
        %v599 = vadd.f32 %v594, %v597
        %v600 = vadd.f32 %v595, %v598
        %v602 = vperm.slane %v517, 0
        %v604 = vrot.slane %v602, 2
        %v606 = vadd.f32 %v599, %v602
        %v607 = vadd.f32 %v600, %v604
        %v608 = vsub.f32 0.0, %v606
        %v609 = vsub.f32 0.0, %v607
        %v610 = vmul.f32 %v608, 1.442695
        %v611 = vpow.pop %v610
        %v612 = vmul.f32 %v609, 1.442695
        %v613 = vpow.pop %v612
        %v614 = vadd.f32 %v611, 1.0
        %v615 = vadd.f32 %v613, 1.0
        %v616 = vrcp.pop %v614
        %v617 = vrcp.pop %v615
        %v618 = vmul.f32 %v606, %v616
        %v619 = vmul.f32 %v607, %v617
        %v621 = vperm.slane %v521, 0
        %625 = vst [vmem:[#allocation1] ss:$4 sm:$0xff] %v618
        %s626 = scalar_lea.vmem [#allocation1], 1
        %627 = vst [vmem:[%s626] ss:$4 sm:$0xff] %v619
        %v628 = vld.sshfl [vmem:[#allocation1] sm:$0xff pattern:$0x73625140]
        %vm629 = vcmask 195584
        %v630 = vsel %vm629, %v628, 0
        %632 = vmatpush.msra.mxu0 0.0
        %633 = vmatpush.msra.mxu0 0.0
        %634 = vmatpush.msra.mxu0 0.0
        %635 = vmatpush.msra.mxu0 0.0
        %636 = vmatpush.msra.mxu0 0.0
        %637 = vmatpush.msra.mxu0 0.0
        %638 = vmatpush.msra.mxu0 0.0
        %639 = vmatpush.msra.mxu0 0.0
        %640 = vmatpush.msra.mxu0 0.0
        %641 = vmatpush.msra.mxu0 0.0
        %642 = vmatpush.msra.mxu0 0.0
        %643 = vmatpush.msra.mxu0 0.0
        %644 = vmatpush.msra.mxu0 0.0
        %645 = vmatpush.msra.mxu0 %v520
        %646 = vmatpush.msra.mxu0 %v519
        %647 = vmatpush.msra.mxu0 %v518
        %648 = vmatmul.f32.gmra.mxu0 %v630
        %v649 = vpop.f32.mrf.mxu0
        %v650 = vadd.f32 %v621, %v649
        %651 = vdwg.mxu0
        %v652 = vsub.f32 0.0, %v650
        %v653 = vmul.f32 %v652, 1.442695
        %v654 = vpow.pop %v653
        %v655 = vadd.f32 %v654, 1.0
        %v656 = vrcp.pop %v655
        %v657 = vmul.f32 %v650, %v656
        %658 = vst.msk [vmem:[%s479] sm:$0xf] %vm510, %v657
        %v660 = vrot.slane %v657, 2
        %v662 = vld [vmem:[%s8] sm:$0xff]
        %v663 = vld [vmem:[%s8 + $0x8] sm:$0x1]
        %v664 = vld [vmem:[%s9] sm:$0x1]
        %v665 = vld [vmem:[%s10] sm:$0xff]
        %v666 = vld [vmem:[%s10 + $0x8] sm:$0xff]
        %v667 = vld [vmem:[%s10 + $0x10] sm:$0xff]
        %v668 = vld [vmem:[%s10 + $0x18] sm:$0xff]
        %v669 = vld [vmem:[%s11] sm:$0x1]
        %vm670 = vcmask 254976
        %671 = vst.msk [vmem:[%s530 + $0x1] sm:$0x3] %vm670, %v657
        %672 = vst.msk [vmem:[%s530 + $0x5] sm:$0x3] %vm670, %v660
        %v673 = vld [vmem:[#allocation2] sm:$0x3]
        %v674 = vld [vmem:[#allocation2 + $0x4] sm:$0x3]
        %v675 = vld [vmem:[#allocation2 + $0x1] sm:$0x3]
        %v676 = vld [vmem:[#allocation2 + $0x5] sm:$0x3]
        %v677 = vld [vmem:[#allocation2 + $0x2] sm:$0x3]
        %v678 = vld [vmem:[#allocation2 + $0x6] sm:$0x3]
        %v679 = vld [vmem:[%s530] sm:$0x3]
        %v680 = vld [vmem:[%s530 + $0x4] sm:$0x3]
        %v681 = vld [vmem:[%s530 + $0x1] sm:$0x3]
        %v682 = vld [vmem:[%s530 + $0x5] sm:$0x3]
        %v683 = vld [vmem:[%s530 + $0x2] sm:$0x3]
        %v684 = vld [vmem:[%s530 + $0x6] sm:$0x3]
        %s685 = scalar_lea.vmem [#allocation2], 8
        %v686 = vld [vmem:[%s685] sm:$0x3]
        %v687 = vld [vmem:[%s685 + $0x4] sm:$0x3]
        %v688 = vld [vmem:[%s685 + $0x1] sm:$0x3]
        %v689 = vld [vmem:[%s685 + $0x5] sm:$0x3]
        %v690 = vld [vmem:[%s685 + $0x2] sm:$0x3]
        %v691 = vld [vmem:[%s685 + $0x6] sm:$0x3]
        %v692 = vperm.slane %v662, 0
        %v693 = vmul.f32 %v673, %v692
        %v694 = vmul.f32 %v674, %v692
        %v695 = vperm.slane %v662, 1
        %v696 = vmul.f32 %v675, %v695
        %v697 = vmul.f32 %v676, %v695
        %v698 = vadd.f32 %v693, %v696
        %v699 = vadd.f32 %v694, %v697
        %v700 = vperm.slane %v662, 2
        %v701 = vmul.f32 %v677, %v700
        %v702 = vmul.f32 %v678, %v700
        %v703 = vadd.f32 %v698, %v701
        %v704 = vadd.f32 %v699, %v702
        %v705 = vperm.slane %v662, 3
        %v706 = vmul.f32 %v679, %v705
        %v707 = vmul.f32 %v680, %v705
        %v708 = vadd.f32 %v703, %v706
        %v709 = vadd.f32 %v704, %v707
        %v710 = vperm.slane %v662, 4
        %v711 = vmul.f32 %v681, %v710
        %v712 = vmul.f32 %v682, %v710
        %v713 = vadd.f32 %v708, %v711
        %v714 = vadd.f32 %v709, %v712
        %v715 = vperm.slane %v662, 5
        %v716 = vmul.f32 %v683, %v715
        %v717 = vmul.f32 %v684, %v715
        %v718 = vadd.f32 %v713, %v716
        %v719 = vadd.f32 %v714, %v717
        %v720 = vperm.slane %v662, 6
        %v721 = vmul.f32 %v686, %v720
        %v722 = vmul.f32 %v687, %v720
        %v723 = vadd.f32 %v718, %v721
        %v724 = vadd.f32 %v719, %v722
        %v725 = vperm.slane %v662, 7
        %v726 = vmul.f32 %v688, %v725
        %v727 = vmul.f32 %v689, %v725
        %v728 = vadd.f32 %v723, %v726
        %v729 = vadd.f32 %v724, %v727
        %v730 = vperm.slane %v663, 0
        %v731 = vmul.f32 %v690, %v730
        %v732 = vmul.f32 %v691, %v730
        %v733 = vadd.f32 %v728, %v731
        %v734 = vadd.f32 %v729, %v732
        %v736 = vperm.slane %v664, 0
        %v738 = vrot.slane %v736, 2
        %v740 = vadd.f32 %v733, %v736
        %v741 = vadd.f32 %v734, %v738
        %v742 = vsub.f32 0.0, %v740
        %v743 = vsub.f32 0.0, %v741
        %v744 = vmul.f32 %v742, 1.442695
        %v745 = vpow.pop %v744
        %v746 = vmul.f32 %v743, 1.442695
        %v747 = vpow.pop %v746
        %v748 = vadd.f32 %v745, 1.0
        %v749 = vadd.f32 %v747, 1.0
        %v750 = vrcp.pop %v748
        %v751 = vrcp.pop %v749
        %v752 = vmul.f32 %v740, %v750
        %v753 = vmul.f32 %v741, %v751
        %v755 = vperm.slane %v669, 0
        %759 = vst [vmem:[#allocation1] ss:$4 sm:$0xff] %v752
        %s760 = scalar_lea.vmem [#allocation1], 1
        %761 = vst [vmem:[%s760] ss:$4 sm:$0xff] %v753
        %v762 = vld.sshfl [vmem:[#allocation1] sm:$0xff pattern:$0x73625140]
        %vm763 = vcmask 261120
        %v764 = vsel %vm763, %v762, 0
        %766 = vmatpush.msra.mxu0 0.0
        %767 = vmatpush.msra.mxu0 0.0
        %768 = vmatpush.msra.mxu0 0.0
        %769 = vmatpush.msra.mxu0 0.0
        %770 = vmatpush.msra.mxu0 0.0
        %771 = vmatpush.msra.mxu0 0.0
        %772 = vmatpush.msra.mxu0 0.0
        %773 = vmatpush.msra.mxu0 0.0
        %774 = vmatpush.msra.mxu0 0.0
        %775 = vmatpush.msra.mxu0 0.0
        %776 = vmatpush.msra.mxu0 0.0
        %777 = vmatpush.msra.mxu0 0.0
        %778 = vmatpush.msra.mxu0 %v668
        %779 = vmatpush.msra.mxu0 %v667
        %780 = vmatpush.msra.mxu0 %v666
        %781 = vmatpush.msra.mxu0 %v665
        %782 = vmatmul.f32.gmra.mxu0 %v764
        %v783 = vpop.f32.mrf.mxu0
        %v784 = vadd.f32 %v755, %v783
        %785 = vdwg.mxu0
        %v786 = vsub.f32 0.0, %v784
        %v787 = vmul.f32 %v786, 1.442695
        %v788 = vpow.pop %v787
        %v789 = vadd.f32 %v788, 1.0
        %v790 = vrcp.pop %v789
        %v791 = vmul.f32 %v784, %v790
        %792 = vst.msk [vmem:[%s509] sm:$0xf] %vm510, %v791
        %s793 = sand.u32 %s308, 1
        %s794 = scalar_lea.sflag [#allocation4], %s793
        %s795 = sand.u32 %s308, 1
        %s796 = smul.addr %s795, 4
        %s797 = scalar_lea.vmem [#allocation3], %s796
        %p798 = scmp.lt.s32.totalorder %s28, 1
        %s799 = scalar_select %p798, %s28, 1
        %s800 = smul.addr %s799, 4
        %s801 = scalar_lea.vmem %s13, %s800
        // Predicated region
        $region69: #{encoder_forward.8} parent=67 // pred_check
          %p802 = pneg %p318
        $region70: #{encoder_forward.8} parent=67 // pred_check_branch
          %804 = sbr.rel (%p802) target = $region72
        $region71: #{encoder_forward.8} parent=67 // pred_region
          %806 = vsyncadd %s794, 0
          %s807 = smul.addr %s28, 4
          %s808 = scalar_lea.hbm %s12, %s807
          %s810 = sshll.u32 %s797, 4
          %s811 = int_to_ptr.vmem [resolvable:$true] %s810
          %s812 = sshll.u32 %s808, 4
          %s813 = int_to_ptr.hbm [resolvable:$true] %s812
          %815 = dma.vmem_to_hbm [thread:$0]  %s811, 64, %s813, %s794
        $region72: #{encoder_forward.8} parent=67 // pred_fallthru
          _
        // Predicated region
        $region73: #{encoder_forward.8} parent=67 // pred_check
          %p816 = pneg %p344
        $region74: #{encoder_forward.8} parent=67 // pred_check_branch
          %818 = sbr.rel (%p816) target = $region76
        $region75: #{encoder_forward.8} parent=67 // pred_region
          _
        $region76: #{encoder_forward.8} parent=67 // pred_fallthru
          _
      $region68: #{encoder_forward.8} parent=5 // pred_fallthru
        _
      %p819 = scmp.le.s32.totalorder 2, %s23
      // Predicated region
      $region77: #{encoder_forward.8} parent=5 // pred_check
        %p820 = pneg %p819
      $region78: #{encoder_forward.8} parent=5 // pred_check_branch
        %822 = sbr.rel (%p820) target = $region80
      $region79: #{encoder_forward.8} parent=5 // pred_region
        %s823 = ssub.s32 %s23, 2
        // Predicated region
        $region81: #{encoder_forward.8} parent=79 // pred_check
          %p824 = pneg %p324
        $region82: #{encoder_forward.8} parent=79 // pred_check_branch
          %826 = sbr.rel (%p824) target = $region84
        $region83: #{encoder_forward.8} parent=79 // pred_region
          %s827 = sand.u32 %s309, 1
          %s828 = scalar_lea.sflag [#allocation4], %s827
          %s829 = sand.u32 %s309, 1
          %s830 = smul.addr %s829, 4
          %s831 = scalar_lea.vmem [#allocation3], %s830
          %833 = dma.done %s828, 64
        $region84: #{encoder_forward.8} parent=79 // pred_fallthru
          _
        // Predicated region
        $region85: #{encoder_forward.8} parent=79 // pred_check
          %p834 = pneg %p350
        $region86: #{encoder_forward.8} parent=79 // pred_check_branch
          %836 = sbr.rel (%p834) target = $region88
        $region87: #{encoder_forward.8} parent=79 // pred_region
          %p837 = scmp.lt.s32.totalorder %s29, 1
          %s838 = scalar_select %p837, %s29, 1
          %s839 = smul.addr %s838, 4
          %s840 = scalar_lea.vmem %s13, %s839
        $region88: #{encoder_forward.8} parent=79 // pred_fallthru
          _
      $region80: #{encoder_forward.8} parent=5 // pred_fallthru
        _
    $region6: #{encoder_forward.8} parent=1 // loop_footer
      %s27 = sadd.s32 1, %s23
    $region7: #{encoder_forward.8} parent=1 // loop_footer_branch
      %22 = sbr.rel target = $region3
    $region8: #{encoder_forward.8} parent=1 // loop_exit
      _
    %841 = vsyncpa [#allocation4], 1
    %s842 = scalar_lea.sflag [#allocation4], 1
    %843 = vsyncpa %s842, 1

</llo_original>
